<compile_context>
chip_gen: v6e
topology: v6e:2x2x1
jax: 0.10.0
libtpu: 0.0.40
codegen_flags: <defaults>
</compile_context>

<pallas_src>
import functools
import math

import jax
import jax.numpy as jnp
from jax.experimental import pallas as pl
from jax.experimental.pallas import tpu as pltpu

_EPS = 1e-5
_INV_SQRT2 = 1.0 / math.sqrt(2.0)
_LANES = 128


def _round_up(x, m):
    return (x + m - 1) // m * m


def _detect_vmem_limit():
    # Generation-aware scoped-VMEM limit: ~75% of physical, clamped to a sane range.
    try:
        cap = int(pltpu.get_tpu_info().vmem_capacity_bytes)
        return min(max(cap * 3 // 4, 32 * 1024 * 1024), 96 * 1024 * 1024)
    except Exception:
        return 32 * 1024 * 1024


_VMEM_LIMIT = _detect_vmem_limit()


def _gelu(x):
    return 0.5 * x * (1.0 + jax.lax.erf(x * _INV_SQRT2))


def _bn_gelu(y, mean, inv_std, gamma, beta):
    # y: (H, W, C) f32; mean / inv_std / gamma / beta: (1, C) f32 (broadcast over H, W).
    return _gelu((y - mean) * inv_std * gamma + beta)


# --------------------------------------------------------------------------- #
# Kernel K0: first conv as a single im2col matmul (tiny real Cin)
# --------------------------------------------------------------------------- #
def _first_matmul_kernel(x_ref, w_ref, b_ref, y_ref, sum_ref, ssq_ref, *, H, W):
    cout_p = w_ref.shape[-1]
    x = x_ref[0].reshape(H * W, x_ref.shape[-1])                       # (H*W, Kp) bf16
    y = jnp.dot(x, w_ref[...], preferred_element_type=jnp.float32)     # (H*W, Cout_p) f32
    y = y + b_ref[...]
    sum_ref[...] = jnp.sum(y, axis=0, keepdims=True).reshape(1, 1, cout_p)
    ssq_ref[...] = jnp.sum(y * y, axis=0, keepdims=True).reshape(1, 1, cout_p)
    y_ref[...] = y.reshape(1, H, W, cout_p).astype(jnp.bfloat16)


# --------------------------------------------------------------------------- #
# Kernels K1-K3: BN(previous stats) + GELU + conv3x3 (+ per-image BN partial stats)
# (also used as a generic "conv only" stage via apply_bn_gelu=False)
# --------------------------------------------------------------------------- #
def _conv_stage_kernel(y_in_ref, mean_ref, istd_ref, gamma_ref, beta_ref,
                       w_ref, b_ref, y_ref, sum_ref, ssq_ref, pad_scr,
                       *, H, W, Wp, apply_bn_gelu):
    cp = pad_scr.shape[-1]
    cout_p = w_ref.shape[-1]

    # Zero only the halo (top/bottom rows, left/right columns) every step; correct under
    # "parallel" grid sharding across TensorCores (no program_id==0 init trick) and cheap.
    pad_scr[pl.ds(0, 1), :, :] = jnp.zeros((1, Wp, cp), jnp.bfloat16)
    pad_scr[pl.ds(H + 1, 2), :, :] = jnp.zeros((2, Wp, cp), jnp.bfloat16)
    pad_scr[:, pl.ds(0, 1), :] = jnp.zeros((H + 3, 1, cp), jnp.bfloat16)
    pad_scr[:, pl.ds(W + 1, Wp - W - 1), :] = jnp.zeros((H + 3, Wp - W - 1, cp), jnp.bfloat16)

    if apply_bn_gelu:
        a = _bn_gelu(y_in_ref[0].astype(jnp.float32), mean_ref[...], istd_ref[...],
                     gamma_ref[...], beta_ref[...]).astype(jnp.bfloat16)   # (H, W, Cp)
    else:
        a = y_in_ref[0]                                                    # already bf16
    pad_scr[pl.ds(1, H), pl.ds(1, W), :] = a

    # Flatten the padded image once (Wp % 8 == 0 so the collapse is layout-free); each of the
    # 9 taps is then one contiguous sublane slice feeding the MXU, accumulated in a traced f32
    # value (junk columns beyond W are dropped once at the end).
    flat = pad_scr[...].reshape((H + 3) * Wp, cp)                          # bf16
    acc = None
    for kh in range(3):
        for kw in range(3):
            off = kh * Wp + kw
            patch = flat[off:off + H * Wp]                                 # (H*Wp, Cp)
            contrib = jnp.dot(patch, w_ref[kh * 3 + kw],
                              preferred_element_type=jnp.float32)          # (H*Wp, Cout_p)
            acc = contrib if acc is None else acc + contrib

    y = acc.reshape(H, Wp, cout_p)[:, :W, :] + b_ref[...]                  # (H, W, Cout_p) f32
    sum_ref[...] = jnp.sum(y, axis=(0, 1), keepdims=True)
    ssq_ref[...] = jnp.sum(y * y, axis=(0, 1), keepdims=True)
    y_ref[...] = y.reshape(1, H, W, cout_p).astype(jnp.bfloat16)


# --------------------------------------------------------------------------- #
# Kernel K4: final BN + GELU + 2x2 max-pool (fused)
# --------------------------------------------------------------------------- #
def _bn_gelu_pool_kernel(y_in_ref, mean_ref, istd_ref, gamma_ref, beta_ref,
                         o_ref, row_scr, *, H, W):
    Ho, Wo = H // 2, W // 2
    a = _bn_gelu(y_in_ref[0].astype(jnp.float32), mean_ref[...], istd_ref[...],
                 gamma_ref[...], beta_ref[...])                            # (H, W, C) f32
    C = a.shape[-1]
    # pool along H: split the leading dim (free reshape) and reduce the pair axis
    row_scr[...] = jnp.max(a.reshape(Ho, 2, W, C), axis=1)                 # (Ho, W, C)
    # pool along W: even / odd column reads via sublane-strided pl.ds
    pooled = jnp.maximum(row_scr[:, pl.ds(0, Wo, 2), :],
                         row_scr[:, pl.ds(1, Wo, 2), :])                   # (Ho, Wo, C)
    o_ref[...] = pooled.reshape(1, Ho, Wo, C)


# --------------------------------------------------------------------------- #
# pallas_call wrappers
# --------------------------------------------------------------------------- #
def _full_spec(shape):
    nd = len(shape)
    return pl.BlockSpec(tuple(shape), lambda n, _nd=nd: (0,) * _nd)


def _per_image_spec(shape):
    blk = (1,) + tuple(shape[1:])
    zeros = (0,) * (len(shape) - 1)
    return pl.BlockSpec(blk, lambda n, _z=zeros: (n,) + _z)


def _cparams(semantics):
    return pltpu.CompilerParams(dimension_semantics=semantics,
                                vmem_limit_bytes=_VMEM_LIMIT)


def _run_first_matmul_stage(xcol, w, b):
    N, H, W, _ = xcol.shape
    cout_p = w.shape[-1]
    kern = functools.partial(_first_matmul_kernel, H=H, W=W)
    return pl.pallas_call(
        kern,
        grid=(N,),
        in_specs=[_per_image_spec(xcol.shape), _full_spec(w.shape), _full_spec(b.shape)],
        out_specs=[_per_image_spec((N, H, W, cout_p)),
                   _per_image_spec((N, 1, cout_p)),
                   _per_image_spec((N, 1, cout_p))],
        out_shape=[jax.ShapeDtypeStruct((N, H, W, cout_p), jnp.bfloat16),
                   jax.ShapeDtypeStruct((N, 1, cout_p), jnp.float32),
                   jax.ShapeDtypeStruct((N, 1, cout_p), jnp.float32)],
        compiler_params=_cparams(("parallel",)),
    )(xcol, w, b)


def _run_conv_stage(y_in, mean_in, istd_in, gamma, beta, w, b, *, apply_bn_gelu):
    N, H, W, cp = y_in.shape
    cout_p = w.shape[-1]
    Wp = _round_up(W + 2, 8)
    kern = functools.partial(_conv_stage_kernel, H=H, W=W, Wp=Wp,
                             apply_bn_gelu=apply_bn_gelu)
    return pl.pallas_call(
        kern,
        grid=(N,),
        in_specs=[_per_image_spec(y_in.shape),
                  _full_spec(mean_in.shape), _full_spec(istd_in.shape),
                  _full_spec(gamma.shape), _full_spec(beta.shape),
                  _full_spec(w.shape), _full_spec(b.shape)],
        out_specs=[_per_image_spec((N, H, W, cout_p)),
                   _per_image_spec((N, 1, cout_p)),
                   _per_image_spec((N, 1, cout_p))],
        out_shape=[jax.ShapeDtypeStruct((N, H, W, cout_p), jnp.bfloat16),
                   jax.ShapeDtypeStruct((N, 1, cout_p), jnp.float32),
                   jax.ShapeDtypeStruct((N, 1, cout_p), jnp.float32)],
        scratch_shapes=[pltpu.VMEM((H + 3, Wp, cp), jnp.bfloat16)],  # padded bf16 activation
        compiler_params=_cparams(("parallel",)),
    )(y_in, mean_in, istd_in, gamma, beta, w, b)


def _run_pool_stage(y_in, mean, istd, gamma, beta):
    N, H, W, cp = y_in.shape
    Ho, Wo = H // 2, W // 2
    kern = functools.partial(_bn_gelu_pool_kernel, H=H, W=W)
    return pl.pallas_call(
        kern,
        grid=(N,),
        in_specs=[_per_image_spec(y_in.shape),
                  _full_spec(mean.shape), _full_spec(istd.shape),
                  _full_spec(gamma.shape), _full_spec(beta.shape)],
        out_specs=_per_image_spec((N, Ho, Wo, cp)),
        out_shape=jax.ShapeDtypeStruct((N, Ho, Wo, cp), jnp.float32),
        scratch_shapes=[pltpu.VMEM((Ho, W, cp), jnp.float32)],
        compiler_params=_cparams(("parallel",)),
    )(y_in, mean, istd, gamma, beta)


# --------------------------------------------------------------------------- #
# Parameter prep, stat finalization, UnetDown forward
# --------------------------------------------------------------------------- #
def _pad_row(v, cp, fill):
    c = v.shape[0]
    return jnp.pad(v.astype(jnp.float32), (0, cp - c),
                   constant_values=fill).reshape(1, cp)


def _prep_conv_params(w_oihw, bias, cin_p, cout_p):
    cout, cin = w_oihw.shape[0], w_oihw.shape[1]
    # OIHW -> (tap = kh*3+kw, Cin_p, Cout_p), bf16 for the MXU
    w = jnp.transpose(w_oihw.astype(jnp.float32), (2, 3, 1, 0)).reshape(9, cin, cout)
    w = jnp.pad(w, ((0, 0), (0, cin_p - cin), (0, cout_p - cout))).astype(jnp.bfloat16)
    b = jnp.pad(bias.astype(jnp.float32), (0, cout_p - cout)).reshape(1, cout_p)
    return w, b


def _prep_first_matmul_params(w_oihw, bias, kp, cout_p):
    cout, cin = w_oihw.shape[0], w_oihw.shape[1]
    # OIHW -> (K = tap*Cin + ci, Cout_p), matching the im2col channel order
    w = jnp.transpose(w_oihw.astype(jnp.float32), (2, 3, 1, 0)).reshape(9 * cin, cout)
    w = jnp.pad(w, ((0, kp - 9 * cin), (0, cout_p - cout))).astype(jnp.bfloat16)
    b = jnp.pad(bias.astype(jnp.float32), (0, cout_p - cout)).reshape(1, cout_p)
    return w, b


def _build_im2col(x_nhwc, kp):
    N, H, W, cin = x_nhwc.shape
    xp = jnp.pad(x_nhwc, ((0, 0), (1, 1), (1, 1), (0, 0)))
    cols = [xp[:, kh:kh + H, kw:kw + W, :] for kh in range(3) for kw in range(3)]
    xcol = jnp.concatenate(cols, axis=-1)                       # (N, H, W, 9*Cin)
    xcol = jnp.pad(xcol, ((0, 0), (0, 0), (0, 0), (0, kp - 9 * cin)))
    return xcol.astype(jnp.bfloat16)


def _finalize_stats(sum_nc, ssq_nc, count):
    # Combine per-image partial sums (tiny N x C arrays) into batch-norm (mean, 1/std).
    s = jnp.sum(sum_nc, axis=0)                                  # (1, C)
    ss = jnp.sum(ssq_nc, axis=0)
    mean = s / count
    var = jnp.maximum(ss / count - mean * mean, 0.0)
    return mean, jax.lax.rsqrt(var + _EPS)


def init_unet_down_params(key, in_channels, out_channels):
    """4 conv-bn-gelu stages: (block1.conv1, block1.conv2, block2.conv1, block2.conv2)."""
    chans = [(in_channels, out_channels), (out_channels, out_channels),
             (out_channels, out_channels), (out_channels, out_channels)]
    stages = []
    for (cin, cout) in chans:
        key, kw, kb = jax.random.split(key, 3)
        w = jax.random.normal(kw, (cout, cin, 3, 3), jnp.float32) * 0.1   # OIHW, like PyTorch
        b = jax.random.normal(kb, (cout,), jnp.float32) * 0.1
        gamma = jnp.ones((cout,), jnp.float32)    # BatchNorm2d default init
        beta = jnp.zeros((cout,), jnp.float32)
        stages.append((w, b, gamma, beta))
    return stages


@jax.jit
def unet_down_forward(x_nchw, stages):
    """UnetDown forward: 4 x (Conv3x3 + BatchNorm2d(train batch stats) + GELU), MaxPool2d(2)."""
    N, cin, H, W = x_nchw.shape
    cout = stages[0][0].shape[0]
    cout_p = _round_up(cout, _LANES)
    count = float(N * H * W)                      # BN element count per channel

    x = jnp.transpose(x_nchw, (0, 2, 3, 1)).astype(jnp.float32)   # NCHW -> NHWC

    gbs = [(_pad_row(g, cout_p, 1.0), _pad_row(bt, cout_p, 0.0))
           for (_, _, g, bt) in stages]

    # stage 1: conv only; its BN+GELU is applied by the next (fused) kernel
    w0, b0, _, _ = stages[0]
    if 9 * cin <= _LANES:
        # tiny real Cin: single im2col matmul, K padded to 128
        kp = _LANES
        xcol = _build_im2col(x, kp)
        wm, bm = _prep_first_matmul_params(w0, b0, kp, cout_p)
        y, s, ss = _run_first_matmul_stage(xcol, wm, bm)
    else:
        # generic path for large Cin: same conv-stage kernel, BN+GELU disabled
        cin_p = _round_up(cin, _LANES)
        xb = jnp.pad(x, ((0, 0), (0, 0), (0, 0), (0, cin_p - cin))).astype(jnp.bfloat16)
        wc, bc = _prep_conv_params(w0, b0, cin_p, cout_p)
        ones = jnp.ones((1, cin_p), jnp.float32)
        zeros = jnp.zeros((1, cin_p), jnp.float32)
        y, s, ss = _run_conv_stage(xb, zeros, ones, ones, zeros, wc, bc,
                                   apply_bn_gelu=False)
    mean, istd = _finalize_stats(s, ss, count)
    gamma_prev, beta_prev = gbs[0]

    # stages 2..4: BN(prev stats) + GELU fused with the next conv
    for idx in range(1, 4):
        w, b, _, _ = stages[idx]
        wc, bc = _prep_conv_params(w, b, cout_p, cout_p)
        y, s, ss = _run_conv_stage(y, mean, istd, gamma_prev, beta_prev, wc, bc,
                                   apply_bn_gelu=True)
        mean, istd = _finalize_stats(s, ss, count)
        gamma_prev, beta_prev = gbs[idx]

    # final: BN(last) + GELU + 2x2 max-pool, all in one kernel
    out = _run_pool_stage(y, mean, istd, gamma_prev, beta_prev)    # (N, H/2, W/2, Cout_p)
    out = out[..., :cout]
    return jnp.transpose(out, (0, 3, 1, 2))                        # NHWC -> NCHW


# --------------------------------------------------------------------------- #
# Pure-JAX reference (bf16 conv operands, f32 elsewhere) for a sanity check
# --------------------------------------------------------------------------- #
def _reference_forward(x_nchw, stages):
    x = x_nchw.astype(jnp.float32)
    for (w, b, g, bt) in stages:
        y = jax.lax.conv_general_dilated(
            x.astype(jnp.bfloat16), w.astype(jnp.bfloat16),
            window_strides=(1, 1), padding=((1, 1), (1, 1)),
            dimension_numbers=("NCHW", "OIHW", "NCHW"),
            preferred_element_type=jnp.float32)
        y = y + b[None, :, None, None]
        mean = jnp.mean(y, axis=(0, 2, 3), keepdims=True)
        var = jnp.mean((y - mean) ** 2, axis=(0, 2, 3), keepdims=True)
        yh = (y - mean) * jax.lax.rsqrt(var + _EPS)
        yh = yh * g[None, :, None, None] + bt[None, :, None, None]
        x = 0.5 * yh * (1.0 + jax.lax.erf(yh * _INV_SQRT2))
    N, C, H, W = x.shape
    return x.reshape(N, C, H // 2, 2, W // 2, 2).max(axis=(3, 5))


if __name__ == "__main__":
    key = jax.random.PRNGKey(0)
    k_x, k_p = jax.random.split(key)

    N, Cin, H, W = 2, 4, 16, 16
    Cout = 8
    x = jax.random.normal(k_x, (N, Cin, H, W), jnp.float32)
    stages = init_unet_down_params(k_p, Cin, Cout)

    out = unet_down_forward(x, stages)
    out = jax.block_until_ready(out)

    assert out.shape == (N, Cout, H // 2, W // 2), out.shape
    assert jnp.isfinite(out).all()

    ref = _reference_forward(x, stages)
    max_err = float(jnp.max(jnp.abs(out - ref)))
    assert max_err < 1.5e-1, f"mismatch vs reference: max abs err = {max_err}"

    print("KERNEL_OK")
</pallas_src>

<mosaic_0001>
module attributes {stable_mosaic.version = 11 : i64} {
  func.func @_first_matmul_kernel(%arg0: i32, %arg1: memref<1x16x16x128xbf16, #tpu.memory_space<vmem>>, %arg2: memref<128x128xbf16, #tpu.memory_space<vmem>>, %arg3: memref<1x128xf32, #tpu.memory_space<vmem>>, %arg4: memref<1x16x16x128xbf16, #tpu.memory_space<vmem>>, %arg5: memref<1x1x128xf32, #tpu.memory_space<vmem>>, %arg6: memref<1x1x128xf32, #tpu.memory_space<vmem>>) attributes {dimension_semantics = [#tpu.dimension_semantics<parallel>], iteration_bounds = array<i64: 2>, scalar_prefetch = 0 : i64, scratch_operands = 0 : i64, tpu.core_type = #tpu.core_type<tc>, window_params = [{transform_indices = @transform_0, window_bounds = array<i64: 1, 16, 16, 128>}, {pipeline_mode = #tpu.pipeline_mode<synchronous>, transform_indices = @transform_1, window_bounds = array<i64: 128, 128>}, {pipeline_mode = #tpu.pipeline_mode<synchronous>, transform_indices = @transform_2, window_bounds = array<i64: 1, 128>}, {transform_indices = @transform_3, window_bounds = array<i64: 1, 16, 16, 128>}, {transform_indices = @transform_4, window_bounds = array<i64: 1, 1, 128>}, {transform_indices = @transform_5, window_bounds = array<i64: 1, 1, 128>}]} {
    %c0 = arith.constant 0 : index
    %c0_0 = arith.constant 0 : index
    %c0_1 = arith.constant 0 : index
    %c0_2 = arith.constant 0 : index
    %0 = vector.load %arg1[%c0, %c0_0, %c0_1, %c0_2] : memref<1x16x16x128xbf16, #tpu.memory_space<vmem>>, vector<1x16x16x128xbf16>
    %1 = vector.shape_cast %0 : vector<1x16x16x128xbf16> to vector<16x16x128xbf16>
    %2 = vector.shape_cast %1 : vector<16x16x128xbf16> to vector<256x128xbf16>
    %c0_3 = arith.constant 0 : index
    %c0_4 = arith.constant 0 : index
    %3 = vector.load %arg2[%c0_3, %c0_4] : memref<128x128xbf16, #tpu.memory_space<vmem>>, vector<128x128xbf16>
    %cst = arith.constant dense<0.000000e+00> : vector<256x128xf32>
    %4 = tpu.matmul %2, %3, %cst {dimension_numbers = #tpu.dot_dimension_numbers<[1], [0], [0], [1], [0, 0, 1, 1], [], []>} : vector<256x128xbf16>, vector<128x128xbf16>, vector<256x128xf32> -> vector<256x128xf32>
    %c0_5 = arith.constant 0 : index
    %c0_6 = arith.constant 0 : index
    %5 = vector.load %arg3[%c0_5, %c0_6] : memref<1x128xf32, #tpu.memory_space<vmem>>, vector<1x128xf32>
    %6 = vector.broadcast %5 : vector<1x128xf32> to vector<256x128xf32>
    %7 = arith.addf %4, %6 : vector<256x128xf32>
    %cst_7 = arith.constant dense<0.000000e+00> : vector<128xf32>
    %8 = vector.multi_reduction <add>, %7, %cst_7 [0] : vector<256x128xf32> to vector<128xf32>
    %9 = vector.shape_cast %8 : vector<128xf32> to vector<1x128xf32>
    %10 = vector.shape_cast %9 : vector<1x128xf32> to vector<1x1x128xf32>
    %c0_8 = arith.constant 0 : index
    %c0_9 = arith.constant 0 : index
    %c0_10 = arith.constant 0 : index
    %11 = vector.load %arg5[%c0_8, %c0_9, %c0_10] : memref<1x1x128xf32, #tpu.memory_space<vmem>>, vector<1x1x128xf32>
    tpu.vector_store %arg5[%c0_8, %c0_9, %c0_10], %10 {strides = array<i32>} : memref<1x1x128xf32, #tpu.memory_space<vmem>>, vector<1x1x128xf32>,
    %12 = arith.mulf %7, %7 : vector<256x128xf32>
    %cst_11 = arith.constant dense<0.000000e+00> : vector<128xf32>
    %13 = vector.multi_reduction <add>, %12, %cst_11 [0] : vector<256x128xf32> to vector<128xf32>
    %14 = vector.shape_cast %13 : vector<128xf32> to vector<1x128xf32>
    %15 = vector.shape_cast %14 : vector<1x128xf32> to vector<1x1x128xf32>
    %c0_12 = arith.constant 0 : index
    %c0_13 = arith.constant 0 : index
    %c0_14 = arith.constant 0 : index
    %16 = vector.load %arg6[%c0_12, %c0_13, %c0_14] : memref<1x1x128xf32, #tpu.memory_space<vmem>>, vector<1x1x128xf32>
    tpu.vector_store %arg6[%c0_12, %c0_13, %c0_14], %15 {strides = array<i32>} : memref<1x1x128xf32, #tpu.memory_space<vmem>>, vector<1x1x128xf32>,
    %17 = vector.shape_cast %7 : vector<256x128xf32> to vector<1x16x16x128xf32>
    %18 = arith.truncf %17 : vector<1x16x16x128xf32> to vector<1x16x16x128xbf16>
    %c0_15 = arith.constant 0 : index
    %c0_16 = arith.constant 0 : index
    %c0_17 = arith.constant 0 : index
    %c0_18 = arith.constant 0 : index
    %19 = vector.load %arg4[%c0_15, %c0_16, %c0_17, %c0_18] : memref<1x16x16x128xbf16, #tpu.memory_space<vmem>>, vector<1x16x16x128xbf16>
    tpu.vector_store %arg4[%c0_15, %c0_16, %c0_17, %c0_18], %18 {strides = array<i32>} : memref<1x16x16x128xbf16, #tpu.memory_space<vmem>>, vector<1x16x16x128xbf16>,
    return
  }
  func.func @transform_0(%arg0: i32) -> (i32, i32, i32, i32) {
    %c0_i32 = arith.constant 0 : i32
    %c0_i32_0 = arith.constant 0 : i32
    %c0_i32_1 = arith.constant 0 : i32
    %c0_i32_2 = arith.constant 0 : i32
    return %arg0, %c0_i32, %c0_i32_0, %c0_i32_1 : i32, i32, i32, i32
  }
  func.func @transform_1(%arg0: i32) -> (i32, i32) {
    %c0_i32 = arith.constant 0 : i32
    %c0_i32_0 = arith.constant 0 : i32
    %c0_i32_1 = arith.constant 0 : i32
    return %c0_i32, %c0_i32_0 : i32, i32
  }
  func.func @transform_2(%arg0: i32) -> (i32, i32) {
    %c0_i32 = arith.constant 0 : i32
    %c0_i32_0 = arith.constant 0 : i32
    %c0_i32_1 = arith.constant 0 : i32
    return %c0_i32, %c0_i32_0 : i32, i32
  }
  func.func @transform_3(%arg0: i32) -> (i32, i32, i32, i32) {
    %c0_i32 = arith.constant 0 : i32
    %c0_i32_0 = arith.constant 0 : i32
    %c0_i32_1 = arith.constant 0 : i32
    %c0_i32_2 = arith.constant 0 : i32
    return %arg0, %c0_i32, %c0_i32_0, %c0_i32_1 : i32, i32, i32, i32
  }
  func.func @transform_4(%arg0: i32) -> (i32, i32, i32) {
    %c0_i32 = arith.constant 0 : i32
    %c0_i32_0 = arith.constant 0 : i32
    %c0_i32_1 = arith.constant 0 : i32
    return %arg0, %c0_i32, %c0_i32_0 : i32, i32, i32
  }
  func.func @transform_5(%arg0: i32) -> (i32, i32, i32) {
    %c0_i32 = arith.constant 0 : i32
    %c0_i32_0 = arith.constant 0 : i32
    %c0_i32_1 = arith.constant 0 : i32
    return %arg0, %c0_i32, %c0_i32_0 : i32, i32, i32
  }
}

module attributes {stable_mosaic.version = 11 : i64} {
  func.func @_bn_gelu_pool_kernel(%arg0: i32, %arg1: memref<1x16x16x128xbf16, #tpu.memory_space<vmem>>, %arg2: memref<1x128xf32, #tpu.memory_space<vmem>>, %arg3: memref<1x128xf32, #tpu.memory_space<vmem>>, %arg4: memref<1x128xf32, #tpu.memory_space<vmem>>, %arg5: memref<1x128xf32, #tpu.memory_space<vmem>>, %arg6: memref<1x8x8x128xf32, #tpu.memory_space<vmem>>, %arg7: memref<8x16x128xf32, #tpu.memory_space<vmem>>) attributes {dimension_semantics = [#tpu.dimension_semantics<parallel>], iteration_bounds = array<i64: 2>, scalar_prefetch = 0 : i64, scratch_operands = 1 : i64, tpu.core_type = #tpu.core_type<tc>, window_params = [{transform_indices = @transform_0, window_bounds = array<i64: 1, 16, 16, 128>}, {pipeline_mode = #tpu.pipeline_mode<synchronous>, transform_indices = @transform_1, window_bounds = array<i64: 1, 128>}, {pipeline_mode = #tpu.pipeline_mode<synchronous>, transform_indices = @transform_2, window_bounds = array<i64: 1, 128>}, {pipeline_mode = #tpu.pipeline_mode<synchronous>, transform_indices = @transform_3, window_bounds = array<i64: 1, 128>}, {pipeline_mode = #tpu.pipeline_mode<synchronous>, transform_indices = @transform_4, window_bounds = array<i64: 1, 128>}, {transform_indices = @transform_5, window_bounds = array<i64: 1, 8, 8, 128>}]} {
    %c0 = arith.constant 0 : index
    %c0_0 = arith.constant 0 : index
    %c0_1 = arith.constant 0 : index
    %c0_2 = arith.constant 0 : index
    %0 = vector.load %arg1[%c0, %c0_0, %c0_1, %c0_2] : memref<1x16x16x128xbf16, #tpu.memory_space<vmem>>, vector<1x16x16x128xbf16>
    %1 = vector.shape_cast %0 : vector<1x16x16x128xbf16> to vector<16x16x128xbf16>
    %2 = arith.extf %1 : vector<16x16x128xbf16> to vector<16x16x128xf32>
    %c0_3 = arith.constant 0 : index
    %c0_4 = arith.constant 0 : index
    %3 = vector.load %arg2[%c0_3, %c0_4] : memref<1x128xf32, #tpu.memory_space<vmem>>, vector<1x128xf32>
    %c0_5 = arith.constant 0 : index
    %c0_6 = arith.constant 0 : index
    %4 = vector.load %arg3[%c0_5, %c0_6] : memref<1x128xf32, #tpu.memory_space<vmem>>, vector<1x128xf32>
    %c0_7 = arith.constant 0 : index
    %c0_8 = arith.constant 0 : index
    %5 = vector.load %arg4[%c0_7, %c0_8] : memref<1x128xf32, #tpu.memory_space<vmem>>, vector<1x128xf32>
    %c0_9 = arith.constant 0 : index
    %c0_10 = arith.constant 0 : index
    %6 = vector.load %arg5[%c0_9, %c0_10] : memref<1x128xf32, #tpu.memory_space<vmem>>, vector<1x128xf32>
    %7 = vector.shape_cast %3 : vector<1x128xf32> to vector<1x1x128xf32>
    %8 = vector.broadcast %7 : vector<1x1x128xf32> to vector<16x16x128xf32>
    %9 = arith.subf %2, %8 : vector<16x16x128xf32>
    %10 = vector.shape_cast %4 : vector<1x128xf32> to vector<1x1x128xf32>
    %11 = vector.broadcast %10 : vector<1x1x128xf32> to vector<16x16x128xf32>
    %12 = arith.mulf %9, %11 : vector<16x16x128xf32>
    %13 = vector.shape_cast %5 : vector<1x128xf32> to vector<1x1x128xf32>
    %14 = vector.broadcast %13 : vector<1x1x128xf32> to vector<16x16x128xf32>
    %15 = arith.mulf %12, %14 : vector<16x16x128xf32>
    %16 = vector.shape_cast %6 : vector<1x128xf32> to vector<1x1x128xf32>
    %17 = vector.broadcast %16 : vector<1x1x128xf32> to vector<16x16x128xf32>
    %18 = arith.addf %15, %17 : vector<16x16x128xf32>
    %cst = arith.constant 5.000000e-01 : f32
    %19 = vector.broadcast %cst : f32 to vector<16x16x128xf32>
    %20 = arith.mulf %19, %18 : vector<16x16x128xf32>
    %cst_11 = arith.constant 0.707106769 : f32
    %21 = vector.broadcast %cst_11 : f32 to vector<16x16x128xf32>
    %22 = arith.mulf %18, %21 : vector<16x16x128xf32>
    %23 = math.erf %22 : vector<16x16x128xf32>
    %cst_12 = arith.constant 1.000000e+00 : f32
    %24 = vector.broadcast %cst_12 : f32 to vector<16x16x128xf32>
    %25 = arith.addf %24, %23 : vector<16x16x128xf32>
    %26 = arith.mulf %20, %25 : vector<16x16x128xf32>
    %27 = vector.shape_cast %26 : vector<16x16x128xf32> to vector<8x2x16x128xf32>
    %cst_13 = arith.constant dense<0xFF800000> : vector<8x16x128xf32>
    %28 = vector.multi_reduction <maximumf>, %27, %cst_13 [1] : vector<8x2x16x128xf32> to vector<8x16x128xf32>
    %c0_14 = arith.constant 0 : index
    %c0_15 = arith.constant 0 : index
    %c0_16 = arith.constant 0 : index
    %29 = vector.load %arg7[%c0_14, %c0_15, %c0_16] : memref<8x16x128xf32, #tpu.memory_space<vmem>>, vector<8x16x128xf32>
    tpu.vector_store %arg7[%c0_14, %c0_15, %c0_16], %28 {strides = array<i32>} : memref<8x16x128xf32, #tpu.memory_space<vmem>>, vector<8x16x128xf32>,
    %c0_17 = arith.constant 0 : index
    %c0_18 = arith.constant 0 : index
    %c0_19 = arith.constant 0 : index
    %30 = tpu.strided_load %arg7[%c0_17, %c0_18, %c0_19] {strides = array<i32: 1, 2, 1>} : memref<8x16x128xf32, #tpu.memory_space<vmem>>, vector<8x8x128xf32>
    %c0_20 = arith.constant 0 : index
    %c1 = arith.constant 1 : index
    %c0_21 = arith.constant 0 : index
    %31 = tpu.strided_load %arg7[%c0_20, %c1, %c0_21] {strides = array<i32: 1, 2, 1>} : memref<8x16x128xf32, #tpu.memory_space<vmem>>, vector<8x8x128xf32>
    %32 = arith.maximumf %30, %31 : vector<8x8x128xf32>
    %33 = vector.shape_cast %32 : vector<8x8x128xf32> to vector<1x8x8x128xf32>
    %c0_22 = arith.constant 0 : index
    %c0_23 = arith.constant 0 : index
    %c0_24 = arith.constant 0 : index
    %c0_25 = arith.constant 0 : index
    %34 = vector.load %arg6[%c0_22, %c0_23, %c0_24, %c0_25] : memref<1x8x8x128xf32, #tpu.memory_space<vmem>>, vector<1x8x8x128xf32>
    tpu.vector_store %arg6[%c0_22, %c0_23, %c0_24, %c0_25], %33 {strides = array<i32>} : memref<1x8x8x128xf32, #tpu.memory_space<vmem>>, vector<1x8x8x128xf32>,
    return
  }
  func.func @transform_0(%arg0: i32) -> (i32, i32, i32, i32) {
    %c0_i32 = arith.constant 0 : i32
    %c0_i32_0 = arith.constant 0 : i32
    %c0_i32_1 = arith.constant 0 : i32
    %c0_i32_2 = arith.constant 0 : i32
    return %arg0, %c0_i32, %c0_i32_0, %c0_i32_1 : i32, i32, i32, i32
  }
  func.func @transform_1(%arg0: i32) -> (i32, i32) {
    %c0_i32 = arith.constant 0 : i32
    %c0_i32_0 = arith.constant 0 : i32
    %c0_i32_1 = arith.constant 0 : i32
    return %c0_i32, %c0_i32_0 : i32, i32
  }
  func.func @transform_2(%arg0: i32) -> (i32, i32) {
    %c0_i32 = arith.constant 0 : i32
    %c0_i32_0 = arith.constant 0 : i32
    %c0_i32_1 = arith.constant 0 : i32
    return %c0_i32, %c0_i32_0 : i32, i32
  }
  func.func @transform_3(%arg0: i32) -> (i32, i32) {
    %c0_i32 = arith.constant 0 : i32
    %c0_i32_0 = arith.constant 0 : i32
    %c0_i32_1 = arith.constant 0 : i32
    return %c0_i32, %c0_i32_0 : i32, i32
  }
  func.func @transform_4(%arg0: i32) -> (i32, i32) {
    %c0_i32 = arith.constant 0 : i32
    %c0_i32_0 = arith.constant 0 : i32
    %c0_i32_1 = arith.constant 0 : i32
    return %c0_i32, %c0_i32_0 : i32, i32
  }
  func.func @transform_5(%arg0: i32) -> (i32, i32, i32, i32) {
    %c0_i32 = arith.constant 0 : i32
    %c0_i32_0 = arith.constant 0 : i32
    %c0_i32_1 = arith.constant 0 : i32
    %c0_i32_2 = arith.constant 0 : i32
    return %arg0, %c0_i32, %c0_i32_0, %c0_i32_1 : i32, i32, i32, i32
  }
}

module attributes {stable_mosaic.version = 11 : i64} {
  func.func @_conv_stage_kernel(%arg0: i32, %arg1: memref<1x16x16x128xbf16, #tpu.memory_space<vmem>>, %arg2: memref<1x128xf32, #tpu.memory_space<vmem>>, %arg3: memref<1x128xf32, #tpu.memory_space<vmem>>, %arg4: memref<1x128xf32, #tpu.memory_space<vmem>>, %arg5: memref<1x128xf32, #tpu.memory_space<vmem>>, %arg6: memref<9x128x128xbf16, #tpu.memory_space<vmem>>, %arg7: memref<1x128xf32, #tpu.memory_space<vmem>>, %arg8: memref<1x16x16x128xbf16, #tpu.memory_space<vmem>>, %arg9: memref<1x1x128xf32, #tpu.memory_space<vmem>>, %arg10: memref<1x1x128xf32, #tpu.memory_space<vmem>>, %arg11: memref<19x24x128xbf16, #tpu.memory_space<vmem>>) attributes {dimension_semantics = [#tpu.dimension_semantics<parallel>], iteration_bounds = array<i64: 2>, scalar_prefetch = 0 : i64, scratch_operands = 1 : i64, tpu.core_type = #tpu.core_type<tc>, window_params = [{transform_indices = @transform_0, window_bounds = array<i64: 1, 16, 16, 128>}, {pipeline_mode = #tpu.pipeline_mode<synchronous>, transform_indices = @transform_1, window_bounds = array<i64: 1, 128>}, {pipeline_mode = #tpu.pipeline_mode<synchronous>, transform_indices = @transform_2, window_bounds = array<i64: 1, 128>}, {pipeline_mode = #tpu.pipeline_mode<synchronous>, transform_indices = @transform_3, window_bounds = array<i64: 1, 128>}, {pipeline_mode = #tpu.pipeline_mode<synchronous>, transform_indices = @transform_4, window_bounds = array<i64: 1, 128>}, {pipeline_mode = #tpu.pipeline_mode<synchronous>, transform_indices = @transform_5, window_bounds = array<i64: 9, 128, 128>}, {pipeline_mode = #tpu.pipeline_mode<synchronous>, transform_indices = @transform_6, window_bounds = array<i64: 1, 128>}, {transform_indices = @transform_7, window_bounds = array<i64: 1, 16, 16, 128>}, {transform_indices = @transform_8, window_bounds = array<i64: 1, 1, 128>}, {transform_indices = @transform_9, window_bounds = array<i64: 1, 1, 128>}]} {
    %cst = arith.constant 0.000000e+00 : bf16
    %0 = vector.broadcast %cst : bf16 to vector<1x24x128xbf16>
    %c0 = arith.constant 0 : index
    %c0_0 = arith.constant 0 : index
    %c0_1 = arith.constant 0 : index
    %1 = vector.load %arg11[%c0, %c0_0, %c0_1] : memref<19x24x128xbf16, #tpu.memory_space<vmem>>, vector<1x24x128xbf16>
    tpu.vector_store %arg11[%c0, %c0_0, %c0_1], %0 {strides = array<i32>} : memref<19x24x128xbf16, #tpu.memory_space<vmem>>, vector<1x24x128xbf16>,
    %cst_2 = arith.constant 0.000000e+00 : bf16
    %2 = vector.broadcast %cst_2 : bf16 to vector<2x24x128xbf16>
    %c17 = arith.constant 17 : index
    %c0_3 = arith.constant 0 : index
    %c0_4 = arith.constant 0 : index
    %3 = vector.load %arg11[%c17, %c0_3, %c0_4] : memref<19x24x128xbf16, #tpu.memory_space<vmem>>, vector<2x24x128xbf16>
    tpu.vector_store %arg11[%c17, %c0_3, %c0_4], %2 {strides = array<i32>} : memref<19x24x128xbf16, #tpu.memory_space<vmem>>, vector<2x24x128xbf16>,
    %cst_5 = arith.constant 0.000000e+00 : bf16
    %4 = vector.broadcast %cst_5 : bf16 to vector<19x1x128xbf16>
    %c0_6 = arith.constant 0 : index
    %c0_7 = arith.constant 0 : index
    %c0_8 = arith.constant 0 : index
    %5 = vector.load %arg11[%c0_6, %c0_7, %c0_8] : memref<19x24x128xbf16, #tpu.memory_space<vmem>>, vector<19x1x128xbf16>
    tpu.vector_store %arg11[%c0_6, %c0_7, %c0_8], %4 {strides = array<i32>} : memref<19x24x128xbf16, #tpu.memory_space<vmem>>, vector<19x1x128xbf16>,
    %cst_9 = arith.constant 0.000000e+00 : bf16
    %6 = vector.broadcast %cst_9 : bf16 to vector<19x7x128xbf16>
    %c0_10 = arith.constant 0 : index
    %c17_11 = arith.constant 17 : index
    %c0_12 = arith.constant 0 : index
    %7 = vector.load %arg11[%c0_10, %c17_11, %c0_12] : memref<19x24x128xbf16, #tpu.memory_space<vmem>>, vector<19x7x128xbf16>
    tpu.vector_store %arg11[%c0_10, %c17_11, %c0_12], %6 {strides = array<i32>} : memref<19x24x128xbf16, #tpu.memory_space<vmem>>, vector<19x7x128xbf16>,
    %c0_13 = arith.constant 0 : index
    %c0_14 = arith.constant 0 : index
    %c0_15 = arith.constant 0 : index
    %c0_16 = arith.constant 0 : index
    %8 = vector.load %arg1[%c0_13, %c0_14, %c0_15, %c0_16] : memref<1x16x16x128xbf16, #tpu.memory_space<vmem>>, vector<1x16x16x128xbf16>
    %9 = vector.shape_cast %8 : vector<1x16x16x128xbf16> to vector<16x16x128xbf16>
    %10 = arith.extf %9 : vector<16x16x128xbf16> to vector<16x16x128xf32>
    %c0_17 = arith.constant 0 : index
    %c0_18 = arith.constant 0 : index
    %11 = vector.load %arg2[%c0_17, %c0_18] : memref<1x128xf32, #tpu.memory_space<vmem>>, vector<1x128xf32>
    %c0_19 = arith.constant 0 : index
    %c0_20 = arith.constant 0 : index
    %12 = vector.load %arg3[%c0_19, %c0_20] : memref<1x128xf32, #tpu.memory_space<vmem>>, vector<1x128xf32>
    %c0_21 = arith.constant 0 : index
    %c0_22 = arith.constant 0 : index
    %13 = vector.load %arg4[%c0_21, %c0_22] : memref<1x128xf32, #tpu.memory_space<vmem>>, vector<1x128xf32>
    %c0_23 = arith.constant 0 : index
    %c0_24 = arith.constant 0 : index
    %14 = vector.load %arg5[%c0_23, %c0_24] : memref<1x128xf32, #tpu.memory_space<vmem>>, vector<1x128xf32>
    %15 = vector.shape_cast %11 : vector<1x128xf32> to vector<1x1x128xf32>
    %16 = vector.broadcast %15 : vector<1x1x128xf32> to vector<16x16x128xf32>
    %17 = arith.subf %10, %16 : vector<16x16x128xf32>
    %18 = vector.shape_cast %12 : vector<1x128xf32> to vector<1x1x128xf32>
    %19 = vector.broadcast %18 : vector<1x1x128xf32> to vector<16x16x128xf32>
    %20 = arith.mulf %17, %19 : vector<16x16x128xf32>
    %21 = vector.shape_cast %13 : vector<1x128xf32> to vector<1x1x128xf32>
    %22 = vector.broadcast %21 : vector<1x1x128xf32> to vector<16x16x128xf32>
    %23 = arith.mulf %20, %22 : vector<16x16x128xf32>
    %24 = vector.shape_cast %14 : vector<1x128xf32> to vector<1x1x128xf32>
    %25 = vector.broadcast %24 : vector<1x1x128xf32> to vector<16x16x128xf32>
    %26 = arith.addf %23, %25 : vector<16x16x128xf32>
    %cst_25 = arith.constant 5.000000e-01 : f32
    %27 = vector.broadcast %cst_25 : f32 to vector<16x16x128xf32>
    %28 = arith.mulf %27, %26 : vector<16x16x128xf32>
    %cst_26 = arith.constant 0.707106769 : f32
    %29 = vector.broadcast %cst_26 : f32 to vector<16x16x128xf32>
    %30 = arith.mulf %26, %29 : vector<16x16x128xf32>
    %31 = math.erf %30 : vector<16x16x128xf32>
    %cst_27 = arith.constant 1.000000e+00 : f32
    %32 = vector.broadcast %cst_27 : f32 to vector<16x16x128xf32>
    %33 = arith.addf %32, %31 : vector<16x16x128xf32>
    %34 = arith.mulf %28, %33 : vector<16x16x128xf32>
    %35 = arith.truncf %34 : vector<16x16x128xf32> to vector<16x16x128xbf16>
    %c1 = arith.constant 1 : index
    %c1_28 = arith.constant 1 : index
    %c0_29 = arith.constant 0 : index
    %36 = vector.load %arg11[%c1, %c1_28, %c0_29] : memref<19x24x128xbf16, #tpu.memory_space<vmem>>, vector<16x16x128xbf16>
    tpu.vector_store %arg11[%c1, %c1_28, %c0_29], %35 {strides = array<i32>} : memref<19x24x128xbf16, #tpu.memory_space<vmem>>, vector<16x16x128xbf16>,
    %c0_30 = arith.constant 0 : index
    %c0_31 = arith.constant 0 : index
    %c0_32 = arith.constant 0 : index
    %37 = vector.load %arg11[%c0_30, %c0_31, %c0_32] : memref<19x24x128xbf16, #tpu.memory_space<vmem>>, vector<19x24x128xbf16>
    %38 = vector.shape_cast %37 : vector<19x24x128xbf16> to vector<456x128xbf16>
    %39 = vector.extract_strided_slice %38 {offsets = [0, 0], sizes = [384, 128], strides = [1, 1]} : vector<456x128xbf16> to vector<384x128xbf16>
    %c0_33 = arith.constant 0 : index
    %c0_34 = arith.constant 0 : index
    %c0_35 = arith.constant 0 : index
    %40 = vector.load %arg6[%c0_33, %c0_34, %c0_35] : memref<9x128x128xbf16, #tpu.memory_space<vmem>>, vector<1x128x128xbf16>
    %41 = vector.shape_cast %40 : vector<1x128x128xbf16> to vector<128x128xbf16>
    %cst_36 = arith.constant dense<0.000000e+00> : vector<384x128xf32>
    %42 = tpu.matmul %39, %41, %cst_36 {dimension_numbers = #tpu.dot_dimension_numbers<[1], [0], [0], [1], [0, 0, 1, 1], [], []>} : vector<384x128xbf16>, vector<128x128xbf16>, vector<384x128xf32> -> vector<384x128xf32>
    %43 = vector.extract_strided_slice %38 {offsets = [1, 0], sizes = [384, 128], strides = [1, 1]} : vector<456x128xbf16> to vector<384x128xbf16>
    %c1_37 = arith.constant 1 : index
    %c0_38 = arith.constant 0 : index
    %c0_39 = arith.constant 0 : index
    %44 = vector.load %arg6[%c1_37, %c0_38, %c0_39] : memref<9x128x128xbf16, #tpu.memory_space<vmem>>, vector<1x128x128xbf16>
    %45 = vector.shape_cast %44 : vector<1x128x128xbf16> to vector<128x128xbf16>
    %cst_40 = arith.constant dense<0.000000e+00> : vector<384x128xf32>
    %46 = tpu.matmul %43, %45, %cst_40 {dimension_numbers = #tpu.dot_dimension_numbers<[1], [0], [0], [1], [0, 0, 1, 1], [], []>} : vector<384x128xbf16>, vector<128x128xbf16>, vector<384x128xf32> -> vector<384x128xf32>
    %47 = arith.addf %42, %46 : vector<384x128xf32>
    %48 = vector.extract_strided_slice %38 {offsets = [2, 0], sizes = [384, 128], strides = [1, 1]} : vector<456x128xbf16> to vector<384x128xbf16>
    %c2 = arith.constant 2 : index
    %c0_41 = arith.constant 0 : index
    %c0_42 = arith.constant 0 : index
    %49 = vector.load %arg6[%c2, %c0_41, %c0_42] : memref<9x128x128xbf16, #tpu.memory_space<vmem>>, vector<1x128x128xbf16>
    %50 = vector.shape_cast %49 : vector<1x128x128xbf16> to vector<128x128xbf16>
    %cst_43 = arith.constant dense<0.000000e+00> : vector<384x128xf32>
    %51 = tpu.matmul %48, %50, %cst_43 {dimension_numbers = #tpu.dot_dimension_numbers<[1], [0], [0], [1], [0, 0, 1, 1], [], []>} : vector<384x128xbf16>, vector<128x128xbf16>, vector<384x128xf32> -> vector<384x128xf32>
    %52 = arith.addf %47, %51 : vector<384x128xf32>
    %53 = vector.extract_strided_slice %38 {offsets = [24, 0], sizes = [384, 128], strides = [1, 1]} : vector<456x128xbf16> to vector<384x128xbf16>
    %c3 = arith.constant 3 : index
    %c0_44 = arith.constant 0 : index
    %c0_45 = arith.constant 0 : index
    %54 = vector.load %arg6[%c3, %c0_44, %c0_45] : memref<9x128x128xbf16, #tpu.memory_space<vmem>>, vector<1x128x128xbf16>
    %55 = vector.shape_cast %54 : vector<1x128x128xbf16> to vector<128x128xbf16>
    %cst_46 = arith.constant dense<0.000000e+00> : vector<384x128xf32>
    %56 = tpu.matmul %53, %55, %cst_46 {dimension_numbers = #tpu.dot_dimension_numbers<[1], [0], [0], [1], [0, 0, 1, 1], [], []>} : vector<384x128xbf16>, vector<128x128xbf16>, vector<384x128xf32> -> vector<384x128xf32>
    %57 = arith.addf %52, %56 : vector<384x128xf32>
    %58 = vector.extract_strided_slice %38 {offsets = [25, 0], sizes = [384, 128], strides = [1, 1]} : vector<456x128xbf16> to vector<384x128xbf16>
    %c4 = arith.constant 4 : index
    %c0_47 = arith.constant 0 : index
    %c0_48 = arith.constant 0 : index
    %59 = vector.load %arg6[%c4, %c0_47, %c0_48] : memref<9x128x128xbf16, #tpu.memory_space<vmem>>, vector<1x128x128xbf16>
    %60 = vector.shape_cast %59 : vector<1x128x128xbf16> to vector<128x128xbf16>
    %cst_49 = arith.constant dense<0.000000e+00> : vector<384x128xf32>
    %61 = tpu.matmul %58, %60, %cst_49 {dimension_numbers = #tpu.dot_dimension_numbers<[1], [0], [0], [1], [0, 0, 1, 1], [], []>} : vector<384x128xbf16>, vector<128x128xbf16>, vector<384x128xf32> -> vector<384x128xf32>
    %62 = arith.addf %57, %61 : vector<384x128xf32>
    %63 = vector.extract_strided_slice %38 {offsets = [26, 0], sizes = [384, 128], strides = [1, 1]} : vector<456x128xbf16> to vector<384x128xbf16>
    %c5 = arith.constant 5 : index
    %c0_50 = arith.constant 0 : index
    %c0_51 = arith.constant 0 : index
    %64 = vector.load %arg6[%c5, %c0_50, %c0_51] : memref<9x128x128xbf16, #tpu.memory_space<vmem>>, vector<1x128x128xbf16>
    %65 = vector.shape_cast %64 : vector<1x128x128xbf16> to vector<128x128xbf16>
    %cst_52 = arith.constant dense<0.000000e+00> : vector<384x128xf32>
    %66 = tpu.matmul %63, %65, %cst_52 {dimension_numbers = #tpu.dot_dimension_numbers<[1], [0], [0], [1], [0, 0, 1, 1], [], []>} : vector<384x128xbf16>, vector<128x128xbf16>, vector<384x128xf32> -> vector<384x128xf32>
    %67 = arith.addf %62, %66 : vector<384x128xf32>
    %68 = vector.extract_strided_slice %38 {offsets = [48, 0], sizes = [384, 128], strides = [1, 1]} : vector<456x128xbf16> to vector<384x128xbf16>
    %c6 = arith.constant 6 : index
    %c0_53 = arith.constant 0 : index
    %c0_54 = arith.constant 0 : index
    %69 = vector.load %arg6[%c6, %c0_53, %c0_54] : memref<9x128x128xbf16, #tpu.memory_space<vmem>>, vector<1x128x128xbf16>
    %70 = vector.shape_cast %69 : vector<1x128x128xbf16> to vector<128x128xbf16>
    %cst_55 = arith.constant dense<0.000000e+00> : vector<384x128xf32>
    %71 = tpu.matmul %68, %70, %cst_55 {dimension_numbers = #tpu.dot_dimension_numbers<[1], [0], [0], [1], [0, 0, 1, 1], [], []>} : vector<384x128xbf16>, vector<128x128xbf16>, vector<384x128xf32> -> vector<384x128xf32>
    %72 = arith.addf %67, %71 : vector<384x128xf32>
    %73 = vector.extract_strided_slice %38 {offsets = [49, 0], sizes = [384, 128], strides = [1, 1]} : vector<456x128xbf16> to vector<384x128xbf16>
    %c7 = arith.constant 7 : index
    %c0_56 = arith.constant 0 : index
    %c0_57 = arith.constant 0 : index
    %74 = vector.load %arg6[%c7, %c0_56, %c0_57] : memref<9x128x128xbf16, #tpu.memory_space<vmem>>, vector<1x128x128xbf16>
    %75 = vector.shape_cast %74 : vector<1x128x128xbf16> to vector<128x128xbf16>
    %cst_58 = arith.constant dense<0.000000e+00> : vector<384x128xf32>
    %76 = tpu.matmul %73, %75, %cst_58 {dimension_numbers = #tpu.dot_dimension_numbers<[1], [0], [0], [1], [0, 0, 1, 1], [], []>} : vector<384x128xbf16>, vector<128x128xbf16>, vector<384x128xf32> -> vector<384x128xf32>
    %77 = arith.addf %72, %76 : vector<384x128xf32>
    %78 = vector.extract_strided_slice %38 {offsets = [50, 0], sizes = [384, 128], strides = [1, 1]} : vector<456x128xbf16> to vector<384x128xbf16>
    %c8 = arith.constant 8 : index
    %c0_59 = arith.constant 0 : index
    %c0_60 = arith.constant 0 : index
    %79 = vector.load %arg6[%c8, %c0_59, %c0_60] : memref<9x128x128xbf16, #tpu.memory_space<vmem>>, vector<1x128x128xbf16>
    %80 = vector.shape_cast %79 : vector<1x128x128xbf16> to vector<128x128xbf16>
    %cst_61 = arith.constant dense<0.000000e+00> : vector<384x128xf32>
    %81 = tpu.matmul %78, %80, %cst_61 {dimension_numbers = #tpu.dot_dimension_numbers<[1], [0], [0], [1], [0, 0, 1, 1], [], []>} : vector<384x128xbf16>, vector<128x128xbf16>, vector<384x128xf32> -> vector<384x128xf32>
    %82 = arith.addf %77, %81 : vector<384x128xf32>
    %83 = vector.shape_cast %82 : vector<384x128xf32> to vector<16x24x128xf32>
    %84 = vector.extract_strided_slice %83 {offsets = [0, 0, 0], sizes = [16, 16, 128], strides = [1, 1, 1]} : vector<16x24x128xf32> to vector<16x16x128xf32>
    %c0_62 = arith.constant 0 : index
    %c0_63 = arith.constant 0 : index
    %85 = vector.load %arg7[%c0_62, %c0_63] : memref<1x128xf32, #tpu.memory_space<vmem>>, vector<1x128xf32>
    %86 = vector.shape_cast %85 : vector<1x128xf32> to vector<1x1x128xf32>
    %87 = vector.broadcast %86 : vector<1x1x128xf32> to vector<16x16x128xf32>
    %88 = arith.addf %84, %87 : vector<16x16x128xf32>
    %cst_64 = arith.constant dense<0.000000e+00> : vector<128xf32>
    %89 = vector.multi_reduction <add>, %88, %cst_64 [0, 1] : vector<16x16x128xf32> to vector<128xf32>
    %90 = vector.shape_cast %89 : vector<128xf32> to vector<1x1x128xf32>
    %c0_65 = arith.constant 0 : index
    %c0_66 = arith.constant 0 : index
    %c0_67 = arith.constant 0 : index
    %91 = vector.load %arg9[%c0_65, %c0_66, %c0_67] : memref<1x1x128xf32, #tpu.memory_space<vmem>>, vector<1x1x128xf32>
    tpu.vector_store %arg9[%c0_65, %c0_66, %c0_67], %90 {strides = array<i32>} : memref<1x1x128xf32, #tpu.memory_space<vmem>>, vector<1x1x128xf32>,
    %92 = arith.mulf %88, %88 : vector<16x16x128xf32>
    %cst_68 = arith.constant dense<0.000000e+00> : vector<128xf32>
    %93 = vector.multi_reduction <add>, %92, %cst_68 [0, 1] : vector<16x16x128xf32> to vector<128xf32>
    %94 = vector.shape_cast %93 : vector<128xf32> to vector<1x1x128xf32>
    %c0_69 = arith.constant 0 : index
    %c0_70 = arith.constant 0 : index
    %c0_71 = arith.constant 0 : index
    %95 = vector.load %arg10[%c0_69, %c0_70, %c0_71] : memref<1x1x128xf32, #tpu.memory_space<vmem>>, vector<1x1x128xf32>
    tpu.vector_store %arg10[%c0_69, %c0_70, %c0_71], %94 {strides = array<i32>} : memref<1x1x128xf32, #tpu.memory_space<vmem>>, vector<1x1x128xf32>,
    %96 = vector.shape_cast %88 : vector<16x16x128xf32> to vector<1x16x16x128xf32>
    %97 = arith.truncf %96 : vector<1x16x16x128xf32> to vector<1x16x16x128xbf16>
    %c0_72 = arith.constant 0 : index
    %c0_73 = arith.constant 0 : index
    %c0_74 = arith.constant 0 : index
    %c0_75 = arith.constant 0 : index
    %98 = vector.load %arg8[%c0_72, %c0_73, %c0_74, %c0_75] : memref<1x16x16x128xbf16, #tpu.memory_space<vmem>>, vector<1x16x16x128xbf16>
    tpu.vector_store %arg8[%c0_72, %c0_73, %c0_74, %c0_75], %97 {strides = array<i32>} : memref<1x16x16x128xbf16, #tpu.memory_space<vmem>>, vector<1x16x16x128xbf16>,
    return
  }
  func.func @transform_0(%arg0: i32) -> (i32, i32, i32, i32) {
    %c0_i32 = arith.constant 0 : i32
    %c0_i32_0 = arith.constant 0 : i32
    %c0_i32_1 = arith.constant 0 : i32
    %c0_i32_2 = arith.constant 0 : i32
    return %arg0, %c0_i32, %c0_i32_0, %c0_i32_1 : i32, i32, i32, i32
  }
  func.func @transform_1(%arg0: i32) -> (i32, i32) {
    %c0_i32 = arith.constant 0 : i32
    %c0_i32_0 = arith.constant 0 : i32
    %c0_i32_1 = arith.constant 0 : i32
    return %c0_i32, %c0_i32_0 : i32, i32
  }
  func.func @transform_2(%arg0: i32) -> (i32, i32) {
    %c0_i32 = arith.constant 0 : i32
    %c0_i32_0 = arith.constant 0 : i32
    %c0_i32_1 = arith.constant 0 : i32
    return %c0_i32, %c0_i32_0 : i32, i32
  }
  func.func @transform_3(%arg0: i32) -> (i32, i32) {
    %c0_i32 = arith.constant 0 : i32
    %c0_i32_0 = arith.constant 0 : i32
    %c0_i32_1 = arith.constant 0 : i32
    return %c0_i32, %c0_i32_0 : i32, i32
  }
  func.func @transform_4(%arg0: i32) -> (i32, i32) {
    %c0_i32 = arith.constant 0 : i32
    %c0_i32_0 = arith.constant 0 : i32
    %c0_i32_1 = arith.constant 0 : i32
    return %c0_i32, %c0_i32_0 : i32, i32
  }
  func.func @transform_5(%arg0: i32) -> (i32, i32, i32) {
    %c0_i32 = arith.constant 0 : i32
    %c0_i32_0 = arith.constant 0 : i32
    %c0_i32_1 = arith.constant 0 : i32
    %c0_i32_2 = arith.constant 0 : i32
    return %c0_i32, %c0_i32_0, %c0_i32_1 : i32, i32, i32
  }
  func.func @transform_6(%arg0: i32) -> (i32, i32) {
    %c0_i32 = arith.constant 0 : i32
    %c0_i32_0 = arith.constant 0 : i32
    %c0_i32_1 = arith.constant 0 : i32
    return %c0_i32, %c0_i32_0 : i32, i32
  }
  func.func @transform_7(%arg0: i32) -> (i32, i32, i32, i32) {
    %c0_i32 = arith.constant 0 : i32
    %c0_i32_0 = arith.constant 0 : i32
    %c0_i32_1 = arith.constant 0 : i32
    %c0_i32_2 = arith.constant 0 : i32
    return %arg0, %c0_i32, %c0_i32_0, %c0_i32_1 : i32, i32, i32, i32
  }
  func.func @transform_8(%arg0: i32) -> (i32, i32, i32) {
    %c0_i32 = arith.constant 0 : i32
    %c0_i32_0 = arith.constant 0 : i32
    %c0_i32_1 = arith.constant 0 : i32
    return %arg0, %c0_i32, %c0_i32_0 : i32, i32, i32
  }
  func.func @transform_9(%arg0: i32) -> (i32, i32, i32) {
    %c0_i32 = arith.constant 0 : i32
    %c0_i32_0 = arith.constant 0 : i32
    %c0_i32_1 = arith.constant 0 : i32
    return %arg0, %c0_i32, %c0_i32_0 : i32, i32, i32
  }
}

</mosaic_0001>

<llo_original>
// kernel: unet_down_forward.9
$region0: #{unet_down_forward.9}
  #allocation0 [shape = 'u32[]', space=smem, size = 0x4, offset = 0x4, fixed_abs, tag = 'smem constant byte address 0x4 - core index']
  #allocation1 [shape = 'u32[144,128]{1,0:T(1,128)}', space=vmem, size = 0x12000, scoped, tag = 'internal scratch']
  #allocation2 [shape = 'f32[8,16,128]{2,1,0:T(8,128)}', space=vmem, size = 0x10000, scoped, tag = 'scratch operand']
  %s0 = inlined_call_operand.vmem [shape: bf16[2,16,16,128], index: 0, kind: input, shape index: {}]
  %s1 = inlined_call_operand.vmem [shape: f32[1,128], index: 1, kind: input, shape index: {}]
  %s2 = inlined_call_operand.vmem [shape: f32[1,128], index: 2, kind: input, shape index: {}]
  %s3 = inlined_call_operand.vmem [shape: f32[1,128], index: 3, kind: input, shape index: {}]
  %s4 = inlined_call_operand.vmem [shape: f32[1,128], index: 4, kind: input, shape index: {}]
  %s5 = inlined_call_operand.vmem [shape: f32[2,8,8,128], index: 5, kind: output, shape index: {}]
  %s6 = sld [smem:[#allocation0]]
  $region53: #{unet_down_forward.9} parent=0
    _
  %s8 = ssub.s32 1, %s6
  %s9 = scalar_select 0, %s8, %s6
  loop: start=0, step=1, limit=4
  $region2: #{unet_down_forward.9} parent=0 // loop_pre_header
    _
  $region3: #{unet_down_forward.9} parent=0 // loop_header
    %s11 = sphi 0, %s15
    %p12 = scmp.ge.s32.totalorder %s11, 4
    %s21 = sphi 0, %s23
    %s24 = sphi 0, %s21
    %s25 = sphi 0, %s24
    %s41 = sphi 0, %s25
    %s45 = sphi 0, %s45
    %s47 = sphi 0, %s45
    %s48 = sphi 0, %s47
    %s62 = sphi 0, %s48
    %s66 = sphi 0, %s66
    %s68 = sphi 0, %s66
    %s69 = sphi 0, %s68
    %s83 = sphi 0, %s69
    %s87 = sphi 0, %s87
    %s89 = sphi 0, %s87
    %s90 = sphi 0, %s89
    %s104 = sphi 0, %s90
    %s108 = sphi 0, %s108
    %s110 = sphi 0, %s108
    %s111 = sphi 0, %s110
    %s125 = sphi 0, %s111
    %s131 = sphi 0, %s133
    %s134 = sphi 0, %s131
    %s135 = sphi 0, %s134
    %s151 = sphi 0, %s135
  $region4: #{unet_down_forward.9} parent=0 // loop_header_branch
    %14 = sbr.rel (%p12) target = $region8
  $region5: #{unet_down_forward.9} parent=0 // loop_body
    %s16 = ssub.s32 %s11, 1
    %s17 = ssub.s32 %s11, 2
    %s18 = sadd.s32 %s11, 1
    %s19 = ssub.s32 %s11, %s18
    %p20 = scmp.eq.s32.totalorder %s19, 0
    %s22 = sadd.s32 %s21, 1
    %s23 = scalar_select %p20, %s21, %s22
    %p26 = pneg %p20
    %p27 = scmp.eq.s32.totalorder %s11, 1
    %p28 = por %p26, %p27
    %p29 = scmp.ne.s32.totalorder %s21, %s24
    %p30 = scmp.eq.s32.totalorder %s11, 0
    %p31 = por %p29, %p30
    %p32 = scmp.ne.s32.totalorder %s21, %s24
    %p33 = scmp.eq.s32.totalorder %s16, 1
    %p34 = por %p32, %p33
    %p35 = scmp.ne.s32.totalorder %s24, %s25
    %p36 = scmp.eq.s32.totalorder %s16, 0
    %p37 = por %p35, %p36
    %p38 = scmp.ne.s32.totalorder %s24, %s25
    %p39 = scmp.eq.s32.totalorder %s17, 1
    %p40 = por %p38, %p39
    %p42 = scmp.ne.s32.totalorder %s25, %s41
    %p43 = scmp.eq.s32.totalorder %s17, 0
    %p44 = por %p42, %p43
    %s46 = sadd.s32 %s45, 1
    %p49 = scmp.eq.s32.totalorder %s11, 1
    %p50 = scmp.ne.s32.totalorder %s45, %s47
    %p51 = scmp.eq.s32.totalorder %s11, 0
    %p52 = por %p50, %p51
    %p53 = scmp.ne.s32.totalorder %s45, %s47
    %p54 = scmp.eq.s32.totalorder %s16, 1
    %p55 = por %p53, %p54
    %p56 = scmp.ne.s32.totalorder %s47, %s48
    %p57 = scmp.eq.s32.totalorder %s16, 0
    %p58 = por %p56, %p57
    %p59 = scmp.ne.s32.totalorder %s47, %s48
    %p60 = scmp.eq.s32.totalorder %s17, 1
    %p61 = por %p59, %p60
    %p63 = scmp.ne.s32.totalorder %s48, %s62
    %p64 = scmp.eq.s32.totalorder %s17, 0
    %p65 = por %p63, %p64
    %s67 = sadd.s32 %s66, 1
    %p70 = scmp.eq.s32.totalorder %s11, 1
    %p71 = scmp.ne.s32.totalorder %s66, %s68
    %p72 = scmp.eq.s32.totalorder %s11, 0
    %p73 = por %p71, %p72
    %p74 = scmp.ne.s32.totalorder %s66, %s68
    %p75 = scmp.eq.s32.totalorder %s16, 1
    %p76 = por %p74, %p75
    %p77 = scmp.ne.s32.totalorder %s68, %s69
    %p78 = scmp.eq.s32.totalorder %s16, 0
    %p79 = por %p77, %p78
    %p80 = scmp.ne.s32.totalorder %s68, %s69
    %p81 = scmp.eq.s32.totalorder %s17, 1
    %p82 = por %p80, %p81
    %p84 = scmp.ne.s32.totalorder %s69, %s83
    %p85 = scmp.eq.s32.totalorder %s17, 0
    %p86 = por %p84, %p85
    %s88 = sadd.s32 %s87, 1
    %p91 = scmp.eq.s32.totalorder %s11, 1
    %p92 = scmp.ne.s32.totalorder %s87, %s89
    %p93 = scmp.eq.s32.totalorder %s11, 0
    %p94 = por %p92, %p93
    %p95 = scmp.ne.s32.totalorder %s87, %s89
    %p96 = scmp.eq.s32.totalorder %s16, 1
    %p97 = por %p95, %p96
    %p98 = scmp.ne.s32.totalorder %s89, %s90
    %p99 = scmp.eq.s32.totalorder %s16, 0
    %p100 = por %p98, %p99
    %p101 = scmp.ne.s32.totalorder %s89, %s90
    %p102 = scmp.eq.s32.totalorder %s17, 1
    %p103 = por %p101, %p102
    %p105 = scmp.ne.s32.totalorder %s90, %s104
    %p106 = scmp.eq.s32.totalorder %s17, 0
    %p107 = por %p105, %p106
    %s109 = sadd.s32 %s108, 1
    %p112 = scmp.eq.s32.totalorder %s11, 1
    %p113 = scmp.ne.s32.totalorder %s108, %s110
    %p114 = scmp.eq.s32.totalorder %s11, 0
    %p115 = por %p113, %p114
    %p116 = scmp.ne.s32.totalorder %s108, %s110
    %p117 = scmp.eq.s32.totalorder %s16, 1
    %p118 = por %p116, %p117
    %p119 = scmp.ne.s32.totalorder %s110, %s111
    %p120 = scmp.eq.s32.totalorder %s16, 0
    %p121 = por %p119, %p120
    %p122 = scmp.ne.s32.totalorder %s110, %s111
    %p123 = scmp.eq.s32.totalorder %s17, 1
    %p124 = por %p122, %p123
    %p126 = scmp.ne.s32.totalorder %s111, %s125
    %p127 = scmp.eq.s32.totalorder %s17, 0
    %p128 = por %p126, %p127
    %s129 = ssub.s32 %s11, %s18
    %p130 = scmp.eq.s32.totalorder %s129, 0
    %s132 = sadd.s32 %s131, 1
    %s133 = scalar_select %p130, %s131, %s132
    %p136 = pneg %p130
    %p137 = scmp.eq.s32.totalorder %s11, 1
    %p138 = por %p136, %p137
    %p139 = scmp.ne.s32.totalorder %s131, %s134
    %p140 = scmp.eq.s32.totalorder %s11, 0
    %p141 = por %p139, %p140
    %p142 = scmp.ne.s32.totalorder %s131, %s134
    %p143 = scmp.eq.s32.totalorder %s16, 1
    %p144 = por %p142, %p143
    %p145 = scmp.ne.s32.totalorder %s134, %s135
    %p146 = scmp.eq.s32.totalorder %s16, 0
    %p147 = por %p145, %p146
    %p148 = scmp.ne.s32.totalorder %s134, %s135
    %p149 = scmp.eq.s32.totalorder %s17, 1
    %p150 = por %p148, %p149
    %p152 = scmp.ne.s32.totalorder %s135, %s151
    %p153 = scmp.eq.s32.totalorder %s17, 0
    %p154 = por %p152, %p153
    %p155 = scmp.le.s32.totalorder 1, %s11
    %p156 = scmp.lt.s32.totalorder %s11, 3
    %p157 = pnand %p155, %p156
    %p158 = pneg %p157
    // Predicated region
    $region9: #{unet_down_forward.9} parent=5 // pred_check
      _
    $region10: #{unet_down_forward.9} parent=5 // pred_check_branch
      %160 = sbr.rel (%p157) target = $region12
    $region11: #{unet_down_forward.9} parent=5 // pred_region
      %s161 = ssub.s32 %s11, 1
      // Predicated region
      $region13: #{unet_down_forward.9} parent=11 // pred_check
        %p162 = pneg %p58
      $region14: #{unet_down_forward.9} parent=11 // pred_check_branch
        %164 = sbr.rel (%p162) target = $region16
      $region15: #{unet_down_forward.9} parent=11 // pred_region
        _
      $region16: #{unet_down_forward.9} parent=11 // pred_fallthru
        _
      // Predicated region
      $region17: #{unet_down_forward.9} parent=11 // pred_check
        %p165 = pneg %p79
      $region18: #{unet_down_forward.9} parent=11 // pred_check_branch
        %167 = sbr.rel (%p165) target = $region20
      $region19: #{unet_down_forward.9} parent=11 // pred_region
        _
      $region20: #{unet_down_forward.9} parent=11 // pred_fallthru
        _
      // Predicated region
      $region21: #{unet_down_forward.9} parent=11 // pred_check
        %p168 = pneg %p100
      $region22: #{unet_down_forward.9} parent=11 // pred_check_branch
        %170 = sbr.rel (%p168) target = $region24
      $region23: #{unet_down_forward.9} parent=11 // pred_region
        _
      $region24: #{unet_down_forward.9} parent=11 // pred_fallthru
        _
      // Predicated region
      $region25: #{unet_down_forward.9} parent=11 // pred_check
        %p171 = pneg %p121
      $region26: #{unet_down_forward.9} parent=11 // pred_check_branch
        %173 = sbr.rel (%p171) target = $region28
      $region27: #{unet_down_forward.9} parent=11 // pred_region
        _
      $region28: #{unet_down_forward.9} parent=11 // pred_fallthru
        _
    $region12: #{unet_down_forward.9} parent=5 // pred_fallthru
      _
    %p174 = scmp.lt.s32.totalorder %s11, 2
    // Predicated region
    $region29: #{unet_down_forward.9} parent=5 // pred_check
      %p175 = pneg %p174
    $region30: #{unet_down_forward.9} parent=5 // pred_check_branch
      %177 = sbr.rel (%p175) target = $region32
    $region31: #{unet_down_forward.9} parent=5 // pred_region
      // Predicated region
      $region33: #{unet_down_forward.9} parent=31 // pred_check
        %p178 = pneg %p31
      $region34: #{unet_down_forward.9} parent=31 // pred_check_branch
        %180 = sbr.rel (%p178) target = $region36
      $region35: #{unet_down_forward.9} parent=31 // pred_region
        %p181 = scmp.lt.s32.totalorder %s11, 1
        %s182 = scalar_select %p181, %s11, 1
        %s183 = smul.addr %s182, 32
        %s184 = smul.addr %s183, 4
        %s185 = scalar_lea.vmem %s0, %s184
      $region36: #{unet_down_forward.9} parent=31 // pred_fallthru
        _
    $region32: #{unet_down_forward.9} parent=5 // pred_fallthru
      _
    %p186 = scmp.le.s32.totalorder 1, %s11
    %p187 = scmp.lt.s32.totalorder %s11, 3
    %p188 = pnand %p186, %p187
    %p189 = pneg %p188
    // Predicated region
    $region37: #{unet_down_forward.9} parent=5 // pred_check
      _
    $region38: #{unet_down_forward.9} parent=5 // pred_check_branch
      %191 = sbr.rel (%p188) target = $region40
    $region39: #{unet_down_forward.9} parent=5 // pred_region
      %s192 = ssub.s32 %s11, 1
      %p193 = scmp.lt.s32.totalorder %s16, 1
      %s194 = scalar_select %p193, %s16, 1
      %s195 = smul.addr %s194, 32
      %s196 = smul.addr %s195, 4
      %s197 = scalar_lea.vmem %s0, %s196
      %p198 = pneg %p37
      %p199 = pneg %p34
      %p200 = pneg %p58
      %p201 = pneg %p55
      %p202 = pneg %p79
      %p203 = pneg %p76
      %p204 = pneg %p100
      %p205 = pneg %p97
      %p206 = pneg %p121
      %p207 = pneg %p118
      %p208 = pneg %p147
      %p209 = pneg %p144
      %p210 = scmp.lt.s32.totalorder %s16, 1
      %s211 = scalar_select %p210, %s16, 1
      %s212 = smul.addr %s211, 8
      %s213 = smul.addr %s212, 8
      %s214 = scalar_lea.vmem %s5, %s213
      %p215 = scmp.lt.s32.totalorder %s16, 1
      %s216 = scalar_select %p215, %s16, 1
      %s217 = smul.addr %s216, 32
      %s218 = smul.addr %s217, 4
      %s219 = scalar_lea.vmem %s0, %s218
      %p220 = scmp.lt.s32.totalorder %s16, 1
      %s221 = scalar_select %p220, %s16, 1
      %s222 = smul.addr %s221, 8
      %s223 = smul.addr %s222, 8
      %s224 = scalar_lea.vmem %s5, %s223
      %v225 = vld [vmem:[%s219] sm:$0xf]
      %v226 = vld [vmem:[%s219 + $0x4] sm:$0xf]
      %v227 = vld [vmem:[%s219 + $0x8] sm:$0xf]
      %v228 = vld [vmem:[%s219 + $0xc] sm:$0xf]
      %v229 = vld [vmem:[%s219 + $0x10] sm:$0xf]
      %v230 = vld [vmem:[%s219 + $0x14] sm:$0xf]
      %v231 = vld [vmem:[%s219 + $0x18] sm:$0xf]
      %v232 = vld [vmem:[%s219 + $0x1c] sm:$0xf]
      %v233 = vld [vmem:[%s219 + $0x20] sm:$0xf]
      %v234 = vld [vmem:[%s219 + $0x24] sm:$0xf]
      %v235 = vld [vmem:[%s219 + $0x28] sm:$0xf]
      %v236 = vld [vmem:[%s219 + $0x2c] sm:$0xf]
      %v237 = vld [vmem:[%s219 + $0x30] sm:$0xf]
      %v238 = vld [vmem:[%s219 + $0x34] sm:$0xf]
      %v239 = vld [vmem:[%s219 + $0x38] sm:$0xf]
      %v240 = vld [vmem:[%s219 + $0x3c] sm:$0xf]
      %v241 = vld [vmem:[%s219 + $0x40] sm:$0xf]
      %v242 = vld [vmem:[%s219 + $0x44] sm:$0xf]
      %v243 = vld [vmem:[%s219 + $0x48] sm:$0xf]
      %v244 = vld [vmem:[%s219 + $0x4c] sm:$0xf]
      %v245 = vld [vmem:[%s219 + $0x50] sm:$0xf]
      %v246 = vld [vmem:[%s219 + $0x54] sm:$0xf]
      %v247 = vld [vmem:[%s219 + $0x58] sm:$0xf]
      %v248 = vld [vmem:[%s219 + $0x5c] sm:$0xf]
      %v249 = vld [vmem:[%s219 + $0x60] sm:$0xf]
      %v250 = vld [vmem:[%s219 + $0x64] sm:$0xf]
      %v251 = vld [vmem:[%s219 + $0x68] sm:$0xf]
      %v252 = vld [vmem:[%s219 + $0x6c] sm:$0xf]
      %v253 = vld [vmem:[%s219 + $0x70] sm:$0xf]
      %v254 = vld [vmem:[%s219 + $0x74] sm:$0xf]
      %v255 = vld [vmem:[%s219 + $0x78] sm:$0xf]
      %v256 = vld [vmem:[%s219 + $0x7c] sm:$0xf]
      %v257 = vunpack.c.l.bf16 %v225
      %v258 = vunpack.c.l.bf16 %v226
      %v259 = vunpack.c.l.bf16 %v227
      %v260 = vunpack.c.l.bf16 %v228
      %v261 = vunpack.c.l.bf16 %v229
      %v262 = vunpack.c.l.bf16 %v230
      %v263 = vunpack.c.l.bf16 %v231
      %v264 = vunpack.c.l.bf16 %v232
      %v265 = vunpack.c.l.bf16 %v233
      %v266 = vunpack.c.l.bf16 %v234
      %v267 = vunpack.c.l.bf16 %v235
      %v268 = vunpack.c.l.bf16 %v236
      %v269 = vunpack.c.l.bf16 %v237
      %v270 = vunpack.c.l.bf16 %v238
      %v271 = vunpack.c.l.bf16 %v239
      %v272 = vunpack.c.l.bf16 %v240
      %v273 = vunpack.c.l.bf16 %v241
      %v274 = vunpack.c.l.bf16 %v242
      %v275 = vunpack.c.l.bf16 %v243
      %v276 = vunpack.c.l.bf16 %v244
      %v277 = vunpack.c.l.bf16 %v245
      %v278 = vunpack.c.l.bf16 %v246
      %v279 = vunpack.c.l.bf16 %v247
      %v280 = vunpack.c.l.bf16 %v248
      %v281 = vunpack.c.l.bf16 %v249
      %v282 = vunpack.c.l.bf16 %v250
      %v283 = vunpack.c.l.bf16 %v251
      %v284 = vunpack.c.l.bf16 %v252
      %v285 = vunpack.c.l.bf16 %v253
      %v286 = vunpack.c.l.bf16 %v254
      %v287 = vunpack.c.l.bf16 %v255
      %v288 = vunpack.c.l.bf16 %v256
      %v289 = vld [vmem:[%s1] sm:$0x1]
      %v290 = vld [vmem:[%s2] sm:$0x1]
      %v291 = vld [vmem:[%s3] sm:$0x1]
      %v292 = vld [vmem:[%s4] sm:$0x1]
      %v294 = vlaneseq
      %v295 = vshrl.u32 %v294, 7
      %v296 = vsub.s32 0, %v295
      %v297 = vrot.slane %v289, %v296
      %v299 = vsub.f32 %v257, %v297
      %v300 = vsub.f32 %v258, %v297
      %v301 = vsub.f32 %v259, %v297
      %v302 = vsub.f32 %v260, %v297
      %v303 = vsub.f32 %v261, %v297
      %v304 = vsub.f32 %v262, %v297
      %v305 = vsub.f32 %v263, %v297
      %v306 = vsub.f32 %v264, %v297
      %v307 = vsub.f32 %v265, %v297
      %v308 = vsub.f32 %v266, %v297
      %v309 = vsub.f32 %v267, %v297
      %v310 = vsub.f32 %v268, %v297
      %v311 = vsub.f32 %v269, %v297
      %v312 = vsub.f32 %v270, %v297
      %v313 = vsub.f32 %v271, %v297
      %v314 = vsub.f32 %v272, %v297
      %v315 = vsub.f32 %v273, %v297
      %v316 = vsub.f32 %v274, %v297
      %v317 = vsub.f32 %v275, %v297
      %v318 = vsub.f32 %v276, %v297
      %v319 = vsub.f32 %v277, %v297
      %v320 = vsub.f32 %v278, %v297
      %v321 = vsub.f32 %v279, %v297
      %v322 = vsub.f32 %v280, %v297
      %v323 = vsub.f32 %v281, %v297
      %v324 = vsub.f32 %v282, %v297
      %v325 = vsub.f32 %v283, %v297
      %v326 = vsub.f32 %v284, %v297
      %v327 = vsub.f32 %v285, %v297
      %v328 = vsub.f32 %v286, %v297
      %v329 = vsub.f32 %v287, %v297
      %v330 = vsub.f32 %v288, %v297
      %v332 = vlaneseq
      %v333 = vshrl.u32 %v332, 7
      %v334 = vsub.s32 0, %v333
      %v335 = vrot.slane %v290, %v334
      %v337 = vmul.f32 %v299, %v335
      %v338 = vmul.f32 %v300, %v335
      %v339 = vmul.f32 %v301, %v335
      %v340 = vmul.f32 %v302, %v335
      %v341 = vmul.f32 %v303, %v335
      %v342 = vmul.f32 %v304, %v335
      %v343 = vmul.f32 %v305, %v335
      %v344 = vmul.f32 %v306, %v335
      %v345 = vmul.f32 %v307, %v335
      %v346 = vmul.f32 %v308, %v335
      %v347 = vmul.f32 %v309, %v335
      %v348 = vmul.f32 %v310, %v335
      %v349 = vmul.f32 %v311, %v335
      %v350 = vmul.f32 %v312, %v335
      %v351 = vmul.f32 %v313, %v335
      %v352 = vmul.f32 %v314, %v335
      %v353 = vmul.f32 %v315, %v335
      %v354 = vmul.f32 %v316, %v335
      %v355 = vmul.f32 %v317, %v335
      %v356 = vmul.f32 %v318, %v335
      %v357 = vmul.f32 %v319, %v335
      %v358 = vmul.f32 %v320, %v335
      %v359 = vmul.f32 %v321, %v335
      %v360 = vmul.f32 %v322, %v335
      %v361 = vmul.f32 %v323, %v335
      %v362 = vmul.f32 %v324, %v335
      %v363 = vmul.f32 %v325, %v335
      %v364 = vmul.f32 %v326, %v335
      %v365 = vmul.f32 %v327, %v335
      %v366 = vmul.f32 %v328, %v335
      %v367 = vmul.f32 %v329, %v335
      %v368 = vmul.f32 %v330, %v335
      %v370 = vlaneseq
      %v371 = vshrl.u32 %v370, 7
      %v372 = vsub.s32 0, %v371
      %v373 = vrot.slane %v291, %v372
      %v375 = vmul.f32 %v337, %v373
      %v376 = vmul.f32 %v338, %v373
      %v377 = vmul.f32 %v339, %v373
      %v378 = vmul.f32 %v340, %v373
      %v379 = vmul.f32 %v341, %v373
      %v380 = vmul.f32 %v342, %v373
      %v381 = vmul.f32 %v343, %v373
      %v382 = vmul.f32 %v344, %v373
      %v383 = vmul.f32 %v345, %v373
      %v384 = vmul.f32 %v346, %v373
      %v385 = vmul.f32 %v347, %v373
      %v386 = vmul.f32 %v348, %v373
      %v387 = vmul.f32 %v349, %v373
      %v388 = vmul.f32 %v350, %v373
      %v389 = vmul.f32 %v351, %v373
      %v390 = vmul.f32 %v352, %v373
      %v391 = vmul.f32 %v353, %v373
      %v392 = vmul.f32 %v354, %v373
      %v393 = vmul.f32 %v355, %v373
      %v394 = vmul.f32 %v356, %v373
      %v395 = vmul.f32 %v357, %v373
      %v396 = vmul.f32 %v358, %v373
      %v397 = vmul.f32 %v359, %v373
      %v398 = vmul.f32 %v360, %v373
      %v399 = vmul.f32 %v361, %v373
      %v400 = vmul.f32 %v362, %v373
      %v401 = vmul.f32 %v363, %v373
      %v402 = vmul.f32 %v364, %v373
      %v403 = vmul.f32 %v365, %v373
      %v404 = vmul.f32 %v366, %v373
      %v405 = vmul.f32 %v367, %v373
      %v406 = vmul.f32 %v368, %v373
      %v408 = vlaneseq
      %v409 = vshrl.u32 %v408, 7
      %v410 = vsub.s32 0, %v409
      %v411 = vrot.slane %v292, %v410
      %v413 = vadd.f32 %v375, %v411
      %v414 = vadd.f32 %v376, %v411
      %v415 = vadd.f32 %v377, %v411
      %v416 = vadd.f32 %v378, %v411
      %v417 = vadd.f32 %v379, %v411
      %v418 = vadd.f32 %v380, %v411
      %v419 = vadd.f32 %v381, %v411
      %v420 = vadd.f32 %v382, %v411
      %v421 = vadd.f32 %v383, %v411
      %v422 = vadd.f32 %v384, %v411
      %v423 = vadd.f32 %v385, %v411
      %v424 = vadd.f32 %v386, %v411
      %v425 = vadd.f32 %v387, %v411
      %v426 = vadd.f32 %v388, %v411
      %v427 = vadd.f32 %v389, %v411
      %v428 = vadd.f32 %v390, %v411
      %v429 = vadd.f32 %v391, %v411
      %v430 = vadd.f32 %v392, %v411
      %v431 = vadd.f32 %v393, %v411
      %v432 = vadd.f32 %v394, %v411
      %v433 = vadd.f32 %v395, %v411
      %v434 = vadd.f32 %v396, %v411
      %v435 = vadd.f32 %v397, %v411
      %v436 = vadd.f32 %v398, %v411
      %v437 = vadd.f32 %v399, %v411
      %v438 = vadd.f32 %v400, %v411
      %v439 = vadd.f32 %v401, %v411
      %v440 = vadd.f32 %v402, %v411
      %v441 = vadd.f32 %v403, %v411
      %v442 = vadd.f32 %v404, %v411
      %v443 = vadd.f32 %v405, %v411
      %v444 = vadd.f32 %v406, %v411
      %v445 = vmul.f32 %v413, 0.5
      %v446 = vmul.f32 %v414, 0.5
      %v447 = vmul.f32 %v415, 0.5
      %v448 = vmul.f32 %v416, 0.5
      %v449 = vmul.f32 %v417, 0.5
      %v450 = vmul.f32 %v418, 0.5
      %v451 = vmul.f32 %v419, 0.5
      %v452 = vmul.f32 %v420, 0.5
      %v453 = vmul.f32 %v421, 0.5
      %v454 = vmul.f32 %v422, 0.5
      %v455 = vmul.f32 %v423, 0.5
      %v456 = vmul.f32 %v424, 0.5
      %v457 = vmul.f32 %v425, 0.5
      %v458 = vmul.f32 %v426, 0.5
      %v459 = vmul.f32 %v427, 0.5
      %v460 = vmul.f32 %v428, 0.5
      %v461 = vmul.f32 %v429, 0.5
      %v462 = vmul.f32 %v430, 0.5
      %v463 = vmul.f32 %v431, 0.5
      %v464 = vmul.f32 %v432, 0.5
      %v465 = vmul.f32 %v433, 0.5
      %v466 = vmul.f32 %v434, 0.5
      %v467 = vmul.f32 %v435, 0.5
      %v468 = vmul.f32 %v436, 0.5
      %v469 = vmul.f32 %v437, 0.5
      %v470 = vmul.f32 %v438, 0.5
      %v471 = vmul.f32 %v439, 0.5
      %v472 = vmul.f32 %v440, 0.5
      %v473 = vmul.f32 %v441, 0.5
      %v474 = vmul.f32 %v442, 0.5
      %v475 = vmul.f32 %v443, 0.5
      %v476 = vmul.f32 %v444, 0.5
      %v477 = vmul.f32 %v413, 0.70710677
      %v478 = vmul.f32 %v414, 0.70710677
      %v479 = vmul.f32 %v415, 0.70710677
      %v480 = vmul.f32 %v416, 0.70710677
      %v481 = vmul.f32 %v417, 0.70710677
      %v482 = vmul.f32 %v418, 0.70710677
      %v483 = vmul.f32 %v419, 0.70710677
      %v484 = vmul.f32 %v420, 0.70710677
      %v485 = vmul.f32 %v421, 0.70710677
      %v486 = vmul.f32 %v422, 0.70710677
      %v487 = vmul.f32 %v423, 0.70710677
      %v488 = vmul.f32 %v424, 0.70710677
      %v489 = vmul.f32 %v425, 0.70710677
      %v490 = vmul.f32 %v426, 0.70710677
      %v491 = vmul.f32 %v427, 0.70710677
      %v492 = vmul.f32 %v428, 0.70710677
      %v493 = vmul.f32 %v429, 0.70710677
      %v494 = vmul.f32 %v430, 0.70710677
      %v495 = vmul.f32 %v431, 0.70710677
      %v496 = vmul.f32 %v432, 0.70710677
      %v497 = vmul.f32 %v433, 0.70710677
      %v498 = vmul.f32 %v434, 0.70710677
      %v499 = vmul.f32 %v435, 0.70710677
      %v500 = vmul.f32 %v436, 0.70710677
      %v501 = vmul.f32 %v437, 0.70710677
      %v502 = vmul.f32 %v438, 0.70710677
      %v503 = vmul.f32 %v439, 0.70710677
      %v504 = vmul.f32 %v440, 0.70710677
      %v505 = vmul.f32 %v441, 0.70710677
      %v506 = vmul.f32 %v442, 0.70710677
      %v507 = vmul.f32 %v443, 0.70710677
      %v508 = vmul.f32 %v444, 0.70710677
      %v509 = verf.f32.pop %v477
      %v510 = verf.f32.pop %v478
      %v511 = verf.f32.pop %v479
      %v512 = verf.f32.pop %v480
      %v513 = verf.f32.pop %v481
      %v514 = verf.f32.pop %v482
      %v515 = verf.f32.pop %v483
      %v516 = verf.f32.pop %v484
      %v517 = verf.f32.pop %v485
      %v518 = verf.f32.pop %v486
      %v519 = verf.f32.pop %v487
      %v520 = verf.f32.pop %v488
      %v521 = verf.f32.pop %v489
      %v522 = verf.f32.pop %v490
      %v523 = verf.f32.pop %v491
      %v524 = verf.f32.pop %v492
      %v525 = verf.f32.pop %v493
      %v526 = verf.f32.pop %v494
      %v527 = verf.f32.pop %v495
      %v528 = verf.f32.pop %v496
      %v529 = verf.f32.pop %v497
      %v530 = verf.f32.pop %v498
      %v531 = verf.f32.pop %v499
      %v532 = verf.f32.pop %v500
      %v533 = verf.f32.pop %v501
      %v534 = verf.f32.pop %v502
      %v535 = verf.f32.pop %v503
      %v536 = verf.f32.pop %v504
      %v537 = verf.f32.pop %v505
      %v538 = verf.f32.pop %v506
      %v539 = verf.f32.pop %v507
      %v540 = verf.f32.pop %v508
      %v541 = vadd.f32 %v509, 1.0
      %v542 = vadd.f32 %v510, 1.0
      %v543 = vadd.f32 %v511, 1.0
      %v544 = vadd.f32 %v512, 1.0
      %v545 = vadd.f32 %v513, 1.0
      %v546 = vadd.f32 %v514, 1.0
      %v547 = vadd.f32 %v515, 1.0
      %v548 = vadd.f32 %v516, 1.0
      %v549 = vadd.f32 %v517, 1.0
      %v550 = vadd.f32 %v518, 1.0
      %v551 = vadd.f32 %v519, 1.0
      %v552 = vadd.f32 %v520, 1.0
      %v553 = vadd.f32 %v521, 1.0
      %v554 = vadd.f32 %v522, 1.0
      %v555 = vadd.f32 %v523, 1.0
      %v556 = vadd.f32 %v524, 1.0
      %v557 = vadd.f32 %v525, 1.0
      %v558 = vadd.f32 %v526, 1.0
      %v559 = vadd.f32 %v527, 1.0
      %v560 = vadd.f32 %v528, 1.0
      %v561 = vadd.f32 %v529, 1.0
      %v562 = vadd.f32 %v530, 1.0
      %v563 = vadd.f32 %v531, 1.0
      %v564 = vadd.f32 %v532, 1.0
      %v565 = vadd.f32 %v533, 1.0
      %v566 = vadd.f32 %v534, 1.0
      %v567 = vadd.f32 %v535, 1.0
      %v568 = vadd.f32 %v536, 1.0
      %v569 = vadd.f32 %v537, 1.0
      %v570 = vadd.f32 %v538, 1.0
      %v571 = vadd.f32 %v539, 1.0
      %v572 = vadd.f32 %v540, 1.0
      %v573 = vmul.f32 %v445, %v541
      %v574 = vmul.f32 %v446, %v542
      %v575 = vmul.f32 %v447, %v543
      %v576 = vmul.f32 %v448, %v544
      %v577 = vmul.f32 %v449, %v545
      %v578 = vmul.f32 %v450, %v546
      %v579 = vmul.f32 %v451, %v547
      %v580 = vmul.f32 %v452, %v548
      %v581 = vmul.f32 %v453, %v549
      %v582 = vmul.f32 %v454, %v550
      %v583 = vmul.f32 %v455, %v551
      %v584 = vmul.f32 %v456, %v552
      %v585 = vmul.f32 %v457, %v553
      %v586 = vmul.f32 %v458, %v554
      %v587 = vmul.f32 %v459, %v555
      %v588 = vmul.f32 %v460, %v556
      %v589 = vmul.f32 %v461, %v557
      %v590 = vmul.f32 %v462, %v558
      %v591 = vmul.f32 %v463, %v559
      %v592 = vmul.f32 %v464, %v560
      %v593 = vmul.f32 %v465, %v561
      %v594 = vmul.f32 %v466, %v562
      %v595 = vmul.f32 %v467, %v563
      %v596 = vmul.f32 %v468, %v564
      %v597 = vmul.f32 %v469, %v565
      %v598 = vmul.f32 %v470, %v566
      %v599 = vmul.f32 %v471, %v567
      %v600 = vmul.f32 %v472, %v568
      %v601 = vmul.f32 %v473, %v569
      %v602 = vmul.f32 %v474, %v570
      %v603 = vmul.f32 %v475, %v571
      %v604 = vmul.f32 %v476, %v572
      %v605 = vmax.f32 %v573, %v575
      %v606 = vmax.f32 %v574, %v576
      %v607 = vmax.f32 %v577, %v579
      %v608 = vmax.f32 %v578, %v580
      %v609 = vmax.f32 %v581, %v583
      %v610 = vmax.f32 %v582, %v584
      %v611 = vmax.f32 %v585, %v587
      %v612 = vmax.f32 %v586, %v588
      %v613 = vmax.f32 %v589, %v591
      %v614 = vmax.f32 %v590, %v592
      %v615 = vmax.f32 %v593, %v595
      %v616 = vmax.f32 %v594, %v596
      %v617 = vmax.f32 %v597, %v599
      %v618 = vmax.f32 %v598, %v600
      %v619 = vmax.f32 %v601, %v603
      %v620 = vmax.f32 %v602, %v604
      %621 = vst [vmem:[#allocation2] sm:$0xff] %v605
      %622 = vst [vmem:[#allocation2 + $0x8] sm:$0xff] %v606
      %623 = vst [vmem:[#allocation2 + $0x10] sm:$0xff] %v607
      %624 = vst [vmem:[#allocation2 + $0x18] sm:$0xff] %v608
      %625 = vst [vmem:[#allocation2 + $0x20] sm:$0xff] %v609
      %626 = vst [vmem:[#allocation2 + $0x28] sm:$0xff] %v610
      %627 = vst [vmem:[#allocation2 + $0x30] sm:$0xff] %v611
      %628 = vst [vmem:[#allocation2 + $0x38] sm:$0xff] %v612
      %629 = vst [vmem:[#allocation2 + $0x40] sm:$0xff] %v613
      %630 = vst [vmem:[#allocation2 + $0x48] sm:$0xff] %v614
      %631 = vst [vmem:[#allocation2 + $0x50] sm:$0xff] %v615
      %632 = vst [vmem:[#allocation2 + $0x58] sm:$0xff] %v616
      %633 = vst [vmem:[#allocation2 + $0x60] sm:$0xff] %v617
      %634 = vst [vmem:[#allocation2 + $0x68] sm:$0xff] %v618
      %635 = vst [vmem:[#allocation2 + $0x70] sm:$0xff] %v619
      %636 = vst [vmem:[#allocation2 + $0x78] sm:$0xff] %v620
      %v637 = vld [vmem:[#allocation2] ss:$2 sm:$0xff]
      %s638 = scalar_lea.vmem [#allocation2], 16
      %v639 = vld [vmem:[%s638] ss:$2 sm:$0xff]
      %s640 = scalar_lea.vmem [#allocation2], 32
      %v641 = vld [vmem:[%s640] ss:$2 sm:$0xff]
      %s642 = scalar_lea.vmem [#allocation2], 48
      %v643 = vld [vmem:[%s642] ss:$2 sm:$0xff]
      %s644 = scalar_lea.vmem [#allocation2], 64
      %v645 = vld [vmem:[%s644] ss:$2 sm:$0xff]
      %s646 = scalar_lea.vmem [#allocation2], 80
      %v647 = vld [vmem:[%s646] ss:$2 sm:$0xff]
      %s648 = scalar_lea.vmem [#allocation2], 96
      %v649 = vld [vmem:[%s648] ss:$2 sm:$0xff]
      %s650 = scalar_lea.vmem [#allocation2], 112
      %v651 = vld [vmem:[%s650] ss:$2 sm:$0xff]
      %s652 = scalar_lea.vmem [#allocation2], 1
      %v653 = vld [vmem:[%s652] ss:$2 sm:$0xff]
      %s654 = scalar_lea.vmem [#allocation2], 17
      %v655 = vld [vmem:[%s654] ss:$2 sm:$0xff]
      %s656 = scalar_lea.vmem [#allocation2], 33
      %v657 = vld [vmem:[%s656] ss:$2 sm:$0xff]
      %s658 = scalar_lea.vmem [#allocation2], 49
      %v659 = vld [vmem:[%s658] ss:$2 sm:$0xff]
      %s660 = scalar_lea.vmem [#allocation2], 65
      %v661 = vld [vmem:[%s660] ss:$2 sm:$0xff]
      %s662 = scalar_lea.vmem [#allocation2], 81
      %v663 = vld [vmem:[%s662] ss:$2 sm:$0xff]
      %s664 = scalar_lea.vmem [#allocation2], 97
      %v665 = vld [vmem:[%s664] ss:$2 sm:$0xff]
      %s666 = scalar_lea.vmem [#allocation2], 113
      %v667 = vld [vmem:[%s666] ss:$2 sm:$0xff]
      %v668 = vmax.f32 %v637, %v653
      %v669 = vmax.f32 %v639, %v655
      %v670 = vmax.f32 %v641, %v657
      %v671 = vmax.f32 %v643, %v659
      %v672 = vmax.f32 %v645, %v661
      %v673 = vmax.f32 %v647, %v663
      %v674 = vmax.f32 %v649, %v665
      %v675 = vmax.f32 %v651, %v667
      %676 = vst [vmem:[%s224] sm:$0xff] %v668
      %677 = vst [vmem:[%s224 + $0x8] sm:$0xff] %v669
      %678 = vst [vmem:[%s224 + $0x10] sm:$0xff] %v670
      %679 = vst [vmem:[%s224 + $0x18] sm:$0xff] %v671
      %680 = vst [vmem:[%s224 + $0x20] sm:$0xff] %v672
      %681 = vst [vmem:[%s224 + $0x28] sm:$0xff] %v673
      %682 = vst [vmem:[%s224 + $0x30] sm:$0xff] %v674
      %683 = vst [vmem:[%s224 + $0x38] sm:$0xff] %v675
      %p684 = scmp.lt.s32.totalorder %s16, 1
      %s685 = scalar_select %p684, %s16, 1
      %s686 = smul.addr %s685, 8
      %s687 = smul.addr %s686, 8
      %s688 = scalar_lea.vmem %s5, %s687
      // Predicated region
      $region41: #{unet_down_forward.9} parent=39 // pred_check
        %p689 = pneg %p144
      $region42: #{unet_down_forward.9} parent=39 // pred_check_branch
        %691 = sbr.rel (%p689) target = $region44
      $region43: #{unet_down_forward.9} parent=39 // pred_region
        _
      $region44: #{unet_down_forward.9} parent=39 // pred_fallthru
        _
    $region40: #{unet_down_forward.9} parent=5 // pred_fallthru
      _
    %p692 = scmp.le.s32.totalorder 2, %s11
    // Predicated region
    $region45: #{unet_down_forward.9} parent=5 // pred_check
      %p693 = pneg %p692
    $region46: #{unet_down_forward.9} parent=5 // pred_check_branch
      %695 = sbr.rel (%p693) target = $region48
    $region47: #{unet_down_forward.9} parent=5 // pred_region
      %s696 = ssub.s32 %s11, 2
      // Predicated region
      $region49: #{unet_down_forward.9} parent=47 // pred_check
        %p697 = pneg %p150
      $region50: #{unet_down_forward.9} parent=47 // pred_check_branch
        %699 = sbr.rel (%p697) target = $region52
      $region51: #{unet_down_forward.9} parent=47 // pred_region
        %p700 = scmp.lt.s32.totalorder %s17, 1
        %s701 = scalar_select %p700, %s17, 1
        %s702 = smul.addr %s701, 8
        %s703 = smul.addr %s702, 8
        %s704 = scalar_lea.vmem %s5, %s703
      $region52: #{unet_down_forward.9} parent=47 // pred_fallthru
        _
    $region48: #{unet_down_forward.9} parent=5 // pred_fallthru
      _
  $region6: #{unet_down_forward.9} parent=0 // loop_footer
    %s15 = sadd.s32 1, %s11
  $region7: #{unet_down_forward.9} parent=0 // loop_footer_branch
    %10 = sbr.rel target = $region3
  $region8: #{unet_down_forward.9} parent=0 // loop_exit
    _

// kernel: unet_down_forward.5
$region0: #{unet_down_forward.5}
  #allocation0 [shape = 'u32[]', space=smem, size = 0x4, offset = 0x4, fixed_abs, tag = 'smem constant byte address 0x4 - core index']
  #allocation1 [shape = 'u32[144,128]{1,0:T(1,128)}', space=vmem, size = 0x12000, scoped, tag = 'internal scratch']
  %s0 = inlined_call_operand.vmem [shape: bf16[2,16,16,128], index: 0, kind: input, shape index: {}]
  %s1 = inlined_call_operand.vmem [shape: bf16[128,128], index: 1, kind: input, shape index: {}]
  %s2 = inlined_call_operand.vmem [shape: f32[1,128], index: 2, kind: input, shape index: {}]
  %s3 = inlined_call_operand.vmem [shape: bf16[2,16,16,128], index: 3, kind: output, shape index: {0}]
  %s4 = inlined_call_operand.vmem [shape: f32[2,1,128], index: 4, kind: output, shape index: {1}]
  %s5 = inlined_call_operand.vmem [shape: f32[2,1,128], index: 5, kind: output, shape index: {2}]
  %6 = xla_tuple %s3, %s4, %s5
  %s7 = sld [smem:[#allocation0]]
  $region61: #{unet_down_forward.5} parent=0
    _
  %s9 = ssub.s32 1, %s7
  %s10 = scalar_select 0, %s9, %s7
  loop: start=0, step=1, limit=4
  $region2: #{unet_down_forward.5} parent=0 // loop_pre_header
    _
  $region3: #{unet_down_forward.5} parent=0 // loop_header
    %s12 = sphi 0, %s16
    %p13 = scmp.ge.s32.totalorder %s12, 4
    %s22 = sphi 0, %s24
    %s25 = sphi 0, %s22
    %s26 = sphi 0, %s25
    %s42 = sphi 0, %s26
    %s46 = sphi 0, %s46
    %s48 = sphi 0, %s46
    %s49 = sphi 0, %s48
    %s63 = sphi 0, %s49
    %s67 = sphi 0, %s67
    %s69 = sphi 0, %s67
    %s70 = sphi 0, %s69
    %s84 = sphi 0, %s70
    %s90 = sphi 0, %s92
    %s93 = sphi 0, %s90
    %s94 = sphi 0, %s93
    %s110 = sphi 0, %s94
    %s116 = sphi 0, %s118
    %s119 = sphi 0, %s116
    %s120 = sphi 0, %s119
    %s136 = sphi 0, %s120
    %s142 = sphi 0, %s144
    %s145 = sphi 0, %s142
    %s146 = sphi 0, %s145
    %s162 = sphi 0, %s146
  $region4: #{unet_down_forward.5} parent=0 // loop_header_branch
    %15 = sbr.rel (%p13) target = $region8
  $region5: #{unet_down_forward.5} parent=0 // loop_body
    %s17 = ssub.s32 %s12, 1
    %s18 = ssub.s32 %s12, 2
    %s19 = sadd.s32 %s12, 1
    %s20 = ssub.s32 %s12, %s19
    %p21 = scmp.eq.s32.totalorder %s20, 0
    %s23 = sadd.s32 %s22, 1
    %s24 = scalar_select %p21, %s22, %s23
    %p27 = pneg %p21
    %p28 = scmp.eq.s32.totalorder %s12, 1
    %p29 = por %p27, %p28
    %p30 = scmp.ne.s32.totalorder %s22, %s25
    %p31 = scmp.eq.s32.totalorder %s12, 0
    %p32 = por %p30, %p31
    %p33 = scmp.ne.s32.totalorder %s22, %s25
    %p34 = scmp.eq.s32.totalorder %s17, 1
    %p35 = por %p33, %p34
    %p36 = scmp.ne.s32.totalorder %s25, %s26
    %p37 = scmp.eq.s32.totalorder %s17, 0
    %p38 = por %p36, %p37
    %p39 = scmp.ne.s32.totalorder %s25, %s26
    %p40 = scmp.eq.s32.totalorder %s18, 1
    %p41 = por %p39, %p40
    %p43 = scmp.ne.s32.totalorder %s26, %s42
    %p44 = scmp.eq.s32.totalorder %s18, 0
    %p45 = por %p43, %p44
    %s47 = sadd.s32 %s46, 1
    %p50 = scmp.eq.s32.totalorder %s12, 1
    %p51 = scmp.ne.s32.totalorder %s46, %s48
    %p52 = scmp.eq.s32.totalorder %s12, 0
    %p53 = por %p51, %p52
    %p54 = scmp.ne.s32.totalorder %s46, %s48
    %p55 = scmp.eq.s32.totalorder %s17, 1
    %p56 = por %p54, %p55
    %p57 = scmp.ne.s32.totalorder %s48, %s49
    %p58 = scmp.eq.s32.totalorder %s17, 0
    %p59 = por %p57, %p58
    %p60 = scmp.ne.s32.totalorder %s48, %s49
    %p61 = scmp.eq.s32.totalorder %s18, 1
    %p62 = por %p60, %p61
    %p64 = scmp.ne.s32.totalorder %s49, %s63
    %p65 = scmp.eq.s32.totalorder %s18, 0
    %p66 = por %p64, %p65
    %s68 = sadd.s32 %s67, 1
    %p71 = scmp.eq.s32.totalorder %s12, 1
    %p72 = scmp.ne.s32.totalorder %s67, %s69
    %p73 = scmp.eq.s32.totalorder %s12, 0
    %p74 = por %p72, %p73
    %p75 = scmp.ne.s32.totalorder %s67, %s69
    %p76 = scmp.eq.s32.totalorder %s17, 1
    %p77 = por %p75, %p76
    %p78 = scmp.ne.s32.totalorder %s69, %s70
    %p79 = scmp.eq.s32.totalorder %s17, 0
    %p80 = por %p78, %p79
    %p81 = scmp.ne.s32.totalorder %s69, %s70
    %p82 = scmp.eq.s32.totalorder %s18, 1
    %p83 = por %p81, %p82
    %p85 = scmp.ne.s32.totalorder %s70, %s84
    %p86 = scmp.eq.s32.totalorder %s18, 0
    %p87 = por %p85, %p86
    %s88 = ssub.s32 %s12, %s19
    %p89 = scmp.eq.s32.totalorder %s88, 0
    %s91 = sadd.s32 %s90, 1
    %s92 = scalar_select %p89, %s90, %s91
    %p95 = pneg %p89
    %p96 = scmp.eq.s32.totalorder %s12, 1
    %p97 = por %p95, %p96
    %p98 = scmp.ne.s32.totalorder %s90, %s93
    %p99 = scmp.eq.s32.totalorder %s12, 0
    %p100 = por %p98, %p99
    %p101 = scmp.ne.s32.totalorder %s90, %s93
    %p102 = scmp.eq.s32.totalorder %s17, 1
    %p103 = por %p101, %p102
    %p104 = scmp.ne.s32.totalorder %s93, %s94
    %p105 = scmp.eq.s32.totalorder %s17, 0
    %p106 = por %p104, %p105
    %p107 = scmp.ne.s32.totalorder %s93, %s94
    %p108 = scmp.eq.s32.totalorder %s18, 1
    %p109 = por %p107, %p108
    %p111 = scmp.ne.s32.totalorder %s94, %s110
    %p112 = scmp.eq.s32.totalorder %s18, 0
    %p113 = por %p111, %p112
    %s114 = ssub.s32 %s12, %s19
    %p115 = scmp.eq.s32.totalorder %s114, 0
    %s117 = sadd.s32 %s116, 1
    %s118 = scalar_select %p115, %s116, %s117
    %p121 = pneg %p115
    %p122 = scmp.eq.s32.totalorder %s12, 1
    %p123 = por %p121, %p122
    %p124 = scmp.ne.s32.totalorder %s116, %s119
    %p125 = scmp.eq.s32.totalorder %s12, 0
    %p126 = por %p124, %p125
    %p127 = scmp.ne.s32.totalorder %s116, %s119
    %p128 = scmp.eq.s32.totalorder %s17, 1
    %p129 = por %p127, %p128
    %p130 = scmp.ne.s32.totalorder %s119, %s120
    %p131 = scmp.eq.s32.totalorder %s17, 0
    %p132 = por %p130, %p131
    %p133 = scmp.ne.s32.totalorder %s119, %s120
    %p134 = scmp.eq.s32.totalorder %s18, 1
    %p135 = por %p133, %p134
    %p137 = scmp.ne.s32.totalorder %s120, %s136
    %p138 = scmp.eq.s32.totalorder %s18, 0
    %p139 = por %p137, %p138
    %s140 = ssub.s32 %s12, %s19
    %p141 = scmp.eq.s32.totalorder %s140, 0
    %s143 = sadd.s32 %s142, 1
    %s144 = scalar_select %p141, %s142, %s143
    %p147 = pneg %p141
    %p148 = scmp.eq.s32.totalorder %s12, 1
    %p149 = por %p147, %p148
    %p150 = scmp.ne.s32.totalorder %s142, %s145
    %p151 = scmp.eq.s32.totalorder %s12, 0
    %p152 = por %p150, %p151
    %p153 = scmp.ne.s32.totalorder %s142, %s145
    %p154 = scmp.eq.s32.totalorder %s17, 1
    %p155 = por %p153, %p154
    %p156 = scmp.ne.s32.totalorder %s145, %s146
    %p157 = scmp.eq.s32.totalorder %s17, 0
    %p158 = por %p156, %p157
    %p159 = scmp.ne.s32.totalorder %s145, %s146
    %p160 = scmp.eq.s32.totalorder %s18, 1
    %p161 = por %p159, %p160
    %p163 = scmp.ne.s32.totalorder %s146, %s162
    %p164 = scmp.eq.s32.totalorder %s18, 0
    %p165 = por %p163, %p164
    %p166 = scmp.le.s32.totalorder 1, %s12
    %p167 = scmp.lt.s32.totalorder %s12, 3
    %p168 = pnand %p166, %p167
    %p169 = pneg %p168
    // Predicated region
    $region9: #{unet_down_forward.5} parent=5 // pred_check
      _
    $region10: #{unet_down_forward.5} parent=5 // pred_check_branch
      %171 = sbr.rel (%p168) target = $region12
    $region11: #{unet_down_forward.5} parent=5 // pred_region
      %s172 = ssub.s32 %s12, 1
      // Predicated region
      $region13: #{unet_down_forward.5} parent=11 // pred_check
        %p173 = pneg %p59
      $region14: #{unet_down_forward.5} parent=11 // pred_check_branch
        %175 = sbr.rel (%p173) target = $region16
      $region15: #{unet_down_forward.5} parent=11 // pred_region
        _
      $region16: #{unet_down_forward.5} parent=11 // pred_fallthru
        _
      // Predicated region
      $region17: #{unet_down_forward.5} parent=11 // pred_check
        %p176 = pneg %p80
      $region18: #{unet_down_forward.5} parent=11 // pred_check_branch
        %178 = sbr.rel (%p176) target = $region20
      $region19: #{unet_down_forward.5} parent=11 // pred_region
        _
      $region20: #{unet_down_forward.5} parent=11 // pred_fallthru
        _
    $region12: #{unet_down_forward.5} parent=5 // pred_fallthru
      _
    %p179 = scmp.lt.s32.totalorder %s12, 2
    // Predicated region
    $region21: #{unet_down_forward.5} parent=5 // pred_check
      %p180 = pneg %p179
    $region22: #{unet_down_forward.5} parent=5 // pred_check_branch
      %182 = sbr.rel (%p180) target = $region24
    $region23: #{unet_down_forward.5} parent=5 // pred_region
      // Predicated region
      $region25: #{unet_down_forward.5} parent=23 // pred_check
        %p183 = pneg %p32
      $region26: #{unet_down_forward.5} parent=23 // pred_check_branch
        %185 = sbr.rel (%p183) target = $region28
      $region27: #{unet_down_forward.5} parent=23 // pred_region
        %p186 = scmp.lt.s32.totalorder %s12, 1
        %s187 = scalar_select %p186, %s12, 1
        %s188 = smul.addr %s187, 32
        %s189 = smul.addr %s188, 4
        %s190 = scalar_lea.vmem %s0, %s189
      $region28: #{unet_down_forward.5} parent=23 // pred_fallthru
        _
    $region24: #{unet_down_forward.5} parent=5 // pred_fallthru
      _
    %p191 = scmp.le.s32.totalorder 1, %s12
    %p192 = scmp.lt.s32.totalorder %s12, 3
    %p193 = pnand %p191, %p192
    %p194 = pneg %p193
    // Predicated region
    $region29: #{unet_down_forward.5} parent=5 // pred_check
      _
    $region30: #{unet_down_forward.5} parent=5 // pred_check_branch
      %196 = sbr.rel (%p193) target = $region32
    $region31: #{unet_down_forward.5} parent=5 // pred_region
      %s197 = ssub.s32 %s12, 1
      %p198 = scmp.lt.s32.totalorder %s17, 1
      %s199 = scalar_select %p198, %s17, 1
      %s200 = smul.addr %s199, 32
      %s201 = smul.addr %s200, 4
      %s202 = scalar_lea.vmem %s0, %s201
      %p203 = pneg %p38
      %p204 = pneg %p35
      %p205 = pneg %p59
      %p206 = pneg %p56
      %p207 = pneg %p80
      %p208 = pneg %p77
      %p209 = pneg %p106
      %p210 = pneg %p103
      %p211 = scmp.lt.s32.totalorder %s17, 1
      %s212 = scalar_select %p211, %s17, 1
      %s213 = smul.addr %s212, 32
      %s214 = smul.addr %s213, 4
      %s215 = scalar_lea.vmem %s3, %s214
      %p216 = pneg %p132
      %p217 = pneg %p129
      %p218 = scmp.lt.s32.totalorder %s17, 1
      %s219 = scalar_select %p218, %s17, 1
      %s220 = scalar_lea.vmem %s4, %s219
      %p221 = pneg %p158
      %p222 = pneg %p155
      %p223 = scmp.lt.s32.totalorder %s17, 1
      %s224 = scalar_select %p223, %s17, 1
      %s225 = scalar_lea.vmem %s5, %s224
      %p226 = scmp.lt.s32.totalorder %s17, 1
      %s227 = scalar_select %p226, %s17, 1
      %s228 = smul.addr %s227, 32
      %s229 = smul.addr %s228, 4
      %s230 = scalar_lea.vmem %s0, %s229
      %p231 = scmp.lt.s32.totalorder %s17, 1
      %s232 = scalar_select %p231, %s17, 1
      %s233 = smul.addr %s232, 32
      %s234 = smul.addr %s233, 4
      %s235 = scalar_lea.vmem %s3, %s234
      %p236 = scmp.lt.s32.totalorder %s17, 1
      %s237 = scalar_select %p236, %s17, 1
      %s238 = scalar_lea.vmem %s4, %s237
      %p239 = scmp.lt.s32.totalorder %s17, 1
      %s240 = scalar_select %p239, %s17, 1
      %s241 = scalar_lea.vmem %s5, %s240
      %v243 = vld [vmem:[%s230] sm:$0xf]
      %v244 = vld [vmem:[%s230 + $0x4] sm:$0xf]
      %v245 = vld [vmem:[%s230 + $0x8] sm:$0xf]
      %v246 = vld [vmem:[%s230 + $0xc] sm:$0xf]
      %v247 = vld [vmem:[%s230 + $0x10] sm:$0xf]
      %v248 = vld [vmem:[%s230 + $0x14] sm:$0xf]
      %v249 = vld [vmem:[%s230 + $0x18] sm:$0xf]
      %v250 = vld [vmem:[%s230 + $0x1c] sm:$0xf]
      %v251 = vld [vmem:[%s230 + $0x20] sm:$0xf]
      %v252 = vld [vmem:[%s230 + $0x24] sm:$0xf]
      %v253 = vld [vmem:[%s230 + $0x28] sm:$0xf]
      %v254 = vld [vmem:[%s230 + $0x2c] sm:$0xf]
      %v255 = vld [vmem:[%s230 + $0x30] sm:$0xf]
      %v256 = vld [vmem:[%s230 + $0x34] sm:$0xf]
      %v257 = vld [vmem:[%s230 + $0x38] sm:$0xf]
      %v258 = vld [vmem:[%s230 + $0x3c] sm:$0xf]
      %v259 = vld [vmem:[%s230 + $0x40] sm:$0xf]
      %v260 = vld [vmem:[%s230 + $0x44] sm:$0xf]
      %v261 = vld [vmem:[%s230 + $0x48] sm:$0xf]
      %v262 = vld [vmem:[%s230 + $0x4c] sm:$0xf]
      %v263 = vld [vmem:[%s230 + $0x50] sm:$0xf]
      %v264 = vld [vmem:[%s230 + $0x54] sm:$0xf]
      %v265 = vld [vmem:[%s230 + $0x58] sm:$0xf]
      %v266 = vld [vmem:[%s230 + $0x5c] sm:$0xf]
      %v267 = vld [vmem:[%s230 + $0x60] sm:$0xf]
      %v268 = vld [vmem:[%s230 + $0x64] sm:$0xf]
      %v269 = vld [vmem:[%s230 + $0x68] sm:$0xf]
      %v270 = vld [vmem:[%s230 + $0x6c] sm:$0xf]
      %v271 = vld [vmem:[%s230 + $0x70] sm:$0xf]
      %v272 = vld [vmem:[%s230 + $0x74] sm:$0xf]
      %v273 = vld [vmem:[%s230 + $0x78] sm:$0xf]
      %v274 = vld [vmem:[%s230 + $0x7c] sm:$0xf]
      %v275 = vld [vmem:[%s1] sm:$0xf]
      %v276 = vld [vmem:[%s1 + $0x4] sm:$0xf]
      %v277 = vld [vmem:[%s1 + $0x8] sm:$0xf]
      %v278 = vld [vmem:[%s1 + $0xc] sm:$0xf]
      %v279 = vld [vmem:[%s1 + $0x10] sm:$0xf]
      %v280 = vld [vmem:[%s1 + $0x14] sm:$0xf]
      %v281 = vld [vmem:[%s1 + $0x18] sm:$0xf]
      %v282 = vld [vmem:[%s1 + $0x1c] sm:$0xf]
      %v283 = vld [vmem:[%s1 + $0x20] sm:$0xf]
      %v284 = vld [vmem:[%s1 + $0x24] sm:$0xf]
      %v285 = vld [vmem:[%s1 + $0x28] sm:$0xf]
      %v286 = vld [vmem:[%s1 + $0x2c] sm:$0xf]
      %v287 = vld [vmem:[%s1 + $0x30] sm:$0xf]
      %v288 = vld [vmem:[%s1 + $0x34] sm:$0xf]
      %v289 = vld [vmem:[%s1 + $0x38] sm:$0xf]
      %v290 = vld [vmem:[%s1 + $0x3c] sm:$0xf]
      %v291 = vld [vmem:[%s2] sm:$0x1]
      %v293 = vlaneseq
      %v294 = vshrl.u32 %v293, 7
      %v295 = vsub.s32 0, %v294
      %v296 = vrot.slane %v291, %v295
      %v330 = vunpack.c.l.b16 %v243
      %v331 = vunpack.c.l.b16 %v244
      %v332 = vunpack.c.l.b16 %v245
      %v333 = vunpack.c.l.b16 %v246
      %v334 = vunpack.c.l.b16 %v247
      %v335 = vunpack.c.l.b16 %v248
      %v336 = vunpack.c.l.b16 %v249
      %v337 = vunpack.c.l.b16 %v250
      %v338 = vunpack.c.l.b16 %v251
      %v339 = vunpack.c.l.b16 %v252
      %v340 = vunpack.c.l.b16 %v253
      %v341 = vunpack.c.l.b16 %v254
      %v342 = vunpack.c.l.b16 %v255
      %v343 = vunpack.c.l.b16 %v256
      %v344 = vunpack.c.l.b16 %v257
      %v345 = vunpack.c.l.b16 %v258
      %v346 = vunpack.c.l.b16 %v259
      %v347 = vunpack.c.l.b16 %v260
      %v348 = vunpack.c.l.b16 %v261
      %v349 = vunpack.c.l.b16 %v262
      %v350 = vunpack.c.l.b16 %v263
      %v351 = vunpack.c.l.b16 %v264
      %v352 = vunpack.c.l.b16 %v265
      %v353 = vunpack.c.l.b16 %v266
      %v354 = vunpack.c.l.b16 %v267
      %v355 = vunpack.c.l.b16 %v268
      %v356 = vunpack.c.l.b16 %v269
      %v357 = vunpack.c.l.b16 %v270
      %v358 = vunpack.c.l.b16 %v271
      %v359 = vunpack.c.l.b16 %v272
      %v360 = vunpack.c.l.b16 %v273
      %v361 = vunpack.c.l.b16 %v274
      %v362 = vpack.c.b16 %v331, %v330
      %v363 = vpack.c.b16 %v333, %v332
      %v364 = vpack.c.b16 %v335, %v334
      %v365 = vpack.c.b16 %v337, %v336
      %v366 = vpack.c.b16 %v339, %v338
      %v367 = vpack.c.b16 %v341, %v340
      %v368 = vpack.c.b16 %v343, %v342
      %v369 = vpack.c.b16 %v345, %v344
      %v370 = vpack.c.b16 %v347, %v346
      %v371 = vpack.c.b16 %v349, %v348
      %v372 = vpack.c.b16 %v351, %v350
      %v373 = vpack.c.b16 %v353, %v352
      %v374 = vpack.c.b16 %v355, %v354
      %v375 = vpack.c.b16 %v357, %v356
      %v376 = vpack.c.b16 %v359, %v358
      %v377 = vpack.c.b16 %v361, %v360
      %v410 = vunpack.c.l.b16 %v275
      %v411 = vunpack.c.l.b16 %v276
      %v412 = vunpack.c.l.b16 %v277
      %v413 = vunpack.c.l.b16 %v278
      %v414 = vunpack.c.l.b16 %v279
      %v415 = vunpack.c.l.b16 %v280
      %v416 = vunpack.c.l.b16 %v281
      %v417 = vunpack.c.l.b16 %v282
      %v418 = vunpack.c.l.b16 %v283
      %v419 = vunpack.c.l.b16 %v284
      %v420 = vunpack.c.l.b16 %v285
      %v421 = vunpack.c.l.b16 %v286
      %v422 = vunpack.c.l.b16 %v287
      %v423 = vunpack.c.l.b16 %v288
      %v424 = vunpack.c.l.b16 %v289
      %v425 = vunpack.c.l.b16 %v290
      %v426 = vpack.c.b16 %v411, %v410
      %v427 = vpack.c.b16 %v413, %v412
      %v428 = vpack.c.b16 %v415, %v414
      %v429 = vpack.c.b16 %v417, %v416
      %v430 = vpack.c.b16 %v419, %v418
      %v431 = vpack.c.b16 %v421, %v420
      %v432 = vpack.c.b16 %v423, %v422
      %v433 = vpack.c.b16 %v425, %v424
      %442 = vmatprep.subr.bf16.mxu0 0
      %443 = vmatpush1.bf16.msra.mxu0 %v433
      %444 = vmatprep.subr.bf16.mxu0 0
      %445 = vmatpush1.bf16.msra.mxu0 %v432
      %446 = vmatprep.subr.bf16.mxu0 0
      %447 = vmatpush1.bf16.msra.mxu0 %v431
      %448 = vmatprep.subr.bf16.mxu0 0
      %449 = vmatpush1.bf16.msra.mxu0 %v430
      %450 = vmatprep.subr.bf16.mxu0 0
      %451 = vmatpush1.bf16.msra.mxu0 %v429
      %452 = vmatprep.subr.bf16.mxu0 0
      %453 = vmatpush1.bf16.msra.mxu0 %v428
      %454 = vmatprep.subr.bf16.mxu0 0
      %455 = vmatpush1.bf16.msra.mxu0 %v427
      %456 = vmatprep.subr.bf16.mxu0 0
      %457 = vmatpush1.bf16.msra.mxu0 %v426
      %458 = vmatprep.subr.bf16.mxu0 0
      %459 = vmatpush2.bf16.msra.mxu0 0
      %460 = vmatprep.subr.bf16.mxu0 0
      %461 = vmatpush2.bf16.msra.mxu0 0
      %462 = vmatprep.subr.bf16.mxu0 0
      %463 = vmatpush2.bf16.msra.mxu0 0
      %464 = vmatprep.subr.bf16.mxu0 0
      %465 = vmatpush2.bf16.msra.mxu0 0
      %466 = vmatprep.subr.bf16.mxu0 0
      %467 = vmatpush2.bf16.msra.mxu0 0
      %468 = vmatprep.subr.bf16.mxu0 0
      %469 = vmatpush2.bf16.msra.mxu0 0
      %470 = vmatprep.subr.bf16.mxu0 0
      %471 = vmatpush2.bf16.msra.mxu0 0
      %472 = vmatprep.subr.bf16.mxu0 0
      %473 = vmatpush2.bf16.msra.mxu0 0
      %474 = vmatprep.mubr.bf16.mxu0 0
      %475 = vmatmul.mubr.bf16.gmra.mxu0 %v362
      %v476 = vpop.f32.mrf.mxu0
      %v477 = vadd.f32 %v296, %v476
      %v478 = vpop.f32.mrf.mxu0
      %v479 = vpop.f32.mrf.mxu0
      %v480 = vadd.f32 %v296, %v479
      %v481 = vpop.f32.mrf.mxu0
      %482 = vmatprep.mubr.bf16.mxu0 0
      %483 = vmatmul.mubr.bf16.gmra.mxu0 %v363
      %v484 = vpop.f32.mrf.mxu0
      %v485 = vadd.f32 %v296, %v484
      %v486 = vpop.f32.mrf.mxu0
      %v487 = vpop.f32.mrf.mxu0
      %v488 = vadd.f32 %v296, %v487
      %v489 = vpop.f32.mrf.mxu0
      %490 = vmatprep.mubr.bf16.mxu0 0
      %491 = vmatmul.mubr.bf16.gmra.mxu0 %v364
      %v492 = vpop.f32.mrf.mxu0
      %v493 = vadd.f32 %v296, %v492
      %v494 = vpop.f32.mrf.mxu0
      %v495 = vpop.f32.mrf.mxu0
      %v496 = vadd.f32 %v296, %v495
      %v497 = vpop.f32.mrf.mxu0
      %498 = vmatprep.mubr.bf16.mxu0 0
      %499 = vmatmul.mubr.bf16.gmra.mxu0 %v365
      %v500 = vpop.f32.mrf.mxu0
      %v501 = vadd.f32 %v296, %v500
      %v502 = vpop.f32.mrf.mxu0
      %v503 = vpop.f32.mrf.mxu0
      %v504 = vadd.f32 %v296, %v503
      %v505 = vpop.f32.mrf.mxu0
      %506 = vmatprep.mubr.bf16.mxu0 0
      %507 = vmatmul.mubr.bf16.gmra.mxu0 %v366
      %v508 = vpop.f32.mrf.mxu0
      %v509 = vadd.f32 %v296, %v508
      %v510 = vpop.f32.mrf.mxu0
      %v511 = vpop.f32.mrf.mxu0
      %v512 = vadd.f32 %v296, %v511
      %v513 = vpop.f32.mrf.mxu0
      %514 = vmatprep.mubr.bf16.mxu0 0
      %515 = vmatmul.mubr.bf16.gmra.mxu0 %v367
      %v516 = vpop.f32.mrf.mxu0
      %v517 = vadd.f32 %v296, %v516
      %v518 = vpop.f32.mrf.mxu0
      %v519 = vpop.f32.mrf.mxu0
      %v520 = vadd.f32 %v296, %v519
      %v521 = vpop.f32.mrf.mxu0
      %522 = vmatprep.mubr.bf16.mxu0 0
      %523 = vmatmul.mubr.bf16.gmra.mxu0 %v368
      %v524 = vpop.f32.mrf.mxu0
      %v525 = vadd.f32 %v296, %v524
      %v526 = vpop.f32.mrf.mxu0
      %v527 = vpop.f32.mrf.mxu0
      %v528 = vadd.f32 %v296, %v527
      %v529 = vpop.f32.mrf.mxu0
      %530 = vmatprep.mubr.bf16.mxu0 0
      %531 = vmatmul.mubr.bf16.gmra.mxu0 %v369
      %v532 = vpop.f32.mrf.mxu0
      %v533 = vadd.f32 %v296, %v532
      %v534 = vpop.f32.mrf.mxu0
      %v535 = vpop.f32.mrf.mxu0
      %v536 = vadd.f32 %v296, %v535
      %v537 = vpop.f32.mrf.mxu0
      %538 = vmatprep.mubr.bf16.mxu0 0
      %539 = vmatmul.mubr.bf16.gmra.mxu0 %v370
      %v540 = vpop.f32.mrf.mxu0
      %v541 = vadd.f32 %v296, %v540
      %v542 = vpop.f32.mrf.mxu0
      %v543 = vpop.f32.mrf.mxu0
      %v544 = vadd.f32 %v296, %v543
      %v545 = vpop.f32.mrf.mxu0
      %546 = vmatprep.mubr.bf16.mxu0 0
      %547 = vmatmul.mubr.bf16.gmra.mxu0 %v371
      %v548 = vpop.f32.mrf.mxu0
      %v549 = vadd.f32 %v296, %v548
      %v550 = vpop.f32.mrf.mxu0
      %v551 = vpop.f32.mrf.mxu0
      %v552 = vadd.f32 %v296, %v551
      %v553 = vpop.f32.mrf.mxu0
      %554 = vmatprep.mubr.bf16.mxu0 0
      %555 = vmatmul.mubr.bf16.gmra.mxu0 %v372
      %v556 = vpop.f32.mrf.mxu0
      %v557 = vadd.f32 %v296, %v556
      %v558 = vpop.f32.mrf.mxu0
      %v559 = vpop.f32.mrf.mxu0
      %v560 = vadd.f32 %v296, %v559
      %v561 = vpop.f32.mrf.mxu0
      %562 = vmatprep.mubr.bf16.mxu0 0
      %563 = vmatmul.mubr.bf16.gmra.mxu0 %v373
      %v564 = vpop.f32.mrf.mxu0
      %v565 = vadd.f32 %v296, %v564
      %v566 = vpop.f32.mrf.mxu0
      %v567 = vpop.f32.mrf.mxu0
      %v568 = vadd.f32 %v296, %v567
      %v569 = vpop.f32.mrf.mxu0
      %570 = vmatprep.mubr.bf16.mxu0 0
      %571 = vmatmul.mubr.bf16.gmra.mxu0 %v374
      %v572 = vpop.f32.mrf.mxu0
      %v573 = vadd.f32 %v296, %v572
      %v574 = vpop.f32.mrf.mxu0
      %v575 = vpop.f32.mrf.mxu0
      %v576 = vadd.f32 %v296, %v575
      %v577 = vpop.f32.mrf.mxu0
      %578 = vmatprep.mubr.bf16.mxu0 0
      %579 = vmatmul.mubr.bf16.gmra.mxu0 %v375
      %v580 = vpop.f32.mrf.mxu0
      %v581 = vadd.f32 %v296, %v580
      %v582 = vpop.f32.mrf.mxu0
      %v583 = vpop.f32.mrf.mxu0
      %v584 = vadd.f32 %v296, %v583
      %v585 = vpop.f32.mrf.mxu0
      %586 = vmatprep.mubr.bf16.mxu0 0
      %587 = vmatmul.mubr.bf16.gmra.mxu0 %v376
      %v588 = vpop.f32.mrf.mxu0
      %v589 = vadd.f32 %v296, %v588
      %v590 = vpop.f32.mrf.mxu0
      %v591 = vpop.f32.mrf.mxu0
      %v592 = vadd.f32 %v296, %v591
      %v593 = vpop.f32.mrf.mxu0
      %594 = vmatprep.mubr.bf16.mxu0 0
      %595 = vmatmul.mubr.bf16.gmra.mxu0 %v377
      %v596 = vpop.f32.mrf.mxu0
      %v597 = vadd.f32 %v296, %v596
      %v598 = vpop.f32.mrf.mxu0
      %v599 = vpop.f32.mrf.mxu0
      %v600 = vadd.f32 %v296, %v599
      %v601 = vpop.f32.mrf.mxu0
      %602 = vdwg.mxu0
      %v603 = vadd.f32 %v477, %v480
      %v604 = vadd.f32 %v603, %v485
      %v605 = vadd.f32 %v604, %v488
      %v606 = vadd.f32 %v605, %v493
      %v607 = vadd.f32 %v606, %v496
      %v608 = vadd.f32 %v607, %v501
      %v609 = vadd.f32 %v608, %v504
      %v610 = vadd.f32 %v609, %v509
      %v611 = vadd.f32 %v610, %v512
      %v612 = vadd.f32 %v611, %v517
      %v613 = vadd.f32 %v612, %v520
      %v614 = vadd.f32 %v613, %v525
      %v615 = vadd.f32 %v614, %v528
      %v616 = vadd.f32 %v615, %v533
      %v617 = vadd.f32 %v616, %v536
      %v618 = vadd.f32 %v617, %v541
      %v619 = vadd.f32 %v618, %v544
      %v620 = vadd.f32 %v619, %v549
      %v621 = vadd.f32 %v620, %v552
      %v622 = vadd.f32 %v621, %v557
      %v623 = vadd.f32 %v622, %v560
      %v624 = vadd.f32 %v623, %v565
      %v625 = vadd.f32 %v624, %v568
      %v626 = vadd.f32 %v625, %v573
      %v627 = vadd.f32 %v626, %v576
      %v628 = vadd.f32 %v627, %v581
      %v629 = vadd.f32 %v628, %v584
      %v630 = vadd.f32 %v629, %v589
      %v631 = vadd.f32 %v630, %v592
      %v632 = vadd.f32 %v631, %v597
      %v633 = vadd.f32 %v632, %v600
      %v634 = vrot.slane %v633, 4
      %v635 = vadd.f32 %v633, %v634
      %v636 = vrot.slane %v635, 2
      %v637 = vadd.f32 %v635, %v636
      %v638 = vrot.slane %v637, 1
      %v639 = vadd.f32 %v637, %v638
      %640 = vst [vmem:[%s238] sm:$0x1] %v639
      %v641 = vmul.f32 %v477, %v477
      %v642 = vmul.f32 %v480, %v480
      %v643 = vmul.f32 %v485, %v485
      %v644 = vmul.f32 %v488, %v488
      %v645 = vmul.f32 %v493, %v493
      %v646 = vmul.f32 %v496, %v496
      %v647 = vmul.f32 %v501, %v501
      %v648 = vmul.f32 %v504, %v504
      %v649 = vmul.f32 %v509, %v509
      %v650 = vmul.f32 %v512, %v512
      %v651 = vmul.f32 %v517, %v517
      %v652 = vmul.f32 %v520, %v520
      %v653 = vmul.f32 %v525, %v525
      %v654 = vmul.f32 %v528, %v528
      %v655 = vmul.f32 %v533, %v533
      %v656 = vmul.f32 %v536, %v536
      %v657 = vmul.f32 %v541, %v541
      %v658 = vmul.f32 %v544, %v544
      %v659 = vmul.f32 %v549, %v549
      %v660 = vmul.f32 %v552, %v552
      %v661 = vmul.f32 %v557, %v557
      %v662 = vmul.f32 %v560, %v560
      %v663 = vmul.f32 %v565, %v565
      %v664 = vmul.f32 %v568, %v568
      %v665 = vmul.f32 %v573, %v573
      %v666 = vmul.f32 %v576, %v576
      %v667 = vmul.f32 %v581, %v581
      %v668 = vmul.f32 %v584, %v584
      %v669 = vmul.f32 %v589, %v589
      %v670 = vmul.f32 %v592, %v592
      %v671 = vmul.f32 %v597, %v597
      %v672 = vmul.f32 %v600, %v600
      %v673 = vadd.f32 %v641, %v642
      %v674 = vadd.f32 %v673, %v643
      %v675 = vadd.f32 %v674, %v644
      %v676 = vadd.f32 %v675, %v645
      %v677 = vadd.f32 %v676, %v646
      %v678 = vadd.f32 %v677, %v647
      %v679 = vadd.f32 %v678, %v648
      %v680 = vadd.f32 %v679, %v649
      %v681 = vadd.f32 %v680, %v650
      %v682 = vadd.f32 %v681, %v651
      %v683 = vadd.f32 %v682, %v652
      %v684 = vadd.f32 %v683, %v653
      %v685 = vadd.f32 %v684, %v654
      %v686 = vadd.f32 %v685, %v655
      %v687 = vadd.f32 %v686, %v656
      %v688 = vadd.f32 %v687, %v657
      %v689 = vadd.f32 %v688, %v658
      %v690 = vadd.f32 %v689, %v659
      %v691 = vadd.f32 %v690, %v660
      %v692 = vadd.f32 %v691, %v661
      %v693 = vadd.f32 %v692, %v662
      %v694 = vadd.f32 %v693, %v663
      %v695 = vadd.f32 %v694, %v664
      %v696 = vadd.f32 %v695, %v665
      %v697 = vadd.f32 %v696, %v666
      %v698 = vadd.f32 %v697, %v667
      %v699 = vadd.f32 %v698, %v668
      %v700 = vadd.f32 %v699, %v669
      %v701 = vadd.f32 %v700, %v670
      %v702 = vadd.f32 %v701, %v671
      %v703 = vadd.f32 %v702, %v672
      %v704 = vrot.slane %v703, 4
      %v705 = vadd.f32 %v703, %v704
      %v706 = vrot.slane %v705, 2
      %v707 = vadd.f32 %v705, %v706
      %v708 = vrot.slane %v707, 1
      %v709 = vadd.f32 %v707, %v708
      %710 = vst [vmem:[%s241] sm:$0x1] %v709
      %v711 = vpack.c.bf16 %v480, %v477
      %v712 = vpack.c.bf16 %v488, %v485
      %v713 = vpack.c.bf16 %v496, %v493
      %v714 = vpack.c.bf16 %v504, %v501
      %v715 = vpack.c.bf16 %v512, %v509
      %v716 = vpack.c.bf16 %v520, %v517
      %v717 = vpack.c.bf16 %v528, %v525
      %v718 = vpack.c.bf16 %v536, %v533
      %v719 = vpack.c.bf16 %v544, %v541
      %v720 = vpack.c.bf16 %v552, %v549
      %v721 = vpack.c.bf16 %v560, %v557
      %v722 = vpack.c.bf16 %v568, %v565
      %v723 = vpack.c.bf16 %v576, %v573
      %v724 = vpack.c.bf16 %v584, %v581
      %v725 = vpack.c.bf16 %v592, %v589
      %v726 = vpack.c.bf16 %v600, %v597
      %v743 = vunpack.c.l.b16 %v711
      %v744 = vunpack.c.h.b16 %v711
      %v745 = vunpack.c.l.b16 %v712
      %v746 = vunpack.c.h.b16 %v712
      %v747 = vunpack.c.l.b16 %v713
      %v748 = vunpack.c.h.b16 %v713
      %v749 = vunpack.c.l.b16 %v714
      %v750 = vunpack.c.h.b16 %v714
      %v751 = vunpack.c.l.b16 %v715
      %v752 = vunpack.c.h.b16 %v715
      %v753 = vunpack.c.l.b16 %v716
      %v754 = vunpack.c.h.b16 %v716
      %v755 = vunpack.c.l.b16 %v717
      %v756 = vunpack.c.h.b16 %v717
      %v757 = vunpack.c.l.b16 %v718
      %v758 = vunpack.c.h.b16 %v718
      %v759 = vunpack.c.l.b16 %v719
      %v760 = vunpack.c.h.b16 %v719
      %v761 = vunpack.c.l.b16 %v720
      %v762 = vunpack.c.h.b16 %v720
      %v763 = vunpack.c.l.b16 %v721
      %v764 = vunpack.c.h.b16 %v721
      %v765 = vunpack.c.l.b16 %v722
      %v766 = vunpack.c.h.b16 %v722
      %v767 = vunpack.c.l.b16 %v723
      %v768 = vunpack.c.h.b16 %v723
      %v769 = vunpack.c.l.b16 %v724
      %v770 = vunpack.c.h.b16 %v724
      %v771 = vunpack.c.l.b16 %v725
      %v772 = vunpack.c.h.b16 %v725
      %v773 = vunpack.c.l.b16 %v726
      %v774 = vunpack.c.h.b16 %v726
      %v775 = vpack.c.b16 %v743, %v743
      %v776 = vpack.c.b16 %v744, %v744
      %v777 = vpack.c.b16 %v745, %v745
      %v778 = vpack.c.b16 %v746, %v746
      %v779 = vpack.c.b16 %v747, %v747
      %v780 = vpack.c.b16 %v748, %v748
      %v781 = vpack.c.b16 %v749, %v749
      %v782 = vpack.c.b16 %v750, %v750
      %v783 = vpack.c.b16 %v751, %v751
      %v784 = vpack.c.b16 %v752, %v752
      %v785 = vpack.c.b16 %v753, %v753
      %v786 = vpack.c.b16 %v754, %v754
      %v787 = vpack.c.b16 %v755, %v755
      %v788 = vpack.c.b16 %v756, %v756
      %v789 = vpack.c.b16 %v757, %v757
      %v790 = vpack.c.b16 %v758, %v758
      %v791 = vpack.c.b16 %v759, %v759
      %v792 = vpack.c.b16 %v760, %v760
      %v793 = vpack.c.b16 %v761, %v761
      %v794 = vpack.c.b16 %v762, %v762
      %v795 = vpack.c.b16 %v763, %v763
      %v796 = vpack.c.b16 %v764, %v764
      %v797 = vpack.c.b16 %v765, %v765
      %v798 = vpack.c.b16 %v766, %v766
      %v799 = vpack.c.b16 %v767, %v767
      %v800 = vpack.c.b16 %v768, %v768
      %v801 = vpack.c.b16 %v769, %v769
      %v802 = vpack.c.b16 %v770, %v770
      %v803 = vpack.c.b16 %v771, %v771
      %v804 = vpack.c.b16 %v772, %v772
      %v805 = vpack.c.b16 %v773, %v773
      %v806 = vpack.c.b16 %v774, %v774
      %839 = vst [vmem:[%s235] sm:$0xf] %v775
      %840 = vst [vmem:[%s235 + $0x4] sm:$0xf] %v776
      %841 = vst [vmem:[%s235 + $0x8] sm:$0xf] %v777
      %842 = vst [vmem:[%s235 + $0xc] sm:$0xf] %v778
      %843 = vst [vmem:[%s235 + $0x10] sm:$0xf] %v779
      %844 = vst [vmem:[%s235 + $0x14] sm:$0xf] %v780
      %845 = vst [vmem:[%s235 + $0x18] sm:$0xf] %v781
      %846 = vst [vmem:[%s235 + $0x1c] sm:$0xf] %v782
      %847 = vst [vmem:[%s235 + $0x20] sm:$0xf] %v783
      %848 = vst [vmem:[%s235 + $0x24] sm:$0xf] %v784
      %849 = vst [vmem:[%s235 + $0x28] sm:$0xf] %v785
      %850 = vst [vmem:[%s235 + $0x2c] sm:$0xf] %v786
      %851 = vst [vmem:[%s235 + $0x30] sm:$0xf] %v787
      %852 = vst [vmem:[%s235 + $0x34] sm:$0xf] %v788
      %853 = vst [vmem:[%s235 + $0x38] sm:$0xf] %v789
      %854 = vst [vmem:[%s235 + $0x3c] sm:$0xf] %v790
      %855 = vst [vmem:[%s235 + $0x40] sm:$0xf] %v791
      %856 = vst [vmem:[%s235 + $0x44] sm:$0xf] %v792
      %857 = vst [vmem:[%s235 + $0x48] sm:$0xf] %v793
      %858 = vst [vmem:[%s235 + $0x4c] sm:$0xf] %v794
      %859 = vst [vmem:[%s235 + $0x50] sm:$0xf] %v795
      %860 = vst [vmem:[%s235 + $0x54] sm:$0xf] %v796
      %861 = vst [vmem:[%s235 + $0x58] sm:$0xf] %v797
      %862 = vst [vmem:[%s235 + $0x5c] sm:$0xf] %v798
      %863 = vst [vmem:[%s235 + $0x60] sm:$0xf] %v799
      %864 = vst [vmem:[%s235 + $0x64] sm:$0xf] %v800
      %865 = vst [vmem:[%s235 + $0x68] sm:$0xf] %v801
      %866 = vst [vmem:[%s235 + $0x6c] sm:$0xf] %v802
      %867 = vst [vmem:[%s235 + $0x70] sm:$0xf] %v803
      %868 = vst [vmem:[%s235 + $0x74] sm:$0xf] %v804
      %869 = vst [vmem:[%s235 + $0x78] sm:$0xf] %v805
      %870 = vst [vmem:[%s235 + $0x7c] sm:$0xf] %v806
      %p871 = scmp.lt.s32.totalorder %s17, 1
      %s872 = scalar_select %p871, %s17, 1
      %s873 = smul.addr %s872, 32
      %s874 = smul.addr %s873, 4
      %s875 = scalar_lea.vmem %s3, %s874
      %p876 = scmp.lt.s32.totalorder %s17, 1
      %s877 = scalar_select %p876, %s17, 1
      %s878 = scalar_lea.vmem %s4, %s877
      %p879 = scmp.lt.s32.totalorder %s17, 1
      %s880 = scalar_select %p879, %s17, 1
      %s881 = scalar_lea.vmem %s5, %s880
      // Predicated region
      $region33: #{unet_down_forward.5} parent=31 // pred_check
        %p882 = pneg %p103
      $region34: #{unet_down_forward.5} parent=31 // pred_check_branch
        %884 = sbr.rel (%p882) target = $region36
      $region35: #{unet_down_forward.5} parent=31 // pred_region
        _
      $region36: #{unet_down_forward.5} parent=31 // pred_fallthru
        _
      // Predicated region
      $region37: #{unet_down_forward.5} parent=31 // pred_check
        %p885 = pneg %p129
      $region38: #{unet_down_forward.5} parent=31 // pred_check_branch
        %887 = sbr.rel (%p885) target = $region40
      $region39: #{unet_down_forward.5} parent=31 // pred_region
        _
      $region40: #{unet_down_forward.5} parent=31 // pred_fallthru
        _
      // Predicated region
      $region41: #{unet_down_forward.5} parent=31 // pred_check
        %p888 = pneg %p155
      $region42: #{unet_down_forward.5} parent=31 // pred_check_branch
        %890 = sbr.rel (%p888) target = $region44
      $region43: #{unet_down_forward.5} parent=31 // pred_region
        _
      $region44: #{unet_down_forward.5} parent=31 // pred_fallthru
        _
    $region32: #{unet_down_forward.5} parent=5 // pred_fallthru
      _
    %p891 = scmp.le.s32.totalorder 2, %s12
    // Predicated region
    $region45: #{unet_down_forward.5} parent=5 // pred_check
      %p892 = pneg %p891
    $region46: #{unet_down_forward.5} parent=5 // pred_check_branch
      %894 = sbr.rel (%p892) target = $region48
    $region47: #{unet_down_forward.5} parent=5 // pred_region
      %s895 = ssub.s32 %s12, 2
      // Predicated region
      $region49: #{unet_down_forward.5} parent=47 // pred_check
        %p896 = pneg %p109
      $region50: #{unet_down_forward.5} parent=47 // pred_check_branch
        %898 = sbr.rel (%p896) target = $region52
      $region51: #{unet_down_forward.5} parent=47 // pred_region
        %p899 = scmp.lt.s32.totalorder %s18, 1
        %s900 = scalar_select %p899, %s18, 1
        %s901 = smul.addr %s900, 32
        %s902 = smul.addr %s901, 4
        %s903 = scalar_lea.vmem %s3, %s902
      $region52: #{unet_down_forward.5} parent=47 // pred_fallthru
        _
      // Predicated region
      $region53: #{unet_down_forward.5} parent=47 // pred_check
        %p904 = pneg %p135
      $region54: #{unet_down_forward.5} parent=47 // pred_check_branch
        %906 = sbr.rel (%p904) target = $region56
      $region55: #{unet_down_forward.5} parent=47 // pred_region
        %p907 = scmp.lt.s32.totalorder %s18, 1
        %s908 = scalar_select %p907, %s18, 1
        %s909 = scalar_lea.vmem %s4, %s908
      $region56: #{unet_down_forward.5} parent=47 // pred_fallthru
        _
      // Predicated region
      $region57: #{unet_down_forward.5} parent=47 // pred_check
        %p910 = pneg %p161
      $region58: #{unet_down_forward.5} parent=47 // pred_check_branch
        %912 = sbr.rel (%p910) target = $region60
      $region59: #{unet_down_forward.5} parent=47 // pred_region
        %p913 = scmp.lt.s32.totalorder %s18, 1
        %s914 = scalar_select %p913, %s18, 1
        %s915 = scalar_lea.vmem %s5, %s914
      $region60: #{unet_down_forward.5} parent=47 // pred_fallthru
        _
    $region48: #{unet_down_forward.5} parent=5 // pred_fallthru
      _
  $region6: #{unet_down_forward.5} parent=0 // loop_footer
    %s16 = sadd.s32 1, %s12
  $region7: #{unet_down_forward.5} parent=0 // loop_footer_branch
    %11 = sbr.rel target = $region3
  $region8: #{unet_down_forward.5} parent=0 // loop_exit
    _

// kernel: unet_down_forward.6
$region0: #{unet_down_forward.6}
  #allocation0 [shape = 'u32[]', space=smem, size = 0x4, offset = 0x4, fixed_abs, tag = 'smem constant byte address 0x4 - core index']
  #allocation1 [shape = 'u32[144,128]{1,0:T(1,128)}', space=vmem, size = 0x12000, scoped, tag = 'internal scratch']
  #allocation2 [shape = 'bf16[19,24,128]{2,1,0:T(8,128)(2,1)}', space=vmem, size = 0x1c800, scoped, tag = 'scratch operand']
  %s0 = inlined_call_operand.vmem [shape: bf16[2,16,16,128], index: 0, kind: input, shape index: {}]
  %s1 = inlined_call_operand.vmem [shape: f32[1,128], index: 1, kind: input, shape index: {}]
  %s2 = inlined_call_operand.vmem [shape: f32[1,128], index: 2, kind: input, shape index: {}]
  %s3 = inlined_call_operand.vmem [shape: f32[1,128], index: 3, kind: input, shape index: {}]
  %s4 = inlined_call_operand.vmem [shape: f32[1,128], index: 4, kind: input, shape index: {}]
  %s5 = inlined_call_operand.vmem [shape: bf16[9,128,128], index: 5, kind: input, shape index: {}]
  %s6 = inlined_call_operand.vmem [shape: f32[1,128], index: 6, kind: input, shape index: {}]
  %s7 = inlined_call_operand.vmem [shape: bf16[2,16,16,128], index: 7, kind: output, shape index: {0}]
  %s8 = inlined_call_operand.vmem [shape: f32[2,1,128], index: 8, kind: output, shape index: {1}]
  %s9 = inlined_call_operand.vmem [shape: f32[2,1,128], index: 9, kind: output, shape index: {2}]
  %10 = xla_tuple %s7, %s8, %s9
  %s11 = sld [smem:[#allocation0]]
  $region77: #{unet_down_forward.6} parent=0
    _
  %s13 = ssub.s32 1, %s11
  %s14 = scalar_select 0, %s13, %s11
  loop: start=0, step=1, limit=4
  $region2: #{unet_down_forward.6} parent=0 // loop_pre_header
    _
  $region3: #{unet_down_forward.6} parent=0 // loop_header
    %s16 = sphi 0, %s20
    %p17 = scmp.ge.s32.totalorder %s16, 4
    %s26 = sphi 0, %s28
    %s29 = sphi 0, %s26
    %s30 = sphi 0, %s29
    %s46 = sphi 0, %s30
    %s50 = sphi 0, %s50
    %s52 = sphi 0, %s50
    %s53 = sphi 0, %s52
    %s67 = sphi 0, %s53
    %s71 = sphi 0, %s71
    %s73 = sphi 0, %s71
    %s74 = sphi 0, %s73
    %s88 = sphi 0, %s74
    %s92 = sphi 0, %s92
    %s94 = sphi 0, %s92
    %s95 = sphi 0, %s94
    %s109 = sphi 0, %s95
    %s113 = sphi 0, %s113
    %s115 = sphi 0, %s113
    %s116 = sphi 0, %s115
    %s130 = sphi 0, %s116
    %s134 = sphi 0, %s134
    %s136 = sphi 0, %s134
    %s137 = sphi 0, %s136
    %s151 = sphi 0, %s137
    %s155 = sphi 0, %s155
    %s157 = sphi 0, %s155
    %s158 = sphi 0, %s157
    %s172 = sphi 0, %s158
    %s178 = sphi 0, %s180
    %s181 = sphi 0, %s178
    %s182 = sphi 0, %s181
    %s198 = sphi 0, %s182
    %s204 = sphi 0, %s206
    %s207 = sphi 0, %s204
    %s208 = sphi 0, %s207
    %s224 = sphi 0, %s208
    %s230 = sphi 0, %s232
    %s233 = sphi 0, %s230
    %s234 = sphi 0, %s233
    %s250 = sphi 0, %s234
  $region4: #{unet_down_forward.6} parent=0 // loop_header_branch
    %19 = sbr.rel (%p17) target = $region8
  $region5: #{unet_down_forward.6} parent=0 // loop_body
    %s21 = ssub.s32 %s16, 1
    %s22 = ssub.s32 %s16, 2
    %s23 = sadd.s32 %s16, 1
    %s24 = ssub.s32 %s16, %s23
    %p25 = scmp.eq.s32.totalorder %s24, 0
    %s27 = sadd.s32 %s26, 1
    %s28 = scalar_select %p25, %s26, %s27
    %p31 = pneg %p25
    %p32 = scmp.eq.s32.totalorder %s16, 1
    %p33 = por %p31, %p32
    %p34 = scmp.ne.s32.totalorder %s26, %s29
    %p35 = scmp.eq.s32.totalorder %s16, 0
    %p36 = por %p34, %p35
    %p37 = scmp.ne.s32.totalorder %s26, %s29
    %p38 = scmp.eq.s32.totalorder %s21, 1
    %p39 = por %p37, %p38
    %p40 = scmp.ne.s32.totalorder %s29, %s30
    %p41 = scmp.eq.s32.totalorder %s21, 0
    %p42 = por %p40, %p41
    %p43 = scmp.ne.s32.totalorder %s29, %s30
    %p44 = scmp.eq.s32.totalorder %s22, 1
    %p45 = por %p43, %p44
    %p47 = scmp.ne.s32.totalorder %s30, %s46
    %p48 = scmp.eq.s32.totalorder %s22, 0
    %p49 = por %p47, %p48
    %s51 = sadd.s32 %s50, 1
    %p54 = scmp.eq.s32.totalorder %s16, 1
    %p55 = scmp.ne.s32.totalorder %s50, %s52
    %p56 = scmp.eq.s32.totalorder %s16, 0
    %p57 = por %p55, %p56
    %p58 = scmp.ne.s32.totalorder %s50, %s52
    %p59 = scmp.eq.s32.totalorder %s21, 1
    %p60 = por %p58, %p59
    %p61 = scmp.ne.s32.totalorder %s52, %s53
    %p62 = scmp.eq.s32.totalorder %s21, 0
    %p63 = por %p61, %p62
    %p64 = scmp.ne.s32.totalorder %s52, %s53
    %p65 = scmp.eq.s32.totalorder %s22, 1
    %p66 = por %p64, %p65
    %p68 = scmp.ne.s32.totalorder %s53, %s67
    %p69 = scmp.eq.s32.totalorder %s22, 0
    %p70 = por %p68, %p69
    %s72 = sadd.s32 %s71, 1
    %p75 = scmp.eq.s32.totalorder %s16, 1
    %p76 = scmp.ne.s32.totalorder %s71, %s73
    %p77 = scmp.eq.s32.totalorder %s16, 0
    %p78 = por %p76, %p77
    %p79 = scmp.ne.s32.totalorder %s71, %s73
    %p80 = scmp.eq.s32.totalorder %s21, 1
    %p81 = por %p79, %p80
    %p82 = scmp.ne.s32.totalorder %s73, %s74
    %p83 = scmp.eq.s32.totalorder %s21, 0
    %p84 = por %p82, %p83
    %p85 = scmp.ne.s32.totalorder %s73, %s74
    %p86 = scmp.eq.s32.totalorder %s22, 1
    %p87 = por %p85, %p86
    %p89 = scmp.ne.s32.totalorder %s74, %s88
    %p90 = scmp.eq.s32.totalorder %s22, 0
    %p91 = por %p89, %p90
    %s93 = sadd.s32 %s92, 1
    %p96 = scmp.eq.s32.totalorder %s16, 1
    %p97 = scmp.ne.s32.totalorder %s92, %s94
    %p98 = scmp.eq.s32.totalorder %s16, 0
    %p99 = por %p97, %p98
    %p100 = scmp.ne.s32.totalorder %s92, %s94
    %p101 = scmp.eq.s32.totalorder %s21, 1
    %p102 = por %p100, %p101
    %p103 = scmp.ne.s32.totalorder %s94, %s95
    %p104 = scmp.eq.s32.totalorder %s21, 0
    %p105 = por %p103, %p104
    %p106 = scmp.ne.s32.totalorder %s94, %s95
    %p107 = scmp.eq.s32.totalorder %s22, 1
    %p108 = por %p106, %p107
    %p110 = scmp.ne.s32.totalorder %s95, %s109
    %p111 = scmp.eq.s32.totalorder %s22, 0
    %p112 = por %p110, %p111
    %s114 = sadd.s32 %s113, 1
    %p117 = scmp.eq.s32.totalorder %s16, 1
    %p118 = scmp.ne.s32.totalorder %s113, %s115
    %p119 = scmp.eq.s32.totalorder %s16, 0
    %p120 = por %p118, %p119
    %p121 = scmp.ne.s32.totalorder %s113, %s115
    %p122 = scmp.eq.s32.totalorder %s21, 1
    %p123 = por %p121, %p122
    %p124 = scmp.ne.s32.totalorder %s115, %s116
    %p125 = scmp.eq.s32.totalorder %s21, 0
    %p126 = por %p124, %p125
    %p127 = scmp.ne.s32.totalorder %s115, %s116
    %p128 = scmp.eq.s32.totalorder %s22, 1
    %p129 = por %p127, %p128
    %p131 = scmp.ne.s32.totalorder %s116, %s130
    %p132 = scmp.eq.s32.totalorder %s22, 0
    %p133 = por %p131, %p132
    %s135 = sadd.s32 %s134, 1
    %p138 = scmp.eq.s32.totalorder %s16, 1
    %p139 = scmp.ne.s32.totalorder %s134, %s136
    %p140 = scmp.eq.s32.totalorder %s16, 0
    %p141 = por %p139, %p140
    %p142 = scmp.ne.s32.totalorder %s134, %s136
    %p143 = scmp.eq.s32.totalorder %s21, 1
    %p144 = por %p142, %p143
    %p145 = scmp.ne.s32.totalorder %s136, %s137
    %p146 = scmp.eq.s32.totalorder %s21, 0
    %p147 = por %p145, %p146
    %p148 = scmp.ne.s32.totalorder %s136, %s137
    %p149 = scmp.eq.s32.totalorder %s22, 1
    %p150 = por %p148, %p149
    %p152 = scmp.ne.s32.totalorder %s137, %s151
    %p153 = scmp.eq.s32.totalorder %s22, 0
    %p154 = por %p152, %p153
    %s156 = sadd.s32 %s155, 1
    %p159 = scmp.eq.s32.totalorder %s16, 1
    %p160 = scmp.ne.s32.totalorder %s155, %s157
    %p161 = scmp.eq.s32.totalorder %s16, 0
    %p162 = por %p160, %p161
    %p163 = scmp.ne.s32.totalorder %s155, %s157
    %p164 = scmp.eq.s32.totalorder %s21, 1
    %p165 = por %p163, %p164
    %p166 = scmp.ne.s32.totalorder %s157, %s158
    %p167 = scmp.eq.s32.totalorder %s21, 0
    %p168 = por %p166, %p167
    %p169 = scmp.ne.s32.totalorder %s157, %s158
    %p170 = scmp.eq.s32.totalorder %s22, 1
    %p171 = por %p169, %p170
    %p173 = scmp.ne.s32.totalorder %s158, %s172
    %p174 = scmp.eq.s32.totalorder %s22, 0
    %p175 = por %p173, %p174
    %s176 = ssub.s32 %s16, %s23
    %p177 = scmp.eq.s32.totalorder %s176, 0
    %s179 = sadd.s32 %s178, 1
    %s180 = scalar_select %p177, %s178, %s179
    %p183 = pneg %p177
    %p184 = scmp.eq.s32.totalorder %s16, 1
    %p185 = por %p183, %p184
    %p186 = scmp.ne.s32.totalorder %s178, %s181
    %p187 = scmp.eq.s32.totalorder %s16, 0
    %p188 = por %p186, %p187
    %p189 = scmp.ne.s32.totalorder %s178, %s181
    %p190 = scmp.eq.s32.totalorder %s21, 1
    %p191 = por %p189, %p190
    %p192 = scmp.ne.s32.totalorder %s181, %s182
    %p193 = scmp.eq.s32.totalorder %s21, 0
    %p194 = por %p192, %p193
    %p195 = scmp.ne.s32.totalorder %s181, %s182
    %p196 = scmp.eq.s32.totalorder %s22, 1
    %p197 = por %p195, %p196
    %p199 = scmp.ne.s32.totalorder %s182, %s198
    %p200 = scmp.eq.s32.totalorder %s22, 0
    %p201 = por %p199, %p200
    %s202 = ssub.s32 %s16, %s23
    %p203 = scmp.eq.s32.totalorder %s202, 0
    %s205 = sadd.s32 %s204, 1
    %s206 = scalar_select %p203, %s204, %s205
    %p209 = pneg %p203
    %p210 = scmp.eq.s32.totalorder %s16, 1
    %p211 = por %p209, %p210
    %p212 = scmp.ne.s32.totalorder %s204, %s207
    %p213 = scmp.eq.s32.totalorder %s16, 0
    %p214 = por %p212, %p213
    %p215 = scmp.ne.s32.totalorder %s204, %s207
    %p216 = scmp.eq.s32.totalorder %s21, 1
    %p217 = por %p215, %p216
    %p218 = scmp.ne.s32.totalorder %s207, %s208
    %p219 = scmp.eq.s32.totalorder %s21, 0
    %p220 = por %p218, %p219
    %p221 = scmp.ne.s32.totalorder %s207, %s208
    %p222 = scmp.eq.s32.totalorder %s22, 1
    %p223 = por %p221, %p222
    %p225 = scmp.ne.s32.totalorder %s208, %s224
    %p226 = scmp.eq.s32.totalorder %s22, 0
    %p227 = por %p225, %p226
    %s228 = ssub.s32 %s16, %s23
    %p229 = scmp.eq.s32.totalorder %s228, 0
    %s231 = sadd.s32 %s230, 1
    %s232 = scalar_select %p229, %s230, %s231
    %p235 = pneg %p229
    %p236 = scmp.eq.s32.totalorder %s16, 1
    %p237 = por %p235, %p236
    %p238 = scmp.ne.s32.totalorder %s230, %s233
    %p239 = scmp.eq.s32.totalorder %s16, 0
    %p240 = por %p238, %p239
    %p241 = scmp.ne.s32.totalorder %s230, %s233
    %p242 = scmp.eq.s32.totalorder %s21, 1
    %p243 = por %p241, %p242
    %p244 = scmp.ne.s32.totalorder %s233, %s234
    %p245 = scmp.eq.s32.totalorder %s21, 0
    %p246 = por %p244, %p245
    %p247 = scmp.ne.s32.totalorder %s233, %s234
    %p248 = scmp.eq.s32.totalorder %s22, 1
    %p249 = por %p247, %p248
    %p251 = scmp.ne.s32.totalorder %s234, %s250
    %p252 = scmp.eq.s32.totalorder %s22, 0
    %p253 = por %p251, %p252
    %p254 = scmp.le.s32.totalorder 1, %s16
    %p255 = scmp.lt.s32.totalorder %s16, 3
    %p256 = pnand %p254, %p255
    %p257 = pneg %p256
    // Predicated region
    $region9: #{unet_down_forward.6} parent=5 // pred_check
      _
    $region10: #{unet_down_forward.6} parent=5 // pred_check_branch
      %259 = sbr.rel (%p256) target = $region12
    $region11: #{unet_down_forward.6} parent=5 // pred_region
      %s260 = ssub.s32 %s16, 1
      // Predicated region
      $region13: #{unet_down_forward.6} parent=11 // pred_check
        %p261 = pneg %p63
      $region14: #{unet_down_forward.6} parent=11 // pred_check_branch
        %263 = sbr.rel (%p261) target = $region16
      $region15: #{unet_down_forward.6} parent=11 // pred_region
        _
      $region16: #{unet_down_forward.6} parent=11 // pred_fallthru
        _
      // Predicated region
      $region17: #{unet_down_forward.6} parent=11 // pred_check
        %p264 = pneg %p84
      $region18: #{unet_down_forward.6} parent=11 // pred_check_branch
        %266 = sbr.rel (%p264) target = $region20
      $region19: #{unet_down_forward.6} parent=11 // pred_region
        _
      $region20: #{unet_down_forward.6} parent=11 // pred_fallthru
        _
      // Predicated region
      $region21: #{unet_down_forward.6} parent=11 // pred_check
        %p267 = pneg %p105
      $region22: #{unet_down_forward.6} parent=11 // pred_check_branch
        %269 = sbr.rel (%p267) target = $region24
      $region23: #{unet_down_forward.6} parent=11 // pred_region
        _
      $region24: #{unet_down_forward.6} parent=11 // pred_fallthru
        _
      // Predicated region
      $region25: #{unet_down_forward.6} parent=11 // pred_check
        %p270 = pneg %p126
      $region26: #{unet_down_forward.6} parent=11 // pred_check_branch
        %272 = sbr.rel (%p270) target = $region28
      $region27: #{unet_down_forward.6} parent=11 // pred_region
        _
      $region28: #{unet_down_forward.6} parent=11 // pred_fallthru
        _
      // Predicated region
      $region29: #{unet_down_forward.6} parent=11 // pred_check
        %p273 = pneg %p147
      $region30: #{unet_down_forward.6} parent=11 // pred_check_branch
        %275 = sbr.rel (%p273) target = $region32
      $region31: #{unet_down_forward.6} parent=11 // pred_region
        _
      $region32: #{unet_down_forward.6} parent=11 // pred_fallthru
        _
      // Predicated region
      $region33: #{unet_down_forward.6} parent=11 // pred_check
        %p276 = pneg %p168
      $region34: #{unet_down_forward.6} parent=11 // pred_check_branch
        %278 = sbr.rel (%p276) target = $region36
      $region35: #{unet_down_forward.6} parent=11 // pred_region
        _
      $region36: #{unet_down_forward.6} parent=11 // pred_fallthru
        _
    $region12: #{unet_down_forward.6} parent=5 // pred_fallthru
      _
    %p279 = scmp.lt.s32.totalorder %s16, 2
    // Predicated region
    $region37: #{unet_down_forward.6} parent=5 // pred_check
      %p280 = pneg %p279
    $region38: #{unet_down_forward.6} parent=5 // pred_check_branch
      %282 = sbr.rel (%p280) target = $region40
    $region39: #{unet_down_forward.6} parent=5 // pred_region
      // Predicated region
      $region41: #{unet_down_forward.6} parent=39 // pred_check
        %p283 = pneg %p36
      $region42: #{unet_down_forward.6} parent=39 // pred_check_branch
        %285 = sbr.rel (%p283) target = $region44
      $region43: #{unet_down_forward.6} parent=39 // pred_region
        %p286 = scmp.lt.s32.totalorder %s16, 1
        %s287 = scalar_select %p286, %s16, 1
        %s288 = smul.addr %s287, 32
        %s289 = smul.addr %s288, 4
        %s290 = scalar_lea.vmem %s0, %s289
      $region44: #{unet_down_forward.6} parent=39 // pred_fallthru
        _
    $region40: #{unet_down_forward.6} parent=5 // pred_fallthru
      _
    %p291 = scmp.le.s32.totalorder 1, %s16
    %p292 = scmp.lt.s32.totalorder %s16, 3
    %p293 = pnand %p291, %p292
    %p294 = pneg %p293
    // Predicated region
    $region45: #{unet_down_forward.6} parent=5 // pred_check
      _
    $region46: #{unet_down_forward.6} parent=5 // pred_check_branch
      %296 = sbr.rel (%p293) target = $region48
    $region47: #{unet_down_forward.6} parent=5 // pred_region
      %s297 = ssub.s32 %s16, 1
      %p298 = scmp.lt.s32.totalorder %s21, 1
      %s299 = scalar_select %p298, %s21, 1
      %s300 = smul.addr %s299, 32
      %s301 = smul.addr %s300, 4
      %s302 = scalar_lea.vmem %s0, %s301
      %p303 = pneg %p42
      %p304 = pneg %p39
      %p305 = pneg %p63
      %p306 = pneg %p60
      %p307 = pneg %p84
      %p308 = pneg %p81
      %p309 = pneg %p105
      %p310 = pneg %p102
      %p311 = pneg %p126
      %p312 = pneg %p123
      %p313 = pneg %p147
      %p314 = pneg %p144
      %p315 = pneg %p168
      %p316 = pneg %p165
      %p317 = pneg %p194
      %p318 = pneg %p191
      %p319 = scmp.lt.s32.totalorder %s21, 1
      %s320 = scalar_select %p319, %s21, 1
      %s321 = smul.addr %s320, 32
      %s322 = smul.addr %s321, 4
      %s323 = scalar_lea.vmem %s7, %s322
      %p324 = pneg %p220
      %p325 = pneg %p217
      %p326 = scmp.lt.s32.totalorder %s21, 1
      %s327 = scalar_select %p326, %s21, 1
      %s328 = scalar_lea.vmem %s8, %s327
      %p329 = pneg %p246
      %p330 = pneg %p243
      %p331 = scmp.lt.s32.totalorder %s21, 1
      %s332 = scalar_select %p331, %s21, 1
      %s333 = scalar_lea.vmem %s9, %s332
      %p334 = scmp.lt.s32.totalorder %s21, 1
      %s335 = scalar_select %p334, %s21, 1
      %s336 = smul.addr %s335, 32
      %s337 = smul.addr %s336, 4
      %s338 = scalar_lea.vmem %s0, %s337
      %p339 = scmp.lt.s32.totalorder %s21, 1
      %s340 = scalar_select %p339, %s21, 1
      %s341 = smul.addr %s340, 32
      %s342 = smul.addr %s341, 4
      %s343 = scalar_lea.vmem %s7, %s342
      %p344 = scmp.lt.s32.totalorder %s21, 1
      %s345 = scalar_select %p344, %s21, 1
      %s346 = scalar_lea.vmem %s8, %s345
      %p347 = scmp.lt.s32.totalorder %s21, 1
      %s348 = scalar_select %p347, %s21, 1
      %s349 = scalar_lea.vmem %s9, %s348
      %351 = vst [vmem:[#allocation2] sm:$0xf] 0
      %352 = vst [vmem:[#allocation2 + $0x4] sm:$0xf] 0
      %353 = vst [vmem:[#allocation2 + $0x8] sm:$0xf] 0
      %s354 = scalar_lea.vmem [#allocation2], 204
      %355 = vst [vmem:[%s354] sm:$0xf] 0
      %356 = vst [vmem:[%s354 + $0x4] sm:$0xf] 0
      %357 = vst [vmem:[%s354 + $0x8] sm:$0xf] 0
      %358 = vst [vmem:[%s354 + $0xc] sm:$0xf] 0
      %359 = vst [vmem:[%s354 + $0x10] sm:$0xf] 0
      %360 = vst [vmem:[%s354 + $0x14] sm:$0xf] 0
      %vm361 = vcmask 1040384
      %vm362 = vsmask.f32 256
      %vm363 = vmand %vm361, %vm362
      %v364 = vld [vmem:[#allocation2] sm:$0x1]
      %v365 = vsel %vm363, 0, %v364
      %366 = vst [vmem:[#allocation2] sm:$0x1] %v365
      %v367 = vld [vmem:[#allocation2 + $0xc] sm:$0x1]
      %v368 = vsel %vm363, 0, %v367
      %369 = vst [vmem:[#allocation2 + $0xc] sm:$0x1] %v368
      %v370 = vld [vmem:[#allocation2 + $0x18] sm:$0x1]
      %v371 = vsel %vm363, 0, %v370
      %372 = vst [vmem:[#allocation2 + $0x18] sm:$0x1] %v371
      %v373 = vld [vmem:[#allocation2 + $0x24] sm:$0x1]
      %v374 = vsel %vm363, 0, %v373
      %375 = vst [vmem:[#allocation2 + $0x24] sm:$0x1] %v374
      %v376 = vld [vmem:[#allocation2 + $0x30] sm:$0x1]
      %v377 = vsel %vm363, 0, %v376
      %378 = vst [vmem:[#allocation2 + $0x30] sm:$0x1] %v377
      %v379 = vld [vmem:[#allocation2 + $0x3c] sm:$0x1]
      %v380 = vsel %vm363, 0, %v379
      %381 = vst [vmem:[#allocation2 + $0x3c] sm:$0x1] %v380
      %v382 = vld [vmem:[#allocation2 + $0x48] sm:$0x1]
      %v383 = vsel %vm363, 0, %v382
      %384 = vst [vmem:[#allocation2 + $0x48] sm:$0x1] %v383
      %v385 = vld [vmem:[#allocation2 + $0x54] sm:$0x1]
      %v386 = vsel %vm363, 0, %v385
      %387 = vst [vmem:[#allocation2 + $0x54] sm:$0x1] %v386
      %v388 = vld [vmem:[#allocation2 + $0x60] sm:$0x1]
      %v389 = vsel %vm363, 0, %v388
      %390 = vst [vmem:[#allocation2 + $0x60] sm:$0x1] %v389
      %v391 = vld [vmem:[#allocation2 + $0x6c] sm:$0x1]
      %v392 = vsel %vm363, 0, %v391
      %393 = vst [vmem:[#allocation2 + $0x6c] sm:$0x1] %v392
      %v394 = vld [vmem:[#allocation2 + $0x78] sm:$0x1]
      %v395 = vsel %vm363, 0, %v394
      %396 = vst [vmem:[#allocation2 + $0x78] sm:$0x1] %v395
      %v397 = vld [vmem:[#allocation2 + $0x84] sm:$0x1]
      %v398 = vsel %vm363, 0, %v397
      %399 = vst [vmem:[#allocation2 + $0x84] sm:$0x1] %v398
      %v400 = vld [vmem:[#allocation2 + $0x90] sm:$0x1]
      %v401 = vsel %vm363, 0, %v400
      %402 = vst [vmem:[#allocation2 + $0x90] sm:$0x1] %v401
      %v403 = vld [vmem:[#allocation2 + $0x9c] sm:$0x1]
      %v404 = vsel %vm363, 0, %v403
      %405 = vst [vmem:[#allocation2 + $0x9c] sm:$0x1] %v404
      %v406 = vld [vmem:[#allocation2 + $0xa8] sm:$0x1]
      %v407 = vsel %vm363, 0, %v406
      %408 = vst [vmem:[#allocation2 + $0xa8] sm:$0x1] %v407
      %v409 = vld [vmem:[#allocation2 + $0xb4] sm:$0x1]
      %v410 = vsel %vm363, 0, %v409
      %411 = vst [vmem:[#allocation2 + $0xb4] sm:$0x1] %v410
      %v412 = vld [vmem:[#allocation2 + $0xc0] sm:$0x1]
      %v413 = vsel %vm363, 0, %v412
      %414 = vst [vmem:[#allocation2 + $0xc0] sm:$0x1] %v413
      %v415 = vld [vmem:[#allocation2 + $0xcc] sm:$0x1]
      %v416 = vsel %vm363, 0, %v415
      %417 = vst [vmem:[#allocation2 + $0xcc] sm:$0x1] %v416
      %v418 = vld [vmem:[#allocation2 + $0xd8] sm:$0x1]
      %v419 = vsel %vm363, 0, %v418
      %420 = vst [vmem:[#allocation2 + $0xd8] sm:$0x1] %v419
      %vm421 = vcmask 1043456
      %vm422 = vsmask.f32 7938
      %vm423 = vmand %vm421, %vm422
      %v424 = vld [vmem:[#allocation2 + $0x8] sm:$0xf]
      %v425 = vsel %vm423, 0, %v424
      %426 = vst [vmem:[#allocation2 + $0x8] sm:$0xf] %v425
      %v427 = vld [vmem:[#allocation2 + $0x14] sm:$0xf]
      %v428 = vsel %vm423, 0, %v427
      %429 = vst [vmem:[#allocation2 + $0x14] sm:$0xf] %v428
      %v430 = vld [vmem:[#allocation2 + $0x20] sm:$0xf]
      %v431 = vsel %vm423, 0, %v430
      %432 = vst [vmem:[#allocation2 + $0x20] sm:$0xf] %v431
      %v433 = vld [vmem:[#allocation2 + $0x2c] sm:$0xf]
      %v434 = vsel %vm423, 0, %v433
      %435 = vst [vmem:[#allocation2 + $0x2c] sm:$0xf] %v434
      %v436 = vld [vmem:[#allocation2 + $0x38] sm:$0xf]
      %v437 = vsel %vm423, 0, %v436
      %438 = vst [vmem:[#allocation2 + $0x38] sm:$0xf] %v437
      %v439 = vld [vmem:[#allocation2 + $0x44] sm:$0xf]
      %v440 = vsel %vm423, 0, %v439
      %441 = vst [vmem:[#allocation2 + $0x44] sm:$0xf] %v440
      %v442 = vld [vmem:[#allocation2 + $0x50] sm:$0xf]
      %v443 = vsel %vm423, 0, %v442
      %444 = vst [vmem:[#allocation2 + $0x50] sm:$0xf] %v443
      %v445 = vld [vmem:[#allocation2 + $0x5c] sm:$0xf]
      %v446 = vsel %vm423, 0, %v445
      %447 = vst [vmem:[#allocation2 + $0x5c] sm:$0xf] %v446
      %v448 = vld [vmem:[#allocation2 + $0x68] sm:$0xf]
      %v449 = vsel %vm423, 0, %v448
      %450 = vst [vmem:[#allocation2 + $0x68] sm:$0xf] %v449
      %v451 = vld [vmem:[#allocation2 + $0x74] sm:$0xf]
      %v452 = vsel %vm423, 0, %v451
      %453 = vst [vmem:[#allocation2 + $0x74] sm:$0xf] %v452
      %v454 = vld [vmem:[#allocation2 + $0x80] sm:$0xf]
      %v455 = vsel %vm423, 0, %v454
      %456 = vst [vmem:[#allocation2 + $0x80] sm:$0xf] %v455
      %v457 = vld [vmem:[#allocation2 + $0x8c] sm:$0xf]
      %v458 = vsel %vm423, 0, %v457
      %459 = vst [vmem:[#allocation2 + $0x8c] sm:$0xf] %v458
      %v460 = vld [vmem:[#allocation2 + $0x98] sm:$0xf]
      %v461 = vsel %vm423, 0, %v460
      %462 = vst [vmem:[#allocation2 + $0x98] sm:$0xf] %v461
      %v463 = vld [vmem:[#allocation2 + $0xa4] sm:$0xf]
      %v464 = vsel %vm423, 0, %v463
      %465 = vst [vmem:[#allocation2 + $0xa4] sm:$0xf] %v464
      %v466 = vld [vmem:[#allocation2 + $0xb0] sm:$0xf]
      %v467 = vsel %vm423, 0, %v466
      %468 = vst [vmem:[#allocation2 + $0xb0] sm:$0xf] %v467
      %v469 = vld [vmem:[#allocation2 + $0xbc] sm:$0xf]
      %v470 = vsel %vm423, 0, %v469
      %471 = vst [vmem:[#allocation2 + $0xbc] sm:$0xf] %v470
      %v472 = vld [vmem:[#allocation2 + $0xc8] sm:$0xf]
      %v473 = vsel %vm423, 0, %v472
      %474 = vst [vmem:[#allocation2 + $0xc8] sm:$0xf] %v473
      %v475 = vld [vmem:[#allocation2 + $0xd4] sm:$0xf]
      %v476 = vsel %vm423, 0, %v475
      %477 = vst [vmem:[#allocation2 + $0xd4] sm:$0xf] %v476
      %v478 = vld [vmem:[#allocation2 + $0xe0] sm:$0xf]
      %v479 = vsel %vm423, 0, %v478
      %480 = vst [vmem:[#allocation2 + $0xe0] sm:$0xf] %v479
      %v481 = vld [vmem:[%s338] sm:$0xf]
      %v482 = vld [vmem:[%s338 + $0x4] sm:$0xf]
      %v483 = vld [vmem:[%s338 + $0x8] sm:$0xf]
      %v484 = vld [vmem:[%s338 + $0xc] sm:$0xf]
      %v485 = vld [vmem:[%s338 + $0x10] sm:$0xf]
      %v486 = vld [vmem:[%s338 + $0x14] sm:$0xf]
      %v487 = vld [vmem:[%s338 + $0x18] sm:$0xf]
      %v488 = vld [vmem:[%s338 + $0x1c] sm:$0xf]
      %v489 = vld [vmem:[%s338 + $0x20] sm:$0xf]
      %v490 = vld [vmem:[%s338 + $0x24] sm:$0xf]
      %v491 = vld [vmem:[%s338 + $0x28] sm:$0xf]
      %v492 = vld [vmem:[%s338 + $0x2c] sm:$0xf]
      %v493 = vld [vmem:[%s338 + $0x30] sm:$0xf]
      %v494 = vld [vmem:[%s338 + $0x34] sm:$0xf]
      %v495 = vld [vmem:[%s338 + $0x38] sm:$0xf]
      %v496 = vld [vmem:[%s338 + $0x3c] sm:$0xf]
      %v497 = vld [vmem:[%s338 + $0x40] sm:$0xf]
      %v498 = vld [vmem:[%s338 + $0x44] sm:$0xf]
      %v499 = vld [vmem:[%s338 + $0x48] sm:$0xf]
      %v500 = vld [vmem:[%s338 + $0x4c] sm:$0xf]
      %v501 = vld [vmem:[%s338 + $0x50] sm:$0xf]
      %v502 = vld [vmem:[%s338 + $0x54] sm:$0xf]
      %v503 = vld [vmem:[%s338 + $0x58] sm:$0xf]
      %v504 = vld [vmem:[%s338 + $0x5c] sm:$0xf]
      %v505 = vld [vmem:[%s338 + $0x60] sm:$0xf]
      %v506 = vld [vmem:[%s338 + $0x64] sm:$0xf]
      %v507 = vld [vmem:[%s338 + $0x68] sm:$0xf]
      %v508 = vld [vmem:[%s338 + $0x6c] sm:$0xf]
      %v509 = vld [vmem:[%s338 + $0x70] sm:$0xf]
      %v510 = vld [vmem:[%s338 + $0x74] sm:$0xf]
      %v511 = vld [vmem:[%s338 + $0x78] sm:$0xf]
      %v512 = vld [vmem:[%s338 + $0x7c] sm:$0xf]
      %v513 = vunpack.c.l.bf16 %v481
      %v514 = vunpack.c.l.bf16 %v482
      %v515 = vunpack.c.l.bf16 %v483
      %v516 = vunpack.c.l.bf16 %v484
      %v517 = vunpack.c.l.bf16 %v485
      %v518 = vunpack.c.l.bf16 %v486
      %v519 = vunpack.c.l.bf16 %v487
      %v520 = vunpack.c.l.bf16 %v488
      %v521 = vunpack.c.l.bf16 %v489
      %v522 = vunpack.c.l.bf16 %v490
      %v523 = vunpack.c.l.bf16 %v491
      %v524 = vunpack.c.l.bf16 %v492
      %v525 = vunpack.c.l.bf16 %v493
      %v526 = vunpack.c.l.bf16 %v494
      %v527 = vunpack.c.l.bf16 %v495
      %v528 = vunpack.c.l.bf16 %v496
      %v529 = vunpack.c.l.bf16 %v497
      %v530 = vunpack.c.l.bf16 %v498
      %v531 = vunpack.c.l.bf16 %v499
      %v532 = vunpack.c.l.bf16 %v500
      %v533 = vunpack.c.l.bf16 %v501
      %v534 = vunpack.c.l.bf16 %v502
      %v535 = vunpack.c.l.bf16 %v503
      %v536 = vunpack.c.l.bf16 %v504
      %v537 = vunpack.c.l.bf16 %v505
      %v538 = vunpack.c.l.bf16 %v506
      %v539 = vunpack.c.l.bf16 %v507
      %v540 = vunpack.c.l.bf16 %v508
      %v541 = vunpack.c.l.bf16 %v509
      %v542 = vunpack.c.l.bf16 %v510
      %v543 = vunpack.c.l.bf16 %v511
      %v544 = vunpack.c.l.bf16 %v512
      %v545 = vld [vmem:[%s1] sm:$0x1]
      %v546 = vld [vmem:[%s2] sm:$0x1]
      %v547 = vld [vmem:[%s3] sm:$0x1]
      %v548 = vld [vmem:[%s4] sm:$0x1]
      %v550 = vlaneseq
      %v551 = vshrl.u32 %v550, 7
      %v552 = vsub.s32 0, %v551
      %v553 = vrot.slane %v545, %v552
      %v555 = vsub.f32 %v513, %v553
      %v556 = vsub.f32 %v514, %v553
      %v557 = vsub.f32 %v515, %v553
      %v558 = vsub.f32 %v516, %v553
      %v559 = vsub.f32 %v517, %v553
      %v560 = vsub.f32 %v518, %v553
      %v561 = vsub.f32 %v519, %v553
      %v562 = vsub.f32 %v520, %v553
      %v563 = vsub.f32 %v521, %v553
      %v564 = vsub.f32 %v522, %v553
      %v565 = vsub.f32 %v523, %v553
      %v566 = vsub.f32 %v524, %v553
      %v567 = vsub.f32 %v525, %v553
      %v568 = vsub.f32 %v526, %v553
      %v569 = vsub.f32 %v527, %v553
      %v570 = vsub.f32 %v528, %v553
      %v571 = vsub.f32 %v529, %v553
      %v572 = vsub.f32 %v530, %v553
      %v573 = vsub.f32 %v531, %v553
      %v574 = vsub.f32 %v532, %v553
      %v575 = vsub.f32 %v533, %v553
      %v576 = vsub.f32 %v534, %v553
      %v577 = vsub.f32 %v535, %v553
      %v578 = vsub.f32 %v536, %v553
      %v579 = vsub.f32 %v537, %v553
      %v580 = vsub.f32 %v538, %v553
      %v581 = vsub.f32 %v539, %v553
      %v582 = vsub.f32 %v540, %v553
      %v583 = vsub.f32 %v541, %v553
      %v584 = vsub.f32 %v542, %v553
      %v585 = vsub.f32 %v543, %v553
      %v586 = vsub.f32 %v544, %v553
      %v588 = vlaneseq
      %v589 = vshrl.u32 %v588, 7
      %v590 = vsub.s32 0, %v589
      %v591 = vrot.slane %v546, %v590
      %v593 = vmul.f32 %v555, %v591
      %v594 = vmul.f32 %v556, %v591
      %v595 = vmul.f32 %v557, %v591
      %v596 = vmul.f32 %v558, %v591
      %v597 = vmul.f32 %v559, %v591
      %v598 = vmul.f32 %v560, %v591
      %v599 = vmul.f32 %v561, %v591
      %v600 = vmul.f32 %v562, %v591
      %v601 = vmul.f32 %v563, %v591
      %v602 = vmul.f32 %v564, %v591
      %v603 = vmul.f32 %v565, %v591
      %v604 = vmul.f32 %v566, %v591
      %v605 = vmul.f32 %v567, %v591
      %v606 = vmul.f32 %v568, %v591
      %v607 = vmul.f32 %v569, %v591
      %v608 = vmul.f32 %v570, %v591
      %v609 = vmul.f32 %v571, %v591
      %v610 = vmul.f32 %v572, %v591
      %v611 = vmul.f32 %v573, %v591
      %v612 = vmul.f32 %v574, %v591
      %v613 = vmul.f32 %v575, %v591
      %v614 = vmul.f32 %v576, %v591
      %v615 = vmul.f32 %v577, %v591
      %v616 = vmul.f32 %v578, %v591
      %v617 = vmul.f32 %v579, %v591
      %v618 = vmul.f32 %v580, %v591
      %v619 = vmul.f32 %v581, %v591
      %v620 = vmul.f32 %v582, %v591
      %v621 = vmul.f32 %v583, %v591
      %v622 = vmul.f32 %v584, %v591
      %v623 = vmul.f32 %v585, %v591
      %v624 = vmul.f32 %v586, %v591
      %v626 = vlaneseq
      %v627 = vshrl.u32 %v626, 7
      %v628 = vsub.s32 0, %v627
      %v629 = vrot.slane %v547, %v628
      %v631 = vmul.f32 %v593, %v629
      %v632 = vmul.f32 %v594, %v629
      %v633 = vmul.f32 %v595, %v629
      %v634 = vmul.f32 %v596, %v629
      %v635 = vmul.f32 %v597, %v629
      %v636 = vmul.f32 %v598, %v629
      %v637 = vmul.f32 %v599, %v629
      %v638 = vmul.f32 %v600, %v629
      %v639 = vmul.f32 %v601, %v629
      %v640 = vmul.f32 %v602, %v629
      %v641 = vmul.f32 %v603, %v629
      %v642 = vmul.f32 %v604, %v629
      %v643 = vmul.f32 %v605, %v629
      %v644 = vmul.f32 %v606, %v629
      %v645 = vmul.f32 %v607, %v629
      %v646 = vmul.f32 %v608, %v629
      %v647 = vmul.f32 %v609, %v629
      %v648 = vmul.f32 %v610, %v629
      %v649 = vmul.f32 %v611, %v629
      %v650 = vmul.f32 %v612, %v629
      %v651 = vmul.f32 %v613, %v629
      %v652 = vmul.f32 %v614, %v629
      %v653 = vmul.f32 %v615, %v629
      %v654 = vmul.f32 %v616, %v629
      %v655 = vmul.f32 %v617, %v629
      %v656 = vmul.f32 %v618, %v629
      %v657 = vmul.f32 %v619, %v629
      %v658 = vmul.f32 %v620, %v629
      %v659 = vmul.f32 %v621, %v629
      %v660 = vmul.f32 %v622, %v629
      %v661 = vmul.f32 %v623, %v629
      %v662 = vmul.f32 %v624, %v629
      %v664 = vlaneseq
      %v665 = vshrl.u32 %v664, 7
      %v666 = vsub.s32 0, %v665
      %v667 = vrot.slane %v548, %v666
      %v669 = vadd.f32 %v631, %v667
      %v670 = vadd.f32 %v632, %v667
      %v671 = vadd.f32 %v633, %v667
      %v672 = vadd.f32 %v634, %v667
      %v673 = vadd.f32 %v635, %v667
      %v674 = vadd.f32 %v636, %v667
      %v675 = vadd.f32 %v637, %v667
      %v676 = vadd.f32 %v638, %v667
      %v677 = vadd.f32 %v639, %v667
      %v678 = vadd.f32 %v640, %v667
      %v679 = vadd.f32 %v641, %v667
      %v680 = vadd.f32 %v642, %v667
      %v681 = vadd.f32 %v643, %v667
      %v682 = vadd.f32 %v644, %v667
      %v683 = vadd.f32 %v645, %v667
      %v684 = vadd.f32 %v646, %v667
      %v685 = vadd.f32 %v647, %v667
      %v686 = vadd.f32 %v648, %v667
      %v687 = vadd.f32 %v649, %v667
      %v688 = vadd.f32 %v650, %v667
      %v689 = vadd.f32 %v651, %v667
      %v690 = vadd.f32 %v652, %v667
      %v691 = vadd.f32 %v653, %v667
      %v692 = vadd.f32 %v654, %v667
      %v693 = vadd.f32 %v655, %v667
      %v694 = vadd.f32 %v656, %v667
      %v695 = vadd.f32 %v657, %v667
      %v696 = vadd.f32 %v658, %v667
      %v697 = vadd.f32 %v659, %v667
      %v698 = vadd.f32 %v660, %v667
      %v699 = vadd.f32 %v661, %v667
      %v700 = vadd.f32 %v662, %v667
      %v701 = vmul.f32 %v669, 0.5
      %v702 = vmul.f32 %v670, 0.5
      %v703 = vmul.f32 %v671, 0.5
      %v704 = vmul.f32 %v672, 0.5
      %v705 = vmul.f32 %v673, 0.5
      %v706 = vmul.f32 %v674, 0.5
      %v707 = vmul.f32 %v675, 0.5
      %v708 = vmul.f32 %v676, 0.5
      %v709 = vmul.f32 %v677, 0.5
      %v710 = vmul.f32 %v678, 0.5
      %v711 = vmul.f32 %v679, 0.5
      %v712 = vmul.f32 %v680, 0.5
      %v713 = vmul.f32 %v681, 0.5
      %v714 = vmul.f32 %v682, 0.5
      %v715 = vmul.f32 %v683, 0.5
      %v716 = vmul.f32 %v684, 0.5
      %v717 = vmul.f32 %v685, 0.5
      %v718 = vmul.f32 %v686, 0.5
      %v719 = vmul.f32 %v687, 0.5
      %v720 = vmul.f32 %v688, 0.5
      %v721 = vmul.f32 %v689, 0.5
      %v722 = vmul.f32 %v690, 0.5
      %v723 = vmul.f32 %v691, 0.5
      %v724 = vmul.f32 %v692, 0.5
      %v725 = vmul.f32 %v693, 0.5
      %v726 = vmul.f32 %v694, 0.5
      %v727 = vmul.f32 %v695, 0.5
      %v728 = vmul.f32 %v696, 0.5
      %v729 = vmul.f32 %v697, 0.5
      %v730 = vmul.f32 %v698, 0.5
      %v731 = vmul.f32 %v699, 0.5
      %v732 = vmul.f32 %v700, 0.5
      %v733 = vmul.f32 %v669, 0.70710677
      %v734 = vmul.f32 %v670, 0.70710677
      %v735 = vmul.f32 %v671, 0.70710677
      %v736 = vmul.f32 %v672, 0.70710677
      %v737 = vmul.f32 %v673, 0.70710677
      %v738 = vmul.f32 %v674, 0.70710677
      %v739 = vmul.f32 %v675, 0.70710677
      %v740 = vmul.f32 %v676, 0.70710677
      %v741 = vmul.f32 %v677, 0.70710677
      %v742 = vmul.f32 %v678, 0.70710677
      %v743 = vmul.f32 %v679, 0.70710677
      %v744 = vmul.f32 %v680, 0.70710677
      %v745 = vmul.f32 %v681, 0.70710677
      %v746 = vmul.f32 %v682, 0.70710677
      %v747 = vmul.f32 %v683, 0.70710677
      %v748 = vmul.f32 %v684, 0.70710677
      %v749 = vmul.f32 %v685, 0.70710677
      %v750 = vmul.f32 %v686, 0.70710677
      %v751 = vmul.f32 %v687, 0.70710677
      %v752 = vmul.f32 %v688, 0.70710677
      %v753 = vmul.f32 %v689, 0.70710677
      %v754 = vmul.f32 %v690, 0.70710677
      %v755 = vmul.f32 %v691, 0.70710677
      %v756 = vmul.f32 %v692, 0.70710677
      %v757 = vmul.f32 %v693, 0.70710677
      %v758 = vmul.f32 %v694, 0.70710677
      %v759 = vmul.f32 %v695, 0.70710677
      %v760 = vmul.f32 %v696, 0.70710677
      %v761 = vmul.f32 %v697, 0.70710677
      %v762 = vmul.f32 %v698, 0.70710677
      %v763 = vmul.f32 %v699, 0.70710677
      %v764 = vmul.f32 %v700, 0.70710677
      %v765 = verf.f32.pop %v733
      %v766 = verf.f32.pop %v734
      %v767 = verf.f32.pop %v735
      %v768 = verf.f32.pop %v736
      %v769 = verf.f32.pop %v737
      %v770 = verf.f32.pop %v738
      %v771 = verf.f32.pop %v739
      %v772 = verf.f32.pop %v740
      %v773 = verf.f32.pop %v741
      %v774 = verf.f32.pop %v742
      %v775 = verf.f32.pop %v743
      %v776 = verf.f32.pop %v744
      %v777 = verf.f32.pop %v745
      %v778 = verf.f32.pop %v746
      %v779 = verf.f32.pop %v747
      %v780 = verf.f32.pop %v748
      %v781 = verf.f32.pop %v749
      %v782 = verf.f32.pop %v750
      %v783 = verf.f32.pop %v751
      %v784 = verf.f32.pop %v752
      %v785 = verf.f32.pop %v753
      %v786 = verf.f32.pop %v754
      %v787 = verf.f32.pop %v755
      %v788 = verf.f32.pop %v756
      %v789 = verf.f32.pop %v757
      %v790 = verf.f32.pop %v758
      %v791 = verf.f32.pop %v759
      %v792 = verf.f32.pop %v760
      %v793 = verf.f32.pop %v761
      %v794 = verf.f32.pop %v762
      %v795 = verf.f32.pop %v763
      %v796 = verf.f32.pop %v764
      %v797 = vadd.f32 %v765, 1.0
      %v798 = vadd.f32 %v766, 1.0
      %v799 = vadd.f32 %v767, 1.0
      %v800 = vadd.f32 %v768, 1.0
      %v801 = vadd.f32 %v769, 1.0
      %v802 = vadd.f32 %v770, 1.0
      %v803 = vadd.f32 %v771, 1.0
      %v804 = vadd.f32 %v772, 1.0
      %v805 = vadd.f32 %v773, 1.0
      %v806 = vadd.f32 %v774, 1.0
      %v807 = vadd.f32 %v775, 1.0
      %v808 = vadd.f32 %v776, 1.0
      %v809 = vadd.f32 %v777, 1.0
      %v810 = vadd.f32 %v778, 1.0
      %v811 = vadd.f32 %v779, 1.0
      %v812 = vadd.f32 %v780, 1.0
      %v813 = vadd.f32 %v781, 1.0
      %v814 = vadd.f32 %v782, 1.0
      %v815 = vadd.f32 %v783, 1.0
      %v816 = vadd.f32 %v784, 1.0
      %v817 = vadd.f32 %v785, 1.0
      %v818 = vadd.f32 %v786, 1.0
      %v819 = vadd.f32 %v787, 1.0
      %v820 = vadd.f32 %v788, 1.0
      %v821 = vadd.f32 %v789, 1.0
      %v822 = vadd.f32 %v790, 1.0
      %v823 = vadd.f32 %v791, 1.0
      %v824 = vadd.f32 %v792, 1.0
      %v825 = vadd.f32 %v793, 1.0
      %v826 = vadd.f32 %v794, 1.0
      %v827 = vadd.f32 %v795, 1.0
      %v828 = vadd.f32 %v796, 1.0
      %v829 = vmul.f32 %v701, %v797
      %v830 = vmul.f32 %v702, %v798
      %v831 = vmul.f32 %v703, %v799
      %v832 = vmul.f32 %v704, %v800
      %v833 = vmul.f32 %v705, %v801
      %v834 = vmul.f32 %v706, %v802
      %v835 = vmul.f32 %v707, %v803
      %v836 = vmul.f32 %v708, %v804
      %v837 = vmul.f32 %v709, %v805
      %v838 = vmul.f32 %v710, %v806
      %v839 = vmul.f32 %v711, %v807
      %v840 = vmul.f32 %v712, %v808
      %v841 = vmul.f32 %v713, %v809
      %v842 = vmul.f32 %v714, %v810
      %v843 = vmul.f32 %v715, %v811
      %v844 = vmul.f32 %v716, %v812
      %v845 = vmul.f32 %v717, %v813
      %v846 = vmul.f32 %v718, %v814
      %v847 = vmul.f32 %v719, %v815
      %v848 = vmul.f32 %v720, %v816
      %v849 = vmul.f32 %v721, %v817
      %v850 = vmul.f32 %v722, %v818
      %v851 = vmul.f32 %v723, %v819
      %v852 = vmul.f32 %v724, %v820
      %v853 = vmul.f32 %v725, %v821
      %v854 = vmul.f32 %v726, %v822
      %v855 = vmul.f32 %v727, %v823
      %v856 = vmul.f32 %v728, %v824
      %v857 = vmul.f32 %v729, %v825
      %v858 = vmul.f32 %v730, %v826
      %v859 = vmul.f32 %v731, %v827
      %v860 = vmul.f32 %v732, %v828
      %v861 = vpack.c.bf16 %v830, %v829
      %v862 = vpack.c.bf16 %v832, %v831
      %v863 = vpack.c.bf16 %v834, %v833
      %v864 = vpack.c.bf16 %v836, %v835
      %v865 = vpack.c.bf16 %v838, %v837
      %v866 = vpack.c.bf16 %v840, %v839
      %v867 = vpack.c.bf16 %v842, %v841
      %v868 = vpack.c.bf16 %v844, %v843
      %v869 = vpack.c.bf16 %v846, %v845
      %v870 = vpack.c.bf16 %v848, %v847
      %v871 = vpack.c.bf16 %v850, %v849
      %v872 = vpack.c.bf16 %v852, %v851
      %v873 = vpack.c.bf16 %v854, %v853
      %v874 = vpack.c.bf16 %v856, %v855
      %v875 = vpack.c.bf16 %v858, %v857
      %v876 = vpack.c.bf16 %v860, %v859
      %v893 = vunpack.c.l.b16 %v861
      %v894 = vunpack.c.h.b16 %v861
      %v895 = vunpack.c.l.b16 %v862
      %v896 = vunpack.c.h.b16 %v862
      %v897 = vunpack.c.l.b16 %v863
      %v898 = vunpack.c.h.b16 %v863
      %v899 = vunpack.c.l.b16 %v864
      %v900 = vunpack.c.h.b16 %v864
      %v901 = vunpack.c.l.b16 %v865
      %v902 = vunpack.c.h.b16 %v865
      %v903 = vunpack.c.l.b16 %v866
      %v904 = vunpack.c.h.b16 %v866
      %v905 = vunpack.c.l.b16 %v867
      %v906 = vunpack.c.h.b16 %v867
      %v907 = vunpack.c.l.b16 %v868
      %v908 = vunpack.c.h.b16 %v868
      %v909 = vunpack.c.l.b16 %v869
      %v910 = vunpack.c.h.b16 %v869
      %v911 = vunpack.c.l.b16 %v870
      %v912 = vunpack.c.h.b16 %v870
      %v913 = vunpack.c.l.b16 %v871
      %v914 = vunpack.c.h.b16 %v871
      %v915 = vunpack.c.l.b16 %v872
      %v916 = vunpack.c.h.b16 %v872
      %v917 = vunpack.c.l.b16 %v873
      %v918 = vunpack.c.h.b16 %v873
      %v919 = vunpack.c.l.b16 %v874
      %v920 = vunpack.c.h.b16 %v874
      %v921 = vunpack.c.l.b16 %v875
      %v922 = vunpack.c.h.b16 %v875
      %v923 = vunpack.c.l.b16 %v876
      %v924 = vunpack.c.h.b16 %v876
      %v925 = vpack.c.b16 %v893, %v893
      %v926 = vpack.c.b16 %v894, %v894
      %v927 = vpack.c.b16 %v895, %v895
      %v928 = vpack.c.b16 %v896, %v896
      %v929 = vpack.c.b16 %v897, %v897
      %v930 = vpack.c.b16 %v898, %v898
      %v931 = vpack.c.b16 %v899, %v899
      %v932 = vpack.c.b16 %v900, %v900
      %v933 = vpack.c.b16 %v901, %v901
      %v934 = vpack.c.b16 %v902, %v902
      %v935 = vpack.c.b16 %v903, %v903
      %v936 = vpack.c.b16 %v904, %v904
      %v937 = vpack.c.b16 %v905, %v905
      %v938 = vpack.c.b16 %v906, %v906
      %v939 = vpack.c.b16 %v907, %v907
      %v940 = vpack.c.b16 %v908, %v908
      %v941 = vpack.c.b16 %v909, %v909
      %v942 = vpack.c.b16 %v910, %v910
      %v943 = vpack.c.b16 %v911, %v911
      %v944 = vpack.c.b16 %v912, %v912
      %v945 = vpack.c.b16 %v913, %v913
      %v946 = vpack.c.b16 %v914, %v914
      %v947 = vpack.c.b16 %v915, %v915
      %v948 = vpack.c.b16 %v916, %v916
      %v949 = vpack.c.b16 %v917, %v917
      %v950 = vpack.c.b16 %v918, %v918
      %v951 = vpack.c.b16 %v919, %v919
      %v952 = vpack.c.b16 %v920, %v920
      %v953 = vpack.c.b16 %v921, %v921
      %v954 = vpack.c.b16 %v922, %v922
      %v955 = vpack.c.b16 %v923, %v923
      %v956 = vpack.c.b16 %v924, %v924
      %vm957 = vsmask.f32 4368
      %vm958 = vmor %vm362, %vm957
      %v960 = vshrl.u32 %v925, 16
      %v962 = vrot.slane %v960, 7
      %v963 = vshll.u32 %v925, 16
      %v965 = vor.u32 %v962, %v963
      %v966 = vrot.slane %v962, 4
      %v968 = vshrl.u32 %v926, 16
      %v970 = vrot.slane %v968, 7
      %v971 = vshll.u32 %v926, 16
      %v973 = vor.u32 %v970, %v971
      %v974 = vsel %vm958, %v966, %v973
      %v975 = vrot.slane %v970, 4
      %v977 = vshrl.u32 %v927, 16
      %v979 = vrot.slane %v977, 7
      %v980 = vshll.u32 %v927, 16
      %v982 = vor.u32 %v979, %v980
      %v983 = vrot.slane %v979, 4
      %v985 = vshrl.u32 %v928, 16
      %v987 = vrot.slane %v985, 7
      %v988 = vshll.u32 %v928, 16
      %v990 = vor.u32 %v987, %v988
      %v991 = vsel %vm958, %v983, %v990
      %v992 = vrot.slane %v987, 4
      %v994 = vshrl.u32 %v929, 16
      %v996 = vrot.slane %v994, 7
      %v997 = vshll.u32 %v929, 16
      %v999 = vor.u32 %v996, %v997
      %v1000 = vrot.slane %v996, 4
      %v1002 = vshrl.u32 %v930, 16
      %v1004 = vrot.slane %v1002, 7
      %v1005 = vshll.u32 %v930, 16
      %v1007 = vor.u32 %v1004, %v1005
      %v1008 = vsel %vm958, %v1000, %v1007
      %v1009 = vrot.slane %v1004, 4
      %v1011 = vshrl.u32 %v931, 16
      %v1013 = vrot.slane %v1011, 7
      %v1014 = vshll.u32 %v931, 16
      %v1016 = vor.u32 %v1013, %v1014
      %v1017 = vrot.slane %v1013, 4
      %v1019 = vshrl.u32 %v932, 16
      %v1021 = vrot.slane %v1019, 7
      %v1022 = vshll.u32 %v932, 16
      %v1024 = vor.u32 %v1021, %v1022
      %v1025 = vsel %vm958, %v1017, %v1024
      %v1026 = vrot.slane %v1021, 4
      %v1028 = vshrl.u32 %v933, 16
      %v1030 = vrot.slane %v1028, 7
      %v1031 = vshll.u32 %v933, 16
      %v1033 = vor.u32 %v1030, %v1031
      %v1034 = vrot.slane %v1030, 4
      %v1036 = vshrl.u32 %v934, 16
      %v1038 = vrot.slane %v1036, 7
      %v1039 = vshll.u32 %v934, 16
      %v1041 = vor.u32 %v1038, %v1039
      %v1042 = vsel %vm958, %v1034, %v1041
      %v1043 = vrot.slane %v1038, 4
      %v1045 = vshrl.u32 %v935, 16
      %v1047 = vrot.slane %v1045, 7
      %v1048 = vshll.u32 %v935, 16
      %v1050 = vor.u32 %v1047, %v1048
      %v1051 = vrot.slane %v1047, 4
      %v1053 = vshrl.u32 %v936, 16
      %v1055 = vrot.slane %v1053, 7
      %v1056 = vshll.u32 %v936, 16
      %v1058 = vor.u32 %v1055, %v1056
      %v1059 = vsel %vm958, %v1051, %v1058
      %v1060 = vrot.slane %v1055, 4
      %v1062 = vshrl.u32 %v937, 16
      %v1064 = vrot.slane %v1062, 7
      %v1065 = vshll.u32 %v937, 16
      %v1067 = vor.u32 %v1064, %v1065
      %v1068 = vrot.slane %v1064, 4
      %v1070 = vshrl.u32 %v938, 16
      %v1072 = vrot.slane %v1070, 7
      %v1073 = vshll.u32 %v938, 16
      %v1075 = vor.u32 %v1072, %v1073
      %v1076 = vsel %vm958, %v1068, %v1075
      %v1077 = vrot.slane %v1072, 4
      %v1079 = vshrl.u32 %v939, 16
      %v1081 = vrot.slane %v1079, 7
      %v1082 = vshll.u32 %v939, 16
      %v1084 = vor.u32 %v1081, %v1082
      %v1085 = vrot.slane %v1081, 4
      %v1087 = vshrl.u32 %v940, 16
      %v1089 = vrot.slane %v1087, 7
      %v1090 = vshll.u32 %v940, 16
      %v1092 = vor.u32 %v1089, %v1090
      %v1093 = vsel %vm958, %v1085, %v1092
      %v1094 = vrot.slane %v1089, 4
      %v1096 = vshrl.u32 %v941, 16
      %v1098 = vrot.slane %v1096, 7
      %v1099 = vshll.u32 %v941, 16
      %v1101 = vor.u32 %v1098, %v1099
      %v1102 = vrot.slane %v1098, 4
      %v1104 = vshrl.u32 %v942, 16
      %v1106 = vrot.slane %v1104, 7
      %v1107 = vshll.u32 %v942, 16
      %v1109 = vor.u32 %v1106, %v1107
      %v1110 = vsel %vm958, %v1102, %v1109
      %v1111 = vrot.slane %v1106, 4
      %v1113 = vshrl.u32 %v943, 16
      %v1115 = vrot.slane %v1113, 7
      %v1116 = vshll.u32 %v943, 16
      %v1118 = vor.u32 %v1115, %v1116
      %v1119 = vrot.slane %v1115, 4
      %v1121 = vshrl.u32 %v944, 16
      %v1123 = vrot.slane %v1121, 7
      %v1124 = vshll.u32 %v944, 16
      %v1126 = vor.u32 %v1123, %v1124
      %v1127 = vsel %vm958, %v1119, %v1126
      %v1128 = vrot.slane %v1123, 4
      %v1130 = vshrl.u32 %v945, 16
      %v1132 = vrot.slane %v1130, 7
      %v1133 = vshll.u32 %v945, 16
      %v1135 = vor.u32 %v1132, %v1133
      %v1136 = vrot.slane %v1132, 4
      %v1138 = vshrl.u32 %v946, 16
      %v1140 = vrot.slane %v1138, 7
      %v1141 = vshll.u32 %v946, 16
      %v1143 = vor.u32 %v1140, %v1141
      %v1144 = vsel %vm958, %v1136, %v1143
      %v1145 = vrot.slane %v1140, 4
      %v1147 = vshrl.u32 %v947, 16
      %v1149 = vrot.slane %v1147, 7
      %v1150 = vshll.u32 %v947, 16
      %v1152 = vor.u32 %v1149, %v1150
      %v1153 = vrot.slane %v1149, 4
      %v1155 = vshrl.u32 %v948, 16
      %v1157 = vrot.slane %v1155, 7
      %v1158 = vshll.u32 %v948, 16
      %v1160 = vor.u32 %v1157, %v1158
      %v1161 = vsel %vm958, %v1153, %v1160
      %v1162 = vrot.slane %v1157, 4
      %v1164 = vshrl.u32 %v949, 16
      %v1166 = vrot.slane %v1164, 7
      %v1167 = vshll.u32 %v949, 16
      %v1169 = vor.u32 %v1166, %v1167
      %v1170 = vrot.slane %v1166, 4
      %v1172 = vshrl.u32 %v950, 16
      %v1174 = vrot.slane %v1172, 7
      %v1175 = vshll.u32 %v950, 16
      %v1177 = vor.u32 %v1174, %v1175
      %v1178 = vsel %vm958, %v1170, %v1177
      %v1179 = vrot.slane %v1174, 4
      %v1181 = vshrl.u32 %v951, 16
      %v1183 = vrot.slane %v1181, 7
      %v1184 = vshll.u32 %v951, 16
      %v1186 = vor.u32 %v1183, %v1184
      %v1187 = vrot.slane %v1183, 4
      %v1189 = vshrl.u32 %v952, 16
      %v1191 = vrot.slane %v1189, 7
      %v1192 = vshll.u32 %v952, 16
      %v1194 = vor.u32 %v1191, %v1192
      %v1195 = vsel %vm958, %v1187, %v1194
      %v1196 = vrot.slane %v1191, 4
      %v1198 = vshrl.u32 %v953, 16
      %v1200 = vrot.slane %v1198, 7
      %v1201 = vshll.u32 %v953, 16
      %v1203 = vor.u32 %v1200, %v1201
      %v1204 = vrot.slane %v1200, 4
      %v1206 = vshrl.u32 %v954, 16
      %v1208 = vrot.slane %v1206, 7
      %v1209 = vshll.u32 %v954, 16
      %v1211 = vor.u32 %v1208, %v1209
      %v1212 = vsel %vm958, %v1204, %v1211
      %v1213 = vrot.slane %v1208, 4
      %v1215 = vshrl.u32 %v955, 16
      %v1217 = vrot.slane %v1215, 7
      %v1218 = vshll.u32 %v955, 16
      %v1220 = vor.u32 %v1217, %v1218
      %v1221 = vrot.slane %v1217, 4
      %v1223 = vshrl.u32 %v956, 16
      %v1225 = vrot.slane %v1223, 7
      %v1226 = vshll.u32 %v956, 16
      %v1228 = vor.u32 %v1225, %v1226
      %v1229 = vsel %vm958, %v1221, %v1228
      %v1230 = vrot.slane %v1225, 4
      %s1279 = scalar_lea.vmem [#allocation2], 12
      %v1280 = vld [vmem:[%s1279] sm:$0xf]
      %v1281 = vsel %vm423, %v965, %v1280
      %1282 = vst [vmem:[%s1279] sm:$0xf] %v1281
      %1283 = vst [vmem:[%s1279 + $0x4] sm:$0xf] %v974
      %v1284 = vld [vmem:[%s1279 + $0x8] sm:$0x1]
      %v1285 = vsel %vm363, %v975, %v1284
      %1286 = vst [vmem:[%s1279 + $0x8] sm:$0x1] %v1285
      %v1287 = vld [vmem:[%s1279 + $0xc] sm:$0xf]
      %v1288 = vsel %vm423, %v982, %v1287
      %1289 = vst [vmem:[%s1279 + $0xc] sm:$0xf] %v1288
      %1290 = vst [vmem:[%s1279 + $0x10] sm:$0xf] %v991
      %v1291 = vld [vmem:[%s1279 + $0x14] sm:$0x1]
      %v1292 = vsel %vm363, %v992, %v1291
      %1293 = vst [vmem:[%s1279 + $0x14] sm:$0x1] %v1292
      %v1294 = vld [vmem:[%s1279 + $0x18] sm:$0xf]
      %v1295 = vsel %vm423, %v999, %v1294
      %1296 = vst [vmem:[%s1279 + $0x18] sm:$0xf] %v1295
      %1297 = vst [vmem:[%s1279 + $0x1c] sm:$0xf] %v1008
      %v1298 = vld [vmem:[%s1279 + $0x20] sm:$0x1]
      %v1299 = vsel %vm363, %v1009, %v1298
      %1300 = vst [vmem:[%s1279 + $0x20] sm:$0x1] %v1299
      %v1301 = vld [vmem:[%s1279 + $0x24] sm:$0xf]
      %v1302 = vsel %vm423, %v1016, %v1301
      %1303 = vst [vmem:[%s1279 + $0x24] sm:$0xf] %v1302
      %1304 = vst [vmem:[%s1279 + $0x28] sm:$0xf] %v1025
      %v1305 = vld [vmem:[%s1279 + $0x2c] sm:$0x1]
      %v1306 = vsel %vm363, %v1026, %v1305
      %1307 = vst [vmem:[%s1279 + $0x2c] sm:$0x1] %v1306
      %v1308 = vld [vmem:[%s1279 + $0x30] sm:$0xf]
      %v1309 = vsel %vm423, %v1033, %v1308
      %1310 = vst [vmem:[%s1279 + $0x30] sm:$0xf] %v1309
      %1311 = vst [vmem:[%s1279 + $0x34] sm:$0xf] %v1042
      %v1312 = vld [vmem:[%s1279 + $0x38] sm:$0x1]
      %v1313 = vsel %vm363, %v1043, %v1312
      %1314 = vst [vmem:[%s1279 + $0x38] sm:$0x1] %v1313
      %v1315 = vld [vmem:[%s1279 + $0x3c] sm:$0xf]
      %v1316 = vsel %vm423, %v1050, %v1315
      %1317 = vst [vmem:[%s1279 + $0x3c] sm:$0xf] %v1316
      %1318 = vst [vmem:[%s1279 + $0x40] sm:$0xf] %v1059
      %v1319 = vld [vmem:[%s1279 + $0x44] sm:$0x1]
      %v1320 = vsel %vm363, %v1060, %v1319
      %1321 = vst [vmem:[%s1279 + $0x44] sm:$0x1] %v1320
      %v1322 = vld [vmem:[%s1279 + $0x48] sm:$0xf]
      %v1323 = vsel %vm423, %v1067, %v1322
      %1324 = vst [vmem:[%s1279 + $0x48] sm:$0xf] %v1323
      %1325 = vst [vmem:[%s1279 + $0x4c] sm:$0xf] %v1076
      %v1326 = vld [vmem:[%s1279 + $0x50] sm:$0x1]
      %v1327 = vsel %vm363, %v1077, %v1326
      %1328 = vst [vmem:[%s1279 + $0x50] sm:$0x1] %v1327
      %v1329 = vld [vmem:[%s1279 + $0x54] sm:$0xf]
      %v1330 = vsel %vm423, %v1084, %v1329
      %1331 = vst [vmem:[%s1279 + $0x54] sm:$0xf] %v1330
      %1332 = vst [vmem:[%s1279 + $0x58] sm:$0xf] %v1093
      %v1333 = vld [vmem:[%s1279 + $0x5c] sm:$0x1]
      %v1334 = vsel %vm363, %v1094, %v1333
      %1335 = vst [vmem:[%s1279 + $0x5c] sm:$0x1] %v1334
      %v1336 = vld [vmem:[%s1279 + $0x60] sm:$0xf]
      %v1337 = vsel %vm423, %v1101, %v1336
      %1338 = vst [vmem:[%s1279 + $0x60] sm:$0xf] %v1337
      %1339 = vst [vmem:[%s1279 + $0x64] sm:$0xf] %v1110
      %v1340 = vld [vmem:[%s1279 + $0x68] sm:$0x1]
      %v1341 = vsel %vm363, %v1111, %v1340
      %1342 = vst [vmem:[%s1279 + $0x68] sm:$0x1] %v1341
      %v1343 = vld [vmem:[%s1279 + $0x6c] sm:$0xf]
      %v1344 = vsel %vm423, %v1118, %v1343
      %1345 = vst [vmem:[%s1279 + $0x6c] sm:$0xf] %v1344
      %1346 = vst [vmem:[%s1279 + $0x70] sm:$0xf] %v1127
      %v1347 = vld [vmem:[%s1279 + $0x74] sm:$0x1]
      %v1348 = vsel %vm363, %v1128, %v1347
      %1349 = vst [vmem:[%s1279 + $0x74] sm:$0x1] %v1348
      %v1350 = vld [vmem:[%s1279 + $0x78] sm:$0xf]
      %v1351 = vsel %vm423, %v1135, %v1350
      %1352 = vst [vmem:[%s1279 + $0x78] sm:$0xf] %v1351
      %1353 = vst [vmem:[%s1279 + $0x7c] sm:$0xf] %v1144
      %v1354 = vld [vmem:[%s1279 + $0x80] sm:$0x1]
      %v1355 = vsel %vm363, %v1145, %v1354
      %1356 = vst [vmem:[%s1279 + $0x80] sm:$0x1] %v1355
      %v1357 = vld [vmem:[%s1279 + $0x84] sm:$0xf]
      %v1358 = vsel %vm423, %v1152, %v1357
      %1359 = vst [vmem:[%s1279 + $0x84] sm:$0xf] %v1358
      %1360 = vst [vmem:[%s1279 + $0x88] sm:$0xf] %v1161
      %v1361 = vld [vmem:[%s1279 + $0x8c] sm:$0x1]
      %v1362 = vsel %vm363, %v1162, %v1361
      %1363 = vst [vmem:[%s1279 + $0x8c] sm:$0x1] %v1362
      %v1364 = vld [vmem:[%s1279 + $0x90] sm:$0xf]
      %v1365 = vsel %vm423, %v1169, %v1364
      %1366 = vst [vmem:[%s1279 + $0x90] sm:$0xf] %v1365
      %1367 = vst [vmem:[%s1279 + $0x94] sm:$0xf] %v1178
      %v1368 = vld [vmem:[%s1279 + $0x98] sm:$0x1]
      %v1369 = vsel %vm363, %v1179, %v1368
      %1370 = vst [vmem:[%s1279 + $0x98] sm:$0x1] %v1369
      %v1371 = vld [vmem:[%s1279 + $0x9c] sm:$0xf]
      %v1372 = vsel %vm423, %v1186, %v1371
      %1373 = vst [vmem:[%s1279 + $0x9c] sm:$0xf] %v1372
      %1374 = vst [vmem:[%s1279 + $0xa0] sm:$0xf] %v1195
      %v1375 = vld [vmem:[%s1279 + $0xa4] sm:$0x1]
      %v1376 = vsel %vm363, %v1196, %v1375
      %1377 = vst [vmem:[%s1279 + $0xa4] sm:$0x1] %v1376
      %v1378 = vld [vmem:[%s1279 + $0xa8] sm:$0xf]
      %v1379 = vsel %vm423, %v1203, %v1378
      %1380 = vst [vmem:[%s1279 + $0xa8] sm:$0xf] %v1379
      %1381 = vst [vmem:[%s1279 + $0xac] sm:$0xf] %v1212
      %v1382 = vld [vmem:[%s1279 + $0xb0] sm:$0x1]
      %v1383 = vsel %vm363, %v1213, %v1382
      %1384 = vst [vmem:[%s1279 + $0xb0] sm:$0x1] %v1383
      %v1385 = vld [vmem:[%s1279 + $0xb4] sm:$0xf]
      %v1386 = vsel %vm423, %v1220, %v1385
      %1387 = vst [vmem:[%s1279 + $0xb4] sm:$0xf] %v1386
      %1388 = vst [vmem:[%s1279 + $0xb8] sm:$0xf] %v1229
      %v1389 = vld [vmem:[%s1279 + $0xbc] sm:$0x1]
      %v1390 = vsel %vm363, %v1230, %v1389
      %1391 = vst [vmem:[%s1279 + $0xbc] sm:$0x1] %v1390
      %v1392 = vld [vmem:[#allocation2] sm:$0xf]
      %v1393 = vld [vmem:[#allocation2 + $0x4] sm:$0xf]
      %v1394 = vld [vmem:[#allocation2 + $0x8] sm:$0xf]
      %v1395 = vld [vmem:[#allocation2 + $0xc] sm:$0xf]
      %v1396 = vld [vmem:[#allocation2 + $0x10] sm:$0xf]
      %v1397 = vld [vmem:[#allocation2 + $0x14] sm:$0xf]
      %v1398 = vld [vmem:[#allocation2 + $0x18] sm:$0xf]
      %v1399 = vld [vmem:[#allocation2 + $0x1c] sm:$0xf]
      %v1400 = vld [vmem:[#allocation2 + $0x20] sm:$0xf]
      %v1401 = vld [vmem:[#allocation2 + $0x24] sm:$0xf]
      %v1402 = vld [vmem:[#allocation2 + $0x28] sm:$0xf]
      %v1403 = vld [vmem:[#allocation2 + $0x2c] sm:$0xf]
      %v1404 = vld [vmem:[#allocation2 + $0x30] sm:$0xf]
      %v1405 = vld [vmem:[#allocation2 + $0x34] sm:$0xf]
      %v1406 = vld [vmem:[#allocation2 + $0x38] sm:$0xf]
      %v1407 = vld [vmem:[#allocation2 + $0x3c] sm:$0xf]
      %v1408 = vld [vmem:[#allocation2 + $0x40] sm:$0xf]
      %v1409 = vld [vmem:[#allocation2 + $0x44] sm:$0xf]
      %v1410 = vld [vmem:[#allocation2 + $0x48] sm:$0xf]
      %v1411 = vld [vmem:[#allocation2 + $0x4c] sm:$0xf]
      %v1412 = vld [vmem:[#allocation2 + $0x50] sm:$0xf]
      %v1413 = vld [vmem:[#allocation2 + $0x54] sm:$0xf]
      %v1414 = vld [vmem:[#allocation2 + $0x58] sm:$0xf]
      %v1415 = vld [vmem:[#allocation2 + $0x5c] sm:$0xf]
      %v1416 = vld [vmem:[#allocation2 + $0x60] sm:$0xf]
      %v1417 = vld [vmem:[#allocation2 + $0x64] sm:$0xf]
      %v1418 = vld [vmem:[#allocation2 + $0x68] sm:$0xf]
      %v1419 = vld [vmem:[#allocation2 + $0x6c] sm:$0xf]
      %v1420 = vld [vmem:[#allocation2 + $0x70] sm:$0xf]
      %v1421 = vld [vmem:[#allocation2 + $0x74] sm:$0xf]
      %v1422 = vld [vmem:[#allocation2 + $0x78] sm:$0xf]
      %v1423 = vld [vmem:[#allocation2 + $0x7c] sm:$0xf]
      %v1424 = vld [vmem:[#allocation2 + $0x80] sm:$0xf]
      %v1425 = vld [vmem:[#allocation2 + $0x84] sm:$0xf]
      %v1426 = vld [vmem:[#allocation2 + $0x88] sm:$0xf]
      %v1427 = vld [vmem:[#allocation2 + $0x8c] sm:$0xf]
      %v1428 = vld [vmem:[#allocation2 + $0x90] sm:$0xf]
      %v1429 = vld [vmem:[#allocation2 + $0x94] sm:$0xf]
      %v1430 = vld [vmem:[#allocation2 + $0x98] sm:$0xf]
      %v1431 = vld [vmem:[#allocation2 + $0x9c] sm:$0xf]
      %v1432 = vld [vmem:[#allocation2 + $0xa0] sm:$0xf]
      %v1433 = vld [vmem:[#allocation2 + $0xa4] sm:$0xf]
      %v1434 = vld [vmem:[#allocation2 + $0xa8] sm:$0xf]
      %v1435 = vld [vmem:[#allocation2 + $0xac] sm:$0xf]
      %v1436 = vld [vmem:[#allocation2 + $0xb0] sm:$0xf]
      %v1437 = vld [vmem:[#allocation2 + $0xb4] sm:$0xf]
      %v1438 = vld [vmem:[#allocation2 + $0xb8] sm:$0xf]
      %v1439 = vld [vmem:[#allocation2 + $0xbc] sm:$0xf]
      %v1440 = vld [vmem:[#allocation2 + $0xc0] sm:$0xf]
      %v1441 = vld [vmem:[#allocation2 + $0xc4] sm:$0xf]
      %v1442 = vld [vmem:[#allocation2 + $0xc8] sm:$0xf]
      %v1443 = vld [vmem:[#allocation2 + $0xcc] sm:$0xf]
      %v1444 = vld [vmem:[#allocation2 + $0xd0] sm:$0xf]
      %v1445 = vld [vmem:[#allocation2 + $0xd4] sm:$0xf]
      %v1446 = vld [vmem:[#allocation2 + $0xd8] sm:$0xf]
      %v1447 = vld [vmem:[%s5] sm:$0xf]
      %v1448 = vld [vmem:[%s5 + $0x4] sm:$0xf]
      %v1449 = vld [vmem:[%s5 + $0x8] sm:$0xf]
      %v1450 = vld [vmem:[%s5 + $0xc] sm:$0xf]
      %v1451 = vld [vmem:[%s5 + $0x10] sm:$0xf]
      %v1452 = vld [vmem:[%s5 + $0x14] sm:$0xf]
      %v1453 = vld [vmem:[%s5 + $0x18] sm:$0xf]
      %v1454 = vld [vmem:[%s5 + $0x1c] sm:$0xf]
      %v1455 = vld [vmem:[%s5 + $0x20] sm:$0xf]
      %v1456 = vld [vmem:[%s5 + $0x24] sm:$0xf]
      %v1457 = vld [vmem:[%s5 + $0x28] sm:$0xf]
      %v1458 = vld [vmem:[%s5 + $0x2c] sm:$0xf]
      %v1459 = vld [vmem:[%s5 + $0x30] sm:$0xf]
      %v1460 = vld [vmem:[%s5 + $0x34] sm:$0xf]
      %v1461 = vld [vmem:[%s5 + $0x38] sm:$0xf]
      %v1462 = vld [vmem:[%s5 + $0x3c] sm:$0xf]
      %s1463 = scalar_lea.vmem %s5, 64
      %v1464 = vld [vmem:[%s1463] sm:$0xf]
      %v1465 = vld [vmem:[%s1463 + $0x4] sm:$0xf]
      %v1466 = vld [vmem:[%s1463 + $0x8] sm:$0xf]
      %v1467 = vld [vmem:[%s1463 + $0xc] sm:$0xf]
      %v1468 = vld [vmem:[%s1463 + $0x10] sm:$0xf]
      %v1469 = vld [vmem:[%s1463 + $0x14] sm:$0xf]
      %v1470 = vld [vmem:[%s1463 + $0x18] sm:$0xf]
      %v1471 = vld [vmem:[%s1463 + $0x1c] sm:$0xf]
      %v1472 = vld [vmem:[%s1463 + $0x20] sm:$0xf]
      %v1473 = vld [vmem:[%s1463 + $0x24] sm:$0xf]
      %v1474 = vld [vmem:[%s1463 + $0x28] sm:$0xf]
      %v1475 = vld [vmem:[%s1463 + $0x2c] sm:$0xf]
      %v1476 = vld [vmem:[%s1463 + $0x30] sm:$0xf]
      %v1477 = vld [vmem:[%s1463 + $0x34] sm:$0xf]
      %v1478 = vld [vmem:[%s1463 + $0x38] sm:$0xf]
      %v1479 = vld [vmem:[%s1463 + $0x3c] sm:$0xf]
      %v1529 = vunpack.c.l.b16 %v1392
      %v1530 = vunpack.c.l.b16 %v1393
      %v1531 = vunpack.c.l.b16 %v1394
      %v1532 = vunpack.c.l.b16 %v1395
      %v1533 = vunpack.c.l.b16 %v1396
      %v1534 = vunpack.c.l.b16 %v1397
      %v1535 = vunpack.c.l.b16 %v1398
      %v1536 = vunpack.c.l.b16 %v1399
      %v1537 = vunpack.c.l.b16 %v1400
      %v1538 = vunpack.c.l.b16 %v1401
      %v1539 = vunpack.c.l.b16 %v1402
      %v1540 = vunpack.c.l.b16 %v1403
      %v1541 = vunpack.c.l.b16 %v1404
      %v1542 = vunpack.c.l.b16 %v1405
      %v1543 = vunpack.c.l.b16 %v1406
      %v1544 = vunpack.c.l.b16 %v1407
      %v1545 = vunpack.c.l.b16 %v1408
      %v1546 = vunpack.c.l.b16 %v1409
      %v1547 = vunpack.c.l.b16 %v1410
      %v1548 = vunpack.c.l.b16 %v1411
      %v1549 = vunpack.c.l.b16 %v1412
      %v1550 = vunpack.c.l.b16 %v1413
      %v1551 = vunpack.c.l.b16 %v1414
      %v1552 = vunpack.c.l.b16 %v1415
      %v1553 = vunpack.c.l.b16 %v1416
      %v1554 = vunpack.c.l.b16 %v1417
      %v1555 = vunpack.c.l.b16 %v1418
      %v1556 = vunpack.c.l.b16 %v1419
      %v1557 = vunpack.c.l.b16 %v1420
      %v1558 = vunpack.c.l.b16 %v1421
      %v1559 = vunpack.c.l.b16 %v1422
      %v1560 = vunpack.c.l.b16 %v1423
      %v1561 = vunpack.c.l.b16 %v1424
      %v1562 = vunpack.c.l.b16 %v1425
      %v1563 = vunpack.c.l.b16 %v1426
      %v1564 = vunpack.c.l.b16 %v1427
      %v1565 = vunpack.c.l.b16 %v1428
      %v1566 = vunpack.c.l.b16 %v1429
      %v1567 = vunpack.c.l.b16 %v1430
      %v1568 = vunpack.c.l.b16 %v1431
      %v1569 = vunpack.c.l.b16 %v1432
      %v1570 = vunpack.c.l.b16 %v1433
      %v1571 = vunpack.c.l.b16 %v1434
      %v1572 = vunpack.c.l.b16 %v1435
      %v1573 = vunpack.c.l.b16 %v1436
      %v1574 = vunpack.c.l.b16 %v1437
      %v1575 = vunpack.c.l.b16 %v1438
      %v1576 = vunpack.c.l.b16 %v1439
      %v1577 = vunpack.c.l.b16 %v1440
      %v1578 = vpack.c.b16 %v1530, %v1529
      %v1579 = vpack.c.b16 %v1532, %v1531
      %v1580 = vpack.c.b16 %v1534, %v1533
      %v1581 = vpack.c.b16 %v1536, %v1535
      %v1582 = vpack.c.b16 %v1538, %v1537
      %v1583 = vpack.c.b16 %v1540, %v1539
      %v1584 = vpack.c.b16 %v1542, %v1541
      %v1585 = vpack.c.b16 %v1544, %v1543
      %v1586 = vpack.c.b16 %v1546, %v1545
      %v1587 = vpack.c.b16 %v1548, %v1547
      %v1588 = vpack.c.b16 %v1550, %v1549
      %v1589 = vpack.c.b16 %v1552, %v1551
      %v1590 = vpack.c.b16 %v1554, %v1553
      %v1591 = vpack.c.b16 %v1556, %v1555
      %v1592 = vpack.c.b16 %v1558, %v1557
      %v1593 = vpack.c.b16 %v1560, %v1559
      %v1594 = vpack.c.b16 %v1562, %v1561
      %v1595 = vpack.c.b16 %v1564, %v1563
      %v1596 = vpack.c.b16 %v1566, %v1565
      %v1597 = vpack.c.b16 %v1568, %v1567
      %v1598 = vpack.c.b16 %v1570, %v1569
      %v1599 = vpack.c.b16 %v1572, %v1571
      %v1600 = vpack.c.b16 %v1574, %v1573
      %v1601 = vpack.c.b16 %v1576, %v1575
      %v1602 = vpack.c.b16 %v1577, %v1577
      %vm1603 = vsmask.f32 7424
      %v1605 = vshrl.u32 %v1578, 16
      %v1607 = vshll.u32 %v1578, 16
      %v1609 = vrot.slane %v1607, 1
      %v1610 = vor.u32 %v1605, %v1609
      %v1612 = vshll.u32 %v1579, 16
      %v1614 = vrot.slane %v1612, 1
      %v1615 = vsel %vm1603, %v1610, %v1614
      %v1616 = vshrl.u32 %v1579, 16
      %v1618 = vor.u32 %v1616, %v1614
      %v1620 = vshll.u32 %v1580, 16
      %v1622 = vrot.slane %v1620, 1
      %v1623 = vsel %vm1603, %v1618, %v1622
      %v1624 = vshrl.u32 %v1580, 16
      %v1626 = vor.u32 %v1624, %v1622
      %v1628 = vshll.u32 %v1581, 16
      %v1630 = vrot.slane %v1628, 1
      %v1631 = vsel %vm1603, %v1626, %v1630
      %v1632 = vshrl.u32 %v1581, 16
      %v1634 = vor.u32 %v1632, %v1630
      %v1636 = vshll.u32 %v1582, 16
      %v1638 = vrot.slane %v1636, 1
      %v1639 = vsel %vm1603, %v1634, %v1638
      %v1640 = vshrl.u32 %v1582, 16
      %v1642 = vor.u32 %v1640, %v1638
      %v1644 = vshll.u32 %v1583, 16
      %v1646 = vrot.slane %v1644, 1
      %v1647 = vsel %vm1603, %v1642, %v1646
      %v1648 = vshrl.u32 %v1583, 16
      %v1650 = vor.u32 %v1648, %v1646
      %v1652 = vshll.u32 %v1584, 16
      %v1654 = vrot.slane %v1652, 1
      %v1655 = vsel %vm1603, %v1650, %v1654
      %v1656 = vshrl.u32 %v1584, 16
      %v1658 = vor.u32 %v1656, %v1654
      %v1660 = vshll.u32 %v1585, 16
      %v1662 = vrot.slane %v1660, 1
      %v1663 = vsel %vm1603, %v1658, %v1662
      %v1664 = vshrl.u32 %v1585, 16
      %v1666 = vor.u32 %v1664, %v1662
      %v1668 = vshll.u32 %v1586, 16
      %v1670 = vrot.slane %v1668, 1
      %v1671 = vsel %vm1603, %v1666, %v1670
      %v1672 = vshrl.u32 %v1586, 16
      %v1674 = vor.u32 %v1672, %v1670
      %v1676 = vshll.u32 %v1587, 16
      %v1678 = vrot.slane %v1676, 1
      %v1679 = vsel %vm1603, %v1674, %v1678
      %v1680 = vshrl.u32 %v1587, 16
      %v1682 = vor.u32 %v1680, %v1678
      %v1684 = vshll.u32 %v1588, 16
      %v1686 = vrot.slane %v1684, 1
      %v1687 = vsel %vm1603, %v1682, %v1686
      %v1688 = vshrl.u32 %v1588, 16
      %v1690 = vor.u32 %v1688, %v1686
      %v1692 = vshll.u32 %v1589, 16
      %v1694 = vrot.slane %v1692, 1
      %v1695 = vsel %vm1603, %v1690, %v1694
      %v1696 = vshrl.u32 %v1589, 16
      %v1698 = vor.u32 %v1696, %v1694
      %v1700 = vshll.u32 %v1590, 16
      %v1702 = vrot.slane %v1700, 1
      %v1703 = vsel %vm1603, %v1698, %v1702
      %v1704 = vshrl.u32 %v1590, 16
      %v1706 = vor.u32 %v1704, %v1702
      %v1708 = vshll.u32 %v1591, 16
      %v1710 = vrot.slane %v1708, 1
      %v1711 = vsel %vm1603, %v1706, %v1710
      %v1712 = vshrl.u32 %v1591, 16
      %v1714 = vor.u32 %v1712, %v1710
      %v1716 = vshll.u32 %v1592, 16
      %v1718 = vrot.slane %v1716, 1
      %v1719 = vsel %vm1603, %v1714, %v1718
      %v1720 = vshrl.u32 %v1592, 16
      %v1722 = vor.u32 %v1720, %v1718
      %v1724 = vshll.u32 %v1593, 16
      %v1726 = vrot.slane %v1724, 1
      %v1727 = vsel %vm1603, %v1722, %v1726
      %v1728 = vshrl.u32 %v1593, 16
      %v1730 = vor.u32 %v1728, %v1726
      %v1732 = vshll.u32 %v1594, 16
      %v1734 = vrot.slane %v1732, 1
      %v1735 = vsel %vm1603, %v1730, %v1734
      %v1736 = vshrl.u32 %v1594, 16
      %v1738 = vor.u32 %v1736, %v1734
      %v1740 = vshll.u32 %v1595, 16
      %v1742 = vrot.slane %v1740, 1
      %v1743 = vsel %vm1603, %v1738, %v1742
      %v1744 = vshrl.u32 %v1595, 16
      %v1746 = vor.u32 %v1744, %v1742
      %v1748 = vshll.u32 %v1596, 16
      %v1750 = vrot.slane %v1748, 1
      %v1751 = vsel %vm1603, %v1746, %v1750
      %v1752 = vshrl.u32 %v1596, 16
      %v1754 = vor.u32 %v1752, %v1750
      %v1756 = vshll.u32 %v1597, 16
      %v1758 = vrot.slane %v1756, 1
      %v1759 = vsel %vm1603, %v1754, %v1758
      %v1760 = vshrl.u32 %v1597, 16
      %v1762 = vor.u32 %v1760, %v1758
      %v1764 = vshll.u32 %v1598, 16
      %v1766 = vrot.slane %v1764, 1
      %v1767 = vsel %vm1603, %v1762, %v1766
      %v1768 = vshrl.u32 %v1598, 16
      %v1770 = vor.u32 %v1768, %v1766
      %v1772 = vshll.u32 %v1599, 16
      %v1774 = vrot.slane %v1772, 1
      %v1775 = vsel %vm1603, %v1770, %v1774
      %v1776 = vshrl.u32 %v1599, 16
      %v1778 = vor.u32 %v1776, %v1774
      %v1780 = vshll.u32 %v1600, 16
      %v1782 = vrot.slane %v1780, 1
      %v1783 = vsel %vm1603, %v1778, %v1782
      %v1784 = vshrl.u32 %v1600, 16
      %v1786 = vor.u32 %v1784, %v1782
      %v1788 = vshll.u32 %v1601, 16
      %v1790 = vrot.slane %v1788, 1
      %v1791 = vsel %vm1603, %v1786, %v1790
      %v1792 = vshrl.u32 %v1601, 16
      %v1794 = vor.u32 %v1792, %v1790
      %v1796 = vshll.u32 %v1602, 16
      %v1798 = vrot.slane %v1796, 1
      %v1799 = vsel %vm1603, %v1794, %v1798
      %v1840 = vunpack.c.l.b16 %v1464
      %v1841 = vunpack.c.l.b16 %v1465
      %v1842 = vunpack.c.l.b16 %v1466
      %v1843 = vunpack.c.l.b16 %v1467
      %v1844 = vunpack.c.l.b16 %v1468
      %v1845 = vunpack.c.l.b16 %v1469
      %v1846 = vunpack.c.l.b16 %v1470
      %v1847 = vunpack.c.l.b16 %v1471
      %v1848 = vunpack.c.l.b16 %v1472
      %v1849 = vunpack.c.l.b16 %v1473
      %v1850 = vunpack.c.l.b16 %v1474
      %v1851 = vunpack.c.l.b16 %v1475
      %v1852 = vunpack.c.l.b16 %v1476
      %v1853 = vunpack.c.l.b16 %v1477
      %v1854 = vunpack.c.l.b16 %v1478
      %v1855 = vunpack.c.l.b16 %v1479
      %v1856 = vpack.c.b16 %v1841, %v1840
      %v1857 = vpack.c.b16 %v1843, %v1842
      %v1858 = vpack.c.b16 %v1845, %v1844
      %v1859 = vpack.c.b16 %v1847, %v1846
      %v1860 = vpack.c.b16 %v1849, %v1848
      %v1861 = vpack.c.b16 %v1851, %v1850
      %v1862 = vpack.c.b16 %v1853, %v1852
      %v1863 = vpack.c.b16 %v1855, %v1854
      %1872 = vmatprep.subr.bf16.mxu0 0
      %1873 = vmatpush1.bf16.msra.mxu0 %v1863
      %1874 = vmatprep.subr.bf16.mxu0 0
      %1875 = vmatpush1.bf16.msra.mxu0 %v1862
      %1876 = vmatprep.subr.bf16.mxu0 0
      %1877 = vmatpush1.bf16.msra.mxu0 %v1861
      %1878 = vmatprep.subr.bf16.mxu0 0
      %1879 = vmatpush1.bf16.msra.mxu0 %v1860
      %1880 = vmatprep.subr.bf16.mxu0 0
      %1881 = vmatpush1.bf16.msra.mxu0 %v1859
      %1882 = vmatprep.subr.bf16.mxu0 0
      %1883 = vmatpush1.bf16.msra.mxu0 %v1858
      %1884 = vmatprep.subr.bf16.mxu0 0
      %1885 = vmatpush1.bf16.msra.mxu0 %v1857
      %1886 = vmatprep.subr.bf16.mxu0 0
      %1887 = vmatpush1.bf16.msra.mxu0 %v1856
      %1888 = vmatprep.subr.bf16.mxu0 0
      %1889 = vmatpush2.bf16.msra.mxu0 0
      %1890 = vmatprep.subr.bf16.mxu0 0
      %1891 = vmatpush2.bf16.msra.mxu0 0
      %1892 = vmatprep.subr.bf16.mxu0 0
      %1893 = vmatpush2.bf16.msra.mxu0 0
      %1894 = vmatprep.subr.bf16.mxu0 0
      %1895 = vmatpush2.bf16.msra.mxu0 0
      %1896 = vmatprep.subr.bf16.mxu0 0
      %1897 = vmatpush2.bf16.msra.mxu0 0
      %1898 = vmatprep.subr.bf16.mxu0 0
      %1899 = vmatpush2.bf16.msra.mxu0 0
      %1900 = vmatprep.subr.bf16.mxu0 0
      %1901 = vmatpush2.bf16.msra.mxu0 0
      %1902 = vmatprep.subr.bf16.mxu0 0
      %1903 = vmatpush2.bf16.msra.mxu0 0
      %1904 = vmatprep.mubr.bf16.mxu0 0
      %1905 = vmatmul.mubr.bf16.gmra.mxu0 %v1615
      %v1906 = vpop.f32.mrf.mxu0
      %v1907 = vadd.f32 0.0, %v1906
      %v1908 = vpop.f32.mrf.mxu0
      %v1909 = vpop.f32.mrf.mxu0
      %v1910 = vadd.f32 0.0, %v1909
      %v1911 = vpop.f32.mrf.mxu0
      %1912 = vmatprep.mubr.bf16.mxu0 0
      %1913 = vmatmul.mubr.bf16.gmra.mxu0 %v1623
      %v1914 = vpop.f32.mrf.mxu0
      %v1915 = vpop.f32.mrf.mxu0
      %v1916 = vpop.f32.mrf.mxu0
      %v1917 = vadd.f32 0.0, %v1916
      %v1918 = vpop.f32.mrf.mxu0
      %1919 = vmatprep.mubr.bf16.mxu0 0
      %1920 = vmatmul.mubr.bf16.gmra.mxu0 %v1631
      %v1921 = vpop.f32.mrf.mxu0
      %v1922 = vadd.f32 0.0, %v1921
      %v1923 = vpop.f32.mrf.mxu0
      %v1924 = vpop.f32.mrf.mxu0
      %v1925 = vpop.f32.mrf.mxu0
      %1926 = vmatprep.mubr.bf16.mxu0 0
      %1927 = vmatmul.mubr.bf16.gmra.mxu0 %v1639
      %v1928 = vpop.f32.mrf.mxu0
      %v1929 = vadd.f32 0.0, %v1928
      %v1930 = vpop.f32.mrf.mxu0
      %v1931 = vpop.f32.mrf.mxu0
      %v1932 = vadd.f32 0.0, %v1931
      %v1933 = vpop.f32.mrf.mxu0
      %1934 = vmatprep.mubr.bf16.mxu0 0
      %1935 = vmatmul.mubr.bf16.gmra.mxu0 %v1647
      %v1936 = vpop.f32.mrf.mxu0
      %v1937 = vpop.f32.mrf.mxu0
      %v1938 = vpop.f32.mrf.mxu0
      %v1939 = vadd.f32 0.0, %v1938
      %v1940 = vpop.f32.mrf.mxu0
      %1941 = vmatprep.mubr.bf16.mxu0 0
      %1942 = vmatmul.mubr.bf16.gmra.mxu0 %v1655
      %v1943 = vpop.f32.mrf.mxu0
      %v1944 = vadd.f32 0.0, %v1943
      %v1945 = vpop.f32.mrf.mxu0
      %v1946 = vpop.f32.mrf.mxu0
      %v1947 = vpop.f32.mrf.mxu0
      %1948 = vmatprep.mubr.bf16.mxu0 0
      %1949 = vmatmul.mubr.bf16.gmra.mxu0 %v1663
      %v1950 = vpop.f32.mrf.mxu0
      %v1951 = vadd.f32 0.0, %v1950
      %v1952 = vpop.f32.mrf.mxu0
      %v1953 = vpop.f32.mrf.mxu0
      %v1954 = vadd.f32 0.0, %v1953
      %v1955 = vpop.f32.mrf.mxu0
      %1956 = vmatprep.mubr.bf16.mxu0 0
      %1957 = vmatmul.mubr.bf16.gmra.mxu0 %v1671
      %v1958 = vpop.f32.mrf.mxu0
      %v1959 = vpop.f32.mrf.mxu0
      %v1960 = vpop.f32.mrf.mxu0
      %v1961 = vadd.f32 0.0, %v1960
      %v1962 = vpop.f32.mrf.mxu0
      %1963 = vmatprep.mubr.bf16.mxu0 0
      %1964 = vmatmul.mubr.bf16.gmra.mxu0 %v1679
      %v1965 = vpop.f32.mrf.mxu0
      %v1966 = vadd.f32 0.0, %v1965
      %v1967 = vpop.f32.mrf.mxu0
      %v1968 = vpop.f32.mrf.mxu0
      %v1969 = vpop.f32.mrf.mxu0
      %1970 = vmatprep.mubr.bf16.mxu0 0
      %1971 = vmatmul.mubr.bf16.gmra.mxu0 %v1687
      %v1972 = vpop.f32.mrf.mxu0
      %v1973 = vadd.f32 0.0, %v1972
      %v1974 = vpop.f32.mrf.mxu0
      %v1975 = vpop.f32.mrf.mxu0
      %v1976 = vadd.f32 0.0, %v1975
      %v1977 = vpop.f32.mrf.mxu0
      %1978 = vmatprep.mubr.bf16.mxu0 0
      %1979 = vmatmul.mubr.bf16.gmra.mxu0 %v1695
      %v1980 = vpop.f32.mrf.mxu0
      %v1981 = vpop.f32.mrf.mxu0
      %v1982 = vpop.f32.mrf.mxu0
      %v1983 = vadd.f32 0.0, %v1982
      %v1984 = vpop.f32.mrf.mxu0
      %1985 = vmatprep.mubr.bf16.mxu0 0
      %1986 = vmatmul.mubr.bf16.gmra.mxu0 %v1703
      %v1987 = vpop.f32.mrf.mxu0
      %v1988 = vadd.f32 0.0, %v1987
      %v1989 = vpop.f32.mrf.mxu0
      %v1990 = vpop.f32.mrf.mxu0
      %v1991 = vpop.f32.mrf.mxu0
      %1992 = vmatprep.mubr.bf16.mxu0 0
      %1993 = vmatmul.mubr.bf16.gmra.mxu0 %v1711
      %v1994 = vpop.f32.mrf.mxu0
      %v1995 = vadd.f32 0.0, %v1994
      %v1996 = vpop.f32.mrf.mxu0
      %v1997 = vpop.f32.mrf.mxu0
      %v1998 = vadd.f32 0.0, %v1997
      %v1999 = vpop.f32.mrf.mxu0
      %2000 = vmatprep.mubr.bf16.mxu0 0
      %2001 = vmatmul.mubr.bf16.gmra.mxu0 %v1719
      %v2002 = vpop.f32.mrf.mxu0
      %v2003 = vpop.f32.mrf.mxu0
      %v2004 = vpop.f32.mrf.mxu0
      %v2005 = vadd.f32 0.0, %v2004
      %v2006 = vpop.f32.mrf.mxu0
      %2007 = vmatprep.mubr.bf16.mxu0 0
      %2008 = vmatmul.mubr.bf16.gmra.mxu0 %v1727
      %v2009 = vpop.f32.mrf.mxu0
      %v2010 = vadd.f32 0.0, %v2009
      %v2011 = vpop.f32.mrf.mxu0
      %v2012 = vpop.f32.mrf.mxu0
      %v2013 = vpop.f32.mrf.mxu0
      %2014 = vmatprep.mubr.bf16.mxu0 0
      %2015 = vmatmul.mubr.bf16.gmra.mxu0 %v1735
      %v2016 = vpop.f32.mrf.mxu0
      %v2017 = vadd.f32 0.0, %v2016
      %v2018 = vpop.f32.mrf.mxu0
      %v2019 = vpop.f32.mrf.mxu0
      %v2020 = vadd.f32 0.0, %v2019
      %v2021 = vpop.f32.mrf.mxu0
      %2022 = vmatprep.mubr.bf16.mxu0 0
      %2023 = vmatmul.mubr.bf16.gmra.mxu0 %v1743
      %v2024 = vpop.f32.mrf.mxu0
      %v2025 = vpop.f32.mrf.mxu0
      %v2026 = vpop.f32.mrf.mxu0
      %v2027 = vadd.f32 0.0, %v2026
      %v2028 = vpop.f32.mrf.mxu0
      %2029 = vmatprep.mubr.bf16.mxu0 0
      %2030 = vmatmul.mubr.bf16.gmra.mxu0 %v1751
      %v2031 = vpop.f32.mrf.mxu0
      %v2032 = vadd.f32 0.0, %v2031
      %v2033 = vpop.f32.mrf.mxu0
      %v2034 = vpop.f32.mrf.mxu0
      %v2035 = vpop.f32.mrf.mxu0
      %2036 = vmatprep.mubr.bf16.mxu0 0
      %2037 = vmatmul.mubr.bf16.gmra.mxu0 %v1759
      %v2038 = vpop.f32.mrf.mxu0
      %v2039 = vadd.f32 0.0, %v2038
      %v2040 = vpop.f32.mrf.mxu0
      %v2041 = vpop.f32.mrf.mxu0
      %v2042 = vadd.f32 0.0, %v2041
      %v2043 = vpop.f32.mrf.mxu0
      %2044 = vmatprep.mubr.bf16.mxu0 0
      %2045 = vmatmul.mubr.bf16.gmra.mxu0 %v1767
      %v2046 = vpop.f32.mrf.mxu0
      %v2047 = vpop.f32.mrf.mxu0
      %v2048 = vpop.f32.mrf.mxu0
      %v2049 = vadd.f32 0.0, %v2048
      %v2050 = vpop.f32.mrf.mxu0
      %2051 = vmatprep.mubr.bf16.mxu0 0
      %2052 = vmatmul.mubr.bf16.gmra.mxu0 %v1775
      %v2053 = vpop.f32.mrf.mxu0
      %v2054 = vadd.f32 0.0, %v2053
      %v2055 = vpop.f32.mrf.mxu0
      %v2056 = vpop.f32.mrf.mxu0
      %v2057 = vpop.f32.mrf.mxu0
      %2058 = vmatprep.mubr.bf16.mxu0 0
      %2059 = vmatmul.mubr.bf16.gmra.mxu0 %v1783
      %v2060 = vpop.f32.mrf.mxu0
      %v2061 = vadd.f32 0.0, %v2060
      %v2062 = vpop.f32.mrf.mxu0
      %v2063 = vpop.f32.mrf.mxu0
      %v2064 = vadd.f32 0.0, %v2063
      %v2065 = vpop.f32.mrf.mxu0
      %2066 = vmatprep.mubr.bf16.mxu0 0
      %2067 = vmatmul.mubr.bf16.gmra.mxu0 %v1791
      %v2068 = vpop.f32.mrf.mxu0
      %v2069 = vpop.f32.mrf.mxu0
      %v2070 = vpop.f32.mrf.mxu0
      %v2071 = vadd.f32 0.0, %v2070
      %v2072 = vpop.f32.mrf.mxu0
      %2073 = vmatprep.mubr.bf16.mxu0 0
      %2074 = vmatmul.mubr.bf16.gmra.mxu0 %v1799
      %v2075 = vpop.f32.mrf.mxu0
      %v2076 = vadd.f32 0.0, %v2075
      %v2077 = vpop.f32.mrf.mxu0
      %v2078 = vpop.f32.mrf.mxu0
      %v2079 = vpop.f32.mrf.mxu0
      %2080 = vdwg.mxu0
      %v2121 = vunpack.c.l.b16 %v1447
      %v2122 = vunpack.c.l.b16 %v1448
      %v2123 = vunpack.c.l.b16 %v1449
      %v2124 = vunpack.c.l.b16 %v1450
      %v2125 = vunpack.c.l.b16 %v1451
      %v2126 = vunpack.c.l.b16 %v1452
      %v2127 = vunpack.c.l.b16 %v1453
      %v2128 = vunpack.c.l.b16 %v1454
      %v2129 = vunpack.c.l.b16 %v1455
      %v2130 = vunpack.c.l.b16 %v1456
      %v2131 = vunpack.c.l.b16 %v1457
      %v2132 = vunpack.c.l.b16 %v1458
      %v2133 = vunpack.c.l.b16 %v1459
      %v2134 = vunpack.c.l.b16 %v1460
      %v2135 = vunpack.c.l.b16 %v1461
      %v2136 = vunpack.c.l.b16 %v1462
      %v2137 = vpack.c.b16 %v2122, %v2121
      %v2138 = vpack.c.b16 %v2124, %v2123
      %v2139 = vpack.c.b16 %v2126, %v2125
      %v2140 = vpack.c.b16 %v2128, %v2127
      %v2141 = vpack.c.b16 %v2130, %v2129
      %v2142 = vpack.c.b16 %v2132, %v2131
      %v2143 = vpack.c.b16 %v2134, %v2133
      %v2144 = vpack.c.b16 %v2136, %v2135
      %2153 = vmatprep.subr.bf16.mxu0 0
      %2154 = vmatpush1.bf16.msra.mxu0 %v2144
      %2155 = vmatprep.subr.bf16.mxu0 0
      %2156 = vmatpush1.bf16.msra.mxu0 %v2143
      %2157 = vmatprep.subr.bf16.mxu0 0
      %2158 = vmatpush1.bf16.msra.mxu0 %v2142
      %2159 = vmatprep.subr.bf16.mxu0 0
      %2160 = vmatpush1.bf16.msra.mxu0 %v2141
      %2161 = vmatprep.subr.bf16.mxu0 0
      %2162 = vmatpush1.bf16.msra.mxu0 %v2140
      %2163 = vmatprep.subr.bf16.mxu0 0
      %2164 = vmatpush1.bf16.msra.mxu0 %v2139
      %2165 = vmatprep.subr.bf16.mxu0 0
      %2166 = vmatpush1.bf16.msra.mxu0 %v2138
      %2167 = vmatprep.subr.bf16.mxu0 0
      %2168 = vmatpush1.bf16.msra.mxu0 %v2137
      %2169 = vmatprep.subr.bf16.mxu0 0
      %2170 = vmatpush2.bf16.msra.mxu0 0
      %2171 = vmatprep.subr.bf16.mxu0 0
      %2172 = vmatpush2.bf16.msra.mxu0 0
      %2173 = vmatprep.subr.bf16.mxu0 0
      %2174 = vmatpush2.bf16.msra.mxu0 0
      %2175 = vmatprep.subr.bf16.mxu0 0
      %2176 = vmatpush2.bf16.msra.mxu0 0
      %2177 = vmatprep.subr.bf16.mxu0 0
      %2178 = vmatpush2.bf16.msra.mxu0 0
      %2179 = vmatprep.subr.bf16.mxu0 0
      %2180 = vmatpush2.bf16.msra.mxu0 0
      %2181 = vmatprep.subr.bf16.mxu0 0
      %2182 = vmatpush2.bf16.msra.mxu0 0
      %2183 = vmatprep.subr.bf16.mxu0 0
      %2184 = vmatpush2.bf16.msra.mxu0 0
      %2185 = vmatprep.mubr.bf16.mxu0 0
      %2186 = vmatmul.mubr.bf16.gmra.mxu0 %v1578
      %v2187 = vpop.f32.mrf.mxu0
      %v2188 = vadd.f32 %v1907, %v2187
      %v2189 = vpop.f32.mrf.mxu0
      %v2190 = vpop.f32.mrf.mxu0
      %v2191 = vadd.f32 %v1910, %v2190
      %v2192 = vpop.f32.mrf.mxu0
      %2193 = vmatprep.mubr.bf16.mxu0 0
      %2194 = vmatmul.mubr.bf16.gmra.mxu0 %v1579
      %v2195 = vpop.f32.mrf.mxu0
      %v2196 = vpop.f32.mrf.mxu0
      %v2197 = vpop.f32.mrf.mxu0
      %v2198 = vadd.f32 %v1917, %v2197
      %v2199 = vpop.f32.mrf.mxu0
      %2200 = vmatprep.mubr.bf16.mxu0 0
      %2201 = vmatmul.mubr.bf16.gmra.mxu0 %v1580
      %v2202 = vpop.f32.mrf.mxu0
      %v2203 = vadd.f32 %v1922, %v2202
      %v2204 = vpop.f32.mrf.mxu0
      %v2205 = vpop.f32.mrf.mxu0
      %v2206 = vpop.f32.mrf.mxu0
      %2207 = vmatprep.mubr.bf16.mxu0 0
      %2208 = vmatmul.mubr.bf16.gmra.mxu0 %v1581
      %v2209 = vpop.f32.mrf.mxu0
      %v2210 = vadd.f32 %v1929, %v2209
      %v2211 = vpop.f32.mrf.mxu0
      %v2212 = vpop.f32.mrf.mxu0
      %v2213 = vadd.f32 %v1932, %v2212
      %v2214 = vpop.f32.mrf.mxu0
      %2215 = vmatprep.mubr.bf16.mxu0 0
      %2216 = vmatmul.mubr.bf16.gmra.mxu0 %v1582
      %v2217 = vpop.f32.mrf.mxu0
      %v2218 = vpop.f32.mrf.mxu0
      %v2219 = vpop.f32.mrf.mxu0
      %v2220 = vadd.f32 %v1939, %v2219
      %v2221 = vpop.f32.mrf.mxu0
      %2222 = vmatprep.mubr.bf16.mxu0 0
      %2223 = vmatmul.mubr.bf16.gmra.mxu0 %v1583
      %v2224 = vpop.f32.mrf.mxu0
      %v2225 = vadd.f32 %v1944, %v2224
      %v2226 = vpop.f32.mrf.mxu0
      %v2227 = vpop.f32.mrf.mxu0
      %v2228 = vpop.f32.mrf.mxu0
      %2229 = vmatprep.mubr.bf16.mxu0 0
      %2230 = vmatmul.mubr.bf16.gmra.mxu0 %v1584
      %v2231 = vpop.f32.mrf.mxu0
      %v2232 = vadd.f32 %v1951, %v2231
      %v2233 = vpop.f32.mrf.mxu0
      %v2234 = vpop.f32.mrf.mxu0
      %v2235 = vadd.f32 %v1954, %v2234
      %v2236 = vpop.f32.mrf.mxu0
      %2237 = vmatprep.mubr.bf16.mxu0 0
      %2238 = vmatmul.mubr.bf16.gmra.mxu0 %v1585
      %v2239 = vpop.f32.mrf.mxu0
      %v2240 = vpop.f32.mrf.mxu0
      %v2241 = vpop.f32.mrf.mxu0
      %v2242 = vadd.f32 %v1961, %v2241
      %v2243 = vpop.f32.mrf.mxu0
      %2244 = vmatprep.mubr.bf16.mxu0 0
      %2245 = vmatmul.mubr.bf16.gmra.mxu0 %v1586
      %v2246 = vpop.f32.mrf.mxu0
      %v2247 = vadd.f32 %v1966, %v2246
      %v2248 = vpop.f32.mrf.mxu0
      %v2249 = vpop.f32.mrf.mxu0
      %v2250 = vpop.f32.mrf.mxu0
      %2251 = vmatprep.mubr.bf16.mxu0 0
      %2252 = vmatmul.mubr.bf16.gmra.mxu0 %v1587
      %v2253 = vpop.f32.mrf.mxu0
      %v2254 = vadd.f32 %v1973, %v2253
      %v2255 = vpop.f32.mrf.mxu0
      %v2256 = vpop.f32.mrf.mxu0
      %v2257 = vadd.f32 %v1976, %v2256
      %v2258 = vpop.f32.mrf.mxu0
      %2259 = vmatprep.mubr.bf16.mxu0 0
      %2260 = vmatmul.mubr.bf16.gmra.mxu0 %v1588
      %v2261 = vpop.f32.mrf.mxu0
      %v2262 = vpop.f32.mrf.mxu0
      %v2263 = vpop.f32.mrf.mxu0
      %v2264 = vadd.f32 %v1983, %v2263
      %v2265 = vpop.f32.mrf.mxu0
      %2266 = vmatprep.mubr.bf16.mxu0 0
      %2267 = vmatmul.mubr.bf16.gmra.mxu0 %v1589
      %v2268 = vpop.f32.mrf.mxu0
      %v2269 = vadd.f32 %v1988, %v2268
      %v2270 = vpop.f32.mrf.mxu0
      %v2271 = vpop.f32.mrf.mxu0
      %v2272 = vpop.f32.mrf.mxu0
      %2273 = vmatprep.mubr.bf16.mxu0 0
      %2274 = vmatmul.mubr.bf16.gmra.mxu0 %v1590
      %v2275 = vpop.f32.mrf.mxu0
      %v2276 = vadd.f32 %v1995, %v2275
      %v2277 = vpop.f32.mrf.mxu0
      %v2278 = vpop.f32.mrf.mxu0
      %v2279 = vadd.f32 %v1998, %v2278
      %v2280 = vpop.f32.mrf.mxu0
      %2281 = vmatprep.mubr.bf16.mxu0 0
      %2282 = vmatmul.mubr.bf16.gmra.mxu0 %v1591
      %v2283 = vpop.f32.mrf.mxu0
      %v2284 = vpop.f32.mrf.mxu0
      %v2285 = vpop.f32.mrf.mxu0
      %v2286 = vadd.f32 %v2005, %v2285
      %v2287 = vpop.f32.mrf.mxu0
      %2288 = vmatprep.mubr.bf16.mxu0 0
      %2289 = vmatmul.mubr.bf16.gmra.mxu0 %v1592
      %v2290 = vpop.f32.mrf.mxu0
      %v2291 = vadd.f32 %v2010, %v2290
      %v2292 = vpop.f32.mrf.mxu0
      %v2293 = vpop.f32.mrf.mxu0
      %v2294 = vpop.f32.mrf.mxu0
      %2295 = vmatprep.mubr.bf16.mxu0 0
      %2296 = vmatmul.mubr.bf16.gmra.mxu0 %v1593
      %v2297 = vpop.f32.mrf.mxu0
      %v2298 = vadd.f32 %v2017, %v2297
      %v2299 = vpop.f32.mrf.mxu0
      %v2300 = vpop.f32.mrf.mxu0
      %v2301 = vadd.f32 %v2020, %v2300
      %v2302 = vpop.f32.mrf.mxu0
      %2303 = vmatprep.mubr.bf16.mxu0 0
      %2304 = vmatmul.mubr.bf16.gmra.mxu0 %v1594
      %v2305 = vpop.f32.mrf.mxu0
      %v2306 = vpop.f32.mrf.mxu0
      %v2307 = vpop.f32.mrf.mxu0
      %v2308 = vadd.f32 %v2027, %v2307
      %v2309 = vpop.f32.mrf.mxu0
      %2310 = vmatprep.mubr.bf16.mxu0 0
      %2311 = vmatmul.mubr.bf16.gmra.mxu0 %v1595
      %v2312 = vpop.f32.mrf.mxu0
      %v2313 = vadd.f32 %v2032, %v2312
      %v2314 = vpop.f32.mrf.mxu0
      %v2315 = vpop.f32.mrf.mxu0
      %v2316 = vpop.f32.mrf.mxu0
      %2317 = vmatprep.mubr.bf16.mxu0 0
      %2318 = vmatmul.mubr.bf16.gmra.mxu0 %v1596
      %v2319 = vpop.f32.mrf.mxu0
      %v2320 = vadd.f32 %v2039, %v2319
      %v2321 = vpop.f32.mrf.mxu0
      %v2322 = vpop.f32.mrf.mxu0
      %v2323 = vadd.f32 %v2042, %v2322
      %v2324 = vpop.f32.mrf.mxu0
      %2325 = vmatprep.mubr.bf16.mxu0 0
      %2326 = vmatmul.mubr.bf16.gmra.mxu0 %v1597
      %v2327 = vpop.f32.mrf.mxu0
      %v2328 = vpop.f32.mrf.mxu0
      %v2329 = vpop.f32.mrf.mxu0
      %v2330 = vadd.f32 %v2049, %v2329
      %v2331 = vpop.f32.mrf.mxu0
      %2332 = vmatprep.mubr.bf16.mxu0 0
      %2333 = vmatmul.mubr.bf16.gmra.mxu0 %v1598
      %v2334 = vpop.f32.mrf.mxu0
      %v2335 = vadd.f32 %v2054, %v2334
      %v2336 = vpop.f32.mrf.mxu0
      %v2337 = vpop.f32.mrf.mxu0
      %v2338 = vpop.f32.mrf.mxu0
      %2339 = vmatprep.mubr.bf16.mxu0 0
      %2340 = vmatmul.mubr.bf16.gmra.mxu0 %v1599
      %v2341 = vpop.f32.mrf.mxu0
      %v2342 = vadd.f32 %v2061, %v2341
      %v2343 = vpop.f32.mrf.mxu0
      %v2344 = vpop.f32.mrf.mxu0
      %v2345 = vadd.f32 %v2064, %v2344
      %v2346 = vpop.f32.mrf.mxu0
      %2347 = vmatprep.mubr.bf16.mxu0 0
      %2348 = vmatmul.mubr.bf16.gmra.mxu0 %v1600
      %v2349 = vpop.f32.mrf.mxu0
      %v2350 = vpop.f32.mrf.mxu0
      %v2351 = vpop.f32.mrf.mxu0
      %v2352 = vadd.f32 %v2071, %v2351
      %v2353 = vpop.f32.mrf.mxu0
      %2354 = vmatprep.mubr.bf16.mxu0 0
      %2355 = vmatmul.mubr.bf16.gmra.mxu0 %v1601
      %v2356 = vpop.f32.mrf.mxu0
      %v2357 = vadd.f32 %v2076, %v2356
      %v2358 = vpop.f32.mrf.mxu0
      %v2359 = vpop.f32.mrf.mxu0
      %v2360 = vpop.f32.mrf.mxu0
      %2361 = vdwg.mxu0
      %s2362 = scalar_lea.vmem %s5, 128
      %v2363 = vld [vmem:[%s2362] sm:$0xf]
      %v2364 = vld [vmem:[%s2362 + $0x4] sm:$0xf]
      %v2365 = vld [vmem:[%s2362 + $0x8] sm:$0xf]
      %v2366 = vld [vmem:[%s2362 + $0xc] sm:$0xf]
      %v2367 = vld [vmem:[%s2362 + $0x10] sm:$0xf]
      %v2368 = vld [vmem:[%s2362 + $0x14] sm:$0xf]
      %v2369 = vld [vmem:[%s2362 + $0x18] sm:$0xf]
      %v2370 = vld [vmem:[%s2362 + $0x1c] sm:$0xf]
      %v2371 = vld [vmem:[%s2362 + $0x20] sm:$0xf]
      %v2372 = vld [vmem:[%s2362 + $0x24] sm:$0xf]
      %v2373 = vld [vmem:[%s2362 + $0x28] sm:$0xf]
      %v2374 = vld [vmem:[%s2362 + $0x2c] sm:$0xf]
      %v2375 = vld [vmem:[%s2362 + $0x30] sm:$0xf]
      %v2376 = vld [vmem:[%s2362 + $0x34] sm:$0xf]
      %v2377 = vld [vmem:[%s2362 + $0x38] sm:$0xf]
      %v2378 = vld [vmem:[%s2362 + $0x3c] sm:$0xf]
      %vm2379 = vcmask 1046528
      %v2380 = vrot.slane %v1578, 1
      %v2381 = vrot.slane %v1579, 1
      %v2382 = vsel %vm2379, %v2380, %v2381
      %v2383 = vrot.slane %v1580, 1
      %v2384 = vsel %vm2379, %v2381, %v2383
      %v2385 = vrot.slane %v1581, 1
      %v2386 = vsel %vm2379, %v2383, %v2385
      %v2387 = vrot.slane %v1582, 1
      %v2388 = vsel %vm2379, %v2385, %v2387
      %v2389 = vrot.slane %v1583, 1
      %v2390 = vsel %vm2379, %v2387, %v2389
      %v2391 = vrot.slane %v1584, 1
      %v2392 = vsel %vm2379, %v2389, %v2391
      %v2393 = vrot.slane %v1585, 1
      %v2394 = vsel %vm2379, %v2391, %v2393
      %v2395 = vrot.slane %v1586, 1
      %v2396 = vsel %vm2379, %v2393, %v2395
      %v2397 = vrot.slane %v1587, 1
      %v2398 = vsel %vm2379, %v2395, %v2397
      %v2399 = vrot.slane %v1588, 1
      %v2400 = vsel %vm2379, %v2397, %v2399
      %v2401 = vrot.slane %v1589, 1
      %v2402 = vsel %vm2379, %v2399, %v2401
      %v2403 = vrot.slane %v1590, 1
      %v2404 = vsel %vm2379, %v2401, %v2403
      %v2405 = vrot.slane %v1591, 1
      %v2406 = vsel %vm2379, %v2403, %v2405
      %v2407 = vrot.slane %v1592, 1
      %v2408 = vsel %vm2379, %v2405, %v2407
      %v2409 = vrot.slane %v1593, 1
      %v2410 = vsel %vm2379, %v2407, %v2409
      %v2411 = vrot.slane %v1594, 1
      %v2412 = vsel %vm2379, %v2409, %v2411
      %v2413 = vrot.slane %v1595, 1
      %v2414 = vsel %vm2379, %v2411, %v2413
      %v2415 = vrot.slane %v1596, 1
      %v2416 = vsel %vm2379, %v2413, %v2415
      %v2417 = vrot.slane %v1597, 1
      %v2418 = vsel %vm2379, %v2415, %v2417
      %v2419 = vrot.slane %v1598, 1
      %v2420 = vsel %vm2379, %v2417, %v2419
      %v2421 = vrot.slane %v1599, 1
      %v2422 = vsel %vm2379, %v2419, %v2421
      %v2423 = vrot.slane %v1600, 1
      %v2424 = vsel %vm2379, %v2421, %v2423
      %v2425 = vrot.slane %v1601, 1
      %v2426 = vsel %vm2379, %v2423, %v2425
      %v2427 = vrot.slane %v1602, 1
      %v2428 = vsel %vm2379, %v2425, %v2427
      %v2469 = vunpack.c.l.b16 %v2363
      %v2470 = vunpack.c.l.b16 %v2364
      %v2471 = vunpack.c.l.b16 %v2365
      %v2472 = vunpack.c.l.b16 %v2366
      %v2473 = vunpack.c.l.b16 %v2367
      %v2474 = vunpack.c.l.b16 %v2368
      %v2475 = vunpack.c.l.b16 %v2369
      %v2476 = vunpack.c.l.b16 %v2370
      %v2477 = vunpack.c.l.b16 %v2371
      %v2478 = vunpack.c.l.b16 %v2372
      %v2479 = vunpack.c.l.b16 %v2373
      %v2480 = vunpack.c.l.b16 %v2374
      %v2481 = vunpack.c.l.b16 %v2375
      %v2482 = vunpack.c.l.b16 %v2376
      %v2483 = vunpack.c.l.b16 %v2377
      %v2484 = vunpack.c.l.b16 %v2378
      %v2485 = vpack.c.b16 %v2470, %v2469
      %v2486 = vpack.c.b16 %v2472, %v2471
      %v2487 = vpack.c.b16 %v2474, %v2473
      %v2488 = vpack.c.b16 %v2476, %v2475
      %v2489 = vpack.c.b16 %v2478, %v2477
      %v2490 = vpack.c.b16 %v2480, %v2479
      %v2491 = vpack.c.b16 %v2482, %v2481
      %v2492 = vpack.c.b16 %v2484, %v2483
      %2501 = vmatprep.subr.bf16.mxu0 0
      %2502 = vmatpush1.bf16.msra.mxu0 %v2492
      %2503 = vmatprep.subr.bf16.mxu0 0
      %2504 = vmatpush1.bf16.msra.mxu0 %v2491
      %2505 = vmatprep.subr.bf16.mxu0 0
      %2506 = vmatpush1.bf16.msra.mxu0 %v2490
      %2507 = vmatprep.subr.bf16.mxu0 0
      %2508 = vmatpush1.bf16.msra.mxu0 %v2489
      %2509 = vmatprep.subr.bf16.mxu0 0
      %2510 = vmatpush1.bf16.msra.mxu0 %v2488
      %2511 = vmatprep.subr.bf16.mxu0 0
      %2512 = vmatpush1.bf16.msra.mxu0 %v2487
      %2513 = vmatprep.subr.bf16.mxu0 0
      %2514 = vmatpush1.bf16.msra.mxu0 %v2486
      %2515 = vmatprep.subr.bf16.mxu0 0
      %2516 = vmatpush1.bf16.msra.mxu0 %v2485
      %2517 = vmatprep.subr.bf16.mxu0 0
      %2518 = vmatpush2.bf16.msra.mxu0 0
      %2519 = vmatprep.subr.bf16.mxu0 0
      %2520 = vmatpush2.bf16.msra.mxu0 0
      %2521 = vmatprep.subr.bf16.mxu0 0
      %2522 = vmatpush2.bf16.msra.mxu0 0
      %2523 = vmatprep.subr.bf16.mxu0 0
      %2524 = vmatpush2.bf16.msra.mxu0 0
      %2525 = vmatprep.subr.bf16.mxu0 0
      %2526 = vmatpush2.bf16.msra.mxu0 0
      %2527 = vmatprep.subr.bf16.mxu0 0
      %2528 = vmatpush2.bf16.msra.mxu0 0
      %2529 = vmatprep.subr.bf16.mxu0 0
      %2530 = vmatpush2.bf16.msra.mxu0 0
      %2531 = vmatprep.subr.bf16.mxu0 0
      %2532 = vmatpush2.bf16.msra.mxu0 0
      %2533 = vmatprep.mubr.bf16.mxu0 0
      %2534 = vmatmul.mubr.bf16.gmra.mxu0 %v2382
      %v2535 = vpop.f32.mrf.mxu0
      %v2536 = vadd.f32 0.0, %v2535
      %v2537 = vpop.f32.mrf.mxu0
      %v2538 = vpop.f32.mrf.mxu0
      %v2539 = vadd.f32 0.0, %v2538
      %v2540 = vpop.f32.mrf.mxu0
      %2541 = vmatprep.mubr.bf16.mxu0 0
      %2542 = vmatmul.mubr.bf16.gmra.mxu0 %v2384
      %v2543 = vpop.f32.mrf.mxu0
      %v2544 = vpop.f32.mrf.mxu0
      %v2545 = vpop.f32.mrf.mxu0
      %v2546 = vadd.f32 0.0, %v2545
      %v2547 = vpop.f32.mrf.mxu0
      %2548 = vmatprep.mubr.bf16.mxu0 0
      %2549 = vmatmul.mubr.bf16.gmra.mxu0 %v2386
      %v2550 = vpop.f32.mrf.mxu0
      %v2551 = vadd.f32 0.0, %v2550
      %v2552 = vpop.f32.mrf.mxu0
      %v2553 = vpop.f32.mrf.mxu0
      %v2554 = vpop.f32.mrf.mxu0
      %2555 = vmatprep.mubr.bf16.mxu0 0
      %2556 = vmatmul.mubr.bf16.gmra.mxu0 %v2388
      %v2557 = vpop.f32.mrf.mxu0
      %v2558 = vadd.f32 0.0, %v2557
      %v2559 = vpop.f32.mrf.mxu0
      %v2560 = vpop.f32.mrf.mxu0
      %v2561 = vadd.f32 0.0, %v2560
      %v2562 = vpop.f32.mrf.mxu0
      %2563 = vmatprep.mubr.bf16.mxu0 0
      %2564 = vmatmul.mubr.bf16.gmra.mxu0 %v2390
      %v2565 = vpop.f32.mrf.mxu0
      %v2566 = vpop.f32.mrf.mxu0
      %v2567 = vpop.f32.mrf.mxu0
      %v2568 = vadd.f32 0.0, %v2567
      %v2569 = vpop.f32.mrf.mxu0
      %2570 = vmatprep.mubr.bf16.mxu0 0
      %2571 = vmatmul.mubr.bf16.gmra.mxu0 %v2392
      %v2572 = vpop.f32.mrf.mxu0
      %v2573 = vadd.f32 0.0, %v2572
      %v2574 = vpop.f32.mrf.mxu0
      %v2575 = vpop.f32.mrf.mxu0
      %v2576 = vpop.f32.mrf.mxu0
      %2577 = vmatprep.mubr.bf16.mxu0 0
      %2578 = vmatmul.mubr.bf16.gmra.mxu0 %v2394
      %v2579 = vpop.f32.mrf.mxu0
      %v2580 = vadd.f32 0.0, %v2579
      %v2581 = vpop.f32.mrf.mxu0
      %v2582 = vpop.f32.mrf.mxu0
      %v2583 = vadd.f32 0.0, %v2582
      %v2584 = vpop.f32.mrf.mxu0
      %2585 = vmatprep.mubr.bf16.mxu0 0
      %2586 = vmatmul.mubr.bf16.gmra.mxu0 %v2396
      %v2587 = vpop.f32.mrf.mxu0
      %v2588 = vpop.f32.mrf.mxu0
      %v2589 = vpop.f32.mrf.mxu0
      %v2590 = vadd.f32 0.0, %v2589
      %v2591 = vpop.f32.mrf.mxu0
      %2592 = vmatprep.mubr.bf16.mxu0 0
      %2593 = vmatmul.mubr.bf16.gmra.mxu0 %v2398
      %v2594 = vpop.f32.mrf.mxu0
      %v2595 = vadd.f32 0.0, %v2594
      %v2596 = vpop.f32.mrf.mxu0
      %v2597 = vpop.f32.mrf.mxu0
      %v2598 = vpop.f32.mrf.mxu0
      %2599 = vmatprep.mubr.bf16.mxu0 0
      %2600 = vmatmul.mubr.bf16.gmra.mxu0 %v2400
      %v2601 = vpop.f32.mrf.mxu0
      %v2602 = vadd.f32 0.0, %v2601
      %v2603 = vpop.f32.mrf.mxu0
      %v2604 = vpop.f32.mrf.mxu0
      %v2605 = vadd.f32 0.0, %v2604
      %v2606 = vpop.f32.mrf.mxu0
      %2607 = vmatprep.mubr.bf16.mxu0 0
      %2608 = vmatmul.mubr.bf16.gmra.mxu0 %v2402
      %v2609 = vpop.f32.mrf.mxu0
      %v2610 = vpop.f32.mrf.mxu0
      %v2611 = vpop.f32.mrf.mxu0
      %v2612 = vadd.f32 0.0, %v2611
      %v2613 = vpop.f32.mrf.mxu0
      %2614 = vmatprep.mubr.bf16.mxu0 0
      %2615 = vmatmul.mubr.bf16.gmra.mxu0 %v2404
      %v2616 = vpop.f32.mrf.mxu0
      %v2617 = vadd.f32 0.0, %v2616
      %v2618 = vpop.f32.mrf.mxu0
      %v2619 = vpop.f32.mrf.mxu0
      %v2620 = vpop.f32.mrf.mxu0
      %2621 = vmatprep.mubr.bf16.mxu0 0
      %2622 = vmatmul.mubr.bf16.gmra.mxu0 %v2406
      %v2623 = vpop.f32.mrf.mxu0
      %v2624 = vadd.f32 0.0, %v2623
      %v2625 = vpop.f32.mrf.mxu0
      %v2626 = vpop.f32.mrf.mxu0
      %v2627 = vadd.f32 0.0, %v2626
      %v2628 = vpop.f32.mrf.mxu0
      %2629 = vmatprep.mubr.bf16.mxu0 0
      %2630 = vmatmul.mubr.bf16.gmra.mxu0 %v2408
      %v2631 = vpop.f32.mrf.mxu0
      %v2632 = vpop.f32.mrf.mxu0
      %v2633 = vpop.f32.mrf.mxu0
      %v2634 = vadd.f32 0.0, %v2633
      %v2635 = vpop.f32.mrf.mxu0
      %2636 = vmatprep.mubr.bf16.mxu0 0
      %2637 = vmatmul.mubr.bf16.gmra.mxu0 %v2410
      %v2638 = vpop.f32.mrf.mxu0
      %v2639 = vadd.f32 0.0, %v2638
      %v2640 = vpop.f32.mrf.mxu0
      %v2641 = vpop.f32.mrf.mxu0
      %v2642 = vpop.f32.mrf.mxu0
      %2643 = vmatprep.mubr.bf16.mxu0 0
      %2644 = vmatmul.mubr.bf16.gmra.mxu0 %v2412
      %v2645 = vpop.f32.mrf.mxu0
      %v2646 = vadd.f32 0.0, %v2645
      %v2647 = vpop.f32.mrf.mxu0
      %v2648 = vpop.f32.mrf.mxu0
      %v2649 = vadd.f32 0.0, %v2648
      %v2650 = vpop.f32.mrf.mxu0
      %2651 = vmatprep.mubr.bf16.mxu0 0
      %2652 = vmatmul.mubr.bf16.gmra.mxu0 %v2414
      %v2653 = vpop.f32.mrf.mxu0
      %v2654 = vpop.f32.mrf.mxu0
      %v2655 = vpop.f32.mrf.mxu0
      %v2656 = vadd.f32 0.0, %v2655
      %v2657 = vpop.f32.mrf.mxu0
      %2658 = vmatprep.mubr.bf16.mxu0 0
      %2659 = vmatmul.mubr.bf16.gmra.mxu0 %v2416
      %v2660 = vpop.f32.mrf.mxu0
      %v2661 = vadd.f32 0.0, %v2660
      %v2662 = vpop.f32.mrf.mxu0
      %v2663 = vpop.f32.mrf.mxu0
      %v2664 = vpop.f32.mrf.mxu0
      %2665 = vmatprep.mubr.bf16.mxu0 0
      %2666 = vmatmul.mubr.bf16.gmra.mxu0 %v2418
      %v2667 = vpop.f32.mrf.mxu0
      %v2668 = vadd.f32 0.0, %v2667
      %v2669 = vpop.f32.mrf.mxu0
      %v2670 = vpop.f32.mrf.mxu0
      %v2671 = vadd.f32 0.0, %v2670
      %v2672 = vpop.f32.mrf.mxu0
      %2673 = vmatprep.mubr.bf16.mxu0 0
      %2674 = vmatmul.mubr.bf16.gmra.mxu0 %v2420
      %v2675 = vpop.f32.mrf.mxu0
      %v2676 = vpop.f32.mrf.mxu0
      %v2677 = vpop.f32.mrf.mxu0
      %v2678 = vadd.f32 0.0, %v2677
      %v2679 = vpop.f32.mrf.mxu0
      %2680 = vmatprep.mubr.bf16.mxu0 0
      %2681 = vmatmul.mubr.bf16.gmra.mxu0 %v2422
      %v2682 = vpop.f32.mrf.mxu0
      %v2683 = vadd.f32 0.0, %v2682
      %v2684 = vpop.f32.mrf.mxu0
      %v2685 = vpop.f32.mrf.mxu0
      %v2686 = vpop.f32.mrf.mxu0
      %2687 = vmatprep.mubr.bf16.mxu0 0
      %2688 = vmatmul.mubr.bf16.gmra.mxu0 %v2424
      %v2689 = vpop.f32.mrf.mxu0
      %v2690 = vadd.f32 0.0, %v2689
      %v2691 = vpop.f32.mrf.mxu0
      %v2692 = vpop.f32.mrf.mxu0
      %v2693 = vadd.f32 0.0, %v2692
      %v2694 = vpop.f32.mrf.mxu0
      %2695 = vmatprep.mubr.bf16.mxu0 0
      %2696 = vmatmul.mubr.bf16.gmra.mxu0 %v2426
      %v2697 = vpop.f32.mrf.mxu0
      %v2698 = vpop.f32.mrf.mxu0
      %v2699 = vpop.f32.mrf.mxu0
      %v2700 = vadd.f32 0.0, %v2699
      %v2701 = vpop.f32.mrf.mxu0
      %2702 = vmatprep.mubr.bf16.mxu0 0
      %2703 = vmatmul.mubr.bf16.gmra.mxu0 %v2428
      %v2704 = vpop.f32.mrf.mxu0
      %v2705 = vadd.f32 0.0, %v2704
      %v2706 = vpop.f32.mrf.mxu0
      %v2707 = vpop.f32.mrf.mxu0
      %v2708 = vpop.f32.mrf.mxu0
      %2709 = vdwg.mxu0
      %v2710 = vadd.f32 %v2188, %v2536
      %v2711 = vadd.f32 %v2191, %v2539
      %v2712 = vadd.f32 %v2198, %v2546
      %v2713 = vadd.f32 %v2203, %v2551
      %v2714 = vadd.f32 %v2210, %v2558
      %v2715 = vadd.f32 %v2213, %v2561
      %v2716 = vadd.f32 %v2220, %v2568
      %v2717 = vadd.f32 %v2225, %v2573
      %v2718 = vadd.f32 %v2232, %v2580
      %v2719 = vadd.f32 %v2235, %v2583
      %v2720 = vadd.f32 %v2242, %v2590
      %v2721 = vadd.f32 %v2247, %v2595
      %v2722 = vadd.f32 %v2254, %v2602
      %v2723 = vadd.f32 %v2257, %v2605
      %v2724 = vadd.f32 %v2264, %v2612
      %v2725 = vadd.f32 %v2269, %v2617
      %v2726 = vadd.f32 %v2276, %v2624
      %v2727 = vadd.f32 %v2279, %v2627
      %v2728 = vadd.f32 %v2286, %v2634
      %v2729 = vadd.f32 %v2291, %v2639
      %v2730 = vadd.f32 %v2298, %v2646
      %v2731 = vadd.f32 %v2301, %v2649
      %v2732 = vadd.f32 %v2308, %v2656
      %v2733 = vadd.f32 %v2313, %v2661
      %v2734 = vadd.f32 %v2320, %v2668
      %v2735 = vadd.f32 %v2323, %v2671
      %v2736 = vadd.f32 %v2330, %v2678
      %v2737 = vadd.f32 %v2335, %v2683
      %v2738 = vadd.f32 %v2342, %v2690
      %v2739 = vadd.f32 %v2345, %v2693
      %v2740 = vadd.f32 %v2352, %v2700
      %v2741 = vadd.f32 %v2357, %v2705
      %s2742 = scalar_lea.vmem %s5, 192
      %v2743 = vld [vmem:[%s2742] sm:$0xf]
      %v2744 = vld [vmem:[%s2742 + $0x4] sm:$0xf]
      %v2745 = vld [vmem:[%s2742 + $0x8] sm:$0xf]
      %v2746 = vld [vmem:[%s2742 + $0xc] sm:$0xf]
      %v2747 = vld [vmem:[%s2742 + $0x10] sm:$0xf]
      %v2748 = vld [vmem:[%s2742 + $0x14] sm:$0xf]
      %v2749 = vld [vmem:[%s2742 + $0x18] sm:$0xf]
      %v2750 = vld [vmem:[%s2742 + $0x1c] sm:$0xf]
      %v2751 = vld [vmem:[%s2742 + $0x20] sm:$0xf]
      %v2752 = vld [vmem:[%s2742 + $0x24] sm:$0xf]
      %v2753 = vld [vmem:[%s2742 + $0x28] sm:$0xf]
      %v2754 = vld [vmem:[%s2742 + $0x2c] sm:$0xf]
      %v2755 = vld [vmem:[%s2742 + $0x30] sm:$0xf]
      %v2756 = vld [vmem:[%s2742 + $0x34] sm:$0xf]
      %v2757 = vld [vmem:[%s2742 + $0x38] sm:$0xf]
      %v2758 = vld [vmem:[%s2742 + $0x3c] sm:$0xf]
      %v2761 = vunpack.c.l.b16 %v1441
      %v2762 = vunpack.c.l.b16 %v1442
      %v2763 = vpack.c.b16 %v1533, %v1532
      %v2764 = vpack.c.b16 %v1535, %v1534
      %v2765 = vpack.c.b16 %v1537, %v1536
      %v2766 = vpack.c.b16 %v1539, %v1538
      %v2767 = vpack.c.b16 %v1541, %v1540
      %v2768 = vpack.c.b16 %v1543, %v1542
      %v2769 = vpack.c.b16 %v1545, %v1544
      %v2770 = vpack.c.b16 %v1547, %v1546
      %v2771 = vpack.c.b16 %v1549, %v1548
      %v2772 = vpack.c.b16 %v1551, %v1550
      %v2773 = vpack.c.b16 %v1553, %v1552
      %v2774 = vpack.c.b16 %v1555, %v1554
      %v2775 = vpack.c.b16 %v1557, %v1556
      %v2776 = vpack.c.b16 %v1559, %v1558
      %v2777 = vpack.c.b16 %v1561, %v1560
      %v2778 = vpack.c.b16 %v1563, %v1562
      %v2779 = vpack.c.b16 %v1565, %v1564
      %v2780 = vpack.c.b16 %v1567, %v1566
      %v2781 = vpack.c.b16 %v1569, %v1568
      %v2782 = vpack.c.b16 %v1571, %v1570
      %v2783 = vpack.c.b16 %v1573, %v1572
      %v2784 = vpack.c.b16 %v1575, %v1574
      %v2785 = vpack.c.b16 %v1577, %v1576
      %v2786 = vpack.c.b16 %v2762, %v2761
      %v2827 = vunpack.c.l.b16 %v2743
      %v2828 = vunpack.c.l.b16 %v2744
      %v2829 = vunpack.c.l.b16 %v2745
      %v2830 = vunpack.c.l.b16 %v2746
      %v2831 = vunpack.c.l.b16 %v2747
      %v2832 = vunpack.c.l.b16 %v2748
      %v2833 = vunpack.c.l.b16 %v2749
      %v2834 = vunpack.c.l.b16 %v2750
      %v2835 = vunpack.c.l.b16 %v2751
      %v2836 = vunpack.c.l.b16 %v2752
      %v2837 = vunpack.c.l.b16 %v2753
      %v2838 = vunpack.c.l.b16 %v2754
      %v2839 = vunpack.c.l.b16 %v2755
      %v2840 = vunpack.c.l.b16 %v2756
      %v2841 = vunpack.c.l.b16 %v2757
      %v2842 = vunpack.c.l.b16 %v2758
      %v2843 = vpack.c.b16 %v2828, %v2827
      %v2844 = vpack.c.b16 %v2830, %v2829
      %v2845 = vpack.c.b16 %v2832, %v2831
      %v2846 = vpack.c.b16 %v2834, %v2833
      %v2847 = vpack.c.b16 %v2836, %v2835
      %v2848 = vpack.c.b16 %v2838, %v2837
      %v2849 = vpack.c.b16 %v2840, %v2839
      %v2850 = vpack.c.b16 %v2842, %v2841
      %2859 = vmatprep.subr.bf16.mxu0 0
      %2860 = vmatpush1.bf16.msra.mxu0 %v2850
      %2861 = vmatprep.subr.bf16.mxu0 0
      %2862 = vmatpush1.bf16.msra.mxu0 %v2849
      %2863 = vmatprep.subr.bf16.mxu0 0
      %2864 = vmatpush1.bf16.msra.mxu0 %v2848
      %2865 = vmatprep.subr.bf16.mxu0 0
      %2866 = vmatpush1.bf16.msra.mxu0 %v2847
      %2867 = vmatprep.subr.bf16.mxu0 0
      %2868 = vmatpush1.bf16.msra.mxu0 %v2846
      %2869 = vmatprep.subr.bf16.mxu0 0
      %2870 = vmatpush1.bf16.msra.mxu0 %v2845
      %2871 = vmatprep.subr.bf16.mxu0 0
      %2872 = vmatpush1.bf16.msra.mxu0 %v2844
      %2873 = vmatprep.subr.bf16.mxu0 0
      %2874 = vmatpush1.bf16.msra.mxu0 %v2843
      %2875 = vmatprep.subr.bf16.mxu0 0
      %2876 = vmatpush2.bf16.msra.mxu0 0
      %2877 = vmatprep.subr.bf16.mxu0 0
      %2878 = vmatpush2.bf16.msra.mxu0 0
      %2879 = vmatprep.subr.bf16.mxu0 0
      %2880 = vmatpush2.bf16.msra.mxu0 0
      %2881 = vmatprep.subr.bf16.mxu0 0
      %2882 = vmatpush2.bf16.msra.mxu0 0
      %2883 = vmatprep.subr.bf16.mxu0 0
      %2884 = vmatpush2.bf16.msra.mxu0 0
      %2885 = vmatprep.subr.bf16.mxu0 0
      %2886 = vmatpush2.bf16.msra.mxu0 0
      %2887 = vmatprep.subr.bf16.mxu0 0
      %2888 = vmatpush2.bf16.msra.mxu0 0
      %2889 = vmatprep.subr.bf16.mxu0 0
      %2890 = vmatpush2.bf16.msra.mxu0 0
      %2891 = vmatprep.mubr.bf16.mxu0 0
      %2892 = vmatmul.mubr.bf16.gmra.mxu0 %v2763
      %v2893 = vpop.f32.mrf.mxu0
      %v2894 = vadd.f32 0.0, %v2893
      %v2895 = vpop.f32.mrf.mxu0
      %v2896 = vpop.f32.mrf.mxu0
      %v2897 = vadd.f32 0.0, %v2896
      %v2898 = vpop.f32.mrf.mxu0
      %2899 = vmatprep.mubr.bf16.mxu0 0
      %2900 = vmatmul.mubr.bf16.gmra.mxu0 %v2764
      %v2901 = vpop.f32.mrf.mxu0
      %v2902 = vpop.f32.mrf.mxu0
      %v2903 = vpop.f32.mrf.mxu0
      %v2904 = vadd.f32 0.0, %v2903
      %v2905 = vpop.f32.mrf.mxu0
      %2906 = vmatprep.mubr.bf16.mxu0 0
      %2907 = vmatmul.mubr.bf16.gmra.mxu0 %v2765
      %v2908 = vpop.f32.mrf.mxu0
      %v2909 = vadd.f32 0.0, %v2908
      %v2910 = vpop.f32.mrf.mxu0
      %v2911 = vpop.f32.mrf.mxu0
      %v2912 = vpop.f32.mrf.mxu0
      %2913 = vmatprep.mubr.bf16.mxu0 0
      %2914 = vmatmul.mubr.bf16.gmra.mxu0 %v2766
      %v2915 = vpop.f32.mrf.mxu0
      %v2916 = vadd.f32 0.0, %v2915
      %v2917 = vpop.f32.mrf.mxu0
      %v2918 = vpop.f32.mrf.mxu0
      %v2919 = vadd.f32 0.0, %v2918
      %v2920 = vpop.f32.mrf.mxu0
      %2921 = vmatprep.mubr.bf16.mxu0 0
      %2922 = vmatmul.mubr.bf16.gmra.mxu0 %v2767
      %v2923 = vpop.f32.mrf.mxu0
      %v2924 = vpop.f32.mrf.mxu0
      %v2925 = vpop.f32.mrf.mxu0
      %v2926 = vadd.f32 0.0, %v2925
      %v2927 = vpop.f32.mrf.mxu0
      %2928 = vmatprep.mubr.bf16.mxu0 0
      %2929 = vmatmul.mubr.bf16.gmra.mxu0 %v2768
      %v2930 = vpop.f32.mrf.mxu0
      %v2931 = vadd.f32 0.0, %v2930
      %v2932 = vpop.f32.mrf.mxu0
      %v2933 = vpop.f32.mrf.mxu0
      %v2934 = vpop.f32.mrf.mxu0
      %2935 = vmatprep.mubr.bf16.mxu0 0
      %2936 = vmatmul.mubr.bf16.gmra.mxu0 %v2769
      %v2937 = vpop.f32.mrf.mxu0
      %v2938 = vadd.f32 0.0, %v2937
      %v2939 = vpop.f32.mrf.mxu0
      %v2940 = vpop.f32.mrf.mxu0
      %v2941 = vadd.f32 0.0, %v2940
      %v2942 = vpop.f32.mrf.mxu0
      %2943 = vmatprep.mubr.bf16.mxu0 0
      %2944 = vmatmul.mubr.bf16.gmra.mxu0 %v2770
      %v2945 = vpop.f32.mrf.mxu0
      %v2946 = vpop.f32.mrf.mxu0
      %v2947 = vpop.f32.mrf.mxu0
      %v2948 = vadd.f32 0.0, %v2947
      %v2949 = vpop.f32.mrf.mxu0
      %2950 = vmatprep.mubr.bf16.mxu0 0
      %2951 = vmatmul.mubr.bf16.gmra.mxu0 %v2771
      %v2952 = vpop.f32.mrf.mxu0
      %v2953 = vadd.f32 0.0, %v2952
      %v2954 = vpop.f32.mrf.mxu0
      %v2955 = vpop.f32.mrf.mxu0
      %v2956 = vpop.f32.mrf.mxu0
      %2957 = vmatprep.mubr.bf16.mxu0 0
      %2958 = vmatmul.mubr.bf16.gmra.mxu0 %v2772
      %v2959 = vpop.f32.mrf.mxu0
      %v2960 = vadd.f32 0.0, %v2959
      %v2961 = vpop.f32.mrf.mxu0
      %v2962 = vpop.f32.mrf.mxu0
      %v2963 = vadd.f32 0.0, %v2962
      %v2964 = vpop.f32.mrf.mxu0
      %2965 = vmatprep.mubr.bf16.mxu0 0
      %2966 = vmatmul.mubr.bf16.gmra.mxu0 %v2773
      %v2967 = vpop.f32.mrf.mxu0
      %v2968 = vpop.f32.mrf.mxu0
      %v2969 = vpop.f32.mrf.mxu0
      %v2970 = vadd.f32 0.0, %v2969
      %v2971 = vpop.f32.mrf.mxu0
      %2972 = vmatprep.mubr.bf16.mxu0 0
      %2973 = vmatmul.mubr.bf16.gmra.mxu0 %v2774
      %v2974 = vpop.f32.mrf.mxu0
      %v2975 = vadd.f32 0.0, %v2974
      %v2976 = vpop.f32.mrf.mxu0
      %v2977 = vpop.f32.mrf.mxu0
      %v2978 = vpop.f32.mrf.mxu0
      %2979 = vmatprep.mubr.bf16.mxu0 0
      %2980 = vmatmul.mubr.bf16.gmra.mxu0 %v2775
      %v2981 = vpop.f32.mrf.mxu0
      %v2982 = vadd.f32 0.0, %v2981
      %v2983 = vpop.f32.mrf.mxu0
      %v2984 = vpop.f32.mrf.mxu0
      %v2985 = vadd.f32 0.0, %v2984
      %v2986 = vpop.f32.mrf.mxu0
      %2987 = vmatprep.mubr.bf16.mxu0 0
      %2988 = vmatmul.mubr.bf16.gmra.mxu0 %v2776
      %v2989 = vpop.f32.mrf.mxu0
      %v2990 = vpop.f32.mrf.mxu0
      %v2991 = vpop.f32.mrf.mxu0
      %v2992 = vadd.f32 0.0, %v2991
      %v2993 = vpop.f32.mrf.mxu0
      %2994 = vmatprep.mubr.bf16.mxu0 0
      %2995 = vmatmul.mubr.bf16.gmra.mxu0 %v2777
      %v2996 = vpop.f32.mrf.mxu0
      %v2997 = vadd.f32 0.0, %v2996
      %v2998 = vpop.f32.mrf.mxu0
      %v2999 = vpop.f32.mrf.mxu0
      %v3000 = vpop.f32.mrf.mxu0
      %3001 = vmatprep.mubr.bf16.mxu0 0
      %3002 = vmatmul.mubr.bf16.gmra.mxu0 %v2778
      %v3003 = vpop.f32.mrf.mxu0
      %v3004 = vadd.f32 0.0, %v3003
      %v3005 = vpop.f32.mrf.mxu0
      %v3006 = vpop.f32.mrf.mxu0
      %v3007 = vadd.f32 0.0, %v3006
      %v3008 = vpop.f32.mrf.mxu0
      %3009 = vmatprep.mubr.bf16.mxu0 0
      %3010 = vmatmul.mubr.bf16.gmra.mxu0 %v2779
      %v3011 = vpop.f32.mrf.mxu0
      %v3012 = vpop.f32.mrf.mxu0
      %v3013 = vpop.f32.mrf.mxu0
      %v3014 = vadd.f32 0.0, %v3013
      %v3015 = vpop.f32.mrf.mxu0
      %3016 = vmatprep.mubr.bf16.mxu0 0
      %3017 = vmatmul.mubr.bf16.gmra.mxu0 %v2780
      %v3018 = vpop.f32.mrf.mxu0
      %v3019 = vadd.f32 0.0, %v3018
      %v3020 = vpop.f32.mrf.mxu0
      %v3021 = vpop.f32.mrf.mxu0
      %v3022 = vpop.f32.mrf.mxu0
      %3023 = vmatprep.mubr.bf16.mxu0 0
      %3024 = vmatmul.mubr.bf16.gmra.mxu0 %v2781
      %v3025 = vpop.f32.mrf.mxu0
      %v3026 = vadd.f32 0.0, %v3025
      %v3027 = vpop.f32.mrf.mxu0
      %v3028 = vpop.f32.mrf.mxu0
      %v3029 = vadd.f32 0.0, %v3028
      %v3030 = vpop.f32.mrf.mxu0
      %3031 = vmatprep.mubr.bf16.mxu0 0
      %3032 = vmatmul.mubr.bf16.gmra.mxu0 %v2782
      %v3033 = vpop.f32.mrf.mxu0
      %v3034 = vpop.f32.mrf.mxu0
      %v3035 = vpop.f32.mrf.mxu0
      %v3036 = vadd.f32 0.0, %v3035
      %v3037 = vpop.f32.mrf.mxu0
      %3038 = vmatprep.mubr.bf16.mxu0 0
      %3039 = vmatmul.mubr.bf16.gmra.mxu0 %v2783
      %v3040 = vpop.f32.mrf.mxu0
      %v3041 = vadd.f32 0.0, %v3040
      %v3042 = vpop.f32.mrf.mxu0
      %v3043 = vpop.f32.mrf.mxu0
      %v3044 = vpop.f32.mrf.mxu0
      %3045 = vmatprep.mubr.bf16.mxu0 0
      %3046 = vmatmul.mubr.bf16.gmra.mxu0 %v2784
      %v3047 = vpop.f32.mrf.mxu0
      %v3048 = vadd.f32 0.0, %v3047
      %v3049 = vpop.f32.mrf.mxu0
      %v3050 = vpop.f32.mrf.mxu0
      %v3051 = vadd.f32 0.0, %v3050
      %v3052 = vpop.f32.mrf.mxu0
      %3053 = vmatprep.mubr.bf16.mxu0 0
      %3054 = vmatmul.mubr.bf16.gmra.mxu0 %v2785
      %v3055 = vpop.f32.mrf.mxu0
      %v3056 = vpop.f32.mrf.mxu0
      %v3057 = vpop.f32.mrf.mxu0
      %v3058 = vadd.f32 0.0, %v3057
      %v3059 = vpop.f32.mrf.mxu0
      %3060 = vmatprep.mubr.bf16.mxu0 0
      %3061 = vmatmul.mubr.bf16.gmra.mxu0 %v2786
      %v3062 = vpop.f32.mrf.mxu0
      %v3063 = vadd.f32 0.0, %v3062
      %v3064 = vpop.f32.mrf.mxu0
      %v3065 = vpop.f32.mrf.mxu0
      %v3066 = vpop.f32.mrf.mxu0
      %3067 = vdwg.mxu0
      %v3068 = vadd.f32 %v2710, %v2894
      %v3069 = vadd.f32 %v2711, %v2897
      %v3070 = vadd.f32 %v2712, %v2904
      %v3071 = vadd.f32 %v2713, %v2909
      %v3072 = vadd.f32 %v2714, %v2916
      %v3073 = vadd.f32 %v2715, %v2919
      %v3074 = vadd.f32 %v2716, %v2926
      %v3075 = vadd.f32 %v2717, %v2931
      %v3076 = vadd.f32 %v2718, %v2938
      %v3077 = vadd.f32 %v2719, %v2941
      %v3078 = vadd.f32 %v2720, %v2948
      %v3079 = vadd.f32 %v2721, %v2953
      %v3080 = vadd.f32 %v2722, %v2960
      %v3081 = vadd.f32 %v2723, %v2963
      %v3082 = vadd.f32 %v2724, %v2970
      %v3083 = vadd.f32 %v2725, %v2975
      %v3084 = vadd.f32 %v2726, %v2982
      %v3085 = vadd.f32 %v2727, %v2985
      %v3086 = vadd.f32 %v2728, %v2992
      %v3087 = vadd.f32 %v2729, %v2997
      %v3088 = vadd.f32 %v2730, %v3004
      %v3089 = vadd.f32 %v2731, %v3007
      %v3090 = vadd.f32 %v2732, %v3014
      %v3091 = vadd.f32 %v2733, %v3019
      %v3092 = vadd.f32 %v2734, %v3026
      %v3093 = vadd.f32 %v2735, %v3029
      %v3094 = vadd.f32 %v2736, %v3036
      %v3095 = vadd.f32 %v2737, %v3041
      %v3096 = vadd.f32 %v2738, %v3048
      %v3097 = vadd.f32 %v2739, %v3051
      %v3098 = vadd.f32 %v2740, %v3058
      %v3099 = vadd.f32 %v2741, %v3063
      %s3100 = scalar_lea.vmem %s5, 256
      %v3101 = vld [vmem:[%s3100] sm:$0xf]
      %v3102 = vld [vmem:[%s3100 + $0x4] sm:$0xf]
      %v3103 = vld [vmem:[%s3100 + $0x8] sm:$0xf]
      %v3104 = vld [vmem:[%s3100 + $0xc] sm:$0xf]
      %v3105 = vld [vmem:[%s3100 + $0x10] sm:$0xf]
      %v3106 = vld [vmem:[%s3100 + $0x14] sm:$0xf]
      %v3107 = vld [vmem:[%s3100 + $0x18] sm:$0xf]
      %v3108 = vld [vmem:[%s3100 + $0x1c] sm:$0xf]
      %v3109 = vld [vmem:[%s3100 + $0x20] sm:$0xf]
      %v3110 = vld [vmem:[%s3100 + $0x24] sm:$0xf]
      %v3111 = vld [vmem:[%s3100 + $0x28] sm:$0xf]
      %v3112 = vld [vmem:[%s3100 + $0x2c] sm:$0xf]
      %v3113 = vld [vmem:[%s3100 + $0x30] sm:$0xf]
      %v3114 = vld [vmem:[%s3100 + $0x34] sm:$0xf]
      %v3115 = vld [vmem:[%s3100 + $0x38] sm:$0xf]
      %v3116 = vld [vmem:[%s3100 + $0x3c] sm:$0xf]
      %v3118 = vunpack.c.l.b16 %v1443
      %v3119 = vpack.c.b16 %v3118, %v3118
      %v3121 = vshrl.u32 %v2763, 16
      %v3123 = vshll.u32 %v2763, 16
      %v3125 = vrot.slane %v3123, 1
      %v3126 = vor.u32 %v3121, %v3125
      %v3128 = vshll.u32 %v2764, 16
      %v3130 = vrot.slane %v3128, 1
      %v3131 = vsel %vm1603, %v3126, %v3130
      %v3132 = vshrl.u32 %v2764, 16
      %v3134 = vor.u32 %v3132, %v3130
      %v3136 = vshll.u32 %v2765, 16
      %v3138 = vrot.slane %v3136, 1
      %v3139 = vsel %vm1603, %v3134, %v3138
      %v3140 = vshrl.u32 %v2765, 16
      %v3142 = vor.u32 %v3140, %v3138
      %v3144 = vshll.u32 %v2766, 16
      %v3146 = vrot.slane %v3144, 1
      %v3147 = vsel %vm1603, %v3142, %v3146
      %v3148 = vshrl.u32 %v2766, 16
      %v3150 = vor.u32 %v3148, %v3146
      %v3152 = vshll.u32 %v2767, 16
      %v3154 = vrot.slane %v3152, 1
      %v3155 = vsel %vm1603, %v3150, %v3154
      %v3156 = vshrl.u32 %v2767, 16
      %v3158 = vor.u32 %v3156, %v3154
      %v3160 = vshll.u32 %v2768, 16
      %v3162 = vrot.slane %v3160, 1
      %v3163 = vsel %vm1603, %v3158, %v3162
      %v3164 = vshrl.u32 %v2768, 16
      %v3166 = vor.u32 %v3164, %v3162
      %v3168 = vshll.u32 %v2769, 16
      %v3170 = vrot.slane %v3168, 1
      %v3171 = vsel %vm1603, %v3166, %v3170
      %v3172 = vshrl.u32 %v2769, 16
      %v3174 = vor.u32 %v3172, %v3170
      %v3176 = vshll.u32 %v2770, 16
      %v3178 = vrot.slane %v3176, 1
      %v3179 = vsel %vm1603, %v3174, %v3178
      %v3180 = vshrl.u32 %v2770, 16
      %v3182 = vor.u32 %v3180, %v3178
      %v3184 = vshll.u32 %v2771, 16
      %v3186 = vrot.slane %v3184, 1
      %v3187 = vsel %vm1603, %v3182, %v3186
      %v3188 = vshrl.u32 %v2771, 16
      %v3190 = vor.u32 %v3188, %v3186
      %v3192 = vshll.u32 %v2772, 16
      %v3194 = vrot.slane %v3192, 1
      %v3195 = vsel %vm1603, %v3190, %v3194
      %v3196 = vshrl.u32 %v2772, 16
      %v3198 = vor.u32 %v3196, %v3194
      %v3200 = vshll.u32 %v2773, 16
      %v3202 = vrot.slane %v3200, 1
      %v3203 = vsel %vm1603, %v3198, %v3202
      %v3204 = vshrl.u32 %v2773, 16
      %v3206 = vor.u32 %v3204, %v3202
      %v3208 = vshll.u32 %v2774, 16
      %v3210 = vrot.slane %v3208, 1
      %v3211 = vsel %vm1603, %v3206, %v3210
      %v3212 = vshrl.u32 %v2774, 16
      %v3214 = vor.u32 %v3212, %v3210
      %v3216 = vshll.u32 %v2775, 16
      %v3218 = vrot.slane %v3216, 1
      %v3219 = vsel %vm1603, %v3214, %v3218
      %v3220 = vshrl.u32 %v2775, 16
      %v3222 = vor.u32 %v3220, %v3218
      %v3224 = vshll.u32 %v2776, 16
      %v3226 = vrot.slane %v3224, 1
      %v3227 = vsel %vm1603, %v3222, %v3226
      %v3228 = vshrl.u32 %v2776, 16
      %v3230 = vor.u32 %v3228, %v3226
      %v3232 = vshll.u32 %v2777, 16
      %v3234 = vrot.slane %v3232, 1
      %v3235 = vsel %vm1603, %v3230, %v3234
      %v3236 = vshrl.u32 %v2777, 16
      %v3238 = vor.u32 %v3236, %v3234
      %v3240 = vshll.u32 %v2778, 16
      %v3242 = vrot.slane %v3240, 1
      %v3243 = vsel %vm1603, %v3238, %v3242
      %v3244 = vshrl.u32 %v2778, 16
      %v3246 = vor.u32 %v3244, %v3242
      %v3248 = vshll.u32 %v2779, 16
      %v3250 = vrot.slane %v3248, 1
      %v3251 = vsel %vm1603, %v3246, %v3250
      %v3252 = vshrl.u32 %v2779, 16
      %v3254 = vor.u32 %v3252, %v3250
      %v3256 = vshll.u32 %v2780, 16
      %v3258 = vrot.slane %v3256, 1
      %v3259 = vsel %vm1603, %v3254, %v3258
      %v3260 = vshrl.u32 %v2780, 16
      %v3262 = vor.u32 %v3260, %v3258
      %v3264 = vshll.u32 %v2781, 16
      %v3266 = vrot.slane %v3264, 1
      %v3267 = vsel %vm1603, %v3262, %v3266
      %v3268 = vshrl.u32 %v2781, 16
      %v3270 = vor.u32 %v3268, %v3266
      %v3272 = vshll.u32 %v2782, 16
      %v3274 = vrot.slane %v3272, 1
      %v3275 = vsel %vm1603, %v3270, %v3274
      %v3276 = vshrl.u32 %v2782, 16
      %v3278 = vor.u32 %v3276, %v3274
      %v3280 = vshll.u32 %v2783, 16
      %v3282 = vrot.slane %v3280, 1
      %v3283 = vsel %vm1603, %v3278, %v3282
      %v3284 = vshrl.u32 %v2783, 16
      %v3286 = vor.u32 %v3284, %v3282
      %v3288 = vshll.u32 %v2784, 16
      %v3290 = vrot.slane %v3288, 1
      %v3291 = vsel %vm1603, %v3286, %v3290
      %v3292 = vshrl.u32 %v2784, 16
      %v3294 = vor.u32 %v3292, %v3290
      %v3296 = vshll.u32 %v2785, 16
      %v3298 = vrot.slane %v3296, 1
      %v3299 = vsel %vm1603, %v3294, %v3298
      %v3300 = vshrl.u32 %v2785, 16
      %v3302 = vor.u32 %v3300, %v3298
      %v3304 = vshll.u32 %v2786, 16
      %v3306 = vrot.slane %v3304, 1
      %v3307 = vsel %vm1603, %v3302, %v3306
      %v3308 = vshrl.u32 %v2786, 16
      %v3310 = vor.u32 %v3308, %v3306
      %v3312 = vshll.u32 %v3119, 16
      %v3314 = vrot.slane %v3312, 1
      %v3315 = vsel %vm1603, %v3310, %v3314
      %v3356 = vunpack.c.l.b16 %v3101
      %v3357 = vunpack.c.l.b16 %v3102
      %v3358 = vunpack.c.l.b16 %v3103
      %v3359 = vunpack.c.l.b16 %v3104
      %v3360 = vunpack.c.l.b16 %v3105
      %v3361 = vunpack.c.l.b16 %v3106
      %v3362 = vunpack.c.l.b16 %v3107
      %v3363 = vunpack.c.l.b16 %v3108
      %v3364 = vunpack.c.l.b16 %v3109
      %v3365 = vunpack.c.l.b16 %v3110
      %v3366 = vunpack.c.l.b16 %v3111
      %v3367 = vunpack.c.l.b16 %v3112
      %v3368 = vunpack.c.l.b16 %v3113
      %v3369 = vunpack.c.l.b16 %v3114
      %v3370 = vunpack.c.l.b16 %v3115
      %v3371 = vunpack.c.l.b16 %v3116
      %v3372 = vpack.c.b16 %v3357, %v3356
      %v3373 = vpack.c.b16 %v3359, %v3358
      %v3374 = vpack.c.b16 %v3361, %v3360
      %v3375 = vpack.c.b16 %v3363, %v3362
      %v3376 = vpack.c.b16 %v3365, %v3364
      %v3377 = vpack.c.b16 %v3367, %v3366
      %v3378 = vpack.c.b16 %v3369, %v3368
      %v3379 = vpack.c.b16 %v3371, %v3370
      %3388 = vmatprep.subr.bf16.mxu0 0
      %3389 = vmatpush1.bf16.msra.mxu0 %v3379
      %3390 = vmatprep.subr.bf16.mxu0 0
      %3391 = vmatpush1.bf16.msra.mxu0 %v3378
      %3392 = vmatprep.subr.bf16.mxu0 0
      %3393 = vmatpush1.bf16.msra.mxu0 %v3377
      %3394 = vmatprep.subr.bf16.mxu0 0
      %3395 = vmatpush1.bf16.msra.mxu0 %v3376
      %3396 = vmatprep.subr.bf16.mxu0 0
      %3397 = vmatpush1.bf16.msra.mxu0 %v3375
      %3398 = vmatprep.subr.bf16.mxu0 0
      %3399 = vmatpush1.bf16.msra.mxu0 %v3374
      %3400 = vmatprep.subr.bf16.mxu0 0
      %3401 = vmatpush1.bf16.msra.mxu0 %v3373
      %3402 = vmatprep.subr.bf16.mxu0 0
      %3403 = vmatpush1.bf16.msra.mxu0 %v3372
      %3404 = vmatprep.subr.bf16.mxu0 0
      %3405 = vmatpush2.bf16.msra.mxu0 0
      %3406 = vmatprep.subr.bf16.mxu0 0
      %3407 = vmatpush2.bf16.msra.mxu0 0
      %3408 = vmatprep.subr.bf16.mxu0 0
      %3409 = vmatpush2.bf16.msra.mxu0 0
      %3410 = vmatprep.subr.bf16.mxu0 0
      %3411 = vmatpush2.bf16.msra.mxu0 0
      %3412 = vmatprep.subr.bf16.mxu0 0
      %3413 = vmatpush2.bf16.msra.mxu0 0
      %3414 = vmatprep.subr.bf16.mxu0 0
      %3415 = vmatpush2.bf16.msra.mxu0 0
      %3416 = vmatprep.subr.bf16.mxu0 0
      %3417 = vmatpush2.bf16.msra.mxu0 0
      %3418 = vmatprep.subr.bf16.mxu0 0
      %3419 = vmatpush2.bf16.msra.mxu0 0
      %3420 = vmatprep.mubr.bf16.mxu0 0
      %3421 = vmatmul.mubr.bf16.gmra.mxu0 %v3131
      %v3422 = vpop.f32.mrf.mxu0
      %v3423 = vadd.f32 0.0, %v3422
      %v3424 = vpop.f32.mrf.mxu0
      %v3425 = vpop.f32.mrf.mxu0
      %v3426 = vadd.f32 0.0, %v3425
      %v3427 = vpop.f32.mrf.mxu0
      %3428 = vmatprep.mubr.bf16.mxu0 0
      %3429 = vmatmul.mubr.bf16.gmra.mxu0 %v3139
      %v3430 = vpop.f32.mrf.mxu0
      %v3431 = vpop.f32.mrf.mxu0
      %v3432 = vpop.f32.mrf.mxu0
      %v3433 = vadd.f32 0.0, %v3432
      %v3434 = vpop.f32.mrf.mxu0
      %3435 = vmatprep.mubr.bf16.mxu0 0
      %3436 = vmatmul.mubr.bf16.gmra.mxu0 %v3147
      %v3437 = vpop.f32.mrf.mxu0
      %v3438 = vadd.f32 0.0, %v3437
      %v3439 = vpop.f32.mrf.mxu0
      %v3440 = vpop.f32.mrf.mxu0
      %v3441 = vpop.f32.mrf.mxu0
      %3442 = vmatprep.mubr.bf16.mxu0 0
      %3443 = vmatmul.mubr.bf16.gmra.mxu0 %v3155
      %v3444 = vpop.f32.mrf.mxu0
      %v3445 = vadd.f32 0.0, %v3444
      %v3446 = vpop.f32.mrf.mxu0
      %v3447 = vpop.f32.mrf.mxu0
      %v3448 = vadd.f32 0.0, %v3447
      %v3449 = vpop.f32.mrf.mxu0
      %3450 = vmatprep.mubr.bf16.mxu0 0
      %3451 = vmatmul.mubr.bf16.gmra.mxu0 %v3163
      %v3452 = vpop.f32.mrf.mxu0
      %v3453 = vpop.f32.mrf.mxu0
      %v3454 = vpop.f32.mrf.mxu0
      %v3455 = vadd.f32 0.0, %v3454
      %v3456 = vpop.f32.mrf.mxu0
      %3457 = vmatprep.mubr.bf16.mxu0 0
      %3458 = vmatmul.mubr.bf16.gmra.mxu0 %v3171
      %v3459 = vpop.f32.mrf.mxu0
      %v3460 = vadd.f32 0.0, %v3459
      %v3461 = vpop.f32.mrf.mxu0
      %v3462 = vpop.f32.mrf.mxu0
      %v3463 = vpop.f32.mrf.mxu0
      %3464 = vmatprep.mubr.bf16.mxu0 0
      %3465 = vmatmul.mubr.bf16.gmra.mxu0 %v3179
      %v3466 = vpop.f32.mrf.mxu0
      %v3467 = vadd.f32 0.0, %v3466
      %v3468 = vpop.f32.mrf.mxu0
      %v3469 = vpop.f32.mrf.mxu0
      %v3470 = vadd.f32 0.0, %v3469
      %v3471 = vpop.f32.mrf.mxu0
      %3472 = vmatprep.mubr.bf16.mxu0 0
      %3473 = vmatmul.mubr.bf16.gmra.mxu0 %v3187
      %v3474 = vpop.f32.mrf.mxu0
      %v3475 = vpop.f32.mrf.mxu0
      %v3476 = vpop.f32.mrf.mxu0
      %v3477 = vadd.f32 0.0, %v3476
      %v3478 = vpop.f32.mrf.mxu0
      %3479 = vmatprep.mubr.bf16.mxu0 0
      %3480 = vmatmul.mubr.bf16.gmra.mxu0 %v3195
      %v3481 = vpop.f32.mrf.mxu0
      %v3482 = vadd.f32 0.0, %v3481
      %v3483 = vpop.f32.mrf.mxu0
      %v3484 = vpop.f32.mrf.mxu0
      %v3485 = vpop.f32.mrf.mxu0
      %3486 = vmatprep.mubr.bf16.mxu0 0
      %3487 = vmatmul.mubr.bf16.gmra.mxu0 %v3203
      %v3488 = vpop.f32.mrf.mxu0
      %v3489 = vadd.f32 0.0, %v3488
      %v3490 = vpop.f32.mrf.mxu0
      %v3491 = vpop.f32.mrf.mxu0
      %v3492 = vadd.f32 0.0, %v3491
      %v3493 = vpop.f32.mrf.mxu0
      %3494 = vmatprep.mubr.bf16.mxu0 0
      %3495 = vmatmul.mubr.bf16.gmra.mxu0 %v3211
      %v3496 = vpop.f32.mrf.mxu0
      %v3497 = vpop.f32.mrf.mxu0
      %v3498 = vpop.f32.mrf.mxu0
      %v3499 = vadd.f32 0.0, %v3498
      %v3500 = vpop.f32.mrf.mxu0
      %3501 = vmatprep.mubr.bf16.mxu0 0
      %3502 = vmatmul.mubr.bf16.gmra.mxu0 %v3219
      %v3503 = vpop.f32.mrf.mxu0
      %v3504 = vadd.f32 0.0, %v3503
      %v3505 = vpop.f32.mrf.mxu0
      %v3506 = vpop.f32.mrf.mxu0
      %v3507 = vpop.f32.mrf.mxu0
      %3508 = vmatprep.mubr.bf16.mxu0 0
      %3509 = vmatmul.mubr.bf16.gmra.mxu0 %v3227
      %v3510 = vpop.f32.mrf.mxu0
      %v3511 = vadd.f32 0.0, %v3510
      %v3512 = vpop.f32.mrf.mxu0
      %v3513 = vpop.f32.mrf.mxu0
      %v3514 = vadd.f32 0.0, %v3513
      %v3515 = vpop.f32.mrf.mxu0
      %3516 = vmatprep.mubr.bf16.mxu0 0
      %3517 = vmatmul.mubr.bf16.gmra.mxu0 %v3235
      %v3518 = vpop.f32.mrf.mxu0
      %v3519 = vpop.f32.mrf.mxu0
      %v3520 = vpop.f32.mrf.mxu0
      %v3521 = vadd.f32 0.0, %v3520
      %v3522 = vpop.f32.mrf.mxu0
      %3523 = vmatprep.mubr.bf16.mxu0 0
      %3524 = vmatmul.mubr.bf16.gmra.mxu0 %v3243
      %v3525 = vpop.f32.mrf.mxu0
      %v3526 = vadd.f32 0.0, %v3525
      %v3527 = vpop.f32.mrf.mxu0
      %v3528 = vpop.f32.mrf.mxu0
      %v3529 = vpop.f32.mrf.mxu0
      %3530 = vmatprep.mubr.bf16.mxu0 0
      %3531 = vmatmul.mubr.bf16.gmra.mxu0 %v3251
      %v3532 = vpop.f32.mrf.mxu0
      %v3533 = vadd.f32 0.0, %v3532
      %v3534 = vpop.f32.mrf.mxu0
      %v3535 = vpop.f32.mrf.mxu0
      %v3536 = vadd.f32 0.0, %v3535
      %v3537 = vpop.f32.mrf.mxu0
      %3538 = vmatprep.mubr.bf16.mxu0 0
      %3539 = vmatmul.mubr.bf16.gmra.mxu0 %v3259
      %v3540 = vpop.f32.mrf.mxu0
      %v3541 = vpop.f32.mrf.mxu0
      %v3542 = vpop.f32.mrf.mxu0
      %v3543 = vadd.f32 0.0, %v3542
      %v3544 = vpop.f32.mrf.mxu0
      %3545 = vmatprep.mubr.bf16.mxu0 0
      %3546 = vmatmul.mubr.bf16.gmra.mxu0 %v3267
      %v3547 = vpop.f32.mrf.mxu0
      %v3548 = vadd.f32 0.0, %v3547
      %v3549 = vpop.f32.mrf.mxu0
      %v3550 = vpop.f32.mrf.mxu0
      %v3551 = vpop.f32.mrf.mxu0
      %3552 = vmatprep.mubr.bf16.mxu0 0
      %3553 = vmatmul.mubr.bf16.gmra.mxu0 %v3275
      %v3554 = vpop.f32.mrf.mxu0
      %v3555 = vadd.f32 0.0, %v3554
      %v3556 = vpop.f32.mrf.mxu0
      %v3557 = vpop.f32.mrf.mxu0
      %v3558 = vadd.f32 0.0, %v3557
      %v3559 = vpop.f32.mrf.mxu0
      %3560 = vmatprep.mubr.bf16.mxu0 0
      %3561 = vmatmul.mubr.bf16.gmra.mxu0 %v3283
      %v3562 = vpop.f32.mrf.mxu0
      %v3563 = vpop.f32.mrf.mxu0
      %v3564 = vpop.f32.mrf.mxu0
      %v3565 = vadd.f32 0.0, %v3564
      %v3566 = vpop.f32.mrf.mxu0
      %3567 = vmatprep.mubr.bf16.mxu0 0
      %3568 = vmatmul.mubr.bf16.gmra.mxu0 %v3291
      %v3569 = vpop.f32.mrf.mxu0
      %v3570 = vadd.f32 0.0, %v3569
      %v3571 = vpop.f32.mrf.mxu0
      %v3572 = vpop.f32.mrf.mxu0
      %v3573 = vpop.f32.mrf.mxu0
      %3574 = vmatprep.mubr.bf16.mxu0 0
      %3575 = vmatmul.mubr.bf16.gmra.mxu0 %v3299
      %v3576 = vpop.f32.mrf.mxu0
      %v3577 = vadd.f32 0.0, %v3576
      %v3578 = vpop.f32.mrf.mxu0
      %v3579 = vpop.f32.mrf.mxu0
      %v3580 = vadd.f32 0.0, %v3579
      %v3581 = vpop.f32.mrf.mxu0
      %3582 = vmatprep.mubr.bf16.mxu0 0
      %3583 = vmatmul.mubr.bf16.gmra.mxu0 %v3307
      %v3584 = vpop.f32.mrf.mxu0
      %v3585 = vpop.f32.mrf.mxu0
      %v3586 = vpop.f32.mrf.mxu0
      %v3587 = vadd.f32 0.0, %v3586
      %v3588 = vpop.f32.mrf.mxu0
      %3589 = vmatprep.mubr.bf16.mxu0 0
      %3590 = vmatmul.mubr.bf16.gmra.mxu0 %v3315
      %v3591 = vpop.f32.mrf.mxu0
      %v3592 = vadd.f32 0.0, %v3591
      %v3593 = vpop.f32.mrf.mxu0
      %v3594 = vpop.f32.mrf.mxu0
      %v3595 = vpop.f32.mrf.mxu0
      %3596 = vdwg.mxu0
      %v3597 = vadd.f32 %v3068, %v3423
      %v3598 = vadd.f32 %v3069, %v3426
      %v3599 = vadd.f32 %v3070, %v3433
      %v3600 = vadd.f32 %v3071, %v3438
      %v3601 = vadd.f32 %v3072, %v3445
      %v3602 = vadd.f32 %v3073, %v3448
      %v3603 = vadd.f32 %v3074, %v3455
      %v3604 = vadd.f32 %v3075, %v3460
      %v3605 = vadd.f32 %v3076, %v3467
      %v3606 = vadd.f32 %v3077, %v3470
      %v3607 = vadd.f32 %v3078, %v3477
      %v3608 = vadd.f32 %v3079, %v3482
      %v3609 = vadd.f32 %v3080, %v3489
      %v3610 = vadd.f32 %v3081, %v3492
      %v3611 = vadd.f32 %v3082, %v3499
      %v3612 = vadd.f32 %v3083, %v3504
      %v3613 = vadd.f32 %v3084, %v3511
      %v3614 = vadd.f32 %v3085, %v3514
      %v3615 = vadd.f32 %v3086, %v3521
      %v3616 = vadd.f32 %v3087, %v3526
      %v3617 = vadd.f32 %v3088, %v3533
      %v3618 = vadd.f32 %v3089, %v3536
      %v3619 = vadd.f32 %v3090, %v3543
      %v3620 = vadd.f32 %v3091, %v3548
      %v3621 = vadd.f32 %v3092, %v3555
      %v3622 = vadd.f32 %v3093, %v3558
      %v3623 = vadd.f32 %v3094, %v3565
      %v3624 = vadd.f32 %v3095, %v3570
      %v3625 = vadd.f32 %v3096, %v3577
      %v3626 = vadd.f32 %v3097, %v3580
      %v3627 = vadd.f32 %v3098, %v3587
      %v3628 = vadd.f32 %v3099, %v3592
      %s3629 = scalar_lea.vmem %s5, 320
      %v3630 = vld [vmem:[%s3629] sm:$0xf]
      %v3631 = vld [vmem:[%s3629 + $0x4] sm:$0xf]
      %v3632 = vld [vmem:[%s3629 + $0x8] sm:$0xf]
      %v3633 = vld [vmem:[%s3629 + $0xc] sm:$0xf]
      %v3634 = vld [vmem:[%s3629 + $0x10] sm:$0xf]
      %v3635 = vld [vmem:[%s3629 + $0x14] sm:$0xf]
      %v3636 = vld [vmem:[%s3629 + $0x18] sm:$0xf]
      %v3637 = vld [vmem:[%s3629 + $0x1c] sm:$0xf]
      %v3638 = vld [vmem:[%s3629 + $0x20] sm:$0xf]
      %v3639 = vld [vmem:[%s3629 + $0x24] sm:$0xf]
      %v3640 = vld [vmem:[%s3629 + $0x28] sm:$0xf]
      %v3641 = vld [vmem:[%s3629 + $0x2c] sm:$0xf]
      %v3642 = vld [vmem:[%s3629 + $0x30] sm:$0xf]
      %v3643 = vld [vmem:[%s3629 + $0x34] sm:$0xf]
      %v3644 = vld [vmem:[%s3629 + $0x38] sm:$0xf]
      %v3645 = vld [vmem:[%s3629 + $0x3c] sm:$0xf]
      %v3646 = vrot.slane %v2763, 1
      %v3647 = vrot.slane %v2764, 1
      %v3648 = vsel %vm2379, %v3646, %v3647
      %v3649 = vrot.slane %v2765, 1
      %v3650 = vsel %vm2379, %v3647, %v3649
      %v3651 = vrot.slane %v2766, 1
      %v3652 = vsel %vm2379, %v3649, %v3651
      %v3653 = vrot.slane %v2767, 1
      %v3654 = vsel %vm2379, %v3651, %v3653
      %v3655 = vrot.slane %v2768, 1
      %v3656 = vsel %vm2379, %v3653, %v3655
      %v3657 = vrot.slane %v2769, 1
      %v3658 = vsel %vm2379, %v3655, %v3657
      %v3659 = vrot.slane %v2770, 1
      %v3660 = vsel %vm2379, %v3657, %v3659
      %v3661 = vrot.slane %v2771, 1
      %v3662 = vsel %vm2379, %v3659, %v3661
      %v3663 = vrot.slane %v2772, 1
      %v3664 = vsel %vm2379, %v3661, %v3663
      %v3665 = vrot.slane %v2773, 1
      %v3666 = vsel %vm2379, %v3663, %v3665
      %v3667 = vrot.slane %v2774, 1
      %v3668 = vsel %vm2379, %v3665, %v3667
      %v3669 = vrot.slane %v2775, 1
      %v3670 = vsel %vm2379, %v3667, %v3669
      %v3671 = vrot.slane %v2776, 1
      %v3672 = vsel %vm2379, %v3669, %v3671
      %v3673 = vrot.slane %v2777, 1
      %v3674 = vsel %vm2379, %v3671, %v3673
      %v3675 = vrot.slane %v2778, 1
      %v3676 = vsel %vm2379, %v3673, %v3675
      %v3677 = vrot.slane %v2779, 1
      %v3678 = vsel %vm2379, %v3675, %v3677
      %v3679 = vrot.slane %v2780, 1
      %v3680 = vsel %vm2379, %v3677, %v3679
      %v3681 = vrot.slane %v2781, 1
      %v3682 = vsel %vm2379, %v3679, %v3681
      %v3683 = vrot.slane %v2782, 1
      %v3684 = vsel %vm2379, %v3681, %v3683
      %v3685 = vrot.slane %v2783, 1
      %v3686 = vsel %vm2379, %v3683, %v3685
      %v3687 = vrot.slane %v2784, 1
      %v3688 = vsel %vm2379, %v3685, %v3687
      %v3689 = vrot.slane %v2785, 1
      %v3690 = vsel %vm2379, %v3687, %v3689
      %v3691 = vrot.slane %v2786, 1
      %v3692 = vsel %vm2379, %v3689, %v3691
      %v3693 = vrot.slane %v3119, 1
      %v3694 = vsel %vm2379, %v3691, %v3693
      %v3735 = vunpack.c.l.b16 %v3630
      %v3736 = vunpack.c.l.b16 %v3631
      %v3737 = vunpack.c.l.b16 %v3632
      %v3738 = vunpack.c.l.b16 %v3633
      %v3739 = vunpack.c.l.b16 %v3634
      %v3740 = vunpack.c.l.b16 %v3635
      %v3741 = vunpack.c.l.b16 %v3636
      %v3742 = vunpack.c.l.b16 %v3637
      %v3743 = vunpack.c.l.b16 %v3638
      %v3744 = vunpack.c.l.b16 %v3639
      %v3745 = vunpack.c.l.b16 %v3640
      %v3746 = vunpack.c.l.b16 %v3641
      %v3747 = vunpack.c.l.b16 %v3642
      %v3748 = vunpack.c.l.b16 %v3643
      %v3749 = vunpack.c.l.b16 %v3644
      %v3750 = vunpack.c.l.b16 %v3645
      %v3751 = vpack.c.b16 %v3736, %v3735
      %v3752 = vpack.c.b16 %v3738, %v3737
      %v3753 = vpack.c.b16 %v3740, %v3739
      %v3754 = vpack.c.b16 %v3742, %v3741
      %v3755 = vpack.c.b16 %v3744, %v3743
      %v3756 = vpack.c.b16 %v3746, %v3745
      %v3757 = vpack.c.b16 %v3748, %v3747
      %v3758 = vpack.c.b16 %v3750, %v3749
      %3767 = vmatprep.subr.bf16.mxu0 0
      %3768 = vmatpush1.bf16.msra.mxu0 %v3758
      %3769 = vmatprep.subr.bf16.mxu0 0
      %3770 = vmatpush1.bf16.msra.mxu0 %v3757
      %3771 = vmatprep.subr.bf16.mxu0 0
      %3772 = vmatpush1.bf16.msra.mxu0 %v3756
      %3773 = vmatprep.subr.bf16.mxu0 0
      %3774 = vmatpush1.bf16.msra.mxu0 %v3755
      %3775 = vmatprep.subr.bf16.mxu0 0
      %3776 = vmatpush1.bf16.msra.mxu0 %v3754
      %3777 = vmatprep.subr.bf16.mxu0 0
      %3778 = vmatpush1.bf16.msra.mxu0 %v3753
      %3779 = vmatprep.subr.bf16.mxu0 0
      %3780 = vmatpush1.bf16.msra.mxu0 %v3752
      %3781 = vmatprep.subr.bf16.mxu0 0
      %3782 = vmatpush1.bf16.msra.mxu0 %v3751
      %3783 = vmatprep.subr.bf16.mxu0 0
      %3784 = vmatpush2.bf16.msra.mxu0 0
      %3785 = vmatprep.subr.bf16.mxu0 0
      %3786 = vmatpush2.bf16.msra.mxu0 0
      %3787 = vmatprep.subr.bf16.mxu0 0
      %3788 = vmatpush2.bf16.msra.mxu0 0
      %3789 = vmatprep.subr.bf16.mxu0 0
      %3790 = vmatpush2.bf16.msra.mxu0 0
      %3791 = vmatprep.subr.bf16.mxu0 0
      %3792 = vmatpush2.bf16.msra.mxu0 0
      %3793 = vmatprep.subr.bf16.mxu0 0
      %3794 = vmatpush2.bf16.msra.mxu0 0
      %3795 = vmatprep.subr.bf16.mxu0 0
      %3796 = vmatpush2.bf16.msra.mxu0 0
      %3797 = vmatprep.subr.bf16.mxu0 0
      %3798 = vmatpush2.bf16.msra.mxu0 0
      %3799 = vmatprep.mubr.bf16.mxu0 0
      %3800 = vmatmul.mubr.bf16.gmra.mxu0 %v3648
      %v3801 = vpop.f32.mrf.mxu0
      %v3802 = vadd.f32 0.0, %v3801
      %v3803 = vpop.f32.mrf.mxu0
      %v3804 = vpop.f32.mrf.mxu0
      %v3805 = vadd.f32 0.0, %v3804
      %v3806 = vpop.f32.mrf.mxu0
      %3807 = vmatprep.mubr.bf16.mxu0 0
      %3808 = vmatmul.mubr.bf16.gmra.mxu0 %v3650
      %v3809 = vpop.f32.mrf.mxu0
      %v3810 = vpop.f32.mrf.mxu0
      %v3811 = vpop.f32.mrf.mxu0
      %v3812 = vadd.f32 0.0, %v3811
      %v3813 = vpop.f32.mrf.mxu0
      %3814 = vmatprep.mubr.bf16.mxu0 0
      %3815 = vmatmul.mubr.bf16.gmra.mxu0 %v3652
      %v3816 = vpop.f32.mrf.mxu0
      %v3817 = vadd.f32 0.0, %v3816
      %v3818 = vpop.f32.mrf.mxu0
      %v3819 = vpop.f32.mrf.mxu0
      %v3820 = vpop.f32.mrf.mxu0
      %3821 = vmatprep.mubr.bf16.mxu0 0
      %3822 = vmatmul.mubr.bf16.gmra.mxu0 %v3654
      %v3823 = vpop.f32.mrf.mxu0
      %v3824 = vadd.f32 0.0, %v3823
      %v3825 = vpop.f32.mrf.mxu0
      %v3826 = vpop.f32.mrf.mxu0
      %v3827 = vadd.f32 0.0, %v3826
      %v3828 = vpop.f32.mrf.mxu0
      %3829 = vmatprep.mubr.bf16.mxu0 0
      %3830 = vmatmul.mubr.bf16.gmra.mxu0 %v3656
      %v3831 = vpop.f32.mrf.mxu0
      %v3832 = vpop.f32.mrf.mxu0
      %v3833 = vpop.f32.mrf.mxu0
      %v3834 = vadd.f32 0.0, %v3833
      %v3835 = vpop.f32.mrf.mxu0
      %3836 = vmatprep.mubr.bf16.mxu0 0
      %3837 = vmatmul.mubr.bf16.gmra.mxu0 %v3658
      %v3838 = vpop.f32.mrf.mxu0
      %v3839 = vadd.f32 0.0, %v3838
      %v3840 = vpop.f32.mrf.mxu0
      %v3841 = vpop.f32.mrf.mxu0
      %v3842 = vpop.f32.mrf.mxu0
      %3843 = vmatprep.mubr.bf16.mxu0 0
      %3844 = vmatmul.mubr.bf16.gmra.mxu0 %v3660
      %v3845 = vpop.f32.mrf.mxu0
      %v3846 = vadd.f32 0.0, %v3845
      %v3847 = vpop.f32.mrf.mxu0
      %v3848 = vpop.f32.mrf.mxu0
      %v3849 = vadd.f32 0.0, %v3848
      %v3850 = vpop.f32.mrf.mxu0
      %3851 = vmatprep.mubr.bf16.mxu0 0
      %3852 = vmatmul.mubr.bf16.gmra.mxu0 %v3662
      %v3853 = vpop.f32.mrf.mxu0
      %v3854 = vpop.f32.mrf.mxu0
      %v3855 = vpop.f32.mrf.mxu0
      %v3856 = vadd.f32 0.0, %v3855
      %v3857 = vpop.f32.mrf.mxu0
      %3858 = vmatprep.mubr.bf16.mxu0 0
      %3859 = vmatmul.mubr.bf16.gmra.mxu0 %v3664
      %v3860 = vpop.f32.mrf.mxu0
      %v3861 = vadd.f32 0.0, %v3860
      %v3862 = vpop.f32.mrf.mxu0
      %v3863 = vpop.f32.mrf.mxu0
      %v3864 = vpop.f32.mrf.mxu0
      %3865 = vmatprep.mubr.bf16.mxu0 0
      %3866 = vmatmul.mubr.bf16.gmra.mxu0 %v3666
      %v3867 = vpop.f32.mrf.mxu0
      %v3868 = vadd.f32 0.0, %v3867
      %v3869 = vpop.f32.mrf.mxu0
      %v3870 = vpop.f32.mrf.mxu0
      %v3871 = vadd.f32 0.0, %v3870
      %v3872 = vpop.f32.mrf.mxu0
      %3873 = vmatprep.mubr.bf16.mxu0 0
      %3874 = vmatmul.mubr.bf16.gmra.mxu0 %v3668
      %v3875 = vpop.f32.mrf.mxu0
      %v3876 = vpop.f32.mrf.mxu0
      %v3877 = vpop.f32.mrf.mxu0
      %v3878 = vadd.f32 0.0, %v3877
      %v3879 = vpop.f32.mrf.mxu0
      %3880 = vmatprep.mubr.bf16.mxu0 0
      %3881 = vmatmul.mubr.bf16.gmra.mxu0 %v3670
      %v3882 = vpop.f32.mrf.mxu0
      %v3883 = vadd.f32 0.0, %v3882
      %v3884 = vpop.f32.mrf.mxu0
      %v3885 = vpop.f32.mrf.mxu0
      %v3886 = vpop.f32.mrf.mxu0
      %3887 = vmatprep.mubr.bf16.mxu0 0
      %3888 = vmatmul.mubr.bf16.gmra.mxu0 %v3672
      %v3889 = vpop.f32.mrf.mxu0
      %v3890 = vadd.f32 0.0, %v3889
      %v3891 = vpop.f32.mrf.mxu0
      %v3892 = vpop.f32.mrf.mxu0
      %v3893 = vadd.f32 0.0, %v3892
      %v3894 = vpop.f32.mrf.mxu0
      %3895 = vmatprep.mubr.bf16.mxu0 0
      %3896 = vmatmul.mubr.bf16.gmra.mxu0 %v3674
      %v3897 = vpop.f32.mrf.mxu0
      %v3898 = vpop.f32.mrf.mxu0
      %v3899 = vpop.f32.mrf.mxu0
      %v3900 = vadd.f32 0.0, %v3899
      %v3901 = vpop.f32.mrf.mxu0
      %3902 = vmatprep.mubr.bf16.mxu0 0
      %3903 = vmatmul.mubr.bf16.gmra.mxu0 %v3676
      %v3904 = vpop.f32.mrf.mxu0
      %v3905 = vadd.f32 0.0, %v3904
      %v3906 = vpop.f32.mrf.mxu0
      %v3907 = vpop.f32.mrf.mxu0
      %v3908 = vpop.f32.mrf.mxu0
      %3909 = vmatprep.mubr.bf16.mxu0 0
      %3910 = vmatmul.mubr.bf16.gmra.mxu0 %v3678
      %v3911 = vpop.f32.mrf.mxu0
      %v3912 = vadd.f32 0.0, %v3911
      %v3913 = vpop.f32.mrf.mxu0
      %v3914 = vpop.f32.mrf.mxu0
      %v3915 = vadd.f32 0.0, %v3914
      %v3916 = vpop.f32.mrf.mxu0
      %3917 = vmatprep.mubr.bf16.mxu0 0
      %3918 = vmatmul.mubr.bf16.gmra.mxu0 %v3680
      %v3919 = vpop.f32.mrf.mxu0
      %v3920 = vpop.f32.mrf.mxu0
      %v3921 = vpop.f32.mrf.mxu0
      %v3922 = vadd.f32 0.0, %v3921
      %v3923 = vpop.f32.mrf.mxu0
      %3924 = vmatprep.mubr.bf16.mxu0 0
      %3925 = vmatmul.mubr.bf16.gmra.mxu0 %v3682
      %v3926 = vpop.f32.mrf.mxu0
      %v3927 = vadd.f32 0.0, %v3926
      %v3928 = vpop.f32.mrf.mxu0
      %v3929 = vpop.f32.mrf.mxu0
      %v3930 = vpop.f32.mrf.mxu0
      %3931 = vmatprep.mubr.bf16.mxu0 0
      %3932 = vmatmul.mubr.bf16.gmra.mxu0 %v3684
      %v3933 = vpop.f32.mrf.mxu0
      %v3934 = vadd.f32 0.0, %v3933
      %v3935 = vpop.f32.mrf.mxu0
      %v3936 = vpop.f32.mrf.mxu0
      %v3937 = vadd.f32 0.0, %v3936
      %v3938 = vpop.f32.mrf.mxu0
      %3939 = vmatprep.mubr.bf16.mxu0 0
      %3940 = vmatmul.mubr.bf16.gmra.mxu0 %v3686
      %v3941 = vpop.f32.mrf.mxu0
      %v3942 = vpop.f32.mrf.mxu0
      %v3943 = vpop.f32.mrf.mxu0
      %v3944 = vadd.f32 0.0, %v3943
      %v3945 = vpop.f32.mrf.mxu0
      %3946 = vmatprep.mubr.bf16.mxu0 0
      %3947 = vmatmul.mubr.bf16.gmra.mxu0 %v3688
      %v3948 = vpop.f32.mrf.mxu0
      %v3949 = vadd.f32 0.0, %v3948
      %v3950 = vpop.f32.mrf.mxu0
      %v3951 = vpop.f32.mrf.mxu0
      %v3952 = vpop.f32.mrf.mxu0
      %3953 = vmatprep.mubr.bf16.mxu0 0
      %3954 = vmatmul.mubr.bf16.gmra.mxu0 %v3690
      %v3955 = vpop.f32.mrf.mxu0
      %v3956 = vadd.f32 0.0, %v3955
      %v3957 = vpop.f32.mrf.mxu0
      %v3958 = vpop.f32.mrf.mxu0
      %v3959 = vadd.f32 0.0, %v3958
      %v3960 = vpop.f32.mrf.mxu0
      %3961 = vmatprep.mubr.bf16.mxu0 0
      %3962 = vmatmul.mubr.bf16.gmra.mxu0 %v3692
      %v3963 = vpop.f32.mrf.mxu0
      %v3964 = vpop.f32.mrf.mxu0
      %v3965 = vpop.f32.mrf.mxu0
      %v3966 = vadd.f32 0.0, %v3965
      %v3967 = vpop.f32.mrf.mxu0
      %3968 = vmatprep.mubr.bf16.mxu0 0
      %3969 = vmatmul.mubr.bf16.gmra.mxu0 %v3694
      %v3970 = vpop.f32.mrf.mxu0
      %v3971 = vadd.f32 0.0, %v3970
      %v3972 = vpop.f32.mrf.mxu0
      %v3973 = vpop.f32.mrf.mxu0
      %v3974 = vpop.f32.mrf.mxu0
      %3975 = vdwg.mxu0
      %v3976 = vadd.f32 %v3597, %v3802
      %v3977 = vadd.f32 %v3598, %v3805
      %v3978 = vadd.f32 %v3599, %v3812
      %v3979 = vadd.f32 %v3600, %v3817
      %v3980 = vadd.f32 %v3601, %v3824
      %v3981 = vadd.f32 %v3602, %v3827
      %v3982 = vadd.f32 %v3603, %v3834
      %v3983 = vadd.f32 %v3604, %v3839
      %v3984 = vadd.f32 %v3605, %v3846
      %v3985 = vadd.f32 %v3606, %v3849
      %v3986 = vadd.f32 %v3607, %v3856
      %v3987 = vadd.f32 %v3608, %v3861
      %v3988 = vadd.f32 %v3609, %v3868
      %v3989 = vadd.f32 %v3610, %v3871
      %v3990 = vadd.f32 %v3611, %v3878
      %v3991 = vadd.f32 %v3612, %v3883
      %v3992 = vadd.f32 %v3613, %v3890
      %v3993 = vadd.f32 %v3614, %v3893
      %v3994 = vadd.f32 %v3615, %v3900
      %v3995 = vadd.f32 %v3616, %v3905
      %v3996 = vadd.f32 %v3617, %v3912
      %v3997 = vadd.f32 %v3618, %v3915
      %v3998 = vadd.f32 %v3619, %v3922
      %v3999 = vadd.f32 %v3620, %v3927
      %v4000 = vadd.f32 %v3621, %v3934
      %v4001 = vadd.f32 %v3622, %v3937
      %v4002 = vadd.f32 %v3623, %v3944
      %v4003 = vadd.f32 %v3624, %v3949
      %v4004 = vadd.f32 %v3625, %v3956
      %v4005 = vadd.f32 %v3626, %v3959
      %v4006 = vadd.f32 %v3627, %v3966
      %v4007 = vadd.f32 %v3628, %v3971
      %s4008 = scalar_lea.vmem %s5, 384
      %v4009 = vld [vmem:[%s4008] sm:$0xf]
      %v4010 = vld [vmem:[%s4008 + $0x4] sm:$0xf]
      %v4011 = vld [vmem:[%s4008 + $0x8] sm:$0xf]
      %v4012 = vld [vmem:[%s4008 + $0xc] sm:$0xf]
      %v4013 = vld [vmem:[%s4008 + $0x10] sm:$0xf]
      %v4014 = vld [vmem:[%s4008 + $0x14] sm:$0xf]
      %v4015 = vld [vmem:[%s4008 + $0x18] sm:$0xf]
      %v4016 = vld [vmem:[%s4008 + $0x1c] sm:$0xf]
      %v4017 = vld [vmem:[%s4008 + $0x20] sm:$0xf]
      %v4018 = vld [vmem:[%s4008 + $0x24] sm:$0xf]
      %v4019 = vld [vmem:[%s4008 + $0x28] sm:$0xf]
      %v4020 = vld [vmem:[%s4008 + $0x2c] sm:$0xf]
      %v4021 = vld [vmem:[%s4008 + $0x30] sm:$0xf]
      %v4022 = vld [vmem:[%s4008 + $0x34] sm:$0xf]
      %v4023 = vld [vmem:[%s4008 + $0x38] sm:$0xf]
      %v4024 = vld [vmem:[%s4008 + $0x3c] sm:$0xf]
      %v4027 = vunpack.c.l.b16 %v1444
      %v4028 = vunpack.c.l.b16 %v1445
      %v4029 = vpack.c.b16 %v2761, %v1577
      %v4030 = vpack.c.b16 %v3118, %v2762
      %v4031 = vpack.c.b16 %v4028, %v4027
      %v4051 = vunpack.c.l.b16 %v4009
      %v4052 = vunpack.c.l.b16 %v4010
      %v4053 = vunpack.c.l.b16 %v4011
      %v4054 = vunpack.c.l.b16 %v4012
      %v4055 = vunpack.c.l.b16 %v4013
      %v4056 = vunpack.c.l.b16 %v4014
      %v4057 = vunpack.c.l.b16 %v4015
      %v4058 = vunpack.c.l.b16 %v4016
      %v4059 = vunpack.c.l.b16 %v4017
      %v4060 = vunpack.c.l.b16 %v4018
      %v4061 = vunpack.c.l.b16 %v4019
      %v4062 = vunpack.c.l.b16 %v4020
      %v4063 = vunpack.c.l.b16 %v4021
      %v4064 = vunpack.c.l.b16 %v4022
      %v4065 = vunpack.c.l.b16 %v4023
      %v4066 = vunpack.c.l.b16 %v4024
      %v4067 = vpack.c.b16 %v4052, %v4051
      %v4068 = vpack.c.b16 %v4054, %v4053
      %v4069 = vpack.c.b16 %v4056, %v4055
      %v4070 = vpack.c.b16 %v4058, %v4057
      %v4071 = vpack.c.b16 %v4060, %v4059
      %v4072 = vpack.c.b16 %v4062, %v4061
      %v4073 = vpack.c.b16 %v4064, %v4063
      %v4074 = vpack.c.b16 %v4066, %v4065
      %4083 = vmatprep.subr.bf16.mxu0 0
      %4084 = vmatpush1.bf16.msra.mxu0 %v4074
      %4085 = vmatprep.subr.bf16.mxu0 0
      %4086 = vmatpush1.bf16.msra.mxu0 %v4073
      %4087 = vmatprep.subr.bf16.mxu0 0
      %4088 = vmatpush1.bf16.msra.mxu0 %v4072
      %4089 = vmatprep.subr.bf16.mxu0 0
      %4090 = vmatpush1.bf16.msra.mxu0 %v4071
      %4091 = vmatprep.subr.bf16.mxu0 0
      %4092 = vmatpush1.bf16.msra.mxu0 %v4070
      %4093 = vmatprep.subr.bf16.mxu0 0
      %4094 = vmatpush1.bf16.msra.mxu0 %v4069
      %4095 = vmatprep.subr.bf16.mxu0 0
      %4096 = vmatpush1.bf16.msra.mxu0 %v4068
      %4097 = vmatprep.subr.bf16.mxu0 0
      %4098 = vmatpush1.bf16.msra.mxu0 %v4067
      %4099 = vmatprep.subr.bf16.mxu0 0
      %4100 = vmatpush2.bf16.msra.mxu0 0
      %4101 = vmatprep.subr.bf16.mxu0 0
      %4102 = vmatpush2.bf16.msra.mxu0 0
      %4103 = vmatprep.subr.bf16.mxu0 0
      %4104 = vmatpush2.bf16.msra.mxu0 0
      %4105 = vmatprep.subr.bf16.mxu0 0
      %4106 = vmatpush2.bf16.msra.mxu0 0
      %4107 = vmatprep.subr.bf16.mxu0 0
      %4108 = vmatpush2.bf16.msra.mxu0 0
      %4109 = vmatprep.subr.bf16.mxu0 0
      %4110 = vmatpush2.bf16.msra.mxu0 0
      %4111 = vmatprep.subr.bf16.mxu0 0
      %4112 = vmatpush2.bf16.msra.mxu0 0
      %4113 = vmatprep.subr.bf16.mxu0 0
      %4114 = vmatpush2.bf16.msra.mxu0 0
      %4115 = vmatprep.mubr.bf16.mxu0 0
      %4116 = vmatmul.mubr.bf16.gmra.mxu0 %v1581
      %v4117 = vpop.f32.mrf.mxu0
      %v4118 = vadd.f32 0.0, %v4117
      %v4119 = vpop.f32.mrf.mxu0
      %v4120 = vpop.f32.mrf.mxu0
      %v4121 = vadd.f32 0.0, %v4120
      %v4122 = vpop.f32.mrf.mxu0
      %4123 = vmatprep.mubr.bf16.mxu0 0
      %4124 = vmatmul.mubr.bf16.gmra.mxu0 %v1582
      %v4125 = vpop.f32.mrf.mxu0
      %v4126 = vpop.f32.mrf.mxu0
      %v4127 = vpop.f32.mrf.mxu0
      %v4128 = vadd.f32 0.0, %v4127
      %v4129 = vpop.f32.mrf.mxu0
      %4130 = vmatprep.mubr.bf16.mxu0 0
      %4131 = vmatmul.mubr.bf16.gmra.mxu0 %v1583
      %v4132 = vpop.f32.mrf.mxu0
      %v4133 = vadd.f32 0.0, %v4132
      %v4134 = vpop.f32.mrf.mxu0
      %v4135 = vpop.f32.mrf.mxu0
      %v4136 = vpop.f32.mrf.mxu0
      %4137 = vmatprep.mubr.bf16.mxu0 0
      %4138 = vmatmul.mubr.bf16.gmra.mxu0 %v1584
      %v4139 = vpop.f32.mrf.mxu0
      %v4140 = vadd.f32 0.0, %v4139
      %v4141 = vpop.f32.mrf.mxu0
      %v4142 = vpop.f32.mrf.mxu0
      %v4143 = vadd.f32 0.0, %v4142
      %v4144 = vpop.f32.mrf.mxu0
      %4145 = vmatprep.mubr.bf16.mxu0 0
      %4146 = vmatmul.mubr.bf16.gmra.mxu0 %v1585
      %v4147 = vpop.f32.mrf.mxu0
      %v4148 = vpop.f32.mrf.mxu0
      %v4149 = vpop.f32.mrf.mxu0
      %v4150 = vadd.f32 0.0, %v4149
      %v4151 = vpop.f32.mrf.mxu0
      %4152 = vmatprep.mubr.bf16.mxu0 0
      %4153 = vmatmul.mubr.bf16.gmra.mxu0 %v1586
      %v4154 = vpop.f32.mrf.mxu0
      %v4155 = vadd.f32 0.0, %v4154
      %v4156 = vpop.f32.mrf.mxu0
      %v4157 = vpop.f32.mrf.mxu0
      %v4158 = vpop.f32.mrf.mxu0
      %4159 = vmatprep.mubr.bf16.mxu0 0
      %4160 = vmatmul.mubr.bf16.gmra.mxu0 %v1587
      %v4161 = vpop.f32.mrf.mxu0
      %v4162 = vadd.f32 0.0, %v4161
      %v4163 = vpop.f32.mrf.mxu0
      %v4164 = vpop.f32.mrf.mxu0
      %v4165 = vadd.f32 0.0, %v4164
      %v4166 = vpop.f32.mrf.mxu0
      %4167 = vmatprep.mubr.bf16.mxu0 0
      %4168 = vmatmul.mubr.bf16.gmra.mxu0 %v1588
      %v4169 = vpop.f32.mrf.mxu0
      %v4170 = vpop.f32.mrf.mxu0
      %v4171 = vpop.f32.mrf.mxu0
      %v4172 = vadd.f32 0.0, %v4171
      %v4173 = vpop.f32.mrf.mxu0
      %4174 = vmatprep.mubr.bf16.mxu0 0
      %4175 = vmatmul.mubr.bf16.gmra.mxu0 %v1589
      %v4176 = vpop.f32.mrf.mxu0
      %v4177 = vadd.f32 0.0, %v4176
      %v4178 = vpop.f32.mrf.mxu0
      %v4179 = vpop.f32.mrf.mxu0
      %v4180 = vpop.f32.mrf.mxu0
      %4181 = vmatprep.mubr.bf16.mxu0 0
      %4182 = vmatmul.mubr.bf16.gmra.mxu0 %v1590
      %v4183 = vpop.f32.mrf.mxu0
      %v4184 = vadd.f32 0.0, %v4183
      %v4185 = vpop.f32.mrf.mxu0
      %v4186 = vpop.f32.mrf.mxu0
      %v4187 = vadd.f32 0.0, %v4186
      %v4188 = vpop.f32.mrf.mxu0
      %4189 = vmatprep.mubr.bf16.mxu0 0
      %4190 = vmatmul.mubr.bf16.gmra.mxu0 %v1591
      %v4191 = vpop.f32.mrf.mxu0
      %v4192 = vpop.f32.mrf.mxu0
      %v4193 = vpop.f32.mrf.mxu0
      %v4194 = vadd.f32 0.0, %v4193
      %v4195 = vpop.f32.mrf.mxu0
      %4196 = vmatprep.mubr.bf16.mxu0 0
      %4197 = vmatmul.mubr.bf16.gmra.mxu0 %v1592
      %v4198 = vpop.f32.mrf.mxu0
      %v4199 = vadd.f32 0.0, %v4198
      %v4200 = vpop.f32.mrf.mxu0
      %v4201 = vpop.f32.mrf.mxu0
      %v4202 = vpop.f32.mrf.mxu0
      %4203 = vmatprep.mubr.bf16.mxu0 0
      %4204 = vmatmul.mubr.bf16.gmra.mxu0 %v1593
      %v4205 = vpop.f32.mrf.mxu0
      %v4206 = vadd.f32 0.0, %v4205
      %v4207 = vpop.f32.mrf.mxu0
      %v4208 = vpop.f32.mrf.mxu0
      %v4209 = vadd.f32 0.0, %v4208
      %v4210 = vpop.f32.mrf.mxu0
      %4211 = vmatprep.mubr.bf16.mxu0 0
      %4212 = vmatmul.mubr.bf16.gmra.mxu0 %v1594
      %v4213 = vpop.f32.mrf.mxu0
      %v4214 = vpop.f32.mrf.mxu0
      %v4215 = vpop.f32.mrf.mxu0
      %v4216 = vadd.f32 0.0, %v4215
      %v4217 = vpop.f32.mrf.mxu0
      %4218 = vmatprep.mubr.bf16.mxu0 0
      %4219 = vmatmul.mubr.bf16.gmra.mxu0 %v1595
      %v4220 = vpop.f32.mrf.mxu0
      %v4221 = vadd.f32 0.0, %v4220
      %v4222 = vpop.f32.mrf.mxu0
      %v4223 = vpop.f32.mrf.mxu0
      %v4224 = vpop.f32.mrf.mxu0
      %4225 = vmatprep.mubr.bf16.mxu0 0
      %4226 = vmatmul.mubr.bf16.gmra.mxu0 %v1596
      %v4227 = vpop.f32.mrf.mxu0
      %v4228 = vadd.f32 0.0, %v4227
      %v4229 = vpop.f32.mrf.mxu0
      %v4230 = vpop.f32.mrf.mxu0
      %v4231 = vadd.f32 0.0, %v4230
      %v4232 = vpop.f32.mrf.mxu0
      %4233 = vmatprep.mubr.bf16.mxu0 0
      %4234 = vmatmul.mubr.bf16.gmra.mxu0 %v1597
      %v4235 = vpop.f32.mrf.mxu0
      %v4236 = vpop.f32.mrf.mxu0
      %v4237 = vpop.f32.mrf.mxu0
      %v4238 = vadd.f32 0.0, %v4237
      %v4239 = vpop.f32.mrf.mxu0
      %4240 = vmatprep.mubr.bf16.mxu0 0
      %4241 = vmatmul.mubr.bf16.gmra.mxu0 %v1598
      %v4242 = vpop.f32.mrf.mxu0
      %v4243 = vadd.f32 0.0, %v4242
      %v4244 = vpop.f32.mrf.mxu0
      %v4245 = vpop.f32.mrf.mxu0
      %v4246 = vpop.f32.mrf.mxu0
      %4247 = vmatprep.mubr.bf16.mxu0 0
      %4248 = vmatmul.mubr.bf16.gmra.mxu0 %v1599
      %v4249 = vpop.f32.mrf.mxu0
      %v4250 = vadd.f32 0.0, %v4249
      %v4251 = vpop.f32.mrf.mxu0
      %v4252 = vpop.f32.mrf.mxu0
      %v4253 = vadd.f32 0.0, %v4252
      %v4254 = vpop.f32.mrf.mxu0
      %4255 = vmatprep.mubr.bf16.mxu0 0
      %4256 = vmatmul.mubr.bf16.gmra.mxu0 %v1600
      %v4257 = vpop.f32.mrf.mxu0
      %v4258 = vpop.f32.mrf.mxu0
      %v4259 = vpop.f32.mrf.mxu0
      %v4260 = vadd.f32 0.0, %v4259
      %v4261 = vpop.f32.mrf.mxu0
      %4262 = vmatprep.mubr.bf16.mxu0 0
      %4263 = vmatmul.mubr.bf16.gmra.mxu0 %v1601
      %v4264 = vpop.f32.mrf.mxu0
      %v4265 = vadd.f32 0.0, %v4264
      %v4266 = vpop.f32.mrf.mxu0
      %v4267 = vpop.f32.mrf.mxu0
      %v4268 = vpop.f32.mrf.mxu0
      %4269 = vmatprep.mubr.bf16.mxu0 0
      %4270 = vmatmul.mubr.bf16.gmra.mxu0 %v4029
      %v4271 = vpop.f32.mrf.mxu0
      %v4272 = vadd.f32 0.0, %v4271
      %v4273 = vpop.f32.mrf.mxu0
      %v4274 = vpop.f32.mrf.mxu0
      %v4275 = vadd.f32 0.0, %v4274
      %v4276 = vpop.f32.mrf.mxu0
      %4277 = vmatprep.mubr.bf16.mxu0 0
      %4278 = vmatmul.mubr.bf16.gmra.mxu0 %v4030
      %v4279 = vpop.f32.mrf.mxu0
      %v4280 = vpop.f32.mrf.mxu0
      %v4281 = vpop.f32.mrf.mxu0
      %v4282 = vadd.f32 0.0, %v4281
      %v4283 = vpop.f32.mrf.mxu0
      %4284 = vmatprep.mubr.bf16.mxu0 0
      %4285 = vmatmul.mubr.bf16.gmra.mxu0 %v4031
      %v4286 = vpop.f32.mrf.mxu0
      %v4287 = vadd.f32 0.0, %v4286
      %v4288 = vpop.f32.mrf.mxu0
      %v4289 = vpop.f32.mrf.mxu0
      %v4290 = vpop.f32.mrf.mxu0
      %4291 = vdwg.mxu0
      %v4292 = vadd.f32 %v3976, %v4118
      %v4293 = vadd.f32 %v3977, %v4121
      %v4294 = vadd.f32 %v3978, %v4128
      %v4295 = vadd.f32 %v3979, %v4133
      %v4296 = vadd.f32 %v3980, %v4140
      %v4297 = vadd.f32 %v3981, %v4143
      %v4298 = vadd.f32 %v3982, %v4150
      %v4299 = vadd.f32 %v3983, %v4155
      %v4300 = vadd.f32 %v3984, %v4162
      %v4301 = vadd.f32 %v3985, %v4165
      %v4302 = vadd.f32 %v3986, %v4172
      %v4303 = vadd.f32 %v3987, %v4177
      %v4304 = vadd.f32 %v3988, %v4184
      %v4305 = vadd.f32 %v3989, %v4187
      %v4306 = vadd.f32 %v3990, %v4194
      %v4307 = vadd.f32 %v3991, %v4199
      %v4308 = vadd.f32 %v3992, %v4206
      %v4309 = vadd.f32 %v3993, %v4209
      %v4310 = vadd.f32 %v3994, %v4216
      %v4311 = vadd.f32 %v3995, %v4221
      %v4312 = vadd.f32 %v3996, %v4228
      %v4313 = vadd.f32 %v3997, %v4231
      %v4314 = vadd.f32 %v3998, %v4238
      %v4315 = vadd.f32 %v3999, %v4243
      %v4316 = vadd.f32 %v4000, %v4250
      %v4317 = vadd.f32 %v4001, %v4253
      %v4318 = vadd.f32 %v4002, %v4260
      %v4319 = vadd.f32 %v4003, %v4265
      %v4320 = vadd.f32 %v4004, %v4272
      %v4321 = vadd.f32 %v4005, %v4275
      %v4322 = vadd.f32 %v4006, %v4282
      %v4323 = vadd.f32 %v4007, %v4287
      %s4324 = scalar_lea.vmem %s5, 448
      %v4325 = vld [vmem:[%s4324] sm:$0xf]
      %v4326 = vld [vmem:[%s4324 + $0x4] sm:$0xf]
      %v4327 = vld [vmem:[%s4324 + $0x8] sm:$0xf]
      %v4328 = vld [vmem:[%s4324 + $0xc] sm:$0xf]
      %v4329 = vld [vmem:[%s4324 + $0x10] sm:$0xf]
      %v4330 = vld [vmem:[%s4324 + $0x14] sm:$0xf]
      %v4331 = vld [vmem:[%s4324 + $0x18] sm:$0xf]
      %v4332 = vld [vmem:[%s4324 + $0x1c] sm:$0xf]
      %v4333 = vld [vmem:[%s4324 + $0x20] sm:$0xf]
      %v4334 = vld [vmem:[%s4324 + $0x24] sm:$0xf]
      %v4335 = vld [vmem:[%s4324 + $0x28] sm:$0xf]
      %v4336 = vld [vmem:[%s4324 + $0x2c] sm:$0xf]
      %v4337 = vld [vmem:[%s4324 + $0x30] sm:$0xf]
      %v4338 = vld [vmem:[%s4324 + $0x34] sm:$0xf]
      %v4339 = vld [vmem:[%s4324 + $0x38] sm:$0xf]
      %v4340 = vld [vmem:[%s4324 + $0x3c] sm:$0xf]
      %v4342 = vunpack.c.l.b16 %v1446
      %v4343 = vpack.c.b16 %v4342, %v4342
      %v4345 = vshll.u32 %v4029, 16
      %v4347 = vrot.slane %v4345, 1
      %v4348 = vsel %vm1603, %v1794, %v4347
      %v4349 = vshrl.u32 %v4029, 16
      %v4351 = vor.u32 %v4349, %v4347
      %v4353 = vshll.u32 %v4030, 16
      %v4355 = vrot.slane %v4353, 1
      %v4356 = vsel %vm1603, %v4351, %v4355
      %v4357 = vshrl.u32 %v4030, 16
      %v4359 = vor.u32 %v4357, %v4355
      %v4361 = vshll.u32 %v4031, 16
      %v4363 = vrot.slane %v4361, 1
      %v4364 = vsel %vm1603, %v4359, %v4363
      %v4365 = vshrl.u32 %v4031, 16
      %v4367 = vor.u32 %v4365, %v4363
      %v4369 = vshll.u32 %v4343, 16
      %v4371 = vrot.slane %v4369, 1
      %v4372 = vsel %vm1603, %v4367, %v4371
      %v4393 = vunpack.c.l.b16 %v4325
      %v4394 = vunpack.c.l.b16 %v4326
      %v4395 = vunpack.c.l.b16 %v4327
      %v4396 = vunpack.c.l.b16 %v4328
      %v4397 = vunpack.c.l.b16 %v4329
      %v4398 = vunpack.c.l.b16 %v4330
      %v4399 = vunpack.c.l.b16 %v4331
      %v4400 = vunpack.c.l.b16 %v4332
      %v4401 = vunpack.c.l.b16 %v4333
      %v4402 = vunpack.c.l.b16 %v4334
      %v4403 = vunpack.c.l.b16 %v4335
      %v4404 = vunpack.c.l.b16 %v4336
      %v4405 = vunpack.c.l.b16 %v4337
      %v4406 = vunpack.c.l.b16 %v4338
      %v4407 = vunpack.c.l.b16 %v4339
      %v4408 = vunpack.c.l.b16 %v4340
      %v4409 = vpack.c.b16 %v4394, %v4393
      %v4410 = vpack.c.b16 %v4396, %v4395
      %v4411 = vpack.c.b16 %v4398, %v4397
      %v4412 = vpack.c.b16 %v4400, %v4399
      %v4413 = vpack.c.b16 %v4402, %v4401
      %v4414 = vpack.c.b16 %v4404, %v4403
      %v4415 = vpack.c.b16 %v4406, %v4405
      %v4416 = vpack.c.b16 %v4408, %v4407
      %4425 = vmatprep.subr.bf16.mxu0 0
      %4426 = vmatpush1.bf16.msra.mxu0 %v4416
      %4427 = vmatprep.subr.bf16.mxu0 0
      %4428 = vmatpush1.bf16.msra.mxu0 %v4415
      %4429 = vmatprep.subr.bf16.mxu0 0
      %4430 = vmatpush1.bf16.msra.mxu0 %v4414
      %4431 = vmatprep.subr.bf16.mxu0 0
      %4432 = vmatpush1.bf16.msra.mxu0 %v4413
      %4433 = vmatprep.subr.bf16.mxu0 0
      %4434 = vmatpush1.bf16.msra.mxu0 %v4412
      %4435 = vmatprep.subr.bf16.mxu0 0
      %4436 = vmatpush1.bf16.msra.mxu0 %v4411
      %4437 = vmatprep.subr.bf16.mxu0 0
      %4438 = vmatpush1.bf16.msra.mxu0 %v4410
      %4439 = vmatprep.subr.bf16.mxu0 0
      %4440 = vmatpush1.bf16.msra.mxu0 %v4409
      %4441 = vmatprep.subr.bf16.mxu0 0
      %4442 = vmatpush2.bf16.msra.mxu0 0
      %4443 = vmatprep.subr.bf16.mxu0 0
      %4444 = vmatpush2.bf16.msra.mxu0 0
      %4445 = vmatprep.subr.bf16.mxu0 0
      %4446 = vmatpush2.bf16.msra.mxu0 0
      %4447 = vmatprep.subr.bf16.mxu0 0
      %4448 = vmatpush2.bf16.msra.mxu0 0
      %4449 = vmatprep.subr.bf16.mxu0 0
      %4450 = vmatpush2.bf16.msra.mxu0 0
      %4451 = vmatprep.subr.bf16.mxu0 0
      %4452 = vmatpush2.bf16.msra.mxu0 0
      %4453 = vmatprep.subr.bf16.mxu0 0
      %4454 = vmatpush2.bf16.msra.mxu0 0
      %4455 = vmatprep.subr.bf16.mxu0 0
      %4456 = vmatpush2.bf16.msra.mxu0 0
      %4457 = vmatprep.mubr.bf16.mxu0 0
      %4458 = vmatmul.mubr.bf16.gmra.mxu0 %v1639
      %v4459 = vpop.f32.mrf.mxu0
      %v4460 = vadd.f32 0.0, %v4459
      %v4461 = vpop.f32.mrf.mxu0
      %v4462 = vpop.f32.mrf.mxu0
      %v4463 = vadd.f32 0.0, %v4462
      %v4464 = vpop.f32.mrf.mxu0
      %4465 = vmatprep.mubr.bf16.mxu0 0
      %4466 = vmatmul.mubr.bf16.gmra.mxu0 %v1647
      %v4467 = vpop.f32.mrf.mxu0
      %v4468 = vpop.f32.mrf.mxu0
      %v4469 = vpop.f32.mrf.mxu0
      %v4470 = vadd.f32 0.0, %v4469
      %v4471 = vpop.f32.mrf.mxu0
      %4472 = vmatprep.mubr.bf16.mxu0 0
      %4473 = vmatmul.mubr.bf16.gmra.mxu0 %v1655
      %v4474 = vpop.f32.mrf.mxu0
      %v4475 = vadd.f32 0.0, %v4474
      %v4476 = vpop.f32.mrf.mxu0
      %v4477 = vpop.f32.mrf.mxu0
      %v4478 = vpop.f32.mrf.mxu0
      %4479 = vmatprep.mubr.bf16.mxu0 0
      %4480 = vmatmul.mubr.bf16.gmra.mxu0 %v1663
      %v4481 = vpop.f32.mrf.mxu0
      %v4482 = vadd.f32 0.0, %v4481
      %v4483 = vpop.f32.mrf.mxu0
      %v4484 = vpop.f32.mrf.mxu0
      %v4485 = vadd.f32 0.0, %v4484
      %v4486 = vpop.f32.mrf.mxu0
      %4487 = vmatprep.mubr.bf16.mxu0 0
      %4488 = vmatmul.mubr.bf16.gmra.mxu0 %v1671
      %v4489 = vpop.f32.mrf.mxu0
      %v4490 = vpop.f32.mrf.mxu0
      %v4491 = vpop.f32.mrf.mxu0
      %v4492 = vadd.f32 0.0, %v4491
      %v4493 = vpop.f32.mrf.mxu0
      %4494 = vmatprep.mubr.bf16.mxu0 0
      %4495 = vmatmul.mubr.bf16.gmra.mxu0 %v1679
      %v4496 = vpop.f32.mrf.mxu0
      %v4497 = vadd.f32 0.0, %v4496
      %v4498 = vpop.f32.mrf.mxu0
      %v4499 = vpop.f32.mrf.mxu0
      %v4500 = vpop.f32.mrf.mxu0
      %4501 = vmatprep.mubr.bf16.mxu0 0
      %4502 = vmatmul.mubr.bf16.gmra.mxu0 %v1687
      %v4503 = vpop.f32.mrf.mxu0
      %v4504 = vadd.f32 0.0, %v4503
      %v4505 = vpop.f32.mrf.mxu0
      %v4506 = vpop.f32.mrf.mxu0
      %v4507 = vadd.f32 0.0, %v4506
      %v4508 = vpop.f32.mrf.mxu0
      %4509 = vmatprep.mubr.bf16.mxu0 0
      %4510 = vmatmul.mubr.bf16.gmra.mxu0 %v1695
      %v4511 = vpop.f32.mrf.mxu0
      %v4512 = vpop.f32.mrf.mxu0
      %v4513 = vpop.f32.mrf.mxu0
      %v4514 = vadd.f32 0.0, %v4513
      %v4515 = vpop.f32.mrf.mxu0
      %4516 = vmatprep.mubr.bf16.mxu0 0
      %4517 = vmatmul.mubr.bf16.gmra.mxu0 %v1703
      %v4518 = vpop.f32.mrf.mxu0
      %v4519 = vadd.f32 0.0, %v4518
      %v4520 = vpop.f32.mrf.mxu0
      %v4521 = vpop.f32.mrf.mxu0
      %v4522 = vpop.f32.mrf.mxu0
      %4523 = vmatprep.mubr.bf16.mxu0 0
      %4524 = vmatmul.mubr.bf16.gmra.mxu0 %v1711
      %v4525 = vpop.f32.mrf.mxu0
      %v4526 = vadd.f32 0.0, %v4525
      %v4527 = vpop.f32.mrf.mxu0
      %v4528 = vpop.f32.mrf.mxu0
      %v4529 = vadd.f32 0.0, %v4528
      %v4530 = vpop.f32.mrf.mxu0
      %4531 = vmatprep.mubr.bf16.mxu0 0
      %4532 = vmatmul.mubr.bf16.gmra.mxu0 %v1719
      %v4533 = vpop.f32.mrf.mxu0
      %v4534 = vpop.f32.mrf.mxu0
      %v4535 = vpop.f32.mrf.mxu0
      %v4536 = vadd.f32 0.0, %v4535
      %v4537 = vpop.f32.mrf.mxu0
      %4538 = vmatprep.mubr.bf16.mxu0 0
      %4539 = vmatmul.mubr.bf16.gmra.mxu0 %v1727
      %v4540 = vpop.f32.mrf.mxu0
      %v4541 = vadd.f32 0.0, %v4540
      %v4542 = vpop.f32.mrf.mxu0
      %v4543 = vpop.f32.mrf.mxu0
      %v4544 = vpop.f32.mrf.mxu0
      %4545 = vmatprep.mubr.bf16.mxu0 0
      %4546 = vmatmul.mubr.bf16.gmra.mxu0 %v1735
      %v4547 = vpop.f32.mrf.mxu0
      %v4548 = vadd.f32 0.0, %v4547
      %v4549 = vpop.f32.mrf.mxu0
      %v4550 = vpop.f32.mrf.mxu0
      %v4551 = vadd.f32 0.0, %v4550
      %v4552 = vpop.f32.mrf.mxu0
      %4553 = vmatprep.mubr.bf16.mxu0 0
      %4554 = vmatmul.mubr.bf16.gmra.mxu0 %v1743
      %v4555 = vpop.f32.mrf.mxu0
      %v4556 = vpop.f32.mrf.mxu0
      %v4557 = vpop.f32.mrf.mxu0
      %v4558 = vadd.f32 0.0, %v4557
      %v4559 = vpop.f32.mrf.mxu0
      %4560 = vmatprep.mubr.bf16.mxu0 0
      %4561 = vmatmul.mubr.bf16.gmra.mxu0 %v1751
      %v4562 = vpop.f32.mrf.mxu0
      %v4563 = vadd.f32 0.0, %v4562
      %v4564 = vpop.f32.mrf.mxu0
      %v4565 = vpop.f32.mrf.mxu0
      %v4566 = vpop.f32.mrf.mxu0
      %4567 = vmatprep.mubr.bf16.mxu0 0
      %4568 = vmatmul.mubr.bf16.gmra.mxu0 %v1759
      %v4569 = vpop.f32.mrf.mxu0
      %v4570 = vadd.f32 0.0, %v4569
      %v4571 = vpop.f32.mrf.mxu0
      %v4572 = vpop.f32.mrf.mxu0
      %v4573 = vadd.f32 0.0, %v4572
      %v4574 = vpop.f32.mrf.mxu0
      %4575 = vmatprep.mubr.bf16.mxu0 0
      %4576 = vmatmul.mubr.bf16.gmra.mxu0 %v1767
      %v4577 = vpop.f32.mrf.mxu0
      %v4578 = vpop.f32.mrf.mxu0
      %v4579 = vpop.f32.mrf.mxu0
      %v4580 = vadd.f32 0.0, %v4579
      %v4581 = vpop.f32.mrf.mxu0
      %4582 = vmatprep.mubr.bf16.mxu0 0
      %4583 = vmatmul.mubr.bf16.gmra.mxu0 %v1775
      %v4584 = vpop.f32.mrf.mxu0
      %v4585 = vadd.f32 0.0, %v4584
      %v4586 = vpop.f32.mrf.mxu0
      %v4587 = vpop.f32.mrf.mxu0
      %v4588 = vpop.f32.mrf.mxu0
      %4589 = vmatprep.mubr.bf16.mxu0 0
      %4590 = vmatmul.mubr.bf16.gmra.mxu0 %v1783
      %v4591 = vpop.f32.mrf.mxu0
      %v4592 = vadd.f32 0.0, %v4591
      %v4593 = vpop.f32.mrf.mxu0
      %v4594 = vpop.f32.mrf.mxu0
      %v4595 = vadd.f32 0.0, %v4594
      %v4596 = vpop.f32.mrf.mxu0
      %4597 = vmatprep.mubr.bf16.mxu0 0
      %4598 = vmatmul.mubr.bf16.gmra.mxu0 %v1791
      %v4599 = vpop.f32.mrf.mxu0
      %v4600 = vpop.f32.mrf.mxu0
      %v4601 = vpop.f32.mrf.mxu0
      %v4602 = vadd.f32 0.0, %v4601
      %v4603 = vpop.f32.mrf.mxu0
      %4604 = vmatprep.mubr.bf16.mxu0 0
      %4605 = vmatmul.mubr.bf16.gmra.mxu0 %v4348
      %v4606 = vpop.f32.mrf.mxu0
      %v4607 = vadd.f32 0.0, %v4606
      %v4608 = vpop.f32.mrf.mxu0
      %v4609 = vpop.f32.mrf.mxu0
      %v4610 = vpop.f32.mrf.mxu0
      %4611 = vmatprep.mubr.bf16.mxu0 0
      %4612 = vmatmul.mubr.bf16.gmra.mxu0 %v4356
      %v4613 = vpop.f32.mrf.mxu0
      %v4614 = vadd.f32 0.0, %v4613
      %v4615 = vpop.f32.mrf.mxu0
      %v4616 = vpop.f32.mrf.mxu0
      %v4617 = vadd.f32 0.0, %v4616
      %v4618 = vpop.f32.mrf.mxu0
      %4619 = vmatprep.mubr.bf16.mxu0 0
      %4620 = vmatmul.mubr.bf16.gmra.mxu0 %v4364
      %v4621 = vpop.f32.mrf.mxu0
      %v4622 = vpop.f32.mrf.mxu0
      %v4623 = vpop.f32.mrf.mxu0
      %v4624 = vadd.f32 0.0, %v4623
      %v4625 = vpop.f32.mrf.mxu0
      %4626 = vmatprep.mubr.bf16.mxu0 0
      %4627 = vmatmul.mubr.bf16.gmra.mxu0 %v4372
      %v4628 = vpop.f32.mrf.mxu0
      %v4629 = vadd.f32 0.0, %v4628
      %v4630 = vpop.f32.mrf.mxu0
      %v4631 = vpop.f32.mrf.mxu0
      %v4632 = vpop.f32.mrf.mxu0
      %4633 = vdwg.mxu0
      %v4634 = vadd.f32 %v4292, %v4460
      %v4635 = vadd.f32 %v4293, %v4463
      %v4636 = vadd.f32 %v4294, %v4470
      %v4637 = vadd.f32 %v4295, %v4475
      %v4638 = vadd.f32 %v4296, %v4482
      %v4639 = vadd.f32 %v4297, %v4485
      %v4640 = vadd.f32 %v4298, %v4492
      %v4641 = vadd.f32 %v4299, %v4497
      %v4642 = vadd.f32 %v4300, %v4504
      %v4643 = vadd.f32 %v4301, %v4507
      %v4644 = vadd.f32 %v4302, %v4514
      %v4645 = vadd.f32 %v4303, %v4519
      %v4646 = vadd.f32 %v4304, %v4526
      %v4647 = vadd.f32 %v4305, %v4529
      %v4648 = vadd.f32 %v4306, %v4536
      %v4649 = vadd.f32 %v4307, %v4541
      %v4650 = vadd.f32 %v4308, %v4548
      %v4651 = vadd.f32 %v4309, %v4551
      %v4652 = vadd.f32 %v4310, %v4558
      %v4653 = vadd.f32 %v4311, %v4563
      %v4654 = vadd.f32 %v4312, %v4570
      %v4655 = vadd.f32 %v4313, %v4573
      %v4656 = vadd.f32 %v4314, %v4580
      %v4657 = vadd.f32 %v4315, %v4585
      %v4658 = vadd.f32 %v4316, %v4592
      %v4659 = vadd.f32 %v4317, %v4595
      %v4660 = vadd.f32 %v4318, %v4602
      %v4661 = vadd.f32 %v4319, %v4607
      %v4662 = vadd.f32 %v4320, %v4614
      %v4663 = vadd.f32 %v4321, %v4617
      %v4664 = vadd.f32 %v4322, %v4624
      %v4665 = vadd.f32 %v4323, %v4629
      %s4666 = scalar_lea.vmem %s5, 512
      %v4667 = vld [vmem:[%s4666] sm:$0xf]
      %v4668 = vld [vmem:[%s4666 + $0x4] sm:$0xf]
      %v4669 = vld [vmem:[%s4666 + $0x8] sm:$0xf]
      %v4670 = vld [vmem:[%s4666 + $0xc] sm:$0xf]
      %v4671 = vld [vmem:[%s4666 + $0x10] sm:$0xf]
      %v4672 = vld [vmem:[%s4666 + $0x14] sm:$0xf]
      %v4673 = vld [vmem:[%s4666 + $0x18] sm:$0xf]
      %v4674 = vld [vmem:[%s4666 + $0x1c] sm:$0xf]
      %v4675 = vld [vmem:[%s4666 + $0x20] sm:$0xf]
      %v4676 = vld [vmem:[%s4666 + $0x24] sm:$0xf]
      %v4677 = vld [vmem:[%s4666 + $0x28] sm:$0xf]
      %v4678 = vld [vmem:[%s4666 + $0x2c] sm:$0xf]
      %v4679 = vld [vmem:[%s4666 + $0x30] sm:$0xf]
      %v4680 = vld [vmem:[%s4666 + $0x34] sm:$0xf]
      %v4681 = vld [vmem:[%s4666 + $0x38] sm:$0xf]
      %v4682 = vld [vmem:[%s4666 + $0x3c] sm:$0xf]
      %v4683 = vrot.slane %v4029, 1
      %v4684 = vsel %vm2379, %v2425, %v4683
      %v4685 = vrot.slane %v4030, 1
      %v4686 = vsel %vm2379, %v4683, %v4685
      %v4687 = vrot.slane %v4031, 1
      %v4688 = vsel %vm2379, %v4685, %v4687
      %v4689 = vrot.slane %v4343, 1
      %v4690 = vsel %vm2379, %v4687, %v4689
      %v4711 = vunpack.c.l.b16 %v4667
      %v4712 = vunpack.c.l.b16 %v4668
      %v4713 = vunpack.c.l.b16 %v4669
      %v4714 = vunpack.c.l.b16 %v4670
      %v4715 = vunpack.c.l.b16 %v4671
      %v4716 = vunpack.c.l.b16 %v4672
      %v4717 = vunpack.c.l.b16 %v4673
      %v4718 = vunpack.c.l.b16 %v4674
      %v4719 = vunpack.c.l.b16 %v4675
      %v4720 = vunpack.c.l.b16 %v4676
      %v4721 = vunpack.c.l.b16 %v4677
      %v4722 = vunpack.c.l.b16 %v4678
      %v4723 = vunpack.c.l.b16 %v4679
      %v4724 = vunpack.c.l.b16 %v4680
      %v4725 = vunpack.c.l.b16 %v4681
      %v4726 = vunpack.c.l.b16 %v4682
      %v4727 = vpack.c.b16 %v4712, %v4711
      %v4728 = vpack.c.b16 %v4714, %v4713
      %v4729 = vpack.c.b16 %v4716, %v4715
      %v4730 = vpack.c.b16 %v4718, %v4717
      %v4731 = vpack.c.b16 %v4720, %v4719
      %v4732 = vpack.c.b16 %v4722, %v4721
      %v4733 = vpack.c.b16 %v4724, %v4723
      %v4734 = vpack.c.b16 %v4726, %v4725
      %4743 = vmatprep.subr.bf16.mxu0 0
      %4744 = vmatpush1.bf16.msra.mxu0 %v4734
      %4745 = vmatprep.subr.bf16.mxu0 0
      %4746 = vmatpush1.bf16.msra.mxu0 %v4733
      %4747 = vmatprep.subr.bf16.mxu0 0
      %4748 = vmatpush1.bf16.msra.mxu0 %v4732
      %4749 = vmatprep.subr.bf16.mxu0 0
      %4750 = vmatpush1.bf16.msra.mxu0 %v4731
      %4751 = vmatprep.subr.bf16.mxu0 0
      %4752 = vmatpush1.bf16.msra.mxu0 %v4730
      %4753 = vmatprep.subr.bf16.mxu0 0
      %4754 = vmatpush1.bf16.msra.mxu0 %v4729
      %4755 = vmatprep.subr.bf16.mxu0 0
      %4756 = vmatpush1.bf16.msra.mxu0 %v4728
      %4757 = vmatprep.subr.bf16.mxu0 0
      %4758 = vmatpush1.bf16.msra.mxu0 %v4727
      %4759 = vmatprep.subr.bf16.mxu0 0
      %4760 = vmatpush2.bf16.msra.mxu0 0
      %4761 = vmatprep.subr.bf16.mxu0 0
      %4762 = vmatpush2.bf16.msra.mxu0 0
      %4763 = vmatprep.subr.bf16.mxu0 0
      %4764 = vmatpush2.bf16.msra.mxu0 0
      %4765 = vmatprep.subr.bf16.mxu0 0
      %4766 = vmatpush2.bf16.msra.mxu0 0
      %4767 = vmatprep.subr.bf16.mxu0 0
      %4768 = vmatpush2.bf16.msra.mxu0 0
      %4769 = vmatprep.subr.bf16.mxu0 0
      %4770 = vmatpush2.bf16.msra.mxu0 0
      %4771 = vmatprep.subr.bf16.mxu0 0
      %4772 = vmatpush2.bf16.msra.mxu0 0
      %4773 = vmatprep.subr.bf16.mxu0 0
      %4774 = vmatpush2.bf16.msra.mxu0 0
      %4775 = vmatprep.mubr.bf16.mxu0 0
      %4776 = vmatmul.mubr.bf16.gmra.mxu0 %v2388
      %v4777 = vpop.f32.mrf.mxu0
      %v4778 = vadd.f32 0.0, %v4777
      %v4779 = vpop.f32.mrf.mxu0
      %v4780 = vpop.f32.mrf.mxu0
      %v4781 = vadd.f32 0.0, %v4780
      %v4782 = vpop.f32.mrf.mxu0
      %4783 = vmatprep.mubr.bf16.mxu0 0
      %4784 = vmatmul.mubr.bf16.gmra.mxu0 %v2390
      %v4785 = vpop.f32.mrf.mxu0
      %v4786 = vpop.f32.mrf.mxu0
      %v4787 = vpop.f32.mrf.mxu0
      %v4788 = vadd.f32 0.0, %v4787
      %v4789 = vpop.f32.mrf.mxu0
      %4790 = vmatprep.mubr.bf16.mxu0 0
      %4791 = vmatmul.mubr.bf16.gmra.mxu0 %v2392
      %v4792 = vpop.f32.mrf.mxu0
      %v4793 = vadd.f32 0.0, %v4792
      %v4794 = vpop.f32.mrf.mxu0
      %v4795 = vpop.f32.mrf.mxu0
      %v4796 = vpop.f32.mrf.mxu0
      %4797 = vmatprep.mubr.bf16.mxu0 0
      %4798 = vmatmul.mubr.bf16.gmra.mxu0 %v2394
      %v4799 = vpop.f32.mrf.mxu0
      %v4800 = vadd.f32 0.0, %v4799
      %v4801 = vpop.f32.mrf.mxu0
      %v4802 = vpop.f32.mrf.mxu0
      %v4803 = vadd.f32 0.0, %v4802
      %v4804 = vpop.f32.mrf.mxu0
      %4805 = vmatprep.mubr.bf16.mxu0 0
      %4806 = vmatmul.mubr.bf16.gmra.mxu0 %v2396
      %v4807 = vpop.f32.mrf.mxu0
      %v4808 = vpop.f32.mrf.mxu0
      %v4809 = vpop.f32.mrf.mxu0
      %v4810 = vadd.f32 0.0, %v4809
      %v4811 = vpop.f32.mrf.mxu0
      %4812 = vmatprep.mubr.bf16.mxu0 0
      %4813 = vmatmul.mubr.bf16.gmra.mxu0 %v2398
      %v4814 = vpop.f32.mrf.mxu0
      %v4815 = vadd.f32 0.0, %v4814
      %v4816 = vpop.f32.mrf.mxu0
      %v4817 = vpop.f32.mrf.mxu0
      %v4818 = vpop.f32.mrf.mxu0
      %4819 = vmatprep.mubr.bf16.mxu0 0
      %4820 = vmatmul.mubr.bf16.gmra.mxu0 %v2400
      %v4821 = vpop.f32.mrf.mxu0
      %v4822 = vadd.f32 0.0, %v4821
      %v4823 = vpop.f32.mrf.mxu0
      %v4824 = vpop.f32.mrf.mxu0
      %v4825 = vadd.f32 0.0, %v4824
      %v4826 = vpop.f32.mrf.mxu0
      %4827 = vmatprep.mubr.bf16.mxu0 0
      %4828 = vmatmul.mubr.bf16.gmra.mxu0 %v2402
      %v4829 = vpop.f32.mrf.mxu0
      %v4830 = vpop.f32.mrf.mxu0
      %v4831 = vpop.f32.mrf.mxu0
      %v4832 = vadd.f32 0.0, %v4831
      %v4833 = vpop.f32.mrf.mxu0
      %4834 = vmatprep.mubr.bf16.mxu0 0
      %4835 = vmatmul.mubr.bf16.gmra.mxu0 %v2404
      %v4836 = vpop.f32.mrf.mxu0
      %v4837 = vadd.f32 0.0, %v4836
      %v4838 = vpop.f32.mrf.mxu0
      %v4839 = vpop.f32.mrf.mxu0
      %v4840 = vpop.f32.mrf.mxu0
      %4841 = vmatprep.mubr.bf16.mxu0 0
      %4842 = vmatmul.mubr.bf16.gmra.mxu0 %v2406
      %v4843 = vpop.f32.mrf.mxu0
      %v4844 = vadd.f32 0.0, %v4843
      %v4845 = vpop.f32.mrf.mxu0
      %v4846 = vpop.f32.mrf.mxu0
      %v4847 = vadd.f32 0.0, %v4846
      %v4848 = vpop.f32.mrf.mxu0
      %4849 = vmatprep.mubr.bf16.mxu0 0
      %4850 = vmatmul.mubr.bf16.gmra.mxu0 %v2408
      %v4851 = vpop.f32.mrf.mxu0
      %v4852 = vpop.f32.mrf.mxu0
      %v4853 = vpop.f32.mrf.mxu0
      %v4854 = vadd.f32 0.0, %v4853
      %v4855 = vpop.f32.mrf.mxu0
      %4856 = vmatprep.mubr.bf16.mxu0 0
      %4857 = vmatmul.mubr.bf16.gmra.mxu0 %v2410
      %v4858 = vpop.f32.mrf.mxu0
      %v4859 = vadd.f32 0.0, %v4858
      %v4860 = vpop.f32.mrf.mxu0
      %v4861 = vpop.f32.mrf.mxu0
      %v4862 = vpop.f32.mrf.mxu0
      %4863 = vmatprep.mubr.bf16.mxu0 0
      %4864 = vmatmul.mubr.bf16.gmra.mxu0 %v2412
      %v4865 = vpop.f32.mrf.mxu0
      %v4866 = vadd.f32 0.0, %v4865
      %v4867 = vpop.f32.mrf.mxu0
      %v4868 = vpop.f32.mrf.mxu0
      %v4869 = vadd.f32 0.0, %v4868
      %v4870 = vpop.f32.mrf.mxu0
      %4871 = vmatprep.mubr.bf16.mxu0 0
      %4872 = vmatmul.mubr.bf16.gmra.mxu0 %v2414
      %v4873 = vpop.f32.mrf.mxu0
      %v4874 = vpop.f32.mrf.mxu0
      %v4875 = vpop.f32.mrf.mxu0
      %v4876 = vadd.f32 0.0, %v4875
      %v4877 = vpop.f32.mrf.mxu0
      %4878 = vmatprep.mubr.bf16.mxu0 0
      %4879 = vmatmul.mubr.bf16.gmra.mxu0 %v2416
      %v4880 = vpop.f32.mrf.mxu0
      %v4881 = vadd.f32 0.0, %v4880
      %v4882 = vpop.f32.mrf.mxu0
      %v4883 = vpop.f32.mrf.mxu0
      %v4884 = vpop.f32.mrf.mxu0
      %4885 = vmatprep.mubr.bf16.mxu0 0
      %4886 = vmatmul.mubr.bf16.gmra.mxu0 %v2418
      %v4887 = vpop.f32.mrf.mxu0
      %v4888 = vadd.f32 0.0, %v4887
      %v4889 = vpop.f32.mrf.mxu0
      %v4890 = vpop.f32.mrf.mxu0
      %v4891 = vadd.f32 0.0, %v4890
      %v4892 = vpop.f32.mrf.mxu0
      %4893 = vmatprep.mubr.bf16.mxu0 0
      %4894 = vmatmul.mubr.bf16.gmra.mxu0 %v2420
      %v4895 = vpop.f32.mrf.mxu0
      %v4896 = vpop.f32.mrf.mxu0
      %v4897 = vpop.f32.mrf.mxu0
      %v4898 = vadd.f32 0.0, %v4897
      %v4899 = vpop.f32.mrf.mxu0
      %4900 = vmatprep.mubr.bf16.mxu0 0
      %4901 = vmatmul.mubr.bf16.gmra.mxu0 %v2422
      %v4902 = vpop.f32.mrf.mxu0
      %v4903 = vadd.f32 0.0, %v4902
      %v4904 = vpop.f32.mrf.mxu0
      %v4905 = vpop.f32.mrf.mxu0
      %v4906 = vpop.f32.mrf.mxu0
      %4907 = vmatprep.mubr.bf16.mxu0 0
      %4908 = vmatmul.mubr.bf16.gmra.mxu0 %v2424
      %v4909 = vpop.f32.mrf.mxu0
      %v4910 = vadd.f32 0.0, %v4909
      %v4911 = vpop.f32.mrf.mxu0
      %v4912 = vpop.f32.mrf.mxu0
      %v4913 = vadd.f32 0.0, %v4912
      %v4914 = vpop.f32.mrf.mxu0
      %4915 = vmatprep.mubr.bf16.mxu0 0
      %4916 = vmatmul.mubr.bf16.gmra.mxu0 %v2426
      %v4917 = vpop.f32.mrf.mxu0
      %v4918 = vpop.f32.mrf.mxu0
      %v4919 = vpop.f32.mrf.mxu0
      %v4920 = vadd.f32 0.0, %v4919
      %v4921 = vpop.f32.mrf.mxu0
      %4922 = vmatprep.mubr.bf16.mxu0 0
      %4923 = vmatmul.mubr.bf16.gmra.mxu0 %v4684
      %v4924 = vpop.f32.mrf.mxu0
      %v4925 = vadd.f32 0.0, %v4924
      %v4926 = vpop.f32.mrf.mxu0
      %v4927 = vpop.f32.mrf.mxu0
      %v4928 = vpop.f32.mrf.mxu0
      %4929 = vmatprep.mubr.bf16.mxu0 0
      %4930 = vmatmul.mubr.bf16.gmra.mxu0 %v4686
      %v4931 = vpop.f32.mrf.mxu0
      %v4932 = vadd.f32 0.0, %v4931
      %v4933 = vpop.f32.mrf.mxu0
      %v4934 = vpop.f32.mrf.mxu0
      %v4935 = vadd.f32 0.0, %v4934
      %v4936 = vpop.f32.mrf.mxu0
      %4937 = vmatprep.mubr.bf16.mxu0 0
      %4938 = vmatmul.mubr.bf16.gmra.mxu0 %v4688
      %v4939 = vpop.f32.mrf.mxu0
      %v4940 = vpop.f32.mrf.mxu0
      %v4941 = vpop.f32.mrf.mxu0
      %v4942 = vadd.f32 0.0, %v4941
      %v4943 = vpop.f32.mrf.mxu0
      %4944 = vmatprep.mubr.bf16.mxu0 0
      %4945 = vmatmul.mubr.bf16.gmra.mxu0 %v4690
      %v4946 = vpop.f32.mrf.mxu0
      %v4947 = vadd.f32 0.0, %v4946
      %v4948 = vpop.f32.mrf.mxu0
      %v4949 = vpop.f32.mrf.mxu0
      %v4950 = vpop.f32.mrf.mxu0
      %4951 = vdwg.mxu0
      %v4952 = vadd.f32 %v4634, %v4778
      %v4953 = vadd.f32 %v4635, %v4781
      %v4954 = vadd.f32 %v4636, %v4788
      %v4955 = vadd.f32 %v4637, %v4793
      %v4956 = vadd.f32 %v4638, %v4800
      %v4957 = vadd.f32 %v4639, %v4803
      %v4958 = vadd.f32 %v4640, %v4810
      %v4959 = vadd.f32 %v4641, %v4815
      %v4960 = vadd.f32 %v4642, %v4822
      %v4961 = vadd.f32 %v4643, %v4825
      %v4962 = vadd.f32 %v4644, %v4832
      %v4963 = vadd.f32 %v4645, %v4837
      %v4964 = vadd.f32 %v4646, %v4844
      %v4965 = vadd.f32 %v4647, %v4847
      %v4966 = vadd.f32 %v4648, %v4854
      %v4967 = vadd.f32 %v4649, %v4859
      %v4968 = vadd.f32 %v4650, %v4866
      %v4969 = vadd.f32 %v4651, %v4869
      %v4970 = vadd.f32 %v4652, %v4876
      %v4971 = vadd.f32 %v4653, %v4881
      %v4972 = vadd.f32 %v4654, %v4888
      %v4973 = vadd.f32 %v4655, %v4891
      %v4974 = vadd.f32 %v4656, %v4898
      %v4975 = vadd.f32 %v4657, %v4903
      %v4976 = vadd.f32 %v4658, %v4910
      %v4977 = vadd.f32 %v4659, %v4913
      %v4978 = vadd.f32 %v4660, %v4920
      %v4979 = vadd.f32 %v4661, %v4925
      %v4980 = vadd.f32 %v4662, %v4932
      %v4981 = vadd.f32 %v4663, %v4935
      %v4982 = vadd.f32 %v4664, %v4942
      %v4983 = vadd.f32 %v4665, %v4947
      %v4984 = vld [vmem:[%s6] sm:$0x1]
      %v4986 = vlaneseq
      %v4987 = vshrl.u32 %v4986, 7
      %v4988 = vsub.s32 0, %v4987
      %v4989 = vrot.slane %v4984, %v4988
      %v4991 = vadd.f32 %v4952, %v4989
      %v4992 = vadd.f32 %v4953, %v4989
      %v4993 = vadd.f32 %v4954, %v4989
      %v4994 = vadd.f32 %v4955, %v4989
      %v4995 = vadd.f32 %v4956, %v4989
      %v4996 = vadd.f32 %v4957, %v4989
      %v4997 = vadd.f32 %v4958, %v4989
      %v4998 = vadd.f32 %v4959, %v4989
      %v4999 = vadd.f32 %v4960, %v4989
      %v5000 = vadd.f32 %v4961, %v4989
      %v5001 = vadd.f32 %v4962, %v4989
      %v5002 = vadd.f32 %v4963, %v4989
      %v5003 = vadd.f32 %v4964, %v4989
      %v5004 = vadd.f32 %v4965, %v4989
      %v5005 = vadd.f32 %v4966, %v4989
      %v5006 = vadd.f32 %v4967, %v4989
      %v5007 = vadd.f32 %v4968, %v4989
      %v5008 = vadd.f32 %v4969, %v4989
      %v5009 = vadd.f32 %v4970, %v4989
      %v5010 = vadd.f32 %v4971, %v4989
      %v5011 = vadd.f32 %v4972, %v4989
      %v5012 = vadd.f32 %v4973, %v4989
      %v5013 = vadd.f32 %v4974, %v4989
      %v5014 = vadd.f32 %v4975, %v4989
      %v5015 = vadd.f32 %v4976, %v4989
      %v5016 = vadd.f32 %v4977, %v4989
      %v5017 = vadd.f32 %v4978, %v4989
      %v5018 = vadd.f32 %v4979, %v4989
      %v5019 = vadd.f32 %v4980, %v4989
      %v5020 = vadd.f32 %v4981, %v4989
      %v5021 = vadd.f32 %v4982, %v4989
      %v5022 = vadd.f32 %v4983, %v4989
      %v5023 = vadd.f32 %v4991, %v4992
      %v5024 = vadd.f32 %v5023, %v4993
      %v5025 = vadd.f32 %v5024, %v4994
      %v5026 = vadd.f32 %v5025, %v4995
      %v5027 = vadd.f32 %v5026, %v4996
      %v5028 = vadd.f32 %v5027, %v4997
      %v5029 = vadd.f32 %v5028, %v4998
      %v5030 = vadd.f32 %v5029, %v4999
      %v5031 = vadd.f32 %v5030, %v5000
      %v5032 = vadd.f32 %v5031, %v5001
      %v5033 = vadd.f32 %v5032, %v5002
      %v5034 = vadd.f32 %v5033, %v5003
      %v5035 = vadd.f32 %v5034, %v5004
      %v5036 = vadd.f32 %v5035, %v5005
      %v5037 = vadd.f32 %v5036, %v5006
      %v5038 = vadd.f32 %v5037, %v5007
      %v5039 = vadd.f32 %v5038, %v5008
      %v5040 = vadd.f32 %v5039, %v5009
      %v5041 = vadd.f32 %v5040, %v5010
      %v5042 = vadd.f32 %v5041, %v5011
      %v5043 = vadd.f32 %v5042, %v5012
      %v5044 = vadd.f32 %v5043, %v5013
      %v5045 = vadd.f32 %v5044, %v5014
      %v5046 = vadd.f32 %v5045, %v5015
      %v5047 = vadd.f32 %v5046, %v5016
      %v5048 = vadd.f32 %v5047, %v5017
      %v5049 = vadd.f32 %v5048, %v5018
      %v5050 = vadd.f32 %v5049, %v5019
      %v5051 = vadd.f32 %v5050, %v5020
      %v5052 = vadd.f32 %v5051, %v5021
      %v5053 = vadd.f32 %v5052, %v5022
      %v5054 = vrot.slane %v5053, 4
      %v5055 = vadd.f32 %v5053, %v5054
      %v5056 = vrot.slane %v5055, 2
      %v5057 = vadd.f32 %v5055, %v5056
      %v5058 = vrot.slane %v5057, 1
      %v5059 = vadd.f32 %v5057, %v5058
      %5060 = vst [vmem:[%s346] sm:$0x1] %v5059
      %v5061 = vmul.f32 %v4991, %v4991
      %v5062 = vmul.f32 %v4992, %v4992
      %v5063 = vmul.f32 %v4993, %v4993
      %v5064 = vmul.f32 %v4994, %v4994
      %v5065 = vmul.f32 %v4995, %v4995
      %v5066 = vmul.f32 %v4996, %v4996
      %v5067 = vmul.f32 %v4997, %v4997
      %v5068 = vmul.f32 %v4998, %v4998
      %v5069 = vmul.f32 %v4999, %v4999
      %v5070 = vmul.f32 %v5000, %v5000
      %v5071 = vmul.f32 %v5001, %v5001
      %v5072 = vmul.f32 %v5002, %v5002
      %v5073 = vmul.f32 %v5003, %v5003
      %v5074 = vmul.f32 %v5004, %v5004
      %v5075 = vmul.f32 %v5005, %v5005
      %v5076 = vmul.f32 %v5006, %v5006
      %v5077 = vmul.f32 %v5007, %v5007
      %v5078 = vmul.f32 %v5008, %v5008
      %v5079 = vmul.f32 %v5009, %v5009
      %v5080 = vmul.f32 %v5010, %v5010
      %v5081 = vmul.f32 %v5011, %v5011
      %v5082 = vmul.f32 %v5012, %v5012
      %v5083 = vmul.f32 %v5013, %v5013
      %v5084 = vmul.f32 %v5014, %v5014
      %v5085 = vmul.f32 %v5015, %v5015
      %v5086 = vmul.f32 %v5016, %v5016
      %v5087 = vmul.f32 %v5017, %v5017
      %v5088 = vmul.f32 %v5018, %v5018
      %v5089 = vmul.f32 %v5019, %v5019
      %v5090 = vmul.f32 %v5020, %v5020
      %v5091 = vmul.f32 %v5021, %v5021
      %v5092 = vmul.f32 %v5022, %v5022
      %v5093 = vadd.f32 %v5061, %v5062
      %v5094 = vadd.f32 %v5093, %v5063
      %v5095 = vadd.f32 %v5094, %v5064
      %v5096 = vadd.f32 %v5095, %v5065
      %v5097 = vadd.f32 %v5096, %v5066
      %v5098 = vadd.f32 %v5097, %v5067
      %v5099 = vadd.f32 %v5098, %v5068
      %v5100 = vadd.f32 %v5099, %v5069
      %v5101 = vadd.f32 %v5100, %v5070
      %v5102 = vadd.f32 %v5101, %v5071
      %v5103 = vadd.f32 %v5102, %v5072
      %v5104 = vadd.f32 %v5103, %v5073
      %v5105 = vadd.f32 %v5104, %v5074
      %v5106 = vadd.f32 %v5105, %v5075
      %v5107 = vadd.f32 %v5106, %v5076
      %v5108 = vadd.f32 %v5107, %v5077
      %v5109 = vadd.f32 %v5108, %v5078
      %v5110 = vadd.f32 %v5109, %v5079
      %v5111 = vadd.f32 %v5110, %v5080
      %v5112 = vadd.f32 %v5111, %v5081
      %v5113 = vadd.f32 %v5112, %v5082
      %v5114 = vadd.f32 %v5113, %v5083
      %v5115 = vadd.f32 %v5114, %v5084
      %v5116 = vadd.f32 %v5115, %v5085
      %v5117 = vadd.f32 %v5116, %v5086
      %v5118 = vadd.f32 %v5117, %v5087
      %v5119 = vadd.f32 %v5118, %v5088
      %v5120 = vadd.f32 %v5119, %v5089
      %v5121 = vadd.f32 %v5120, %v5090
      %v5122 = vadd.f32 %v5121, %v5091
      %v5123 = vadd.f32 %v5122, %v5092
      %v5124 = vrot.slane %v5123, 4
      %v5125 = vadd.f32 %v5123, %v5124
      %v5126 = vrot.slane %v5125, 2
      %v5127 = vadd.f32 %v5125, %v5126
      %v5128 = vrot.slane %v5127, 1
      %v5129 = vadd.f32 %v5127, %v5128
      %5130 = vst [vmem:[%s349] sm:$0x1] %v5129
      %v5131 = vpack.c.bf16 %v4992, %v4991
      %v5132 = vpack.c.bf16 %v4994, %v4993
      %v5133 = vpack.c.bf16 %v4996, %v4995
      %v5134 = vpack.c.bf16 %v4998, %v4997
      %v5135 = vpack.c.bf16 %v5000, %v4999
      %v5136 = vpack.c.bf16 %v5002, %v5001
      %v5137 = vpack.c.bf16 %v5004, %v5003
      %v5138 = vpack.c.bf16 %v5006, %v5005
      %v5139 = vpack.c.bf16 %v5008, %v5007
      %v5140 = vpack.c.bf16 %v5010, %v5009
      %v5141 = vpack.c.bf16 %v5012, %v5011
      %v5142 = vpack.c.bf16 %v5014, %v5013
      %v5143 = vpack.c.bf16 %v5016, %v5015
      %v5144 = vpack.c.bf16 %v5018, %v5017
      %v5145 = vpack.c.bf16 %v5020, %v5019
      %v5146 = vpack.c.bf16 %v5022, %v5021
      %v5163 = vunpack.c.l.b16 %v5131
      %v5164 = vunpack.c.h.b16 %v5131
      %v5165 = vunpack.c.l.b16 %v5132
      %v5166 = vunpack.c.h.b16 %v5132
      %v5167 = vunpack.c.l.b16 %v5133
      %v5168 = vunpack.c.h.b16 %v5133
      %v5169 = vunpack.c.l.b16 %v5134
      %v5170 = vunpack.c.h.b16 %v5134
      %v5171 = vunpack.c.l.b16 %v5135
      %v5172 = vunpack.c.h.b16 %v5135
      %v5173 = vunpack.c.l.b16 %v5136
      %v5174 = vunpack.c.h.b16 %v5136
      %v5175 = vunpack.c.l.b16 %v5137
      %v5176 = vunpack.c.h.b16 %v5137
      %v5177 = vunpack.c.l.b16 %v5138
      %v5178 = vunpack.c.h.b16 %v5138
      %v5179 = vunpack.c.l.b16 %v5139
      %v5180 = vunpack.c.h.b16 %v5139
      %v5181 = vunpack.c.l.b16 %v5140
      %v5182 = vunpack.c.h.b16 %v5140
      %v5183 = vunpack.c.l.b16 %v5141
      %v5184 = vunpack.c.h.b16 %v5141
      %v5185 = vunpack.c.l.b16 %v5142
      %v5186 = vunpack.c.h.b16 %v5142
      %v5187 = vunpack.c.l.b16 %v5143
      %v5188 = vunpack.c.h.b16 %v5143
      %v5189 = vunpack.c.l.b16 %v5144
      %v5190 = vunpack.c.h.b16 %v5144
      %v5191 = vunpack.c.l.b16 %v5145
      %v5192 = vunpack.c.h.b16 %v5145
      %v5193 = vunpack.c.l.b16 %v5146
      %v5194 = vunpack.c.h.b16 %v5146
      %v5195 = vpack.c.b16 %v5163, %v5163
      %v5196 = vpack.c.b16 %v5164, %v5164
      %v5197 = vpack.c.b16 %v5165, %v5165
      %v5198 = vpack.c.b16 %v5166, %v5166
      %v5199 = vpack.c.b16 %v5167, %v5167
      %v5200 = vpack.c.b16 %v5168, %v5168
      %v5201 = vpack.c.b16 %v5169, %v5169
      %v5202 = vpack.c.b16 %v5170, %v5170
      %v5203 = vpack.c.b16 %v5171, %v5171
      %v5204 = vpack.c.b16 %v5172, %v5172
      %v5205 = vpack.c.b16 %v5173, %v5173
      %v5206 = vpack.c.b16 %v5174, %v5174
      %v5207 = vpack.c.b16 %v5175, %v5175
      %v5208 = vpack.c.b16 %v5176, %v5176
      %v5209 = vpack.c.b16 %v5177, %v5177
      %v5210 = vpack.c.b16 %v5178, %v5178
      %v5211 = vpack.c.b16 %v5179, %v5179
      %v5212 = vpack.c.b16 %v5180, %v5180
      %v5213 = vpack.c.b16 %v5181, %v5181
      %v5214 = vpack.c.b16 %v5182, %v5182
      %v5215 = vpack.c.b16 %v5183, %v5183
      %v5216 = vpack.c.b16 %v5184, %v5184
      %v5217 = vpack.c.b16 %v5185, %v5185
      %v5218 = vpack.c.b16 %v5186, %v5186
      %v5219 = vpack.c.b16 %v5187, %v5187
      %v5220 = vpack.c.b16 %v5188, %v5188
      %v5221 = vpack.c.b16 %v5189, %v5189
      %v5222 = vpack.c.b16 %v5190, %v5190
      %v5223 = vpack.c.b16 %v5191, %v5191
      %v5224 = vpack.c.b16 %v5192, %v5192
      %v5225 = vpack.c.b16 %v5193, %v5193
      %v5226 = vpack.c.b16 %v5194, %v5194
      %5259 = vst [vmem:[%s343] sm:$0xf] %v5195
      %5260 = vst [vmem:[%s343 + $0x4] sm:$0xf] %v5196
      %5261 = vst [vmem:[%s343 + $0x8] sm:$0xf] %v5197
      %5262 = vst [vmem:[%s343 + $0xc] sm:$0xf] %v5198
      %5263 = vst [vmem:[%s343 + $0x10] sm:$0xf] %v5199
      %5264 = vst [vmem:[%s343 + $0x14] sm:$0xf] %v5200
      %5265 = vst [vmem:[%s343 + $0x18] sm:$0xf] %v5201
      %5266 = vst [vmem:[%s343 + $0x1c] sm:$0xf] %v5202
      %5267 = vst [vmem:[%s343 + $0x20] sm:$0xf] %v5203
      %5268 = vst [vmem:[%s343 + $0x24] sm:$0xf] %v5204
      %5269 = vst [vmem:[%s343 + $0x28] sm:$0xf] %v5205
      %5270 = vst [vmem:[%s343 + $0x2c] sm:$0xf] %v5206
      %5271 = vst [vmem:[%s343 + $0x30] sm:$0xf] %v5207
      %5272 = vst [vmem:[%s343 + $0x34] sm:$0xf] %v5208
      %5273 = vst [vmem:[%s343 + $0x38] sm:$0xf] %v5209
      %5274 = vst [vmem:[%s343 + $0x3c] sm:$0xf] %v5210
      %5275 = vst [vmem:[%s343 + $0x40] sm:$0xf] %v5211
      %5276 = vst [vmem:[%s343 + $0x44] sm:$0xf] %v5212
      %5277 = vst [vmem:[%s343 + $0x48] sm:$0xf] %v5213
      %5278 = vst [vmem:[%s343 + $0x4c] sm:$0xf] %v5214
      %5279 = vst [vmem:[%s343 + $0x50] sm:$0xf] %v5215
      %5280 = vst [vmem:[%s343 + $0x54] sm:$0xf] %v5216
      %5281 = vst [vmem:[%s343 + $0x58] sm:$0xf] %v5217
      %5282 = vst [vmem:[%s343 + $0x5c] sm:$0xf] %v5218
      %5283 = vst [vmem:[%s343 + $0x60] sm:$0xf] %v5219
      %5284 = vst [vmem:[%s343 + $0x64] sm:$0xf] %v5220
      %5285 = vst [vmem:[%s343 + $0x68] sm:$0xf] %v5221
      %5286 = vst [vmem:[%s343 + $0x6c] sm:$0xf] %v5222
      %5287 = vst [vmem:[%s343 + $0x70] sm:$0xf] %v5223
      %5288 = vst [vmem:[%s343 + $0x74] sm:$0xf] %v5224
      %5289 = vst [vmem:[%s343 + $0x78] sm:$0xf] %v5225
      %5290 = vst [vmem:[%s343 + $0x7c] sm:$0xf] %v5226
      %p5291 = scmp.lt.s32.totalorder %s21, 1
      %s5292 = scalar_select %p5291, %s21, 1
      %s5293 = smul.addr %s5292, 32
      %s5294 = smul.addr %s5293, 4
      %s5295 = scalar_lea.vmem %s7, %s5294
      %p5296 = scmp.lt.s32.totalorder %s21, 1
      %s5297 = scalar_select %p5296, %s21, 1
      %s5298 = scalar_lea.vmem %s8, %s5297
      %p5299 = scmp.lt.s32.totalorder %s21, 1
      %s5300 = scalar_select %p5299, %s21, 1
      %s5301 = scalar_lea.vmem %s9, %s5300
      // Predicated region
      $region49: #{unet_down_forward.6} parent=47 // pred_check
        %p5302 = pneg %p191
      $region50: #{unet_down_forward.6} parent=47 // pred_check_branch
        %5304 = sbr.rel (%p5302) target = $region52
      $region51: #{unet_down_forward.6} parent=47 // pred_region
        _
      $region52: #{unet_down_forward.6} parent=47 // pred_fallthru
        _
      // Predicated region
      $region53: #{unet_down_forward.6} parent=47 // pred_check
        %p5305 = pneg %p217
      $region54: #{unet_down_forward.6} parent=47 // pred_check_branch
        %5307 = sbr.rel (%p5305) target = $region56
      $region55: #{unet_down_forward.6} parent=47 // pred_region
        _
      $region56: #{unet_down_forward.6} parent=47 // pred_fallthru
        _
      // Predicated region
      $region57: #{unet_down_forward.6} parent=47 // pred_check
        %p5308 = pneg %p243
      $region58: #{unet_down_forward.6} parent=47 // pred_check_branch
        %5310 = sbr.rel (%p5308) target = $region60
      $region59: #{unet_down_forward.6} parent=47 // pred_region
        _
      $region60: #{unet_down_forward.6} parent=47 // pred_fallthru
        _
    $region48: #{unet_down_forward.6} parent=5 // pred_fallthru
      _
    %p5311 = scmp.le.s32.totalorder 2, %s16
    // Predicated region
    $region61: #{unet_down_forward.6} parent=5 // pred_check
      %p5312 = pneg %p5311
    $region62: #{unet_down_forward.6} parent=5 // pred_check_branch
      %5314 = sbr.rel (%p5312) target = $region64
    $region63: #{unet_down_forward.6} parent=5 // pred_region
      %s5315 = ssub.s32 %s16, 2
      // Predicated region
      $region65: #{unet_down_forward.6} parent=63 // pred_check
        %p5316 = pneg %p197
      $region66: #{unet_down_forward.6} parent=63 // pred_check_branch
        %5318 = sbr.rel (%p5316) target = $region68
      $region67: #{unet_down_forward.6} parent=63 // pred_region
        %p5319 = scmp.lt.s32.totalorder %s22, 1
        %s5320 = scalar_select %p5319, %s22, 1
        %s5321 = smul.addr %s5320, 32
        %s5322 = smul.addr %s5321, 4
        %s5323 = scalar_lea.vmem %s7, %s5322
      $region68: #{unet_down_forward.6} parent=63 // pred_fallthru
        _
      // Predicated region
      $region69: #{unet_down_forward.6} parent=63 // pred_check
        %p5324 = pneg %p223
      $region70: #{unet_down_forward.6} parent=63 // pred_check_branch
        %5326 = sbr.rel (%p5324) target = $region72
      $region71: #{unet_down_forward.6} parent=63 // pred_region
        %p5327 = scmp.lt.s32.totalorder %s22, 1
        %s5328 = scalar_select %p5327, %s22, 1
        %s5329 = scalar_lea.vmem %s8, %s5328
      $region72: #{unet_down_forward.6} parent=63 // pred_fallthru
        _
      // Predicated region
      $region73: #{unet_down_forward.6} parent=63 // pred_check
        %p5330 = pneg %p249
      $region74: #{unet_down_forward.6} parent=63 // pred_check_branch
        %5332 = sbr.rel (%p5330) target = $region76
      $region75: #{unet_down_forward.6} parent=63 // pred_region
        %p5333 = scmp.lt.s32.totalorder %s22, 1
        %s5334 = scalar_select %p5333, %s22, 1
        %s5335 = scalar_lea.vmem %s9, %s5334
      $region76: #{unet_down_forward.6} parent=63 // pred_fallthru
        _
    $region64: #{unet_down_forward.6} parent=5 // pred_fallthru
      _
  $region6: #{unet_down_forward.6} parent=0 // loop_footer
    %s20 = sadd.s32 1, %s16
  $region7: #{unet_down_forward.6} parent=0 // loop_footer_branch
    %15 = sbr.rel target = $region3
  $region8: #{unet_down_forward.6} parent=0 // loop_exit
    _

</llo_original>
